<compile_context>
chip_gen: v6e
topology: v6e:2x2x1
jax: 0.10.0
libtpu: 0.0.40
codegen_flags: <defaults>
</compile_context>

<pallas_src>
import jax
import jax.numpy as jnp
from jax.experimental import pallas as pl
from jax.experimental.pallas import tpu as pltpu

D_IN = 4096     # input features of tensor_1 / tensor_2
D_H1 = 784      # output of the two parallel branches (logical)
D_H1P = 896     # 784 padded up to 7*128 for lane-dense layout
D_H2 = 256      # hidden of the head
D_OUT = 1       # final score
TK = 2048       # reduction tile over the 4096-wide contraction (2 steps)


def branch_kernel(t_ref, w_ref, b_ref, h_ref, acc_ref):
    """ReLU(x @ W + b) for one branch, K-pipelined (P1 + P3 accumulator)."""
    k = pl.program_id(1)

    @pl.when(k == 0)
    def _():
        acc_ref[...] = jnp.zeros_like(acc_ref)

    # bf16 operands, f32 accumulation on the MXU.
    acc_ref[...] += jnp.dot(t_ref[0], w_ref[0],
                            preferred_element_type=jnp.float32)

    @pl.when(k == pl.num_programs(1) - 1)
    def _():
        # Bias + ReLU in f32, store hidden activations as bf16 for the head
        # (Dropout = identity in eval mode).
        h_ref[0] = jnp.maximum(acc_ref[...] + b_ref[0], 0.0).astype(h_ref.dtype)


def head_kernel(h_ref, w3a_ref, w3b_ref, b3_ref, w4_ref, b4_ref, out_ref):
    """Head: concat fused as two matmuls, ReLU, then 256->1 on the VPU."""
    # cat(h1, h2) @ W3 == h1 @ W3[:784] + h2 @ W3[784:]  (padded rows are 0).
    h3 = (jnp.dot(h_ref[0], w3a_ref[...], preferred_element_type=jnp.float32)
          + jnp.dot(h_ref[1], w3b_ref[...], preferred_element_type=jnp.float32))
    h3 = jnp.maximum(h3 + b3_ref[...], 0.0)
    # Final Linear(256 -> 1) as a VPU multiply + lane reduction
    # (an N=1 MXU matmul would waste the systolic array).
    out_ref[...] = jnp.sum(h3 * w4_ref[...], axis=-1, keepdims=True) + b4_ref[...]


def prepare_params(params):
    """One-time weight prep: bf16 cast, pad 784->896, stack branches, split w3."""
    w1, b1, w2, b2, w3, b3, w4, b4 = params
    pad = D_H1P - D_H1

    w12 = jnp.stack([jnp.pad(w1, ((0, 0), (0, pad))),
                     jnp.pad(w2, ((0, 0), (0, pad)))]).astype(jnp.bfloat16)   # (2,4096,896)
    b12 = jnp.stack([jnp.pad(b1, ((0, 0), (0, pad))),
                     jnp.pad(b2, ((0, 0), (0, pad)))]).astype(jnp.float32)    # (2,1,896)

    w3a = jnp.pad(w3[:D_H1, :], ((0, pad), (0, 0))).astype(jnp.bfloat16)      # (896,256)
    w3b = jnp.pad(w3[D_H1:, :], ((0, pad), (0, 0))).astype(jnp.bfloat16)      # (896,256)
    b3p = b3.astype(jnp.float32)                                              # (1,256)

    w4row = w4.reshape(1, D_H2).astype(jnp.float32)                           # (1,256)
    b4p = b4.astype(jnp.float32)                                              # (1,1)
    return (w12, b12, w3a, w3b, b3p, w4row, b4p)


@jax.jit
def cwyxx_forward(tensor_1, tensor_2, prepared):
    """Full Cwyxx_Net forward: branch kernel (parallel x reduction) + head kernel."""
    (w12, b12, w3a, w3b, b3p, w4row, b4p) = prepared

    B = tensor_1.shape[0]
    b_pad = -(-B // 16) * 16                     # bf16 sublane quantum is 16
    t1 = jnp.pad(tensor_1.astype(jnp.bfloat16), ((0, b_pad - B), (0, 0)))
    t2 = jnp.pad(tensor_2.astype(jnp.bfloat16), ((0, b_pad - B), (0, 0)))
    t12 = jnp.stack([t1, t2])                    # (2, b_pad, 4096)

    kt = D_IN // TK                              # 2 K-steps per branch

    branch_flops = 2 * 2 * b_pad * D_IN * D_H1P
    branch_bytes = (2 * D_IN * D_H1P * 2         # bf16 branch weights
                    + 2 * b_pad * D_IN * 2       # bf16 inputs
                    + 2 * D_H1P * 4              # f32 biases
                    + 2 * b_pad * D_H1P * 2)     # bf16 hidden output

    h = pl.pallas_call(
        branch_kernel,
        out_shape=jax.ShapeDtypeStruct((2, b_pad, D_H1P), jnp.bfloat16),
        grid=(2, kt),
        in_specs=[
            pl.BlockSpec((1, b_pad, TK), lambda b, k: (b, 0, k)),    # inputs K-tile
            pl.BlockSpec((1, TK, D_H1P), lambda b, k: (b, k, 0)),    # weights K-tile
            pl.BlockSpec((1, 1, D_H1P), lambda b, k: (b, 0, 0)),     # bias (per branch)
        ],
        out_specs=pl.BlockSpec((1, b_pad, D_H1P), lambda b, k: (b, 0, 0)),
        scratch_shapes=[pltpu.VMEM((b_pad, D_H1P), jnp.float32)],
        compiler_params=pltpu.CompilerParams(
            dimension_semantics=("parallel", "arbitrary"),   # branch axis -> 2 TCs on v7x
            vmem_limit_bytes=32 << 20),
        cost_estimate=pl.CostEstimate(flops=branch_flops, transcendentals=0,
                                      bytes_accessed=branch_bytes),
    )(t12, w12, b12)

    head_flops = 2 * b_pad * (2 * D_H1P * D_H2 + D_H2)
    head_bytes = (2 * b_pad * D_H1P * 2 + 2 * D_H1P * D_H2 * 2
                  + (2 * D_H2 + 1) * 4 + b_pad * D_OUT * 4)

    out = pl.pallas_call(
        head_kernel,
        out_shape=jax.ShapeDtypeStruct((b_pad, D_OUT), jnp.float32),
        grid=(1,),
        in_specs=[
            pl.BlockSpec((2, b_pad, D_H1P), lambda i: (0, 0, 0)),    # stacked h1/h2
            pl.BlockSpec((D_H1P, D_H2), lambda i: (0, 0)),           # w3[:784]
            pl.BlockSpec((D_H1P, D_H2), lambda i: (0, 0)),           # w3[784:]
            pl.BlockSpec((1, D_H2), lambda i: (0, 0)),               # b3
            pl.BlockSpec((1, D_H2), lambda i: (0, 0)),               # w4 row
            pl.BlockSpec((1, 1), lambda i: (0, 0)),                  # b4
        ],
        out_specs=pl.BlockSpec((b_pad, D_OUT), lambda i: (0, 0)),
        compiler_params=pltpu.CompilerParams(vmem_limit_bytes=32 << 20),
        cost_estimate=pl.CostEstimate(flops=head_flops, transcendentals=0,
                                      bytes_accessed=head_bytes),
    )(h, w3a, w3b, b3p, w4row, b4p)

    return out[:B]


def init_params(key):
    """Deterministic init mimicking torch.nn.Linear (uniform +/- 1/sqrt(fan_in)).

    Weights stored as (in_features, out_features); biases as (1, out_features).
    """
    ks = jax.random.split(key, 8)

    def lin(kw, kb, fan_in, fan_out):
        bound = 1.0 / jnp.sqrt(fan_in)
        w = jax.random.uniform(kw, (fan_in, fan_out), jnp.float32, -bound, bound)
        b = jax.random.uniform(kb, (1, fan_out), jnp.float32, -bound, bound)
        return w, b

    w1, b1 = lin(ks[0], ks[1], D_IN, D_H1)        # tensor_1_process Linear
    w2, b2 = lin(ks[2], ks[3], D_IN, D_H1)        # tensor_2_process Linear
    w3, b3 = lin(ks[4], ks[5], 2 * D_H1, D_H2)    # total_tensor_process Linear 1
    w4, b4 = lin(ks[6], ks[7], D_H2, D_OUT)       # total_tensor_process Linear 2
    return (w1, b1, w2, b2, w3, b3, w4, b4)


def reference_forward_f32(tensor_1, tensor_2, params):
    """Plain-JAX f32 reference mirroring the PyTorch module (dropout = identity)."""
    w1, b1, w2, b2, w3, b3, w4, b4 = params
    h1 = jnp.maximum(tensor_1 @ w1 + b1, 0.0)
    h2 = jnp.maximum(tensor_2 @ w2 + b2, 0.0)
    cat = jnp.concatenate([h1, h2], axis=1)
    h3 = jnp.maximum(cat @ w3 + b3, 0.0)
    return h3 @ w4 + b4


def reference_forward_bf16(tensor_1, tensor_2, params):
    """Reference using the kernel's bf16-storage / f32-accumulate numerics."""
    w1, b1, w2, b2, w3, b3, w4, b4 = params
    bf, f32 = jnp.bfloat16, jnp.float32
    h1 = jnp.maximum(jnp.dot(tensor_1.astype(bf), w1.astype(bf),
                             preferred_element_type=f32) + b1, 0.0)
    h2 = jnp.maximum(jnp.dot(tensor_2.astype(bf), w2.astype(bf),
                             preferred_element_type=f32) + b2, 0.0)
    cat = jnp.concatenate([h1, h2], axis=1).astype(bf)
    h3 = jnp.maximum(jnp.dot(cat, w3.astype(bf),
                             preferred_element_type=f32) + b3, 0.0)
    return h3 @ w4 + b4


if __name__ == "__main__":
    key = jax.random.PRNGKey(0)
    k_in1, k_in2, k_par = jax.random.split(key, 3)

    B = 2
    tensor_1 = jax.random.normal(k_in1, (B, D_IN), jnp.float32)
    tensor_2 = jax.random.normal(k_in2, (B, D_IN), jnp.float32)
    params = init_params(k_par)
    prepared = prepare_params(params)           # one-time prep, off the call path

    score = cwyxx_forward(tensor_1, tensor_2, prepared)
    score = jax.block_until_ready(score)
    assert score.shape == (B, D_OUT)

    # Matches the bf16-mirrored reference tightly, and the f32 module loosely
    # (difference is the deliberate bf16 weight storage, not a kernel bug).
    ref_bf16 = reference_forward_bf16(tensor_1, tensor_2, params)
    ref_f32 = reference_forward_f32(tensor_1, tensor_2, params)
    assert jnp.allclose(score, ref_bf16, atol=5e-3, rtol=5e-3), (score, ref_bf16)
    assert jnp.allclose(score, ref_f32, atol=5e-2, rtol=5e-2), (score, ref_f32)

    print("KERNEL_OK")
</pallas_src>

<mosaic_0001>
module attributes {stable_mosaic.version = 11 : i64} {
  func.func @branch_kernel(%arg0: i32, %arg1: i32, %arg2: memref<1x16x2048xbf16, #tpu.memory_space<vmem>>, %arg3: memref<1x2048x896xbf16, #tpu.memory_space<vmem>>, %arg4: memref<1x1x896xf32, #tpu.memory_space<vmem>>, %arg5: memref<1x16x896xbf16, #tpu.memory_space<vmem>>, %arg6: memref<16x896xf32, #tpu.memory_space<vmem>>) attributes {dimension_semantics = [#tpu.dimension_semantics<parallel>, #tpu.dimension_semantics<arbitrary>], iteration_bounds = array<i64: 2, 2>, scalar_prefetch = 0 : i64, scratch_operands = 1 : i64, tpu.core_type = #tpu.core_type<tc>, window_params = [{transform_indices = @transform_0, window_bounds = array<i64: 1, 16, 2048>}, {transform_indices = @transform_1, window_bounds = array<i64: 1, 2048, 896>}, {transform_indices = @transform_2, window_bounds = array<i64: 1, 1, 896>}, {transform_indices = @transform_3, window_bounds = array<i64: 1, 16, 896>}]} {
    %c0_i32 = arith.constant 0 : i32
    %0 = arith.cmpi eq, %arg1, %c0_i32 : i32
    %1 = arith.extui %0 : i1 to i32
    %c0_i32_0 = arith.constant 0 : i32
    %2 = arith.cmpi ne, %1, %c0_i32_0 : i32
    scf.if %2 {
      %cst_11 = arith.constant 0.000000e+00 : f32
      %14 = vector.broadcast %cst_11 : f32 to vector<16x896xf32>
      %c0_12 = arith.constant 0 : index
      %c0_13 = arith.constant 0 : index
      %15 = vector.load %arg6[%c0_12, %c0_13] : memref<16x896xf32, #tpu.memory_space<vmem>>, vector<16x896xf32>
      tpu.vector_store %arg6[%c0_12, %c0_13], %14 {strides = array<i32>} : memref<16x896xf32, #tpu.memory_space<vmem>>, vector<16x896xf32>,
    } else {
    }
    %c0 = arith.constant 0 : index
    %c0_1 = arith.constant 0 : index
    %3 = vector.load %arg6[%c0, %c0_1] : memref<16x896xf32, #tpu.memory_space<vmem>>, vector<16x896xf32>
    %c0_2 = arith.constant 0 : index
    %c0_3 = arith.constant 0 : index
    %c0_4 = arith.constant 0 : index
    %4 = vector.load %arg2[%c0_2, %c0_3, %c0_4] : memref<1x16x2048xbf16, #tpu.memory_space<vmem>>, vector<1x16x2048xbf16>
    %5 = vector.shape_cast %4 : vector<1x16x2048xbf16> to vector<16x2048xbf16>
    %c0_5 = arith.constant 0 : index
    %c0_6 = arith.constant 0 : index
    %c0_7 = arith.constant 0 : index
    %6 = vector.load %arg3[%c0_5, %c0_6, %c0_7] : memref<1x2048x896xbf16, #tpu.memory_space<vmem>>, vector<1x2048x896xbf16>
    %7 = vector.shape_cast %6 : vector<1x2048x896xbf16> to vector<2048x896xbf16>
    %cst = arith.constant dense<0.000000e+00> : vector<16x896xf32>
    %8 = tpu.matmul %5, %7, %cst {dimension_numbers = #tpu.dot_dimension_numbers<[1], [0], [0], [1], [0, 0, 1, 1], [], []>} : vector<16x2048xbf16>, vector<2048x896xbf16>, vector<16x896xf32> -> vector<16x896xf32>
    %9 = arith.addf %3, %8 : vector<16x896xf32>
    %c0_8 = arith.constant 0 : index
    %c0_9 = arith.constant 0 : index
    %10 = vector.load %arg6[%c0_8, %c0_9] : memref<16x896xf32, #tpu.memory_space<vmem>>, vector<16x896xf32>
    tpu.vector_store %arg6[%c0_8, %c0_9], %9 {strides = array<i32>} : memref<16x896xf32, #tpu.memory_space<vmem>>, vector<16x896xf32>,
    %c1_i32 = arith.constant 1 : i32
    %11 = arith.cmpi eq, %arg1, %c1_i32 : i32
    %12 = arith.extui %11 : i1 to i32
    %c0_i32_10 = arith.constant 0 : i32
    %13 = arith.cmpi ne, %12, %c0_i32_10 : i32
    scf.if %13 {
      %c0_11 = arith.constant 0 : index
      %c0_12 = arith.constant 0 : index
      %14 = vector.load %arg6[%c0_11, %c0_12] : memref<16x896xf32, #tpu.memory_space<vmem>>, vector<16x896xf32>
      %c0_13 = arith.constant 0 : index
      %c0_14 = arith.constant 0 : index
      %c0_15 = arith.constant 0 : index
      %15 = vector.load %arg4[%c0_13, %c0_14, %c0_15] : memref<1x1x896xf32, #tpu.memory_space<vmem>>, vector<1x1x896xf32>
      %16 = vector.shape_cast %15 : vector<1x1x896xf32> to vector<1x896xf32>
      %17 = vector.broadcast %16 : vector<1x896xf32> to vector<16x896xf32>
      %18 = arith.addf %14, %17 : vector<16x896xf32>
      %cst_16 = arith.constant 0.000000e+00 : f32
      %19 = vector.broadcast %cst_16 : f32 to vector<16x896xf32>
      %20 = arith.maximumf %18, %19 : vector<16x896xf32>
      %21 = arith.truncf %20 : vector<16x896xf32> to vector<16x896xbf16>
      %c0_17 = arith.constant 0 : index
      %c0_18 = arith.constant 0 : index
      %c0_19 = arith.constant 0 : index
      %22 = vector.load %arg5[%c0_17, %c0_18, %c0_19] : memref<1x16x896xbf16, #tpu.memory_space<vmem>>, vector<1x16x896xbf16>
      %23 = vector.shape_cast %22 : vector<1x16x896xbf16> to vector<16x896xbf16>
      %24 = vector.shape_cast %21 : vector<16x896xbf16> to vector<1x16x896xbf16>
      tpu.vector_store %arg5[%c0_17, %c0_18, %c0_19], %24 {strides = array<i32>} : memref<1x16x896xbf16, #tpu.memory_space<vmem>>, vector<1x16x896xbf16>,
    } else {
    }
    return
  }
  func.func @transform_0(%arg0: i32, %arg1: i32) -> (i32, i32, i32) {
    %c0_i32 = arith.constant 0 : i32
    %c0_i32_0 = arith.constant 0 : i32
    return %arg0, %c0_i32, %arg1 : i32, i32, i32
  }
  func.func @transform_1(%arg0: i32, %arg1: i32) -> (i32, i32, i32) {
    %c0_i32 = arith.constant 0 : i32
    %c0_i32_0 = arith.constant 0 : i32
    return %arg0, %arg1, %c0_i32 : i32, i32, i32
  }
  func.func @transform_2(%arg0: i32, %arg1: i32) -> (i32, i32, i32) {
    %c0_i32 = arith.constant 0 : i32
    %c0_i32_0 = arith.constant 0 : i32
    %c0_i32_1 = arith.constant 0 : i32
    return %arg0, %c0_i32, %c0_i32_0 : i32, i32, i32
  }
  func.func @transform_3(%arg0: i32, %arg1: i32) -> (i32, i32, i32) {
    %c0_i32 = arith.constant 0 : i32
    %c0_i32_0 = arith.constant 0 : i32
    %c0_i32_1 = arith.constant 0 : i32
    return %arg0, %c0_i32, %c0_i32_0 : i32, i32, i32
  }
}

module attributes {stable_mosaic.version = 11 : i64} {
  func.func @head_kernel(%arg0: i32, %arg1: memref<2x16x896xbf16, #tpu.memory_space<vmem>>, %arg2: memref<896x256xbf16, #tpu.memory_space<vmem>>, %arg3: memref<896x256xbf16, #tpu.memory_space<vmem>>, %arg4: memref<1x256xf32, #tpu.memory_space<vmem>>, %arg5: memref<1x256xf32, #tpu.memory_space<vmem>>, %arg6: memref<1x1xf32, #tpu.memory_space<vmem>>, %arg7: memref<16x1xf32, #tpu.memory_space<vmem>>) attributes {dimension_semantics = [#tpu.dimension_semantics<arbitrary>], iteration_bounds = array<i64: 1>, scalar_prefetch = 0 : i64, scratch_operands = 0 : i64, tpu.core_type = #tpu.core_type<tc>, window_params = [{pipeline_mode = #tpu.pipeline_mode<synchronous>, transform_indices = @transform_0, window_bounds = array<i64: 2, 16, 896>}, {pipeline_mode = #tpu.pipeline_mode<synchronous>, transform_indices = @transform_1, window_bounds = array<i64: 896, 256>}, {pipeline_mode = #tpu.pipeline_mode<synchronous>, transform_indices = @transform_2, window_bounds = array<i64: 896, 256>}, {pipeline_mode = #tpu.pipeline_mode<synchronous>, transform_indices = @transform_3, window_bounds = array<i64: 1, 256>}, {pipeline_mode = #tpu.pipeline_mode<synchronous>, transform_indices = @transform_4, window_bounds = array<i64: 1, 256>}, {pipeline_mode = #tpu.pipeline_mode<synchronous>, transform_indices = @transform_5, window_bounds = array<i64: 1, 1>}, {pipeline_mode = #tpu.pipeline_mode<synchronous>, transform_indices = @transform_6, window_bounds = array<i64: 16, 1>}]} {
    %c0 = arith.constant 0 : index
    %c0_0 = arith.constant 0 : index
    %c0_1 = arith.constant 0 : index
    %0 = vector.load %arg1[%c0, %c0_0, %c0_1] : memref<2x16x896xbf16, #tpu.memory_space<vmem>>, vector<1x16x896xbf16>
    %1 = vector.shape_cast %0 : vector<1x16x896xbf16> to vector<16x896xbf16>
    %c0_2 = arith.constant 0 : index
    %c0_3 = arith.constant 0 : index
    %2 = vector.load %arg2[%c0_2, %c0_3] : memref<896x256xbf16, #tpu.memory_space<vmem>>, vector<896x256xbf16>
    %cst = arith.constant dense<0.000000e+00> : vector<16x256xf32>
    %3 = tpu.matmul %1, %2, %cst {dimension_numbers = #tpu.dot_dimension_numbers<[1], [0], [0], [1], [0, 0, 1, 1], [], []>} : vector<16x896xbf16>, vector<896x256xbf16>, vector<16x256xf32> -> vector<16x256xf32>
    %c1 = arith.constant 1 : index
    %c0_4 = arith.constant 0 : index
    %c0_5 = arith.constant 0 : index
    %4 = vector.load %arg1[%c1, %c0_4, %c0_5] : memref<2x16x896xbf16, #tpu.memory_space<vmem>>, vector<1x16x896xbf16>
    %5 = vector.shape_cast %4 : vector<1x16x896xbf16> to vector<16x896xbf16>
    %c0_6 = arith.constant 0 : index
    %c0_7 = arith.constant 0 : index
    %6 = vector.load %arg3[%c0_6, %c0_7] : memref<896x256xbf16, #tpu.memory_space<vmem>>, vector<896x256xbf16>
    %cst_8 = arith.constant dense<0.000000e+00> : vector<16x256xf32>
    %7 = tpu.matmul %5, %6, %cst_8 {dimension_numbers = #tpu.dot_dimension_numbers<[1], [0], [0], [1], [0, 0, 1, 1], [], []>} : vector<16x896xbf16>, vector<896x256xbf16>, vector<16x256xf32> -> vector<16x256xf32>
    %8 = arith.addf %3, %7 : vector<16x256xf32>
    %c0_9 = arith.constant 0 : index
    %c0_10 = arith.constant 0 : index
    %9 = vector.load %arg4[%c0_9, %c0_10] : memref<1x256xf32, #tpu.memory_space<vmem>>, vector<1x256xf32>
    %10 = vector.broadcast %9 : vector<1x256xf32> to vector<16x256xf32>
    %11 = arith.addf %8, %10 : vector<16x256xf32>
    %cst_11 = arith.constant 0.000000e+00 : f32
    %12 = vector.broadcast %cst_11 : f32 to vector<16x256xf32>
    %13 = arith.maximumf %11, %12 : vector<16x256xf32>
    %c0_12 = arith.constant 0 : index
    %c0_13 = arith.constant 0 : index
    %14 = vector.load %arg5[%c0_12, %c0_13] : memref<1x256xf32, #tpu.memory_space<vmem>>, vector<1x256xf32>
    %15 = vector.broadcast %14 : vector<1x256xf32> to vector<16x256xf32>
    %16 = arith.mulf %13, %15 : vector<16x256xf32>
    %cst_14 = arith.constant dense<0.000000e+00> : vector<16xf32>
    %17 = vector.multi_reduction <add>, %16, %cst_14 [1] : vector<16x256xf32> to vector<16xf32>
    %18 = vector.shape_cast %17 : vector<16xf32> to vector<16x1xf32>
    %c0_15 = arith.constant 0 : index
    %c0_16 = arith.constant 0 : index
    %19 = vector.load %arg6[%c0_15, %c0_16] : memref<1x1xf32, #tpu.memory_space<vmem>>, vector<1x1xf32>
    %20 = vector.broadcast %19 : vector<1x1xf32> to vector<16x1xf32>
    %21 = arith.addf %18, %20 : vector<16x1xf32>
    %c0_17 = arith.constant 0 : index
    %c0_18 = arith.constant 0 : index
    %22 = vector.load %arg7[%c0_17, %c0_18] : memref<16x1xf32, #tpu.memory_space<vmem>>, vector<16x1xf32>
    tpu.vector_store %arg7[%c0_17, %c0_18], %21 {strides = array<i32>} : memref<16x1xf32, #tpu.memory_space<vmem>>, vector<16x1xf32>,
    return
  }
  func.func @transform_0(%arg0: i32) -> (i32, i32, i32) {
    %c0_i32 = arith.constant 0 : i32
    %c0_i32_0 = arith.constant 0 : i32
    %c0_i32_1 = arith.constant 0 : i32
    %c0_i32_2 = arith.constant 0 : i32
    return %c0_i32, %c0_i32_0, %c0_i32_1 : i32, i32, i32
  }
  func.func @transform_1(%arg0: i32) -> (i32, i32) {
    %c0_i32 = arith.constant 0 : i32
    %c0_i32_0 = arith.constant 0 : i32
    %c0_i32_1 = arith.constant 0 : i32
    return %c0_i32, %c0_i32_0 : i32, i32
  }
  func.func @transform_2(%arg0: i32) -> (i32, i32) {
    %c0_i32 = arith.constant 0 : i32
    %c0_i32_0 = arith.constant 0 : i32
    %c0_i32_1 = arith.constant 0 : i32
    return %c0_i32, %c0_i32_0 : i32, i32
  }
  func.func @transform_3(%arg0: i32) -> (i32, i32) {
    %c0_i32 = arith.constant 0 : i32
    %c0_i32_0 = arith.constant 0 : i32
    %c0_i32_1 = arith.constant 0 : i32
    return %c0_i32, %c0_i32_0 : i32, i32
  }
  func.func @transform_4(%arg0: i32) -> (i32, i32) {
    %c0_i32 = arith.constant 0 : i32
    %c0_i32_0 = arith.constant 0 : i32
    %c0_i32_1 = arith.constant 0 : i32
    return %c0_i32, %c0_i32_0 : i32, i32
  }
  func.func @transform_5(%arg0: i32) -> (i32, i32) {
    %c0_i32 = arith.constant 0 : i32
    %c0_i32_0 = arith.constant 0 : i32
    %c0_i32_1 = arith.constant 0 : i32
    return %c0_i32, %c0_i32_0 : i32, i32
  }
  func.func @transform_6(%arg0: i32) -> (i32, i32) {
    %c0_i32 = arith.constant 0 : i32
    %c0_i32_0 = arith.constant 0 : i32
    %c0_i32_1 = arith.constant 0 : i32
    return %c0_i32, %c0_i32_0 : i32, i32
  }
}

</mosaic_0001>

<llo_original>
// kernel: cwyxx_forward.3
$region0: #{cwyxx_forward.3}
  #allocation0 [shape = 'u32[]', space=smem, size = 0x4, offset = 0x4, fixed_abs, tag = 'smem constant byte address 0x4 - core index']
  #allocation1 [shape = 'u32[144,128]{1,0:T(1,128)}', space=vmem, size = 0x12000, scoped, tag = 'internal scratch']
  #allocation2 [shape = 'f32[1,1]{1,0:T(1,128)S(1)}', space=vmem, size = 0x200, scoped, tag = 'scoped memory for cwyxx_forward.3']
  %s0 = inlined_call_operand.vmem [shape: bf16[2,16,896], index: 0, kind: input, shape index: {}]
  %s1 = inlined_call_operand.vmem [shape: bf16[896,256], index: 1, kind: input, shape index: {}]
  %s2 = inlined_call_operand.vmem [shape: bf16[896,256], index: 2, kind: input, shape index: {}]
  %s3 = inlined_call_operand.vmem [shape: f32[1,256], index: 3, kind: input, shape index: {}]
  %s4 = inlined_call_operand.vmem [shape: f32[1,256], index: 4, kind: input, shape index: {}]
  %s5 = inlined_call_operand.<no memory space> [shape: f32[1,1], index: 5, kind: input, shape index: {}]
  %s6 = inlined_call_operand.vmem [shape: f32[16,1], index: 6, kind: output, shape index: {}]
  %s7 = sld [smem:[#allocation0]]
  $region34: #{cwyxx_forward.3} parent=0
    _
  %s9 = ssub.s32 1, %s7
  %s10 = scalar_select 0, %s9, %s7
  %v11 = vstv %s5
  %12 = vst [vmem:[#allocation2] sm:$0x1] %v11
  // Predicated region
  $region2: #{cwyxx_forward.3} parent=0 // pred_check
    _
  $region3: #{cwyxx_forward.3} parent=0 // pred_check_branch
    %14 = sbr.rel (0) target = $region5
  $region4: #{cwyxx_forward.3} parent=0 // pred_region
    _
  $region5: #{cwyxx_forward.3} parent=0 // pred_fallthru
    _
  // Predicated region
  $region6: #{cwyxx_forward.3} parent=0 // pred_check
    _
  $region7: #{cwyxx_forward.3} parent=0 // pred_check_branch
    %16 = sbr.rel (0) target = $region9
  $region8: #{cwyxx_forward.3} parent=0 // pred_region
    _
  $region9: #{cwyxx_forward.3} parent=0 // pred_fallthru
    _
  // Predicated region
  $region10: #{cwyxx_forward.3} parent=0 // pred_check
    _
  $region11: #{cwyxx_forward.3} parent=0 // pred_check_branch
    %18 = sbr.rel (0) target = $region13
  $region12: #{cwyxx_forward.3} parent=0 // pred_region
    _
  $region13: #{cwyxx_forward.3} parent=0 // pred_fallthru
    _
  // Predicated region
  $region14: #{cwyxx_forward.3} parent=0 // pred_check
    _
  $region15: #{cwyxx_forward.3} parent=0 // pred_check_branch
    %20 = sbr.rel (0) target = $region17
  $region16: #{cwyxx_forward.3} parent=0 // pred_region
    _
  $region17: #{cwyxx_forward.3} parent=0 // pred_fallthru
    _
  // Predicated region
  $region18: #{cwyxx_forward.3} parent=0 // pred_check
    _
  $region19: #{cwyxx_forward.3} parent=0 // pred_check_branch
    %22 = sbr.rel (0) target = $region21
  $region20: #{cwyxx_forward.3} parent=0 // pred_region
    _
  $region21: #{cwyxx_forward.3} parent=0 // pred_fallthru
    _
  // Predicated region
  $region22: #{cwyxx_forward.3} parent=0 // pred_check
    _
  $region23: #{cwyxx_forward.3} parent=0 // pred_check_branch
    %24 = sbr.rel (0) target = $region25
  $region24: #{cwyxx_forward.3} parent=0 // pred_region
    _
  $region25: #{cwyxx_forward.3} parent=0 // pred_fallthru
    _
  %v26 = vld [vmem:[%s0] sm:$0xff]
  %v27 = vld [vmem:[%s0 + $0x8] sm:$0xff]
  %v28 = vld [vmem:[%s0 + $0x10] sm:$0xff]
  %v29 = vld [vmem:[%s0 + $0x18] sm:$0xf]
  %v30 = vld [vmem:[%s0 + $0x1c] sm:$0xff]
  %v31 = vld [vmem:[%s0 + $0x24] sm:$0xff]
  %v32 = vld [vmem:[%s0 + $0x2c] sm:$0xff]
  %v33 = vld [vmem:[%s0 + $0x34] sm:$0xf]
  %v34 = vld [vmem:[%s1] sm:$0xff]
  %v35 = vld [vmem:[%s1 + $0x8] sm:$0xff]
  %v36 = vld [vmem:[%s1 + $0x10] sm:$0xff]
  %v37 = vld [vmem:[%s1 + $0x18] sm:$0xff]
  %v38 = vld [vmem:[%s1 + $0x20] sm:$0xff]
  %v39 = vld [vmem:[%s1 + $0x28] sm:$0xff]
  %v40 = vld [vmem:[%s1 + $0x30] sm:$0xff]
  %v41 = vld [vmem:[%s1 + $0x38] sm:$0xff]
  %v42 = vld [vmem:[%s1 + $0x40] sm:$0xff]
  %v43 = vld [vmem:[%s1 + $0x48] sm:$0xff]
  %v44 = vld [vmem:[%s1 + $0x50] sm:$0xff]
  %v45 = vld [vmem:[%s1 + $0x58] sm:$0xff]
  %v46 = vld [vmem:[%s1 + $0x60] sm:$0xff]
  %v47 = vld [vmem:[%s1 + $0x68] sm:$0xff]
  %v48 = vld [vmem:[%s1 + $0x70] sm:$0xff]
  %v49 = vld [vmem:[%s1 + $0x78] sm:$0xff]
  %v50 = vld [vmem:[%s1 + $0x80] sm:$0xff]
  %v51 = vld [vmem:[%s1 + $0x88] sm:$0xff]
  %v52 = vld [vmem:[%s1 + $0x90] sm:$0xff]
  %v53 = vld [vmem:[%s1 + $0x98] sm:$0xff]
  %v54 = vld [vmem:[%s1 + $0xa0] sm:$0xff]
  %v55 = vld [vmem:[%s1 + $0xa8] sm:$0xff]
  %v56 = vld [vmem:[%s1 + $0xb0] sm:$0xff]
  %v57 = vld [vmem:[%s1 + $0xb8] sm:$0xff]
  %v58 = vld [vmem:[%s1 + $0xc0] sm:$0xff]
  %v59 = vld [vmem:[%s1 + $0xc8] sm:$0xff]
  %v60 = vld [vmem:[%s1 + $0xd0] sm:$0xff]
  %v61 = vld [vmem:[%s1 + $0xd8] sm:$0xff]
  %v62 = vld [vmem:[%s1 + $0xe0] sm:$0xff]
  %v63 = vld [vmem:[%s1 + $0xe8] sm:$0xff]
  %v64 = vld [vmem:[%s1 + $0xf0] sm:$0xff]
  %v65 = vld [vmem:[%s1 + $0xf8] sm:$0xff]
  %v66 = vld [vmem:[%s1 + $0x100] sm:$0xff]
  %v67 = vld [vmem:[%s1 + $0x108] sm:$0xff]
  %v68 = vld [vmem:[%s1 + $0x110] sm:$0xff]
  %v69 = vld [vmem:[%s1 + $0x118] sm:$0xff]
  %v70 = vld [vmem:[%s1 + $0x120] sm:$0xff]
  %v71 = vld [vmem:[%s1 + $0x128] sm:$0xff]
  %v72 = vld [vmem:[%s1 + $0x130] sm:$0xff]
  %v73 = vld [vmem:[%s1 + $0x138] sm:$0xff]
  %v74 = vld [vmem:[%s1 + $0x140] sm:$0xff]
  %v75 = vld [vmem:[%s1 + $0x148] sm:$0xff]
  %v76 = vld [vmem:[%s1 + $0x150] sm:$0xff]
  %v77 = vld [vmem:[%s1 + $0x158] sm:$0xff]
  %v78 = vld [vmem:[%s1 + $0x160] sm:$0xff]
  %v79 = vld [vmem:[%s1 + $0x168] sm:$0xff]
  %v80 = vld [vmem:[%s1 + $0x170] sm:$0xff]
  %v81 = vld [vmem:[%s1 + $0x178] sm:$0xff]
  %v82 = vld [vmem:[%s1 + $0x180] sm:$0xff]
  %v83 = vld [vmem:[%s1 + $0x188] sm:$0xff]
  %v84 = vld [vmem:[%s1 + $0x190] sm:$0xff]
  %v85 = vld [vmem:[%s1 + $0x198] sm:$0xff]
  %v86 = vld [vmem:[%s1 + $0x1a0] sm:$0xff]
  %v87 = vld [vmem:[%s1 + $0x1a8] sm:$0xff]
  %v88 = vld [vmem:[%s1 + $0x1b0] sm:$0xff]
  %v89 = vld [vmem:[%s1 + $0x1b8] sm:$0xff]
  %v90 = vld [vmem:[%s1 + $0x1c0] sm:$0xff]
  %v91 = vld [vmem:[%s1 + $0x1c8] sm:$0xff]
  %v92 = vld [vmem:[%s1 + $0x1d0] sm:$0xff]
  %v93 = vld [vmem:[%s1 + $0x1d8] sm:$0xff]
  %v94 = vld [vmem:[%s1 + $0x1e0] sm:$0xff]
  %v95 = vld [vmem:[%s1 + $0x1e8] sm:$0xff]
  %v96 = vld [vmem:[%s1 + $0x1f0] sm:$0xff]
  %v97 = vld [vmem:[%s1 + $0x1f8] sm:$0xff]
  %v98 = vld [vmem:[%s1 + $0x200] sm:$0xff]
  %v99 = vld [vmem:[%s1 + $0x208] sm:$0xff]
  %v100 = vld [vmem:[%s1 + $0x210] sm:$0xff]
  %v101 = vld [vmem:[%s1 + $0x218] sm:$0xff]
  %v102 = vld [vmem:[%s1 + $0x220] sm:$0xff]
  %v103 = vld [vmem:[%s1 + $0x228] sm:$0xff]
  %v104 = vld [vmem:[%s1 + $0x230] sm:$0xff]
  %v105 = vld [vmem:[%s1 + $0x238] sm:$0xff]
  %v106 = vld [vmem:[%s1 + $0x240] sm:$0xff]
  %v107 = vld [vmem:[%s1 + $0x248] sm:$0xff]
  %v108 = vld [vmem:[%s1 + $0x250] sm:$0xff]
  %v109 = vld [vmem:[%s1 + $0x258] sm:$0xff]
  %v110 = vld [vmem:[%s1 + $0x260] sm:$0xff]
  %v111 = vld [vmem:[%s1 + $0x268] sm:$0xff]
  %v112 = vld [vmem:[%s1 + $0x270] sm:$0xff]
  %v113 = vld [vmem:[%s1 + $0x278] sm:$0xff]
  %v114 = vld [vmem:[%s1 + $0x280] sm:$0xff]
  %v115 = vld [vmem:[%s1 + $0x288] sm:$0xff]
  %v116 = vld [vmem:[%s1 + $0x290] sm:$0xff]
  %v117 = vld [vmem:[%s1 + $0x298] sm:$0xff]
  %v118 = vld [vmem:[%s1 + $0x2a0] sm:$0xff]
  %v119 = vld [vmem:[%s1 + $0x2a8] sm:$0xff]
  %v120 = vld [vmem:[%s1 + $0x2b0] sm:$0xff]
  %v121 = vld [vmem:[%s1 + $0x2b8] sm:$0xff]
  %v122 = vld [vmem:[%s1 + $0x2c0] sm:$0xff]
  %v123 = vld [vmem:[%s1 + $0x2c8] sm:$0xff]
  %v124 = vld [vmem:[%s1 + $0x2d0] sm:$0xff]
  %v125 = vld [vmem:[%s1 + $0x2d8] sm:$0xff]
  %v126 = vld [vmem:[%s1 + $0x2e0] sm:$0xff]
  %v127 = vld [vmem:[%s1 + $0x2e8] sm:$0xff]
  %v128 = vld [vmem:[%s1 + $0x2f0] sm:$0xff]
  %v129 = vld [vmem:[%s1 + $0x2f8] sm:$0xff]
  %v130 = vld [vmem:[%s1 + $0x300] sm:$0xff]
  %v131 = vld [vmem:[%s1 + $0x308] sm:$0xff]
  %v132 = vld [vmem:[%s1 + $0x310] sm:$0xff]
  %v133 = vld [vmem:[%s1 + $0x318] sm:$0xff]
  %v134 = vld [vmem:[%s1 + $0x320] sm:$0xff]
  %v135 = vld [vmem:[%s1 + $0x328] sm:$0xff]
  %v136 = vld [vmem:[%s1 + $0x330] sm:$0xff]
  %v137 = vld [vmem:[%s1 + $0x338] sm:$0xff]
  %v138 = vld [vmem:[%s1 + $0x340] sm:$0xff]
  %v139 = vld [vmem:[%s1 + $0x348] sm:$0xff]
  %v140 = vld [vmem:[%s1 + $0x350] sm:$0xff]
  %v141 = vld [vmem:[%s1 + $0x358] sm:$0xff]
  %v142 = vld [vmem:[%s1 + $0x360] sm:$0xff]
  %v143 = vld [vmem:[%s1 + $0x368] sm:$0xff]
  %v144 = vld [vmem:[%s1 + $0x370] sm:$0xff]
  %v145 = vld [vmem:[%s1 + $0x378] sm:$0xff]
  %s146 = scalar_lea.vmem %s0, 56
  %v147 = vld [vmem:[%s146] sm:$0xff]
  %v148 = vld [vmem:[%s146 + $0x8] sm:$0xff]
  %v149 = vld [vmem:[%s146 + $0x10] sm:$0xff]
  %v150 = vld [vmem:[%s146 + $0x18] sm:$0xf]
  %v151 = vld [vmem:[%s146 + $0x1c] sm:$0xff]
  %v152 = vld [vmem:[%s146 + $0x24] sm:$0xff]
  %v153 = vld [vmem:[%s146 + $0x2c] sm:$0xff]
  %v154 = vld [vmem:[%s146 + $0x34] sm:$0xf]
  %v155 = vld [vmem:[%s2] sm:$0xff]
  %v156 = vld [vmem:[%s2 + $0x8] sm:$0xff]
  %v157 = vld [vmem:[%s2 + $0x10] sm:$0xff]
  %v158 = vld [vmem:[%s2 + $0x18] sm:$0xff]
  %v159 = vld [vmem:[%s2 + $0x20] sm:$0xff]
  %v160 = vld [vmem:[%s2 + $0x28] sm:$0xff]
  %v161 = vld [vmem:[%s2 + $0x30] sm:$0xff]
  %v162 = vld [vmem:[%s2 + $0x38] sm:$0xff]
  %v163 = vld [vmem:[%s2 + $0x40] sm:$0xff]
  %v164 = vld [vmem:[%s2 + $0x48] sm:$0xff]
  %v165 = vld [vmem:[%s2 + $0x50] sm:$0xff]
  %v166 = vld [vmem:[%s2 + $0x58] sm:$0xff]
  %v167 = vld [vmem:[%s2 + $0x60] sm:$0xff]
  %v168 = vld [vmem:[%s2 + $0x68] sm:$0xff]
  %v169 = vld [vmem:[%s2 + $0x70] sm:$0xff]
  %v170 = vld [vmem:[%s2 + $0x78] sm:$0xff]
  %v171 = vld [vmem:[%s2 + $0x80] sm:$0xff]
  %v172 = vld [vmem:[%s2 + $0x88] sm:$0xff]
  %v173 = vld [vmem:[%s2 + $0x90] sm:$0xff]
  %v174 = vld [vmem:[%s2 + $0x98] sm:$0xff]
  %v175 = vld [vmem:[%s2 + $0xa0] sm:$0xff]
  %v176 = vld [vmem:[%s2 + $0xa8] sm:$0xff]
  %v177 = vld [vmem:[%s2 + $0xb0] sm:$0xff]
  %v178 = vld [vmem:[%s2 + $0xb8] sm:$0xff]
  %v179 = vld [vmem:[%s2 + $0xc0] sm:$0xff]
  %v180 = vld [vmem:[%s2 + $0xc8] sm:$0xff]
  %v181 = vld [vmem:[%s2 + $0xd0] sm:$0xff]
  %v182 = vld [vmem:[%s2 + $0xd8] sm:$0xff]
  %v183 = vld [vmem:[%s2 + $0xe0] sm:$0xff]
  %v184 = vld [vmem:[%s2 + $0xe8] sm:$0xff]
  %v185 = vld [vmem:[%s2 + $0xf0] sm:$0xff]
  %v186 = vld [vmem:[%s2 + $0xf8] sm:$0xff]
  %v187 = vld [vmem:[%s2 + $0x100] sm:$0xff]
  %v188 = vld [vmem:[%s2 + $0x108] sm:$0xff]
  %v189 = vld [vmem:[%s2 + $0x110] sm:$0xff]
  %v190 = vld [vmem:[%s2 + $0x118] sm:$0xff]
  %v191 = vld [vmem:[%s2 + $0x120] sm:$0xff]
  %v192 = vld [vmem:[%s2 + $0x128] sm:$0xff]
  %v193 = vld [vmem:[%s2 + $0x130] sm:$0xff]
  %v194 = vld [vmem:[%s2 + $0x138] sm:$0xff]
  %v195 = vld [vmem:[%s2 + $0x140] sm:$0xff]
  %v196 = vld [vmem:[%s2 + $0x148] sm:$0xff]
  %v197 = vld [vmem:[%s2 + $0x150] sm:$0xff]
  %v198 = vld [vmem:[%s2 + $0x158] sm:$0xff]
  %v199 = vld [vmem:[%s2 + $0x160] sm:$0xff]
  %v200 = vld [vmem:[%s2 + $0x168] sm:$0xff]
  %v201 = vld [vmem:[%s2 + $0x170] sm:$0xff]
  %v202 = vld [vmem:[%s2 + $0x178] sm:$0xff]
  %v203 = vld [vmem:[%s2 + $0x180] sm:$0xff]
  %v204 = vld [vmem:[%s2 + $0x188] sm:$0xff]
  %v205 = vld [vmem:[%s2 + $0x190] sm:$0xff]
  %v206 = vld [vmem:[%s2 + $0x198] sm:$0xff]
  %v207 = vld [vmem:[%s2 + $0x1a0] sm:$0xff]
  %v208 = vld [vmem:[%s2 + $0x1a8] sm:$0xff]
  %v209 = vld [vmem:[%s2 + $0x1b0] sm:$0xff]
  %v210 = vld [vmem:[%s2 + $0x1b8] sm:$0xff]
  %v211 = vld [vmem:[%s2 + $0x1c0] sm:$0xff]
  %v212 = vld [vmem:[%s2 + $0x1c8] sm:$0xff]
  %v213 = vld [vmem:[%s2 + $0x1d0] sm:$0xff]
  %v214 = vld [vmem:[%s2 + $0x1d8] sm:$0xff]
  %v215 = vld [vmem:[%s2 + $0x1e0] sm:$0xff]
  %v216 = vld [vmem:[%s2 + $0x1e8] sm:$0xff]
  %v217 = vld [vmem:[%s2 + $0x1f0] sm:$0xff]
  %v218 = vld [vmem:[%s2 + $0x1f8] sm:$0xff]
  %v219 = vld [vmem:[%s2 + $0x200] sm:$0xff]
  %v220 = vld [vmem:[%s2 + $0x208] sm:$0xff]
  %v221 = vld [vmem:[%s2 + $0x210] sm:$0xff]
  %v222 = vld [vmem:[%s2 + $0x218] sm:$0xff]
  %v223 = vld [vmem:[%s2 + $0x220] sm:$0xff]
  %v224 = vld [vmem:[%s2 + $0x228] sm:$0xff]
  %v225 = vld [vmem:[%s2 + $0x230] sm:$0xff]
  %v226 = vld [vmem:[%s2 + $0x238] sm:$0xff]
  %v227 = vld [vmem:[%s2 + $0x240] sm:$0xff]
  %v228 = vld [vmem:[%s2 + $0x248] sm:$0xff]
  %v229 = vld [vmem:[%s2 + $0x250] sm:$0xff]
  %v230 = vld [vmem:[%s2 + $0x258] sm:$0xff]
  %v231 = vld [vmem:[%s2 + $0x260] sm:$0xff]
  %v232 = vld [vmem:[%s2 + $0x268] sm:$0xff]
  %v233 = vld [vmem:[%s2 + $0x270] sm:$0xff]
  %v234 = vld [vmem:[%s2 + $0x278] sm:$0xff]
  %v235 = vld [vmem:[%s2 + $0x280] sm:$0xff]
  %v236 = vld [vmem:[%s2 + $0x288] sm:$0xff]
  %v237 = vld [vmem:[%s2 + $0x290] sm:$0xff]
  %v238 = vld [vmem:[%s2 + $0x298] sm:$0xff]
  %v239 = vld [vmem:[%s2 + $0x2a0] sm:$0xff]
  %v240 = vld [vmem:[%s2 + $0x2a8] sm:$0xff]
  %v241 = vld [vmem:[%s2 + $0x2b0] sm:$0xff]
  %v242 = vld [vmem:[%s2 + $0x2b8] sm:$0xff]
  %v243 = vld [vmem:[%s2 + $0x2c0] sm:$0xff]
  %v244 = vld [vmem:[%s2 + $0x2c8] sm:$0xff]
  %v245 = vld [vmem:[%s2 + $0x2d0] sm:$0xff]
  %v246 = vld [vmem:[%s2 + $0x2d8] sm:$0xff]
  %v247 = vld [vmem:[%s2 + $0x2e0] sm:$0xff]
  %v248 = vld [vmem:[%s2 + $0x2e8] sm:$0xff]
  %v249 = vld [vmem:[%s2 + $0x2f0] sm:$0xff]
  %v250 = vld [vmem:[%s2 + $0x2f8] sm:$0xff]
  %v251 = vld [vmem:[%s2 + $0x300] sm:$0xff]
  %v252 = vld [vmem:[%s2 + $0x308] sm:$0xff]
  %v253 = vld [vmem:[%s2 + $0x310] sm:$0xff]
  %v254 = vld [vmem:[%s2 + $0x318] sm:$0xff]
  %v255 = vld [vmem:[%s2 + $0x320] sm:$0xff]
  %v256 = vld [vmem:[%s2 + $0x328] sm:$0xff]
  %v257 = vld [vmem:[%s2 + $0x330] sm:$0xff]
  %v258 = vld [vmem:[%s2 + $0x338] sm:$0xff]
  %v259 = vld [vmem:[%s2 + $0x340] sm:$0xff]
  %v260 = vld [vmem:[%s2 + $0x348] sm:$0xff]
  %v261 = vld [vmem:[%s2 + $0x350] sm:$0xff]
  %v262 = vld [vmem:[%s2 + $0x358] sm:$0xff]
  %v263 = vld [vmem:[%s2 + $0x360] sm:$0xff]
  %v264 = vld [vmem:[%s2 + $0x368] sm:$0xff]
  %v265 = vld [vmem:[%s2 + $0x370] sm:$0xff]
  %v266 = vld [vmem:[%s2 + $0x378] sm:$0xff]
  %v275 = vunpack.c.l.b16 %v147
  %v276 = vunpack.c.h.b16 %v147
  %v277 = vunpack.c.l.b16 %v148
  %v278 = vunpack.c.h.b16 %v148
  %v279 = vunpack.c.l.b16 %v149
  %v280 = vunpack.c.h.b16 %v149
  %v281 = vunpack.c.l.b16 %v150
  %v282 = vunpack.c.l.b16 %v151
  %v283 = vunpack.c.h.b16 %v151
  %v284 = vunpack.c.l.b16 %v152
  %v285 = vunpack.c.h.b16 %v152
  %v286 = vunpack.c.l.b16 %v153
  %v287 = vunpack.c.h.b16 %v153
  %v288 = vunpack.c.l.b16 %v154
  %v289 = vpack.c.b16 %v282, %v275
  %v290 = vpack.c.b16 %v283, %v276
  %v291 = vpack.c.b16 %v284, %v277
  %v292 = vpack.c.b16 %v285, %v278
  %v293 = vpack.c.b16 %v286, %v279
  %v294 = vpack.c.b16 %v287, %v280
  %v295 = vpack.c.b16 %v288, %v281
  %v415 = vunpack.c.l.b16 %v155
  %v416 = vunpack.c.h.b16 %v155
  %v417 = vunpack.c.l.b16 %v156
  %v418 = vunpack.c.h.b16 %v156
  %v419 = vunpack.c.l.b16 %v157
  %v420 = vunpack.c.h.b16 %v157
  %v421 = vunpack.c.l.b16 %v158
  %v422 = vunpack.c.h.b16 %v158
  %v423 = vunpack.c.l.b16 %v159
  %v424 = vunpack.c.h.b16 %v159
  %v425 = vunpack.c.l.b16 %v160
  %v426 = vunpack.c.h.b16 %v160
  %v427 = vunpack.c.l.b16 %v161
  %v428 = vunpack.c.h.b16 %v161
  %v429 = vunpack.c.l.b16 %v162
  %v430 = vunpack.c.h.b16 %v162
  %v431 = vunpack.c.l.b16 %v163
  %v432 = vunpack.c.h.b16 %v163
  %v433 = vunpack.c.l.b16 %v164
  %v434 = vunpack.c.h.b16 %v164
  %v435 = vunpack.c.l.b16 %v165
  %v436 = vunpack.c.h.b16 %v165
  %v437 = vunpack.c.l.b16 %v166
  %v438 = vunpack.c.h.b16 %v166
  %v439 = vunpack.c.l.b16 %v167
  %v440 = vunpack.c.h.b16 %v167
  %v441 = vunpack.c.l.b16 %v168
  %v442 = vunpack.c.h.b16 %v168
  %v443 = vunpack.c.l.b16 %v169
  %v444 = vunpack.c.h.b16 %v169
  %v445 = vunpack.c.l.b16 %v170
  %v446 = vunpack.c.h.b16 %v170
  %v447 = vunpack.c.l.b16 %v171
  %v448 = vunpack.c.h.b16 %v171
  %v449 = vunpack.c.l.b16 %v172
  %v450 = vunpack.c.h.b16 %v172
  %v451 = vunpack.c.l.b16 %v173
  %v452 = vunpack.c.h.b16 %v173
  %v453 = vunpack.c.l.b16 %v174
  %v454 = vunpack.c.h.b16 %v174
  %v455 = vunpack.c.l.b16 %v175
  %v456 = vunpack.c.h.b16 %v175
  %v457 = vunpack.c.l.b16 %v176
  %v458 = vunpack.c.h.b16 %v176
  %v459 = vunpack.c.l.b16 %v177
  %v460 = vunpack.c.h.b16 %v177
  %v461 = vunpack.c.l.b16 %v178
  %v462 = vunpack.c.h.b16 %v178
  %v463 = vunpack.c.l.b16 %v179
  %v464 = vunpack.c.h.b16 %v179
  %v465 = vunpack.c.l.b16 %v180
  %v466 = vunpack.c.h.b16 %v180
  %v467 = vunpack.c.l.b16 %v181
  %v468 = vunpack.c.h.b16 %v181
  %v469 = vunpack.c.l.b16 %v182
  %v470 = vunpack.c.h.b16 %v182
  %v471 = vunpack.c.l.b16 %v183
  %v472 = vunpack.c.h.b16 %v183
  %v473 = vunpack.c.l.b16 %v184
  %v474 = vunpack.c.h.b16 %v184
  %v475 = vunpack.c.l.b16 %v185
  %v476 = vunpack.c.h.b16 %v185
  %v477 = vunpack.c.l.b16 %v186
  %v478 = vunpack.c.h.b16 %v186
  %v479 = vunpack.c.l.b16 %v187
  %v480 = vunpack.c.h.b16 %v187
  %v481 = vunpack.c.l.b16 %v188
  %v482 = vunpack.c.h.b16 %v188
  %v483 = vunpack.c.l.b16 %v189
  %v484 = vunpack.c.h.b16 %v189
  %v485 = vunpack.c.l.b16 %v190
  %v486 = vunpack.c.h.b16 %v190
  %v487 = vunpack.c.l.b16 %v191
  %v488 = vunpack.c.h.b16 %v191
  %v489 = vunpack.c.l.b16 %v192
  %v490 = vunpack.c.h.b16 %v192
  %v491 = vunpack.c.l.b16 %v193
  %v492 = vunpack.c.h.b16 %v193
  %v493 = vunpack.c.l.b16 %v194
  %v494 = vunpack.c.h.b16 %v194
  %v495 = vunpack.c.l.b16 %v195
  %v496 = vunpack.c.h.b16 %v195
  %v497 = vunpack.c.l.b16 %v196
  %v498 = vunpack.c.h.b16 %v196
  %v499 = vunpack.c.l.b16 %v197
  %v500 = vunpack.c.h.b16 %v197
  %v501 = vunpack.c.l.b16 %v198
  %v502 = vunpack.c.h.b16 %v198
  %v503 = vunpack.c.l.b16 %v199
  %v504 = vunpack.c.h.b16 %v199
  %v505 = vunpack.c.l.b16 %v200
  %v506 = vunpack.c.h.b16 %v200
  %v507 = vunpack.c.l.b16 %v201
  %v508 = vunpack.c.h.b16 %v201
  %v509 = vunpack.c.l.b16 %v202
  %v510 = vunpack.c.h.b16 %v202
  %v511 = vunpack.c.l.b16 %v203
  %v512 = vunpack.c.h.b16 %v203
  %v513 = vunpack.c.l.b16 %v204
  %v514 = vunpack.c.h.b16 %v204
  %v515 = vunpack.c.l.b16 %v205
  %v516 = vunpack.c.h.b16 %v205
  %v517 = vunpack.c.l.b16 %v206
  %v518 = vunpack.c.h.b16 %v206
  %v519 = vunpack.c.l.b16 %v207
  %v520 = vunpack.c.h.b16 %v207
  %v521 = vunpack.c.l.b16 %v208
  %v522 = vunpack.c.h.b16 %v208
  %v523 = vunpack.c.l.b16 %v209
  %v524 = vunpack.c.h.b16 %v209
  %v525 = vunpack.c.l.b16 %v210
  %v526 = vunpack.c.h.b16 %v210
  %v527 = vunpack.c.l.b16 %v211
  %v528 = vunpack.c.h.b16 %v211
  %v529 = vunpack.c.l.b16 %v212
  %v530 = vunpack.c.h.b16 %v212
  %v531 = vunpack.c.l.b16 %v213
  %v532 = vunpack.c.h.b16 %v213
  %v533 = vunpack.c.l.b16 %v214
  %v534 = vunpack.c.h.b16 %v214
  %v535 = vunpack.c.l.b16 %v215
  %v536 = vunpack.c.h.b16 %v215
  %v537 = vunpack.c.l.b16 %v216
  %v538 = vunpack.c.h.b16 %v216
  %v539 = vunpack.c.l.b16 %v217
  %v540 = vunpack.c.h.b16 %v217
  %v541 = vunpack.c.l.b16 %v218
  %v542 = vunpack.c.h.b16 %v218
  %v543 = vunpack.c.l.b16 %v219
  %v544 = vunpack.c.h.b16 %v219
  %v545 = vunpack.c.l.b16 %v220
  %v546 = vunpack.c.h.b16 %v220
  %v547 = vunpack.c.l.b16 %v221
  %v548 = vunpack.c.h.b16 %v221
  %v549 = vunpack.c.l.b16 %v222
  %v550 = vunpack.c.h.b16 %v222
  %v551 = vunpack.c.l.b16 %v223
  %v552 = vunpack.c.h.b16 %v223
  %v553 = vunpack.c.l.b16 %v224
  %v554 = vunpack.c.h.b16 %v224
  %v555 = vunpack.c.l.b16 %v225
  %v556 = vunpack.c.h.b16 %v225
  %v557 = vunpack.c.l.b16 %v226
  %v558 = vunpack.c.h.b16 %v226
  %v559 = vunpack.c.l.b16 %v227
  %v560 = vunpack.c.h.b16 %v227
  %v561 = vunpack.c.l.b16 %v228
  %v562 = vunpack.c.h.b16 %v228
  %v563 = vunpack.c.l.b16 %v229
  %v564 = vunpack.c.h.b16 %v229
  %v565 = vunpack.c.l.b16 %v230
  %v566 = vunpack.c.h.b16 %v230
  %v567 = vunpack.c.l.b16 %v231
  %v568 = vunpack.c.h.b16 %v231
  %v569 = vunpack.c.l.b16 %v232
  %v570 = vunpack.c.h.b16 %v232
  %v571 = vunpack.c.l.b16 %v233
  %v572 = vunpack.c.h.b16 %v233
  %v573 = vunpack.c.l.b16 %v234
  %v574 = vunpack.c.h.b16 %v234
  %v575 = vunpack.c.l.b16 %v235
  %v576 = vunpack.c.h.b16 %v235
  %v577 = vunpack.c.l.b16 %v236
  %v578 = vunpack.c.h.b16 %v236
  %v579 = vunpack.c.l.b16 %v237
  %v580 = vunpack.c.h.b16 %v237
  %v581 = vunpack.c.l.b16 %v238
  %v582 = vunpack.c.h.b16 %v238
  %v583 = vunpack.c.l.b16 %v239
  %v584 = vunpack.c.h.b16 %v239
  %v585 = vunpack.c.l.b16 %v240
  %v586 = vunpack.c.h.b16 %v240
  %v587 = vunpack.c.l.b16 %v241
  %v588 = vunpack.c.h.b16 %v241
  %v589 = vunpack.c.l.b16 %v242
  %v590 = vunpack.c.h.b16 %v242
  %v591 = vunpack.c.l.b16 %v243
  %v592 = vunpack.c.h.b16 %v243
  %v593 = vunpack.c.l.b16 %v244
  %v594 = vunpack.c.h.b16 %v244
  %v595 = vunpack.c.l.b16 %v245
  %v596 = vunpack.c.h.b16 %v245
  %v597 = vunpack.c.l.b16 %v246
  %v598 = vunpack.c.h.b16 %v246
  %v599 = vunpack.c.l.b16 %v247
  %v600 = vunpack.c.h.b16 %v247
  %v601 = vunpack.c.l.b16 %v248
  %v602 = vunpack.c.h.b16 %v248
  %v603 = vunpack.c.l.b16 %v249
  %v604 = vunpack.c.h.b16 %v249
  %v605 = vunpack.c.l.b16 %v250
  %v606 = vunpack.c.h.b16 %v250
  %v607 = vunpack.c.l.b16 %v251
  %v608 = vunpack.c.h.b16 %v251
  %v609 = vunpack.c.l.b16 %v252
  %v610 = vunpack.c.h.b16 %v252
  %v611 = vunpack.c.l.b16 %v253
  %v612 = vunpack.c.h.b16 %v253
  %v613 = vunpack.c.l.b16 %v254
  %v614 = vunpack.c.h.b16 %v254
  %v615 = vunpack.c.l.b16 %v255
  %v616 = vunpack.c.h.b16 %v255
  %v617 = vunpack.c.l.b16 %v256
  %v618 = vunpack.c.h.b16 %v256
  %v619 = vunpack.c.l.b16 %v257
  %v620 = vunpack.c.h.b16 %v257
  %v621 = vunpack.c.l.b16 %v258
  %v622 = vunpack.c.h.b16 %v258
  %v623 = vunpack.c.l.b16 %v259
  %v624 = vunpack.c.h.b16 %v259
  %v625 = vunpack.c.l.b16 %v260
  %v626 = vunpack.c.h.b16 %v260
  %v627 = vunpack.c.l.b16 %v261
  %v628 = vunpack.c.h.b16 %v261
  %v629 = vunpack.c.l.b16 %v262
  %v630 = vunpack.c.h.b16 %v262
  %v631 = vunpack.c.l.b16 %v263
  %v632 = vunpack.c.h.b16 %v263
  %v633 = vunpack.c.l.b16 %v264
  %v634 = vunpack.c.h.b16 %v264
  %v635 = vunpack.c.l.b16 %v265
  %v636 = vunpack.c.h.b16 %v265
  %v637 = vunpack.c.l.b16 %v266
  %v638 = vunpack.c.h.b16 %v266
  %v639 = vpack.c.b16 %v417, %v415
  %v640 = vpack.c.b16 %v418, %v416
  %v641 = vpack.c.b16 %v421, %v419
  %v642 = vpack.c.b16 %v422, %v420
  %v643 = vpack.c.b16 %v425, %v423
  %v644 = vpack.c.b16 %v426, %v424
  %v645 = vpack.c.b16 %v429, %v427
  %v646 = vpack.c.b16 %v430, %v428
  %v647 = vpack.c.b16 %v433, %v431
  %v648 = vpack.c.b16 %v434, %v432
  %v649 = vpack.c.b16 %v437, %v435
  %v650 = vpack.c.b16 %v438, %v436
  %v651 = vpack.c.b16 %v441, %v439
  %v652 = vpack.c.b16 %v442, %v440
  %v653 = vpack.c.b16 %v445, %v443
  %v654 = vpack.c.b16 %v446, %v444
  %v655 = vpack.c.b16 %v449, %v447
  %v656 = vpack.c.b16 %v450, %v448
  %v657 = vpack.c.b16 %v453, %v451
  %v658 = vpack.c.b16 %v454, %v452
  %v659 = vpack.c.b16 %v457, %v455
  %v660 = vpack.c.b16 %v458, %v456
  %v661 = vpack.c.b16 %v461, %v459
  %v662 = vpack.c.b16 %v462, %v460
  %v663 = vpack.c.b16 %v465, %v463
  %v664 = vpack.c.b16 %v466, %v464
  %v665 = vpack.c.b16 %v469, %v467
  %v666 = vpack.c.b16 %v470, %v468
  %v667 = vpack.c.b16 %v473, %v471
  %v668 = vpack.c.b16 %v474, %v472
  %v669 = vpack.c.b16 %v477, %v475
  %v670 = vpack.c.b16 %v478, %v476
  %v671 = vpack.c.b16 %v481, %v479
  %v672 = vpack.c.b16 %v482, %v480
  %v673 = vpack.c.b16 %v485, %v483
  %v674 = vpack.c.b16 %v486, %v484
  %v675 = vpack.c.b16 %v489, %v487
  %v676 = vpack.c.b16 %v490, %v488
  %v677 = vpack.c.b16 %v493, %v491
  %v678 = vpack.c.b16 %v494, %v492
  %v679 = vpack.c.b16 %v497, %v495
  %v680 = vpack.c.b16 %v498, %v496
  %v681 = vpack.c.b16 %v501, %v499
  %v682 = vpack.c.b16 %v502, %v500
  %v683 = vpack.c.b16 %v505, %v503
  %v684 = vpack.c.b16 %v506, %v504
  %v685 = vpack.c.b16 %v509, %v507
  %v686 = vpack.c.b16 %v510, %v508
  %v687 = vpack.c.b16 %v513, %v511
  %v688 = vpack.c.b16 %v514, %v512
  %v689 = vpack.c.b16 %v517, %v515
  %v690 = vpack.c.b16 %v518, %v516
  %v691 = vpack.c.b16 %v521, %v519
  %v692 = vpack.c.b16 %v522, %v520
  %v693 = vpack.c.b16 %v525, %v523
  %v694 = vpack.c.b16 %v526, %v524
  %v695 = vpack.c.b16 %v529, %v527
  %v696 = vpack.c.b16 %v530, %v528
  %v697 = vpack.c.b16 %v533, %v531
  %v698 = vpack.c.b16 %v534, %v532
  %v699 = vpack.c.b16 %v537, %v535
  %v700 = vpack.c.b16 %v538, %v536
  %v701 = vpack.c.b16 %v541, %v539
  %v702 = vpack.c.b16 %v542, %v540
  %v703 = vpack.c.b16 %v545, %v543
  %v704 = vpack.c.b16 %v546, %v544
  %v705 = vpack.c.b16 %v549, %v547
  %v706 = vpack.c.b16 %v550, %v548
  %v707 = vpack.c.b16 %v553, %v551
  %v708 = vpack.c.b16 %v554, %v552
  %v709 = vpack.c.b16 %v557, %v555
  %v710 = vpack.c.b16 %v558, %v556
  %v711 = vpack.c.b16 %v561, %v559
  %v712 = vpack.c.b16 %v562, %v560
  %v713 = vpack.c.b16 %v565, %v563
  %v714 = vpack.c.b16 %v566, %v564
  %v715 = vpack.c.b16 %v569, %v567
  %v716 = vpack.c.b16 %v570, %v568
  %v717 = vpack.c.b16 %v573, %v571
  %v718 = vpack.c.b16 %v574, %v572
  %v719 = vpack.c.b16 %v577, %v575
  %v720 = vpack.c.b16 %v578, %v576
  %v721 = vpack.c.b16 %v581, %v579
  %v722 = vpack.c.b16 %v582, %v580
  %v723 = vpack.c.b16 %v585, %v583
  %v724 = vpack.c.b16 %v586, %v584
  %v725 = vpack.c.b16 %v589, %v587
  %v726 = vpack.c.b16 %v590, %v588
  %v727 = vpack.c.b16 %v593, %v591
  %v728 = vpack.c.b16 %v594, %v592
  %v729 = vpack.c.b16 %v597, %v595
  %v730 = vpack.c.b16 %v598, %v596
  %v731 = vpack.c.b16 %v601, %v599
  %v732 = vpack.c.b16 %v602, %v600
  %v733 = vpack.c.b16 %v605, %v603
  %v734 = vpack.c.b16 %v606, %v604
  %v735 = vpack.c.b16 %v609, %v607
  %v736 = vpack.c.b16 %v610, %v608
  %v737 = vpack.c.b16 %v613, %v611
  %v738 = vpack.c.b16 %v614, %v612
  %v739 = vpack.c.b16 %v617, %v615
  %v740 = vpack.c.b16 %v618, %v616
  %v741 = vpack.c.b16 %v621, %v619
  %v742 = vpack.c.b16 %v622, %v620
  %v743 = vpack.c.b16 %v625, %v623
  %v744 = vpack.c.b16 %v626, %v624
  %v745 = vpack.c.b16 %v629, %v627
  %v746 = vpack.c.b16 %v630, %v628
  %v747 = vpack.c.b16 %v633, %v631
  %v748 = vpack.c.b16 %v634, %v632
  %v749 = vpack.c.b16 %v637, %v635
  %v750 = vpack.c.b16 %v638, %v636
  %863 = vmatprep.subr.bf16.mxu0 %v654
  %864 = vmatpush1.bf16.msra.mxu0 %v653
  %865 = vmatprep.subr.bf16.mxu0 %v652
  %866 = vmatpush1.bf16.msra.mxu0 %v651
  %867 = vmatprep.subr.bf16.mxu0 %v650
  %868 = vmatpush1.bf16.msra.mxu0 %v649
  %869 = vmatprep.subr.bf16.mxu0 %v648
  %870 = vmatpush1.bf16.msra.mxu0 %v647
  %871 = vmatprep.subr.bf16.mxu0 %v646
  %872 = vmatpush1.bf16.msra.mxu0 %v645
  %873 = vmatprep.subr.bf16.mxu0 %v644
  %874 = vmatpush1.bf16.msra.mxu0 %v643
  %875 = vmatprep.subr.bf16.mxu0 %v642
  %876 = vmatpush1.bf16.msra.mxu0 %v641
  %877 = vmatprep.subr.bf16.mxu0 %v640
  %878 = vmatpush1.bf16.msra.mxu0 %v639
  %879 = vmatprep.subr.bf16.mxu0 %v670
  %880 = vmatpush2.bf16.msra.mxu0 %v669
  %881 = vmatprep.subr.bf16.mxu0 %v668
  %882 = vmatpush2.bf16.msra.mxu0 %v667
  %883 = vmatprep.subr.bf16.mxu0 %v666
  %884 = vmatpush2.bf16.msra.mxu0 %v665
  %885 = vmatprep.subr.bf16.mxu0 %v664
  %886 = vmatpush2.bf16.msra.mxu0 %v663
  %887 = vmatprep.subr.bf16.mxu0 %v662
  %888 = vmatpush2.bf16.msra.mxu0 %v661
  %889 = vmatprep.subr.bf16.mxu0 %v660
  %890 = vmatpush2.bf16.msra.mxu0 %v659
  %891 = vmatprep.subr.bf16.mxu0 %v658
  %892 = vmatpush2.bf16.msra.mxu0 %v657
  %893 = vmatprep.subr.bf16.mxu0 %v656
  %894 = vmatpush2.bf16.msra.mxu0 %v655
  %895 = vmatprep.mubr.bf16.mxu0 %v290
  %896 = vmatmul.mubr.bf16.gmra.mxu0 %v289
  %v897 = vpop.f32.mrf.mxu0
  %v898 = vadd.f32 0.0, %v897
  %v899 = vpop.f32.mrf.mxu0
  %v900 = vadd.f32 0.0, %v899
  %v901 = vpop.f32.mrf.mxu0
  %v902 = vadd.f32 0.0, %v901
  %v903 = vpop.f32.mrf.mxu0
  %v904 = vadd.f32 0.0, %v903
  %905 = vdwg.mxu0
  %906 = vmatprep.subr.bf16.mxu0 %v686
  %907 = vmatpush1.bf16.msra.mxu0 %v685
  %908 = vmatprep.subr.bf16.mxu0 %v684
  %909 = vmatpush1.bf16.msra.mxu0 %v683
  %910 = vmatprep.subr.bf16.mxu0 %v682
  %911 = vmatpush1.bf16.msra.mxu0 %v681
  %912 = vmatprep.subr.bf16.mxu0 %v680
  %913 = vmatpush1.bf16.msra.mxu0 %v679
  %914 = vmatprep.subr.bf16.mxu0 %v678
  %915 = vmatpush1.bf16.msra.mxu0 %v677
  %916 = vmatprep.subr.bf16.mxu0 %v676
  %917 = vmatpush1.bf16.msra.mxu0 %v675
  %918 = vmatprep.subr.bf16.mxu0 %v674
  %919 = vmatpush1.bf16.msra.mxu0 %v673
  %920 = vmatprep.subr.bf16.mxu0 %v672
  %921 = vmatpush1.bf16.msra.mxu0 %v671
  %922 = vmatprep.subr.bf16.mxu0 %v702
  %923 = vmatpush2.bf16.msra.mxu0 %v701
  %924 = vmatprep.subr.bf16.mxu0 %v700
  %925 = vmatpush2.bf16.msra.mxu0 %v699
  %926 = vmatprep.subr.bf16.mxu0 %v698
  %927 = vmatpush2.bf16.msra.mxu0 %v697
  %928 = vmatprep.subr.bf16.mxu0 %v696
  %929 = vmatpush2.bf16.msra.mxu0 %v695
  %930 = vmatprep.subr.bf16.mxu0 %v694
  %931 = vmatpush2.bf16.msra.mxu0 %v693
  %932 = vmatprep.subr.bf16.mxu0 %v692
  %933 = vmatpush2.bf16.msra.mxu0 %v691
  %934 = vmatprep.subr.bf16.mxu0 %v690
  %935 = vmatpush2.bf16.msra.mxu0 %v689
  %936 = vmatprep.subr.bf16.mxu0 %v688
  %937 = vmatpush2.bf16.msra.mxu0 %v687
  %938 = vmatprep.mubr.bf16.mxu0 %v292
  %939 = vmatmul.mubr.bf16.gmra.mxu0 %v291
  %v940 = vpop.f32.mrf.mxu0
  %v941 = vadd.f32 %v898, %v940
  %v942 = vpop.f32.mrf.mxu0
  %v943 = vadd.f32 %v900, %v942
  %v944 = vpop.f32.mrf.mxu0
  %v945 = vadd.f32 %v902, %v944
  %v946 = vpop.f32.mrf.mxu0
  %v947 = vadd.f32 %v904, %v946
  %948 = vdwg.mxu0
  %949 = vmatprep.subr.bf16.mxu0 %v718
  %950 = vmatpush1.bf16.msra.mxu0 %v717
  %951 = vmatprep.subr.bf16.mxu0 %v716
  %952 = vmatpush1.bf16.msra.mxu0 %v715
  %953 = vmatprep.subr.bf16.mxu0 %v714
  %954 = vmatpush1.bf16.msra.mxu0 %v713
  %955 = vmatprep.subr.bf16.mxu0 %v712
  %956 = vmatpush1.bf16.msra.mxu0 %v711
  %957 = vmatprep.subr.bf16.mxu0 %v710
  %958 = vmatpush1.bf16.msra.mxu0 %v709
  %959 = vmatprep.subr.bf16.mxu0 %v708
  %960 = vmatpush1.bf16.msra.mxu0 %v707
  %961 = vmatprep.subr.bf16.mxu0 %v706
  %962 = vmatpush1.bf16.msra.mxu0 %v705
  %963 = vmatprep.subr.bf16.mxu0 %v704
  %964 = vmatpush1.bf16.msra.mxu0 %v703
  %965 = vmatprep.subr.bf16.mxu0 %v734
  %966 = vmatpush2.bf16.msra.mxu0 %v733
  %967 = vmatprep.subr.bf16.mxu0 %v732
  %968 = vmatpush2.bf16.msra.mxu0 %v731
  %969 = vmatprep.subr.bf16.mxu0 %v730
  %970 = vmatpush2.bf16.msra.mxu0 %v729
  %971 = vmatprep.subr.bf16.mxu0 %v728
  %972 = vmatpush2.bf16.msra.mxu0 %v727
  %973 = vmatprep.subr.bf16.mxu0 %v726
  %974 = vmatpush2.bf16.msra.mxu0 %v725
  %975 = vmatprep.subr.bf16.mxu0 %v724
  %976 = vmatpush2.bf16.msra.mxu0 %v723
  %977 = vmatprep.subr.bf16.mxu0 %v722
  %978 = vmatpush2.bf16.msra.mxu0 %v721
  %979 = vmatprep.subr.bf16.mxu0 %v720
  %980 = vmatpush2.bf16.msra.mxu0 %v719
  %981 = vmatprep.mubr.bf16.mxu0 %v294
  %982 = vmatmul.mubr.bf16.gmra.mxu0 %v293
  %v983 = vpop.f32.mrf.mxu0
  %v984 = vadd.f32 %v941, %v983
  %v985 = vpop.f32.mrf.mxu0
  %v986 = vadd.f32 %v943, %v985
  %v987 = vpop.f32.mrf.mxu0
  %v988 = vadd.f32 %v945, %v987
  %v989 = vpop.f32.mrf.mxu0
  %v990 = vadd.f32 %v947, %v989
  %991 = vdwg.mxu0
  %992 = vmatprep.subr.bf16.mxu0 %v750
  %993 = vmatpush1.bf16.msra.mxu0 %v749
  %994 = vmatprep.subr.bf16.mxu0 %v748
  %995 = vmatpush1.bf16.msra.mxu0 %v747
  %996 = vmatprep.subr.bf16.mxu0 %v746
  %997 = vmatpush1.bf16.msra.mxu0 %v745
  %998 = vmatprep.subr.bf16.mxu0 %v744
  %999 = vmatpush1.bf16.msra.mxu0 %v743
  %1000 = vmatprep.subr.bf16.mxu0 %v742
  %1001 = vmatpush1.bf16.msra.mxu0 %v741
  %1002 = vmatprep.subr.bf16.mxu0 %v740
  %1003 = vmatpush1.bf16.msra.mxu0 %v739
  %1004 = vmatprep.subr.bf16.mxu0 %v738
  %1005 = vmatpush1.bf16.msra.mxu0 %v737
  %1006 = vmatprep.subr.bf16.mxu0 %v736
  %1007 = vmatpush1.bf16.msra.mxu0 %v735
  %1008 = vmatprep.subr.bf16.mxu0 0
  %1009 = vmatpush2.bf16.msra.mxu0 0
  %1010 = vmatprep.subr.bf16.mxu0 0
  %1011 = vmatpush2.bf16.msra.mxu0 0
  %1012 = vmatprep.subr.bf16.mxu0 0
  %1013 = vmatpush2.bf16.msra.mxu0 0
  %1014 = vmatprep.subr.bf16.mxu0 0
  %1015 = vmatpush2.bf16.msra.mxu0 0
  %1016 = vmatprep.subr.bf16.mxu0 0
  %1017 = vmatpush2.bf16.msra.mxu0 0
  %1018 = vmatprep.subr.bf16.mxu0 0
  %1019 = vmatpush2.bf16.msra.mxu0 0
  %1020 = vmatprep.subr.bf16.mxu0 0
  %1021 = vmatpush2.bf16.msra.mxu0 0
  %1022 = vmatprep.subr.bf16.mxu0 0
  %1023 = vmatpush2.bf16.msra.mxu0 0
  %1024 = vmatprep.mubr.bf16.mxu0 0
  %1025 = vmatmul.mubr.bf16.gmra.mxu0 %v295
  %v1026 = vpop.f32.mrf.mxu0
  %v1027 = vadd.f32 %v984, %v1026
  %v1028 = vpop.f32.mrf.mxu0
  %v1029 = vadd.f32 %v986, %v1028
  %v1030 = vpop.f32.mrf.mxu0
  %v1031 = vadd.f32 %v988, %v1030
  %v1032 = vpop.f32.mrf.mxu0
  %v1033 = vadd.f32 %v990, %v1032
  %1034 = vdwg.mxu0
  %v1043 = vunpack.c.l.b16 %v26
  %v1044 = vunpack.c.h.b16 %v26
  %v1045 = vunpack.c.l.b16 %v27
  %v1046 = vunpack.c.h.b16 %v27
  %v1047 = vunpack.c.l.b16 %v28
  %v1048 = vunpack.c.h.b16 %v28
  %v1049 = vunpack.c.l.b16 %v29
  %v1050 = vunpack.c.l.b16 %v30
  %v1051 = vunpack.c.h.b16 %v30
  %v1052 = vunpack.c.l.b16 %v31
  %v1053 = vunpack.c.h.b16 %v31
  %v1054 = vunpack.c.l.b16 %v32
  %v1055 = vunpack.c.h.b16 %v32
  %v1056 = vunpack.c.l.b16 %v33
  %v1057 = vpack.c.b16 %v1050, %v1043
  %v1058 = vpack.c.b16 %v1051, %v1044
  %v1059 = vpack.c.b16 %v1052, %v1045
  %v1060 = vpack.c.b16 %v1053, %v1046
  %v1061 = vpack.c.b16 %v1054, %v1047
  %v1062 = vpack.c.b16 %v1055, %v1048
  %v1063 = vpack.c.b16 %v1056, %v1049
  %v1183 = vunpack.c.l.b16 %v34
  %v1184 = vunpack.c.h.b16 %v34
  %v1185 = vunpack.c.l.b16 %v35
  %v1186 = vunpack.c.h.b16 %v35
  %v1187 = vunpack.c.l.b16 %v36
  %v1188 = vunpack.c.h.b16 %v36
  %v1189 = vunpack.c.l.b16 %v37
  %v1190 = vunpack.c.h.b16 %v37
  %v1191 = vunpack.c.l.b16 %v38
  %v1192 = vunpack.c.h.b16 %v38
  %v1193 = vunpack.c.l.b16 %v39
  %v1194 = vunpack.c.h.b16 %v39
  %v1195 = vunpack.c.l.b16 %v40
  %v1196 = vunpack.c.h.b16 %v40
  %v1197 = vunpack.c.l.b16 %v41
  %v1198 = vunpack.c.h.b16 %v41
  %v1199 = vunpack.c.l.b16 %v42
  %v1200 = vunpack.c.h.b16 %v42
  %v1201 = vunpack.c.l.b16 %v43
  %v1202 = vunpack.c.h.b16 %v43
  %v1203 = vunpack.c.l.b16 %v44
  %v1204 = vunpack.c.h.b16 %v44
  %v1205 = vunpack.c.l.b16 %v45
  %v1206 = vunpack.c.h.b16 %v45
  %v1207 = vunpack.c.l.b16 %v46
  %v1208 = vunpack.c.h.b16 %v46
  %v1209 = vunpack.c.l.b16 %v47
  %v1210 = vunpack.c.h.b16 %v47
  %v1211 = vunpack.c.l.b16 %v48
  %v1212 = vunpack.c.h.b16 %v48
  %v1213 = vunpack.c.l.b16 %v49
  %v1214 = vunpack.c.h.b16 %v49
  %v1215 = vunpack.c.l.b16 %v50
  %v1216 = vunpack.c.h.b16 %v50
  %v1217 = vunpack.c.l.b16 %v51
  %v1218 = vunpack.c.h.b16 %v51
  %v1219 = vunpack.c.l.b16 %v52
  %v1220 = vunpack.c.h.b16 %v52
  %v1221 = vunpack.c.l.b16 %v53
  %v1222 = vunpack.c.h.b16 %v53
  %v1223 = vunpack.c.l.b16 %v54
  %v1224 = vunpack.c.h.b16 %v54
  %v1225 = vunpack.c.l.b16 %v55
  %v1226 = vunpack.c.h.b16 %v55
  %v1227 = vunpack.c.l.b16 %v56
  %v1228 = vunpack.c.h.b16 %v56
  %v1229 = vunpack.c.l.b16 %v57
  %v1230 = vunpack.c.h.b16 %v57
  %v1231 = vunpack.c.l.b16 %v58
  %v1232 = vunpack.c.h.b16 %v58
  %v1233 = vunpack.c.l.b16 %v59
  %v1234 = vunpack.c.h.b16 %v59
  %v1235 = vunpack.c.l.b16 %v60
  %v1236 = vunpack.c.h.b16 %v60
  %v1237 = vunpack.c.l.b16 %v61
  %v1238 = vunpack.c.h.b16 %v61
  %v1239 = vunpack.c.l.b16 %v62
  %v1240 = vunpack.c.h.b16 %v62
  %v1241 = vunpack.c.l.b16 %v63
  %v1242 = vunpack.c.h.b16 %v63
  %v1243 = vunpack.c.l.b16 %v64
  %v1244 = vunpack.c.h.b16 %v64
  %v1245 = vunpack.c.l.b16 %v65
  %v1246 = vunpack.c.h.b16 %v65
  %v1247 = vunpack.c.l.b16 %v66
  %v1248 = vunpack.c.h.b16 %v66
  %v1249 = vunpack.c.l.b16 %v67
  %v1250 = vunpack.c.h.b16 %v67
  %v1251 = vunpack.c.l.b16 %v68
  %v1252 = vunpack.c.h.b16 %v68
  %v1253 = vunpack.c.l.b16 %v69
  %v1254 = vunpack.c.h.b16 %v69
  %v1255 = vunpack.c.l.b16 %v70
  %v1256 = vunpack.c.h.b16 %v70
  %v1257 = vunpack.c.l.b16 %v71
  %v1258 = vunpack.c.h.b16 %v71
  %v1259 = vunpack.c.l.b16 %v72
  %v1260 = vunpack.c.h.b16 %v72
  %v1261 = vunpack.c.l.b16 %v73
  %v1262 = vunpack.c.h.b16 %v73
  %v1263 = vunpack.c.l.b16 %v74
  %v1264 = vunpack.c.h.b16 %v74
  %v1265 = vunpack.c.l.b16 %v75
  %v1266 = vunpack.c.h.b16 %v75
  %v1267 = vunpack.c.l.b16 %v76
  %v1268 = vunpack.c.h.b16 %v76
  %v1269 = vunpack.c.l.b16 %v77
  %v1270 = vunpack.c.h.b16 %v77
  %v1271 = vunpack.c.l.b16 %v78
  %v1272 = vunpack.c.h.b16 %v78
  %v1273 = vunpack.c.l.b16 %v79
  %v1274 = vunpack.c.h.b16 %v79
  %v1275 = vunpack.c.l.b16 %v80
  %v1276 = vunpack.c.h.b16 %v80
  %v1277 = vunpack.c.l.b16 %v81
  %v1278 = vunpack.c.h.b16 %v81
  %v1279 = vunpack.c.l.b16 %v82
  %v1280 = vunpack.c.h.b16 %v82
  %v1281 = vunpack.c.l.b16 %v83
  %v1282 = vunpack.c.h.b16 %v83
  %v1283 = vunpack.c.l.b16 %v84
  %v1284 = vunpack.c.h.b16 %v84
  %v1285 = vunpack.c.l.b16 %v85
  %v1286 = vunpack.c.h.b16 %v85
  %v1287 = vunpack.c.l.b16 %v86
  %v1288 = vunpack.c.h.b16 %v86
  %v1289 = vunpack.c.l.b16 %v87
  %v1290 = vunpack.c.h.b16 %v87
  %v1291 = vunpack.c.l.b16 %v88
  %v1292 = vunpack.c.h.b16 %v88
  %v1293 = vunpack.c.l.b16 %v89
  %v1294 = vunpack.c.h.b16 %v89
  %v1295 = vunpack.c.l.b16 %v90
  %v1296 = vunpack.c.h.b16 %v90
  %v1297 = vunpack.c.l.b16 %v91
  %v1298 = vunpack.c.h.b16 %v91
  %v1299 = vunpack.c.l.b16 %v92
  %v1300 = vunpack.c.h.b16 %v92
  %v1301 = vunpack.c.l.b16 %v93
  %v1302 = vunpack.c.h.b16 %v93
  %v1303 = vunpack.c.l.b16 %v94
  %v1304 = vunpack.c.h.b16 %v94
  %v1305 = vunpack.c.l.b16 %v95
  %v1306 = vunpack.c.h.b16 %v95
  %v1307 = vunpack.c.l.b16 %v96
  %v1308 = vunpack.c.h.b16 %v96
  %v1309 = vunpack.c.l.b16 %v97
  %v1310 = vunpack.c.h.b16 %v97
  %v1311 = vunpack.c.l.b16 %v98
  %v1312 = vunpack.c.h.b16 %v98
  %v1313 = vunpack.c.l.b16 %v99
  %v1314 = vunpack.c.h.b16 %v99
  %v1315 = vunpack.c.l.b16 %v100
  %v1316 = vunpack.c.h.b16 %v100
  %v1317 = vunpack.c.l.b16 %v101
  %v1318 = vunpack.c.h.b16 %v101
  %v1319 = vunpack.c.l.b16 %v102
  %v1320 = vunpack.c.h.b16 %v102
  %v1321 = vunpack.c.l.b16 %v103
  %v1322 = vunpack.c.h.b16 %v103
  %v1323 = vunpack.c.l.b16 %v104
  %v1324 = vunpack.c.h.b16 %v104
  %v1325 = vunpack.c.l.b16 %v105
  %v1326 = vunpack.c.h.b16 %v105
  %v1327 = vunpack.c.l.b16 %v106
  %v1328 = vunpack.c.h.b16 %v106
  %v1329 = vunpack.c.l.b16 %v107
  %v1330 = vunpack.c.h.b16 %v107
  %v1331 = vunpack.c.l.b16 %v108
  %v1332 = vunpack.c.h.b16 %v108
  %v1333 = vunpack.c.l.b16 %v109
  %v1334 = vunpack.c.h.b16 %v109
  %v1335 = vunpack.c.l.b16 %v110
  %v1336 = vunpack.c.h.b16 %v110
  %v1337 = vunpack.c.l.b16 %v111
  %v1338 = vunpack.c.h.b16 %v111
  %v1339 = vunpack.c.l.b16 %v112
  %v1340 = vunpack.c.h.b16 %v112
  %v1341 = vunpack.c.l.b16 %v113
  %v1342 = vunpack.c.h.b16 %v113
  %v1343 = vunpack.c.l.b16 %v114
  %v1344 = vunpack.c.h.b16 %v114
  %v1345 = vunpack.c.l.b16 %v115
  %v1346 = vunpack.c.h.b16 %v115
  %v1347 = vunpack.c.l.b16 %v116
  %v1348 = vunpack.c.h.b16 %v116
  %v1349 = vunpack.c.l.b16 %v117
  %v1350 = vunpack.c.h.b16 %v117
  %v1351 = vunpack.c.l.b16 %v118
  %v1352 = vunpack.c.h.b16 %v118
  %v1353 = vunpack.c.l.b16 %v119
  %v1354 = vunpack.c.h.b16 %v119
  %v1355 = vunpack.c.l.b16 %v120
  %v1356 = vunpack.c.h.b16 %v120
  %v1357 = vunpack.c.l.b16 %v121
  %v1358 = vunpack.c.h.b16 %v121
  %v1359 = vunpack.c.l.b16 %v122
  %v1360 = vunpack.c.h.b16 %v122
  %v1361 = vunpack.c.l.b16 %v123
  %v1362 = vunpack.c.h.b16 %v123
  %v1363 = vunpack.c.l.b16 %v124
  %v1364 = vunpack.c.h.b16 %v124
  %v1365 = vunpack.c.l.b16 %v125
  %v1366 = vunpack.c.h.b16 %v125
  %v1367 = vunpack.c.l.b16 %v126
  %v1368 = vunpack.c.h.b16 %v126
  %v1369 = vunpack.c.l.b16 %v127
  %v1370 = vunpack.c.h.b16 %v127
  %v1371 = vunpack.c.l.b16 %v128
  %v1372 = vunpack.c.h.b16 %v128
  %v1373 = vunpack.c.l.b16 %v129
  %v1374 = vunpack.c.h.b16 %v129
  %v1375 = vunpack.c.l.b16 %v130
  %v1376 = vunpack.c.h.b16 %v130
  %v1377 = vunpack.c.l.b16 %v131
  %v1378 = vunpack.c.h.b16 %v131
  %v1379 = vunpack.c.l.b16 %v132
  %v1380 = vunpack.c.h.b16 %v132
  %v1381 = vunpack.c.l.b16 %v133
  %v1382 = vunpack.c.h.b16 %v133
  %v1383 = vunpack.c.l.b16 %v134
  %v1384 = vunpack.c.h.b16 %v134
  %v1385 = vunpack.c.l.b16 %v135
  %v1386 = vunpack.c.h.b16 %v135
  %v1387 = vunpack.c.l.b16 %v136
  %v1388 = vunpack.c.h.b16 %v136
  %v1389 = vunpack.c.l.b16 %v137
  %v1390 = vunpack.c.h.b16 %v137
  %v1391 = vunpack.c.l.b16 %v138
  %v1392 = vunpack.c.h.b16 %v138
  %v1393 = vunpack.c.l.b16 %v139
  %v1394 = vunpack.c.h.b16 %v139
  %v1395 = vunpack.c.l.b16 %v140
  %v1396 = vunpack.c.h.b16 %v140
  %v1397 = vunpack.c.l.b16 %v141
  %v1398 = vunpack.c.h.b16 %v141
  %v1399 = vunpack.c.l.b16 %v142
  %v1400 = vunpack.c.h.b16 %v142
  %v1401 = vunpack.c.l.b16 %v143
  %v1402 = vunpack.c.h.b16 %v143
  %v1403 = vunpack.c.l.b16 %v144
  %v1404 = vunpack.c.h.b16 %v144
  %v1405 = vunpack.c.l.b16 %v145
  %v1406 = vunpack.c.h.b16 %v145
  %v1407 = vpack.c.b16 %v1185, %v1183
  %v1408 = vpack.c.b16 %v1186, %v1184
  %v1409 = vpack.c.b16 %v1189, %v1187
  %v1410 = vpack.c.b16 %v1190, %v1188
  %v1411 = vpack.c.b16 %v1193, %v1191
  %v1412 = vpack.c.b16 %v1194, %v1192
  %v1413 = vpack.c.b16 %v1197, %v1195
  %v1414 = vpack.c.b16 %v1198, %v1196
  %v1415 = vpack.c.b16 %v1201, %v1199
  %v1416 = vpack.c.b16 %v1202, %v1200
  %v1417 = vpack.c.b16 %v1205, %v1203
  %v1418 = vpack.c.b16 %v1206, %v1204
  %v1419 = vpack.c.b16 %v1209, %v1207
  %v1420 = vpack.c.b16 %v1210, %v1208
  %v1421 = vpack.c.b16 %v1213, %v1211
  %v1422 = vpack.c.b16 %v1214, %v1212
  %v1423 = vpack.c.b16 %v1217, %v1215
  %v1424 = vpack.c.b16 %v1218, %v1216
  %v1425 = vpack.c.b16 %v1221, %v1219
  %v1426 = vpack.c.b16 %v1222, %v1220
  %v1427 = vpack.c.b16 %v1225, %v1223
  %v1428 = vpack.c.b16 %v1226, %v1224
  %v1429 = vpack.c.b16 %v1229, %v1227
  %v1430 = vpack.c.b16 %v1230, %v1228
  %v1431 = vpack.c.b16 %v1233, %v1231
  %v1432 = vpack.c.b16 %v1234, %v1232
  %v1433 = vpack.c.b16 %v1237, %v1235
  %v1434 = vpack.c.b16 %v1238, %v1236
  %v1435 = vpack.c.b16 %v1241, %v1239
  %v1436 = vpack.c.b16 %v1242, %v1240
  %v1437 = vpack.c.b16 %v1245, %v1243
  %v1438 = vpack.c.b16 %v1246, %v1244
  %v1439 = vpack.c.b16 %v1249, %v1247
  %v1440 = vpack.c.b16 %v1250, %v1248
  %v1441 = vpack.c.b16 %v1253, %v1251
  %v1442 = vpack.c.b16 %v1254, %v1252
  %v1443 = vpack.c.b16 %v1257, %v1255
  %v1444 = vpack.c.b16 %v1258, %v1256
  %v1445 = vpack.c.b16 %v1261, %v1259
  %v1446 = vpack.c.b16 %v1262, %v1260
  %v1447 = vpack.c.b16 %v1265, %v1263
  %v1448 = vpack.c.b16 %v1266, %v1264
  %v1449 = vpack.c.b16 %v1269, %v1267
  %v1450 = vpack.c.b16 %v1270, %v1268
  %v1451 = vpack.c.b16 %v1273, %v1271
  %v1452 = vpack.c.b16 %v1274, %v1272
  %v1453 = vpack.c.b16 %v1277, %v1275
  %v1454 = vpack.c.b16 %v1278, %v1276
  %v1455 = vpack.c.b16 %v1281, %v1279
  %v1456 = vpack.c.b16 %v1282, %v1280
  %v1457 = vpack.c.b16 %v1285, %v1283
  %v1458 = vpack.c.b16 %v1286, %v1284
  %v1459 = vpack.c.b16 %v1289, %v1287
  %v1460 = vpack.c.b16 %v1290, %v1288
  %v1461 = vpack.c.b16 %v1293, %v1291
  %v1462 = vpack.c.b16 %v1294, %v1292
  %v1463 = vpack.c.b16 %v1297, %v1295
  %v1464 = vpack.c.b16 %v1298, %v1296
  %v1465 = vpack.c.b16 %v1301, %v1299
  %v1466 = vpack.c.b16 %v1302, %v1300
  %v1467 = vpack.c.b16 %v1305, %v1303
  %v1468 = vpack.c.b16 %v1306, %v1304
  %v1469 = vpack.c.b16 %v1309, %v1307
  %v1470 = vpack.c.b16 %v1310, %v1308
  %v1471 = vpack.c.b16 %v1313, %v1311
  %v1472 = vpack.c.b16 %v1314, %v1312
  %v1473 = vpack.c.b16 %v1317, %v1315
  %v1474 = vpack.c.b16 %v1318, %v1316
  %v1475 = vpack.c.b16 %v1321, %v1319
  %v1476 = vpack.c.b16 %v1322, %v1320
  %v1477 = vpack.c.b16 %v1325, %v1323
  %v1478 = vpack.c.b16 %v1326, %v1324
  %v1479 = vpack.c.b16 %v1329, %v1327
  %v1480 = vpack.c.b16 %v1330, %v1328
  %v1481 = vpack.c.b16 %v1333, %v1331
  %v1482 = vpack.c.b16 %v1334, %v1332
  %v1483 = vpack.c.b16 %v1337, %v1335
  %v1484 = vpack.c.b16 %v1338, %v1336
  %v1485 = vpack.c.b16 %v1341, %v1339
  %v1486 = vpack.c.b16 %v1342, %v1340
  %v1487 = vpack.c.b16 %v1345, %v1343
  %v1488 = vpack.c.b16 %v1346, %v1344
  %v1489 = vpack.c.b16 %v1349, %v1347
  %v1490 = vpack.c.b16 %v1350, %v1348
  %v1491 = vpack.c.b16 %v1353, %v1351
  %v1492 = vpack.c.b16 %v1354, %v1352
  %v1493 = vpack.c.b16 %v1357, %v1355
  %v1494 = vpack.c.b16 %v1358, %v1356
  %v1495 = vpack.c.b16 %v1361, %v1359
  %v1496 = vpack.c.b16 %v1362, %v1360
  %v1497 = vpack.c.b16 %v1365, %v1363
  %v1498 = vpack.c.b16 %v1366, %v1364
  %v1499 = vpack.c.b16 %v1369, %v1367
  %v1500 = vpack.c.b16 %v1370, %v1368
  %v1501 = vpack.c.b16 %v1373, %v1371
  %v1502 = vpack.c.b16 %v1374, %v1372
  %v1503 = vpack.c.b16 %v1377, %v1375
  %v1504 = vpack.c.b16 %v1378, %v1376
  %v1505 = vpack.c.b16 %v1381, %v1379
  %v1506 = vpack.c.b16 %v1382, %v1380
  %v1507 = vpack.c.b16 %v1385, %v1383
  %v1508 = vpack.c.b16 %v1386, %v1384
  %v1509 = vpack.c.b16 %v1389, %v1387
  %v1510 = vpack.c.b16 %v1390, %v1388
  %v1511 = vpack.c.b16 %v1393, %v1391
  %v1512 = vpack.c.b16 %v1394, %v1392
  %v1513 = vpack.c.b16 %v1397, %v1395
  %v1514 = vpack.c.b16 %v1398, %v1396
  %v1515 = vpack.c.b16 %v1401, %v1399
  %v1516 = vpack.c.b16 %v1402, %v1400
  %v1517 = vpack.c.b16 %v1405, %v1403
  %v1518 = vpack.c.b16 %v1406, %v1404
  %1631 = vmatprep.subr.bf16.mxu0 %v1422
  %1632 = vmatpush1.bf16.msra.mxu0 %v1421
  %1633 = vmatprep.subr.bf16.mxu0 %v1420
  %1634 = vmatpush1.bf16.msra.mxu0 %v1419
  %1635 = vmatprep.subr.bf16.mxu0 %v1418
  %1636 = vmatpush1.bf16.msra.mxu0 %v1417
  %1637 = vmatprep.subr.bf16.mxu0 %v1416
  %1638 = vmatpush1.bf16.msra.mxu0 %v1415
  %1639 = vmatprep.subr.bf16.mxu0 %v1414
  %1640 = vmatpush1.bf16.msra.mxu0 %v1413
  %1641 = vmatprep.subr.bf16.mxu0 %v1412
  %1642 = vmatpush1.bf16.msra.mxu0 %v1411
  %1643 = vmatprep.subr.bf16.mxu0 %v1410
  %1644 = vmatpush1.bf16.msra.mxu0 %v1409
  %1645 = vmatprep.subr.bf16.mxu0 %v1408
  %1646 = vmatpush1.bf16.msra.mxu0 %v1407
  %1647 = vmatprep.subr.bf16.mxu0 %v1438
  %1648 = vmatpush2.bf16.msra.mxu0 %v1437
  %1649 = vmatprep.subr.bf16.mxu0 %v1436
  %1650 = vmatpush2.bf16.msra.mxu0 %v1435
  %1651 = vmatprep.subr.bf16.mxu0 %v1434
  %1652 = vmatpush2.bf16.msra.mxu0 %v1433
  %1653 = vmatprep.subr.bf16.mxu0 %v1432
  %1654 = vmatpush2.bf16.msra.mxu0 %v1431
  %1655 = vmatprep.subr.bf16.mxu0 %v1430
  %1656 = vmatpush2.bf16.msra.mxu0 %v1429
  %1657 = vmatprep.subr.bf16.mxu0 %v1428
  %1658 = vmatpush2.bf16.msra.mxu0 %v1427
  %1659 = vmatprep.subr.bf16.mxu0 %v1426
  %1660 = vmatpush2.bf16.msra.mxu0 %v1425
  %1661 = vmatprep.subr.bf16.mxu0 %v1424
  %1662 = vmatpush2.bf16.msra.mxu0 %v1423
  %1663 = vmatprep.mubr.bf16.mxu0 %v1058
  %1664 = vmatmul.mubr.bf16.gmra.mxu0 %v1057
  %v1665 = vpop.f32.mrf.mxu0
  %v1666 = vadd.f32 %v1027, %v1665
  %v1667 = vpop.f32.mrf.mxu0
  %v1668 = vadd.f32 %v1029, %v1667
  %v1669 = vpop.f32.mrf.mxu0
  %v1670 = vadd.f32 %v1031, %v1669
  %v1671 = vpop.f32.mrf.mxu0
  %v1672 = vadd.f32 %v1033, %v1671
  %1673 = vdwg.mxu0
  %1674 = vmatprep.subr.bf16.mxu0 %v1454
  %1675 = vmatpush1.bf16.msra.mxu0 %v1453
  %1676 = vmatprep.subr.bf16.mxu0 %v1452
  %1677 = vmatpush1.bf16.msra.mxu0 %v1451
  %1678 = vmatprep.subr.bf16.mxu0 %v1450
  %1679 = vmatpush1.bf16.msra.mxu0 %v1449
  %1680 = vmatprep.subr.bf16.mxu0 %v1448
  %1681 = vmatpush1.bf16.msra.mxu0 %v1447
  %1682 = vmatprep.subr.bf16.mxu0 %v1446
  %1683 = vmatpush1.bf16.msra.mxu0 %v1445
  %1684 = vmatprep.subr.bf16.mxu0 %v1444
  %1685 = vmatpush1.bf16.msra.mxu0 %v1443
  %1686 = vmatprep.subr.bf16.mxu0 %v1442
  %1687 = vmatpush1.bf16.msra.mxu0 %v1441
  %1688 = vmatprep.subr.bf16.mxu0 %v1440
  %1689 = vmatpush1.bf16.msra.mxu0 %v1439
  %1690 = vmatprep.subr.bf16.mxu0 %v1470
  %1691 = vmatpush2.bf16.msra.mxu0 %v1469
  %1692 = vmatprep.subr.bf16.mxu0 %v1468
  %1693 = vmatpush2.bf16.msra.mxu0 %v1467
  %1694 = vmatprep.subr.bf16.mxu0 %v1466
  %1695 = vmatpush2.bf16.msra.mxu0 %v1465
  %1696 = vmatprep.subr.bf16.mxu0 %v1464
  %1697 = vmatpush2.bf16.msra.mxu0 %v1463
  %1698 = vmatprep.subr.bf16.mxu0 %v1462
  %1699 = vmatpush2.bf16.msra.mxu0 %v1461
  %1700 = vmatprep.subr.bf16.mxu0 %v1460
  %1701 = vmatpush2.bf16.msra.mxu0 %v1459
  %1702 = vmatprep.subr.bf16.mxu0 %v1458
  %1703 = vmatpush2.bf16.msra.mxu0 %v1457
  %1704 = vmatprep.subr.bf16.mxu0 %v1456
  %1705 = vmatpush2.bf16.msra.mxu0 %v1455
  %1706 = vmatprep.mubr.bf16.mxu0 %v1060
  %1707 = vmatmul.mubr.bf16.gmra.mxu0 %v1059
  %v1708 = vpop.f32.mrf.mxu0
  %v1709 = vadd.f32 %v1666, %v1708
  %v1710 = vpop.f32.mrf.mxu0
  %v1711 = vadd.f32 %v1668, %v1710
  %v1712 = vpop.f32.mrf.mxu0
  %v1713 = vadd.f32 %v1670, %v1712
  %v1714 = vpop.f32.mrf.mxu0
  %v1715 = vadd.f32 %v1672, %v1714
  %1716 = vdwg.mxu0
  %1717 = vmatprep.subr.bf16.mxu0 %v1486
  %1718 = vmatpush1.bf16.msra.mxu0 %v1485
  %1719 = vmatprep.subr.bf16.mxu0 %v1484
  %1720 = vmatpush1.bf16.msra.mxu0 %v1483
  %1721 = vmatprep.subr.bf16.mxu0 %v1482
  %1722 = vmatpush1.bf16.msra.mxu0 %v1481
  %1723 = vmatprep.subr.bf16.mxu0 %v1480
  %1724 = vmatpush1.bf16.msra.mxu0 %v1479
  %1725 = vmatprep.subr.bf16.mxu0 %v1478
  %1726 = vmatpush1.bf16.msra.mxu0 %v1477
  %1727 = vmatprep.subr.bf16.mxu0 %v1476
  %1728 = vmatpush1.bf16.msra.mxu0 %v1475
  %1729 = vmatprep.subr.bf16.mxu0 %v1474
  %1730 = vmatpush1.bf16.msra.mxu0 %v1473
  %1731 = vmatprep.subr.bf16.mxu0 %v1472
  %1732 = vmatpush1.bf16.msra.mxu0 %v1471
  %1733 = vmatprep.subr.bf16.mxu0 %v1502
  %1734 = vmatpush2.bf16.msra.mxu0 %v1501
  %1735 = vmatprep.subr.bf16.mxu0 %v1500
  %1736 = vmatpush2.bf16.msra.mxu0 %v1499
  %1737 = vmatprep.subr.bf16.mxu0 %v1498
  %1738 = vmatpush2.bf16.msra.mxu0 %v1497
  %1739 = vmatprep.subr.bf16.mxu0 %v1496
  %1740 = vmatpush2.bf16.msra.mxu0 %v1495
  %1741 = vmatprep.subr.bf16.mxu0 %v1494
  %1742 = vmatpush2.bf16.msra.mxu0 %v1493
  %1743 = vmatprep.subr.bf16.mxu0 %v1492
  %1744 = vmatpush2.bf16.msra.mxu0 %v1491
  %1745 = vmatprep.subr.bf16.mxu0 %v1490
  %1746 = vmatpush2.bf16.msra.mxu0 %v1489
  %1747 = vmatprep.subr.bf16.mxu0 %v1488
  %1748 = vmatpush2.bf16.msra.mxu0 %v1487
  %1749 = vmatprep.mubr.bf16.mxu0 %v1062
  %1750 = vmatmul.mubr.bf16.gmra.mxu0 %v1061
  %v1751 = vpop.f32.mrf.mxu0
  %v1752 = vadd.f32 %v1709, %v1751
  %v1753 = vpop.f32.mrf.mxu0
  %v1754 = vadd.f32 %v1711, %v1753
  %v1755 = vpop.f32.mrf.mxu0
  %v1756 = vadd.f32 %v1713, %v1755
  %v1757 = vpop.f32.mrf.mxu0
  %v1758 = vadd.f32 %v1715, %v1757
  %1759 = vdwg.mxu0
  %1760 = vmatprep.subr.bf16.mxu0 %v1518
  %1761 = vmatpush1.bf16.msra.mxu0 %v1517
  %1762 = vmatprep.subr.bf16.mxu0 %v1516
  %1763 = vmatpush1.bf16.msra.mxu0 %v1515
  %1764 = vmatprep.subr.bf16.mxu0 %v1514
  %1765 = vmatpush1.bf16.msra.mxu0 %v1513
  %1766 = vmatprep.subr.bf16.mxu0 %v1512
  %1767 = vmatpush1.bf16.msra.mxu0 %v1511
  %1768 = vmatprep.subr.bf16.mxu0 %v1510
  %1769 = vmatpush1.bf16.msra.mxu0 %v1509
  %1770 = vmatprep.subr.bf16.mxu0 %v1508
  %1771 = vmatpush1.bf16.msra.mxu0 %v1507
  %1772 = vmatprep.subr.bf16.mxu0 %v1506
  %1773 = vmatpush1.bf16.msra.mxu0 %v1505
  %1774 = vmatprep.subr.bf16.mxu0 %v1504
  %1775 = vmatpush1.bf16.msra.mxu0 %v1503
  %1776 = vmatprep.subr.bf16.mxu0 0
  %1777 = vmatpush2.bf16.msra.mxu0 0
  %1778 = vmatprep.subr.bf16.mxu0 0
  %1779 = vmatpush2.bf16.msra.mxu0 0
  %1780 = vmatprep.subr.bf16.mxu0 0
  %1781 = vmatpush2.bf16.msra.mxu0 0
  %1782 = vmatprep.subr.bf16.mxu0 0
  %1783 = vmatpush2.bf16.msra.mxu0 0
  %1784 = vmatprep.subr.bf16.mxu0 0
  %1785 = vmatpush2.bf16.msra.mxu0 0
  %1786 = vmatprep.subr.bf16.mxu0 0
  %1787 = vmatpush2.bf16.msra.mxu0 0
  %1788 = vmatprep.subr.bf16.mxu0 0
  %1789 = vmatpush2.bf16.msra.mxu0 0
  %1790 = vmatprep.subr.bf16.mxu0 0
  %1791 = vmatpush2.bf16.msra.mxu0 0
  %1792 = vmatprep.mubr.bf16.mxu0 0
  %1793 = vmatmul.mubr.bf16.gmra.mxu0 %v1063
  %v1794 = vpop.f32.mrf.mxu0
  %v1795 = vadd.f32 %v1752, %v1794
  %v1796 = vpop.f32.mrf.mxu0
  %v1797 = vadd.f32 %v1754, %v1796
  %v1798 = vpop.f32.mrf.mxu0
  %v1799 = vadd.f32 %v1756, %v1798
  %v1800 = vpop.f32.mrf.mxu0
  %v1801 = vadd.f32 %v1758, %v1800
  %1802 = vdwg.mxu0
  %v1803 = vld [vmem:[%s3] sm:$0x3]
  %v1805 = vlaneseq
  %v1806 = vshrl.u32 %v1805, 7
  %v1807 = vsub.s32 0, %v1806
  %v1808 = vrot.slane %v1803, %v1807
  %v1809 = vlaneseq
  %v1810 = vshrl.u32 %v1809, 7
  %v1811 = vsub.s32 1, %v1810
  %v1812 = vrot.slane %v1803, %v1811
  %v1815 = vadd.f32 %v1795, %v1808
  %v1816 = vadd.f32 %v1797, %v1812
  %v1817 = vadd.f32 %v1799, %v1808
  %v1818 = vadd.f32 %v1801, %v1812
  %v1819 = vmax.f32 %v1815, 0.0
  %v1820 = vmax.f32 %v1816, 0.0
  %v1821 = vmax.f32 %v1817, 0.0
  %v1822 = vmax.f32 %v1818, 0.0
  %v1823 = vld [vmem:[%s4] sm:$0x3]
  %v1825 = vlaneseq
  %v1826 = vshrl.u32 %v1825, 7
  %v1827 = vsub.s32 0, %v1826
  %v1828 = vrot.slane %v1823, %v1827
  %v1829 = vlaneseq
  %v1830 = vshrl.u32 %v1829, 7
  %v1831 = vsub.s32 1, %v1830
  %v1832 = vrot.slane %v1823, %v1831
  %v1835 = vmul.f32 %v1819, %v1828
  %v1836 = vmul.f32 %v1820, %v1832
  %v1837 = vmul.f32 %v1821, %v1828
  %v1838 = vmul.f32 %v1822, %v1832
  %v1839 = vadd.f32 %v1835, %v1836
  %1840 = vadd.xlane.f32.xlu0 %v1839
  %v1841 = vpop.xlane.xlu0 %1840
  %v1842 = vadd.f32 %v1837, %v1838
  %1843 = vadd.xlane.f32.xlu0 %v1842
  %v1844 = vpop.xlane.xlu0 %1843
  %v1845 = vld [vmem:[#allocation2] sm:$0x1]
  %v1847 = vlaneseq
  %v1848 = vshrl.u32 %v1847, 7
  %v1849 = vsub.s32 0, %v1848
  %v1850 = vrot.slane %v1845, %v1849
  %v1852 = vadd.f32 %v1841, %v1850
  %v1853 = vadd.f32 %v1844, %v1850
  %vm1854 = vcmask 7168
  %1855 = vst.msk [vmem:[%s6] sm:$0xff] %vm1854, %v1852
  %1856 = vst.msk [vmem:[%s6 + $0x8] sm:$0xff] %vm1854, %v1853
  // Predicated region
  $region26: #{cwyxx_forward.3} parent=0 // pred_check
    _
  $region27: #{cwyxx_forward.3} parent=0 // pred_check_branch
    %1858 = sbr.rel (0) target = $region29
  $region28: #{cwyxx_forward.3} parent=0 // pred_region
    _
  $region29: #{cwyxx_forward.3} parent=0 // pred_fallthru
    _
  // Predicated region
  $region30: #{cwyxx_forward.3} parent=0 // pred_check
    _
  $region31: #{cwyxx_forward.3} parent=0 // pred_check_branch
    %1860 = sbr.rel (0) target = $region33
  $region32: #{cwyxx_forward.3} parent=0 // pred_region
    _
  $region33: #{cwyxx_forward.3} parent=0 // pred_fallthru
    _

// kernel: cwyxx_forward.2
$region0: #{cwyxx_forward.2}
  #allocation0 [shape = 'u32[]', space=smem, size = 0x4, offset = 0x4, fixed_abs, tag = 'smem constant byte address 0x4 - core index']
  #allocation1 [shape = 'u32[144,128]{1,0:T(1,128)}', space=vmem, size = 0x12000, scoped, tag = 'internal scratch']
  #allocation2 [shape = 'f32[16,896]{1,0:T(8,128)}', space=vmem, size = 0xe000, scoped, tag = 'scratch operand']
  %s0 = inlined_call_operand.vmem [shape: bf16[2,16,4096], index: 0, kind: input, shape index: {}]
  %s1 = inlined_call_operand.hbm [shape: bf16[2,4096,896], index: 1, kind: input, shape index: {}]
  %s2 = inlined_call_operand.hbm [shape: f32[2,1,896], index: 2, kind: input, shape index: {}]
  %s3 = inlined_call_operand.vmem [shape: bf16[2,16,896], index: 3, kind: output, shape index: {}]
  %s4 = sld [smem:[#allocation0]]
  $region84: #{cwyxx_forward.2} parent=0
    _
  %s6 = ssub.s32 1, %s4
  %s7 = scalar_select 0, %s6, %s4
  $region1: #{cwyxx_forward.2} parent=0
    #allocation3 [shape = 'u8[131072]{0}', space=vmem, size = 0x20000, scoped, tag = 'input window, operand 0']
    #allocation4 [shape = 'u8[7340032]{0}', space=vmem, size = 0x700000, scoped, tag = 'input window, operand 1']
    #allocation5 [shape = 's32[2]{0}', space=sflag, size = 0x8, scoped, tag = 'scoped memory for cwyxx_forward.2']
    #allocation6 [shape = 'u8[7168]{0}', space=vmem, size = 0x1c00, scoped, tag = 'input window, operand 2']
    #allocation7 [shape = 's32[2]{0}', space=sflag, size = 0x8, scoped, tag = 'scoped memory for cwyxx_forward.2']
    %8 = vsyncpa [#allocation5], 0
    %s9 = scalar_lea.sflag [#allocation5], 1
    %10 = vsyncpa %s9, 0
    %11 = vsyncpa [#allocation7], 0
    %s12 = scalar_lea.sflag [#allocation7], 1
    %13 = vsyncpa %s12, 0
    loop: start=0, step=1, limit=6
    $region2: #{cwyxx_forward.2} parent=1 // loop_pre_header
      _
    $region3: #{cwyxx_forward.2} parent=1 // loop_header
      %s15 = sphi 0, %s19
      %p16 = scmp.ge.s32.totalorder %s15, 6
      %s22 = sphi 0, %s34
      %s23 = sphi 0, %s30
      %s24 = sphi 0, %s22
      %s25 = sphi 0, %s23
      %s26 = sphi 0, %s24
      %s27 = sphi 0, %s25
      %s39 = sphi 0, %s41
      %s42 = sphi 0, %s39
      %s43 = sphi 0, %s42
      %s59 = sphi 0, %s43
      %s67 = sphi 0, %s69
      %s70 = sphi 0, %s67
      %s71 = sphi 0, %s70
      %s87 = sphi 0, %s71
      %s93 = sphi 0, %s95
      %s96 = sphi 0, %s93
      %s97 = sphi 0, %s96
      %s113 = sphi 0, %s97
      %s119 = sphi 0, %s121
      %s122 = sphi 0, %s119
      %s123 = sphi 0, %s122
      %s139 = sphi 0, %s123
    $region4: #{cwyxx_forward.2} parent=1 // loop_header_branch
      %18 = sbr.rel (%p16) target = $region8
    $region5: #{cwyxx_forward.2} parent=1 // loop_body
      %s20 = ssub.s32 %s15, 1
      %s21 = ssub.s32 %s15, 2
      %s28 = sadd.s32 1, %s23
      %p29 = scmp.ge.s32.totalorder %s28, 2
      %s30 = scalar_select %p29, 0, %s28
      %s31 = sadd.s32 1, %s22
      %s32 = scalar_select %p29, %s31, %s22
      %p33 = scmp.ge.s32.totalorder %s32, 2
      %s34 = scalar_select %p33, 0, %s32
      %s35 = ssub.s32 %s22, %s34
      %s36 = ssub.s32 %s23, %s30
      %s37 = sor.u32 %s35, %s36
      %p38 = scmp.eq.s32.totalorder %s37, 0
      %s40 = sadd.s32 %s39, 1
      %s41 = scalar_select %p38, %s39, %s40
      %p44 = pneg %p38
      %p45 = scmp.eq.s32.totalorder %s15, 3
      %p46 = por %p44, %p45
      %p47 = scmp.ne.s32.totalorder %s39, %s42
      %p48 = scmp.eq.s32.totalorder %s15, 0
      %p49 = por %p47, %p48
      %p50 = scmp.ne.s32.totalorder %s39, %s42
      %p51 = scmp.eq.s32.totalorder %s20, 3
      %p52 = por %p50, %p51
      %p53 = scmp.ne.s32.totalorder %s42, %s43
      %p54 = scmp.eq.s32.totalorder %s20, 0
      %p55 = por %p53, %p54
      %p56 = scmp.ne.s32.totalorder %s42, %s43
      %p57 = scmp.eq.s32.totalorder %s21, 3
      %p58 = por %p56, %p57
      %p60 = scmp.ne.s32.totalorder %s43, %s59
      %p61 = scmp.eq.s32.totalorder %s21, 0
      %p62 = por %p60, %p61
      %s63 = ssub.s32 %s22, %s34
      %s64 = ssub.s32 %s23, %s30
      %s65 = sor.u32 %s63, %s64
      %p66 = scmp.eq.s32.totalorder %s65, 0
      %s68 = sadd.s32 %s67, 1
      %s69 = scalar_select %p66, %s67, %s68
      %p72 = pneg %p66
      %p73 = scmp.eq.s32.totalorder %s15, 3
      %p74 = por %p72, %p73
      %p75 = scmp.ne.s32.totalorder %s67, %s70
      %p76 = scmp.eq.s32.totalorder %s15, 0
      %p77 = por %p75, %p76
      %p78 = scmp.ne.s32.totalorder %s67, %s70
      %p79 = scmp.eq.s32.totalorder %s20, 3
      %p80 = por %p78, %p79
      %p81 = scmp.ne.s32.totalorder %s70, %s71
      %p82 = scmp.eq.s32.totalorder %s20, 0
      %p83 = por %p81, %p82
      %p84 = scmp.ne.s32.totalorder %s70, %s71
      %p85 = scmp.eq.s32.totalorder %s21, 3
      %p86 = por %p84, %p85
      %p88 = scmp.ne.s32.totalorder %s71, %s87
      %p89 = scmp.eq.s32.totalorder %s21, 0
      %p90 = por %p88, %p89
      %s91 = ssub.s32 %s22, %s34
      %p92 = scmp.eq.s32.totalorder %s91, 0
      %s94 = sadd.s32 %s93, 1
      %s95 = scalar_select %p92, %s93, %s94
      %p98 = pneg %p92
      %p99 = scmp.eq.s32.totalorder %s15, 3
      %p100 = por %p98, %p99
      %p101 = scmp.ne.s32.totalorder %s93, %s96
      %p102 = scmp.eq.s32.totalorder %s15, 0
      %p103 = por %p101, %p102
      %p104 = scmp.ne.s32.totalorder %s93, %s96
      %p105 = scmp.eq.s32.totalorder %s20, 3
      %p106 = por %p104, %p105
      %p107 = scmp.ne.s32.totalorder %s96, %s97
      %p108 = scmp.eq.s32.totalorder %s20, 0
      %p109 = por %p107, %p108
      %p110 = scmp.ne.s32.totalorder %s96, %s97
      %p111 = scmp.eq.s32.totalorder %s21, 3
      %p112 = por %p110, %p111
      %p114 = scmp.ne.s32.totalorder %s97, %s113
      %p115 = scmp.eq.s32.totalorder %s21, 0
      %p116 = por %p114, %p115
      %s117 = ssub.s32 %s22, %s34
      %p118 = scmp.eq.s32.totalorder %s117, 0
      %s120 = sadd.s32 %s119, 1
      %s121 = scalar_select %p118, %s119, %s120
      %p124 = pneg %p118
      %p125 = scmp.eq.s32.totalorder %s15, 3
      %p126 = por %p124, %p125
      %p127 = scmp.ne.s32.totalorder %s119, %s122
      %p128 = scmp.eq.s32.totalorder %s15, 0
      %p129 = por %p127, %p128
      %p130 = scmp.ne.s32.totalorder %s119, %s122
      %p131 = scmp.eq.s32.totalorder %s20, 3
      %p132 = por %p130, %p131
      %p133 = scmp.ne.s32.totalorder %s122, %s123
      %p134 = scmp.eq.s32.totalorder %s20, 0
      %p135 = por %p133, %p134
      %p136 = scmp.ne.s32.totalorder %s122, %s123
      %p137 = scmp.eq.s32.totalorder %s21, 3
      %p138 = por %p136, %p137
      %p140 = scmp.ne.s32.totalorder %s123, %s139
      %p141 = scmp.eq.s32.totalorder %s21, 0
      %p142 = por %p140, %p141
      %p143 = scmp.le.s32.totalorder 1, %s15
      %p144 = scmp.lt.s32.totalorder %s15, 5
      %p145 = pnand %p143, %p144
      %p146 = pneg %p145
      // Predicated region
      $region9: #{cwyxx_forward.2} parent=5 // pred_check
        _
      $region10: #{cwyxx_forward.2} parent=5 // pred_check_branch
        %148 = sbr.rel (%p145) target = $region12
      $region11: #{cwyxx_forward.2} parent=5 // pred_region
        %s149 = ssub.s32 %s15, 1
      $region12: #{cwyxx_forward.2} parent=5 // pred_fallthru
        _
      %p150 = scmp.lt.s32.totalorder %s15, 4
      // Predicated region
      $region13: #{cwyxx_forward.2} parent=5 // pred_check
        %p151 = pneg %p150
      $region14: #{cwyxx_forward.2} parent=5 // pred_check_branch
        %153 = sbr.rel (%p151) target = $region16
      $region15: #{cwyxx_forward.2} parent=5 // pred_region
        // Predicated region
        $region17: #{cwyxx_forward.2} parent=15 // pred_check
          %p154 = pneg %p49
        $region18: #{cwyxx_forward.2} parent=15 // pred_check_branch
          %156 = sbr.rel (%p154) target = $region20
        $region19: #{cwyxx_forward.2} parent=15 // pred_region
          %s157 = sand.u32 %s39, 1
          %s158 = sand.u32 %s39, 1
          %s159 = smul.addr %s158, 128
          %s160 = scalar_lea.vmem [#allocation3], %s159
          %s161 = smul.u32 16, %s23
          %s162 = smul.addr %s22, 64
          %s163 = sadd.s32 %s161, %s162
          %s164 = smul.addr %s163, 4
          %s165 = scalar_lea.vmem %s0, %s164
          // Predicated region
          $region21: #{cwyxx_forward.2} parent=19 // pred_check
            _
          $region22: #{cwyxx_forward.2} parent=19 // pred_check_branch
            %167 = sbr.rel (0) target = $region24
          $region23: #{cwyxx_forward.2} parent=19 // pred_region
            // Predicated region
            $region25: #{cwyxx_forward.2} parent=23 // pred_check
              _
            $region26: #{cwyxx_forward.2} parent=23 // pred_check_branch
              %169 = sbr.rel (0) target = $region28
            $region27: #{cwyxx_forward.2} parent=23 // pred_region
              loop: start=0, step=1, limit=1
              $region29: #{cwyxx_forward.2} parent=27 // loop_pre_header
                _
              $region30: #{cwyxx_forward.2} parent=27 // loop_header
                %s171 = sphi 0, %s175
                %p172 = scmp.ge.s32.totalorder %s171, 1
                %s176 = sphi %s165, %s165
                %s177 = sphi %s160, %s160
              $region31: #{cwyxx_forward.2} parent=27 // loop_header_branch
                %174 = sbr.rel (%p172) target = $region35
              $region32: #{cwyxx_forward.2} parent=27 // loop_body
                %v178 = vld [vmem:[%s176] sm:$0xff]
                %179 = vst [vmem:[%s177] sm:$0xff] %v178
                %v180 = vld [vmem:[%s176 + $0x8] sm:$0xff]
                %181 = vst [vmem:[%s177 + $0x8] sm:$0xff] %v180
                %v182 = vld [vmem:[%s176 + $0x10] sm:$0xff]
                %183 = vst [vmem:[%s177 + $0x10] sm:$0xff] %v182
                %v184 = vld [vmem:[%s176 + $0x18] sm:$0xff]
                %185 = vst [vmem:[%s177 + $0x18] sm:$0xff] %v184
                %v186 = vld [vmem:[%s176 + $0x20] sm:$0xff]
                %187 = vst [vmem:[%s177 + $0x20] sm:$0xff] %v186
                %v188 = vld [vmem:[%s176 + $0x28] sm:$0xff]
                %189 = vst [vmem:[%s177 + $0x28] sm:$0xff] %v188
                %v190 = vld [vmem:[%s176 + $0x30] sm:$0xff]
                %191 = vst [vmem:[%s177 + $0x30] sm:$0xff] %v190
                %v192 = vld [vmem:[%s176 + $0x38] sm:$0xff]
                %193 = vst [vmem:[%s177 + $0x38] sm:$0xff] %v192
                %v194 = vld [vmem:[%s176 + $0x80] sm:$0xff]
                %195 = vst [vmem:[%s177 + $0x40] sm:$0xff] %v194
                %v196 = vld [vmem:[%s176 + $0x88] sm:$0xff]
                %197 = vst [vmem:[%s177 + $0x48] sm:$0xff] %v196
                %v198 = vld [vmem:[%s176 + $0x90] sm:$0xff]
                %199 = vst [vmem:[%s177 + $0x50] sm:$0xff] %v198
                %v200 = vld [vmem:[%s176 + $0x98] sm:$0xff]
                %201 = vst [vmem:[%s177 + $0x58] sm:$0xff] %v200
                %v202 = vld [vmem:[%s176 + $0xa0] sm:$0xff]
                %203 = vst [vmem:[%s177 + $0x60] sm:$0xff] %v202
                %v204 = vld [vmem:[%s176 + $0xa8] sm:$0xff]
                %205 = vst [vmem:[%s177 + $0x68] sm:$0xff] %v204
                %v206 = vld [vmem:[%s176 + $0xb0] sm:$0xff]
                %207 = vst [vmem:[%s177 + $0x70] sm:$0xff] %v206
                %v208 = vld [vmem:[%s176 + $0xb8] sm:$0xff]
                %209 = vst [vmem:[%s177 + $0x78] sm:$0xff] %v208
              $region33: #{cwyxx_forward.2} parent=27 // loop_footer
                %s175 = sadd.s32 1, %s171
              $region34: #{cwyxx_forward.2} parent=27 // loop_footer_branch
                %170 = sbr.rel target = $region30
              $region35: #{cwyxx_forward.2} parent=27 // loop_exit
                _
            $region28: #{cwyxx_forward.2} parent=23 // pred_fallthru
              _
            // Predicated region
            $region36: #{cwyxx_forward.2} parent=23 // pred_check
              _
            $region37: #{cwyxx_forward.2} parent=23 // pred_check_branch
              %211 = sbr.rel target = $region39
            $region38: #{cwyxx_forward.2} parent=23 // pred_region
              _
            $region39: #{cwyxx_forward.2} parent=23 // pred_fallthru
              _
          $region24: #{cwyxx_forward.2} parent=19 // pred_fallthru
            _
          %212 = vnop
        $region20: #{cwyxx_forward.2} parent=15 // pred_fallthru
          _
        // Predicated region
        $region40: #{cwyxx_forward.2} parent=15 // pred_check
          %p213 = pneg %p77
        $region41: #{cwyxx_forward.2} parent=15 // pred_check_branch
          %215 = sbr.rel (%p213) target = $region43
        $region42: #{cwyxx_forward.2} parent=15 // pred_region
          %s216 = sand.u32 %s67, 1
          %s217 = scalar_lea.sflag [#allocation5], %s216
          %s218 = sand.u32 %s67, 1
          %s219 = smul.addr %s218, 7168
          %s220 = scalar_lea.vmem [#allocation4], %s219
          %s221 = smul.u32 256, %s23
          %s223 = ssub.s32 114688, 114688
          %224 = vsyncadd %s217, %s223
          %s225 = smul.addr %s221, 7
          %s226 = smul.addr %s22, 3584
          %s227 = sadd.s32 %s225, %s226
          %s228 = smul.addr %s227, 64
          %s229 = scalar_lea.hbm %s1, %s228
          %s230 = sshll.u32 %s220, 4
          %s231 = int_to_ptr.vmem [resolvable:$true] %s230
          %236 = dma.hbm_to_vmem [thread:$0]  %s229, 114688, %s231, %s217, 448, 448, 28
        $region43: #{cwyxx_forward.2} parent=15 // pred_fallthru
          _
        // Predicated region
        $region44: #{cwyxx_forward.2} parent=15 // pred_check
          %p237 = pneg %p103
        $region45: #{cwyxx_forward.2} parent=15 // pred_check_branch
          %239 = sbr.rel (%p237) target = $region47
        $region46: #{cwyxx_forward.2} parent=15 // pred_region
          %s240 = sand.u32 %s93, 1
          %s241 = scalar_lea.sflag [#allocation7], %s240
          %s242 = sand.u32 %s93, 1
          %s243 = smul.addr %s242, 7
          %s244 = scalar_lea.vmem [#allocation6], %s243
          %s246 = ssub.s32 112, 112
          %247 = vsyncadd %s241, %s246
          %s248 = smul.addr %s22, 7
          %s249 = smul.addr %s248, 16
          %s250 = scalar_lea.hbm %s2, %s249
          %s252 = sshll.u32 %s244, 4
          %s253 = int_to_ptr.vmem [resolvable:$true] %s252
          %255 = dma.hbm_to_vmem [thread:$0]  %s250, 112, %s253, %s241
        $region47: #{cwyxx_forward.2} parent=15 // pred_fallthru
          _
      $region16: #{cwyxx_forward.2} parent=5 // pred_fallthru
        _
      %p256 = scmp.le.s32.totalorder 1, %s15
      %p257 = scmp.lt.s32.totalorder %s15, 5
      %p258 = pnand %p256, %p257
      %p259 = pneg %p258
      // Predicated region
      $region48: #{cwyxx_forward.2} parent=5 // pred_check
        _
      $region49: #{cwyxx_forward.2} parent=5 // pred_check_branch
        %261 = sbr.rel (%p258) target = $region51
      $region50: #{cwyxx_forward.2} parent=5 // pred_region
        %s262 = ssub.s32 %s15, 1
        %s263 = sand.u32 %s42, 1
        %s264 = sand.u32 %s42, 1
        %s265 = smul.addr %s264, 128
        %s266 = scalar_lea.vmem [#allocation3], %s265
        // Predicated region
        $region52: #{cwyxx_forward.2} parent=50 // pred_check
          %p267 = pneg %p55
        $region53: #{cwyxx_forward.2} parent=50 // pred_check_branch
          %269 = sbr.rel (%p267) target = $region55
        $region54: #{cwyxx_forward.2} parent=50 // pred_region
          _
        $region55: #{cwyxx_forward.2} parent=50 // pred_fallthru
          _
        %s270 = sand.u32 %s70, 1
        %s271 = scalar_lea.sflag [#allocation5], %s270
        %s272 = sand.u32 %s70, 1
        %s273 = smul.addr %s272, 7168
        %s274 = scalar_lea.vmem [#allocation4], %s273
        // Predicated region
        $region56: #{cwyxx_forward.2} parent=50 // pred_check
          %p275 = pneg %p83
        $region57: #{cwyxx_forward.2} parent=50 // pred_check_branch
          %277 = sbr.rel (%p275) target = $region59
        $region58: #{cwyxx_forward.2} parent=50 // pred_region
          %278 = dma.done %s271, 114688
        $region59: #{cwyxx_forward.2} parent=50 // pred_fallthru
          _
        %s279 = sand.u32 %s96, 1
        %s280 = scalar_lea.sflag [#allocation7], %s279
        %s281 = sand.u32 %s96, 1
        %s282 = smul.addr %s281, 7
        %s283 = scalar_lea.vmem [#allocation6], %s282
        // Predicated region
        $region60: #{cwyxx_forward.2} parent=50 // pred_check
          %p284 = pneg %p109
        $region61: #{cwyxx_forward.2} parent=50 // pred_check_branch
          %286 = sbr.rel (%p284) target = $region63
        $region62: #{cwyxx_forward.2} parent=50 // pred_region
          %287 = dma.done %s280, 112
        $region63: #{cwyxx_forward.2} parent=50 // pred_fallthru
          _
        %s288 = sand.u32 %s42, 1
        %s289 = sand.u32 %s42, 1
        %s290 = smul.addr %s289, 128
        %s291 = scalar_lea.vmem [#allocation3], %s290
        %p292 = pneg %p55
        %p293 = pneg %p52
        %s294 = sand.u32 %s70, 1
        %s295 = scalar_lea.sflag [#allocation5], %s294
        %s296 = sand.u32 %s70, 1
        %s297 = smul.addr %s296, 7168
        %s298 = scalar_lea.vmem [#allocation4], %s297
        %p299 = pneg %p83
        %p300 = pneg %p80
        %s301 = sand.u32 %s96, 1
        %s302 = scalar_lea.sflag [#allocation7], %s301
        %s303 = sand.u32 %s96, 1
        %s304 = smul.addr %s303, 7
        %s305 = scalar_lea.vmem [#allocation6], %s304
        %p306 = pneg %p109
        %p307 = pneg %p106
        %p308 = pneg %p135
        %p309 = pneg %p132
        %p310 = scmp.lt.s32.totalorder %s24, 1
        %s311 = scalar_select %p310, %s24, 1
        %s312 = smul.addr %s311, 14
        %s313 = smul.addr %s312, 4
        %s314 = scalar_lea.vmem %s3, %s313
        %s315 = smul.u32 16, %s25
        %s316 = smul.u32 256, %s25
        %p317 = scmp.lt.s32.totalorder %s24, 1
        %s318 = scalar_select %p317, %s24, 1
        %s319 = smul.addr %s318, 14
        %s320 = smul.addr %s319, 4
        %s321 = scalar_lea.vmem %s3, %s320
        %p323 = scmp.eq.s32.totalorder %s25, 0
        // Predicated region
        $region64: #{cwyxx_forward.2} parent=50 // pred_check
          %p324 = pneg %p323
        $region65: #{cwyxx_forward.2} parent=50 // pred_check_branch
          %326 = sbr.rel (%p324) target = $region67
        $region66: #{cwyxx_forward.2} parent=50 // pred_region
          %327 = vst [vmem:[#allocation2] sm:$0xff] 0.0
          %328 = vst [vmem:[#allocation2 + $0x8] sm:$0xff] 0.0
          %329 = vst [vmem:[#allocation2 + $0x10] sm:$0xff] 0.0
          %330 = vst [vmem:[#allocation2 + $0x18] sm:$0xff] 0.0
          %331 = vst [vmem:[#allocation2 + $0x20] sm:$0xff] 0.0
          %332 = vst [vmem:[#allocation2 + $0x28] sm:$0xff] 0.0
          %333 = vst [vmem:[#allocation2 + $0x30] sm:$0xff] 0.0
          %334 = vst [vmem:[#allocation2 + $0x38] sm:$0xff] 0.0
          %335 = vst [vmem:[#allocation2 + $0x40] sm:$0xff] 0.0
          %336 = vst [vmem:[#allocation2 + $0x48] sm:$0xff] 0.0
          %337 = vst [vmem:[#allocation2 + $0x50] sm:$0xff] 0.0
          %338 = vst [vmem:[#allocation2 + $0x58] sm:$0xff] 0.0
          %339 = vst [vmem:[#allocation2 + $0x60] sm:$0xff] 0.0
          %340 = vst [vmem:[#allocation2 + $0x68] sm:$0xff] 0.0
        $region67: #{cwyxx_forward.2} parent=50 // pred_fallthru
          _
        %v341 = vld [vmem:[#allocation2] sm:$0xff]
        %v342 = vld [vmem:[#allocation2 + $0x8] sm:$0xff]
        %v343 = vld [vmem:[#allocation2 + $0x10] sm:$0xff]
        %v344 = vld [vmem:[#allocation2 + $0x18] sm:$0xff]
        %v345 = vld [vmem:[#allocation2 + $0x20] sm:$0xff]
        %v346 = vld [vmem:[#allocation2 + $0x28] sm:$0xff]
        %v347 = vld [vmem:[#allocation2 + $0x30] sm:$0xff]
        %v348 = vld [vmem:[#allocation2 + $0x38] sm:$0xff]
        %v349 = vld [vmem:[#allocation2 + $0x40] sm:$0xff]
        %v350 = vld [vmem:[#allocation2 + $0x48] sm:$0xff]
        %v351 = vld [vmem:[#allocation2 + $0x50] sm:$0xff]
        %v352 = vld [vmem:[#allocation2 + $0x58] sm:$0xff]
        %v353 = vld [vmem:[#allocation2 + $0x60] sm:$0xff]
        %v354 = vld [vmem:[#allocation2 + $0x68] sm:$0xff]
        %v355 = vld [vmem:[%s266] sm:$0xff]
        %v356 = vld [vmem:[%s266 + $0x8] sm:$0xff]
        %v357 = vld [vmem:[%s266 + $0x10] sm:$0xff]
        %v358 = vld [vmem:[%s266 + $0x18] sm:$0xff]
        %v359 = vld [vmem:[%s266 + $0x20] sm:$0xff]
        %v360 = vld [vmem:[%s266 + $0x28] sm:$0xff]
        %v361 = vld [vmem:[%s266 + $0x30] sm:$0xff]
        %v362 = vld [vmem:[%s266 + $0x38] sm:$0xff]
        %v363 = vld [vmem:[%s266 + $0x40] sm:$0xff]
        %v364 = vld [vmem:[%s266 + $0x48] sm:$0xff]
        %v365 = vld [vmem:[%s266 + $0x50] sm:$0xff]
        %v366 = vld [vmem:[%s266 + $0x58] sm:$0xff]
        %v367 = vld [vmem:[%s266 + $0x60] sm:$0xff]
        %v368 = vld [vmem:[%s266 + $0x68] sm:$0xff]
        %v369 = vld [vmem:[%s266 + $0x70] sm:$0xff]
        %v370 = vld [vmem:[%s266 + $0x78] sm:$0xff]
        %v371 = vld [vmem:[%s274] sm:$0xff]
        %v372 = vld [vmem:[%s274 + $0x8] sm:$0xff]
        %v373 = vld [vmem:[%s274 + $0x10] sm:$0xff]
        %v374 = vld [vmem:[%s274 + $0x18] sm:$0xf]
        %v375 = vld [vmem:[%s274 + $0x1c] sm:$0xff]
        %v376 = vld [vmem:[%s274 + $0x24] sm:$0xff]
        %v377 = vld [vmem:[%s274 + $0x2c] sm:$0xff]
        %v378 = vld [vmem:[%s274 + $0x34] sm:$0xf]
        %v379 = vld [vmem:[%s274 + $0x38] sm:$0xff]
        %v380 = vld [vmem:[%s274 + $0x40] sm:$0xff]
        %v381 = vld [vmem:[%s274 + $0x48] sm:$0xff]
        %v382 = vld [vmem:[%s274 + $0x50] sm:$0xf]
        %v383 = vld [vmem:[%s274 + $0x54] sm:$0xff]
        %v384 = vld [vmem:[%s274 + $0x5c] sm:$0xff]
        %v385 = vld [vmem:[%s274 + $0x64] sm:$0xff]
        %v386 = vld [vmem:[%s274 + $0x6c] sm:$0xf]
        %v387 = vld [vmem:[%s274 + $0x70] sm:$0xff]
        %v388 = vld [vmem:[%s274 + $0x78] sm:$0xff]
        %v389 = vld [vmem:[%s274 + $0x80] sm:$0xff]
        %v390 = vld [vmem:[%s274 + $0x88] sm:$0xf]
        %v391 = vld [vmem:[%s274 + $0x8c] sm:$0xff]
        %v392 = vld [vmem:[%s274 + $0x94] sm:$0xff]
        %v393 = vld [vmem:[%s274 + $0x9c] sm:$0xff]
        %v394 = vld [vmem:[%s274 + $0xa4] sm:$0xf]
        %v395 = vld [vmem:[%s274 + $0xa8] sm:$0xff]
        %v396 = vld [vmem:[%s274 + $0xb0] sm:$0xff]
        %v397 = vld [vmem:[%s274 + $0xb8] sm:$0xff]
        %v398 = vld [vmem:[%s274 + $0xc0] sm:$0xf]
        %v399 = vld [vmem:[%s274 + $0xc4] sm:$0xff]
        %v400 = vld [vmem:[%s274 + $0xcc] sm:$0xff]
        %v401 = vld [vmem:[%s274 + $0xd4] sm:$0xff]
        %v402 = vld [vmem:[%s274 + $0xdc] sm:$0xf]
        %v403 = vld [vmem:[%s274 + $0xe0] sm:$0xff]
        %v404 = vld [vmem:[%s274 + $0xe8] sm:$0xff]
        %v405 = vld [vmem:[%s274 + $0xf0] sm:$0xff]
        %v406 = vld [vmem:[%s274 + $0xf8] sm:$0xf]
        %v407 = vld [vmem:[%s274 + $0xfc] sm:$0xff]
        %v408 = vld [vmem:[%s274 + $0x104] sm:$0xff]
        %v409 = vld [vmem:[%s274 + $0x10c] sm:$0xff]
        %v410 = vld [vmem:[%s274 + $0x114] sm:$0xf]
        %v411 = vld [vmem:[%s274 + $0x118] sm:$0xff]
        %v412 = vld [vmem:[%s274 + $0x120] sm:$0xff]
        %v413 = vld [vmem:[%s274 + $0x128] sm:$0xff]
        %v414 = vld [vmem:[%s274 + $0x130] sm:$0xf]
        %v415 = vld [vmem:[%s274 + $0x134] sm:$0xff]
        %v416 = vld [vmem:[%s274 + $0x13c] sm:$0xff]
        %v417 = vld [vmem:[%s274 + $0x144] sm:$0xff]
        %v418 = vld [vmem:[%s274 + $0x14c] sm:$0xf]
        %v419 = vld [vmem:[%s274 + $0x150] sm:$0xff]
        %v420 = vld [vmem:[%s274 + $0x158] sm:$0xff]
        %v421 = vld [vmem:[%s274 + $0x160] sm:$0xff]
        %v422 = vld [vmem:[%s274 + $0x168] sm:$0xf]
        %v423 = vld [vmem:[%s274 + $0x16c] sm:$0xff]
        %v424 = vld [vmem:[%s274 + $0x174] sm:$0xff]
        %v425 = vld [vmem:[%s274 + $0x17c] sm:$0xff]
        %v426 = vld [vmem:[%s274 + $0x184] sm:$0xf]
        %v427 = vld [vmem:[%s274 + $0x188] sm:$0xff]
        %v428 = vld [vmem:[%s274 + $0x190] sm:$0xff]
        %v429 = vld [vmem:[%s274 + $0x198] sm:$0xff]
        %v430 = vld [vmem:[%s274 + $0x1a0] sm:$0xf]
        %v431 = vld [vmem:[%s274 + $0x1a4] sm:$0xff]
        %v432 = vld [vmem:[%s274 + $0x1ac] sm:$0xff]
        %v433 = vld [vmem:[%s274 + $0x1b4] sm:$0xff]
        %v434 = vld [vmem:[%s274 + $0x1bc] sm:$0xf]
        %v435 = vld [vmem:[%s274 + $0x1c0] sm:$0xff]
        %v436 = vld [vmem:[%s274 + $0x1c8] sm:$0xff]
        %v437 = vld [vmem:[%s274 + $0x1d0] sm:$0xff]
        %v438 = vld [vmem:[%s274 + $0x1d8] sm:$0xf]
        %v439 = vld [vmem:[%s274 + $0x1dc] sm:$0xff]
        %v440 = vld [vmem:[%s274 + $0x1e4] sm:$0xff]
        %v441 = vld [vmem:[%s274 + $0x1ec] sm:$0xff]
        %v442 = vld [vmem:[%s274 + $0x1f4] sm:$0xf]
        %v443 = vld [vmem:[%s274 + $0x1f8] sm:$0xff]
        %v444 = vld [vmem:[%s274 + $0x200] sm:$0xff]
        %v445 = vld [vmem:[%s274 + $0x208] sm:$0xff]
        %v446 = vld [vmem:[%s274 + $0x210] sm:$0xf]
        %v447 = vld [vmem:[%s274 + $0x214] sm:$0xff]
        %v448 = vld [vmem:[%s274 + $0x21c] sm:$0xff]
        %v449 = vld [vmem:[%s274 + $0x224] sm:$0xff]
        %v450 = vld [vmem:[%s274 + $0x22c] sm:$0xf]
        %v451 = vld [vmem:[%s274 + $0x230] sm:$0xff]
        %v452 = vld [vmem:[%s274 + $0x238] sm:$0xff]
        %v453 = vld [vmem:[%s274 + $0x240] sm:$0xff]
        %v454 = vld [vmem:[%s274 + $0x248] sm:$0xf]
        %v455 = vld [vmem:[%s274 + $0x24c] sm:$0xff]
        %v456 = vld [vmem:[%s274 + $0x254] sm:$0xff]
        %v457 = vld [vmem:[%s274 + $0x25c] sm:$0xff]
        %v458 = vld [vmem:[%s274 + $0x264] sm:$0xf]
        %v459 = vld [vmem:[%s274 + $0x268] sm:$0xff]
        %v460 = vld [vmem:[%s274 + $0x270] sm:$0xff]
        %v461 = vld [vmem:[%s274 + $0x278] sm:$0xff]
        %v462 = vld [vmem:[%s274 + $0x280] sm:$0xf]
        %v463 = vld [vmem:[%s274 + $0x284] sm:$0xff]
        %v464 = vld [vmem:[%s274 + $0x28c] sm:$0xff]
        %v465 = vld [vmem:[%s274 + $0x294] sm:$0xff]
        %v466 = vld [vmem:[%s274 + $0x29c] sm:$0xf]
        %v467 = vld [vmem:[%s274 + $0x2a0] sm:$0xff]
        %v468 = vld [vmem:[%s274 + $0x2a8] sm:$0xff]
        %v469 = vld [vmem:[%s274 + $0x2b0] sm:$0xff]
        %v470 = vld [vmem:[%s274 + $0x2b8] sm:$0xf]
        %v471 = vld [vmem:[%s274 + $0x2bc] sm:$0xff]
        %v472 = vld [vmem:[%s274 + $0x2c4] sm:$0xff]
        %v473 = vld [vmem:[%s274 + $0x2cc] sm:$0xff]
        %v474 = vld [vmem:[%s274 + $0x2d4] sm:$0xf]
        %v475 = vld [vmem:[%s274 + $0x2d8] sm:$0xff]
        %v476 = vld [vmem:[%s274 + $0x2e0] sm:$0xff]
        %v477 = vld [vmem:[%s274 + $0x2e8] sm:$0xff]
        %v478 = vld [vmem:[%s274 + $0x2f0] sm:$0xf]
        %v479 = vld [vmem:[%s274 + $0x2f4] sm:$0xff]
        %v480 = vld [vmem:[%s274 + $0x2fc] sm:$0xff]
        %v481 = vld [vmem:[%s274 + $0x304] sm:$0xff]
        %v482 = vld [vmem:[%s274 + $0x30c] sm:$0xf]
        %v483 = vld [vmem:[%s274 + $0x310] sm:$0xff]
        %v484 = vld [vmem:[%s274 + $0x318] sm:$0xff]
        %v485 = vld [vmem:[%s274 + $0x320] sm:$0xff]
        %v486 = vld [vmem:[%s274 + $0x328] sm:$0xf]
        %v487 = vld [vmem:[%s274 + $0x32c] sm:$0xff]
        %v488 = vld [vmem:[%s274 + $0x334] sm:$0xff]
        %v489 = vld [vmem:[%s274 + $0x33c] sm:$0xff]
        %v490 = vld [vmem:[%s274 + $0x344] sm:$0xf]
        %v491 = vld [vmem:[%s274 + $0x348] sm:$0xff]
        %v492 = vld [vmem:[%s274 + $0x350] sm:$0xff]
        %v493 = vld [vmem:[%s274 + $0x358] sm:$0xff]
        %v494 = vld [vmem:[%s274 + $0x360] sm:$0xf]
        %v495 = vld [vmem:[%s274 + $0x364] sm:$0xff]
        %v496 = vld [vmem:[%s274 + $0x36c] sm:$0xff]
        %v497 = vld [vmem:[%s274 + $0x374] sm:$0xff]
        %v498 = vld [vmem:[%s274 + $0x37c] sm:$0xf]
        %v499 = vld [vmem:[%s274 + $0x380] sm:$0xff]
        %v500 = vld [vmem:[%s274 + $0x388] sm:$0xff]
        %v501 = vld [vmem:[%s274 + $0x390] sm:$0xff]
        %v502 = vld [vmem:[%s274 + $0x398] sm:$0xf]
        %v503 = vld [vmem:[%s274 + $0x39c] sm:$0xff]
        %v504 = vld [vmem:[%s274 + $0x3a4] sm:$0xff]
        %v505 = vld [vmem:[%s274 + $0x3ac] sm:$0xff]
        %v506 = vld [vmem:[%s274 + $0x3b4] sm:$0xf]
        %v507 = vld [vmem:[%s274 + $0x3b8] sm:$0xff]
        %v508 = vld [vmem:[%s274 + $0x3c0] sm:$0xff]
        %v509 = vld [vmem:[%s274 + $0x3c8] sm:$0xff]
        %v510 = vld [vmem:[%s274 + $0x3d0] sm:$0xf]
        %v511 = vld [vmem:[%s274 + $0x3d4] sm:$0xff]
        %v512 = vld [vmem:[%s274 + $0x3dc] sm:$0xff]
        %v513 = vld [vmem:[%s274 + $0x3e4] sm:$0xff]
        %v514 = vld [vmem:[%s274 + $0x3ec] sm:$0xf]
        %v515 = vld [vmem:[%s274 + $0x3f0] sm:$0xff]
        %v516 = vld [vmem:[%s274 + $0x3f8] sm:$0xff]
        %v517 = vld [vmem:[%s274 + $0x400] sm:$0xff]
        %v518 = vld [vmem:[%s274 + $0x408] sm:$0xf]
        %v519 = vld [vmem:[%s274 + $0x40c] sm:$0xff]
        %v520 = vld [vmem:[%s274 + $0x414] sm:$0xff]
        %v521 = vld [vmem:[%s274 + $0x41c] sm:$0xff]
        %v522 = vld [vmem:[%s274 + $0x424] sm:$0xf]
        %v523 = vld [vmem:[%s274 + $0x428] sm:$0xff]
        %v524 = vld [vmem:[%s274 + $0x430] sm:$0xff]
        %v525 = vld [vmem:[%s274 + $0x438] sm:$0xff]
        %v526 = vld [vmem:[%s274 + $0x440] sm:$0xf]
        %v527 = vld [vmem:[%s274 + $0x444] sm:$0xff]
        %v528 = vld [vmem:[%s274 + $0x44c] sm:$0xff]
        %v529 = vld [vmem:[%s274 + $0x454] sm:$0xff]
        %v530 = vld [vmem:[%s274 + $0x45c] sm:$0xf]
        %v531 = vld [vmem:[%s274 + $0x460] sm:$0xff]
        %v532 = vld [vmem:[%s274 + $0x468] sm:$0xff]
        %v533 = vld [vmem:[%s274 + $0x470] sm:$0xff]
        %v534 = vld [vmem:[%s274 + $0x478] sm:$0xf]
        %v535 = vld [vmem:[%s274 + $0x47c] sm:$0xff]
        %v536 = vld [vmem:[%s274 + $0x484] sm:$0xff]
        %v537 = vld [vmem:[%s274 + $0x48c] sm:$0xff]
        %v538 = vld [vmem:[%s274 + $0x494] sm:$0xf]
        %v539 = vld [vmem:[%s274 + $0x498] sm:$0xff]
        %v540 = vld [vmem:[%s274 + $0x4a0] sm:$0xff]
        %v541 = vld [vmem:[%s274 + $0x4a8] sm:$0xff]
        %v542 = vld [vmem:[%s274 + $0x4b0] sm:$0xf]
        %v543 = vld [vmem:[%s274 + $0x4b4] sm:$0xff]
        %v544 = vld [vmem:[%s274 + $0x4bc] sm:$0xff]
        %v545 = vld [vmem:[%s274 + $0x4c4] sm:$0xff]
        %v546 = vld [vmem:[%s274 + $0x4cc] sm:$0xf]
        %v547 = vld [vmem:[%s274 + $0x4d0] sm:$0xff]
        %v548 = vld [vmem:[%s274 + $0x4d8] sm:$0xff]
        %v549 = vld [vmem:[%s274 + $0x4e0] sm:$0xff]
        %v550 = vld [vmem:[%s274 + $0x4e8] sm:$0xf]
        %v551 = vld [vmem:[%s274 + $0x4ec] sm:$0xff]
        %v552 = vld [vmem:[%s274 + $0x4f4] sm:$0xff]
        %v553 = vld [vmem:[%s274 + $0x4fc] sm:$0xff]
        %v554 = vld [vmem:[%s274 + $0x504] sm:$0xf]
        %v555 = vld [vmem:[%s274 + $0x508] sm:$0xff]
        %v556 = vld [vmem:[%s274 + $0x510] sm:$0xff]
        %v557 = vld [vmem:[%s274 + $0x518] sm:$0xff]
        %v558 = vld [vmem:[%s274 + $0x520] sm:$0xf]
        %v559 = vld [vmem:[%s274 + $0x524] sm:$0xff]
        %v560 = vld [vmem:[%s274 + $0x52c] sm:$0xff]
        %v561 = vld [vmem:[%s274 + $0x534] sm:$0xff]
        %v562 = vld [vmem:[%s274 + $0x53c] sm:$0xf]
        %v563 = vld [vmem:[%s274 + $0x540] sm:$0xff]
        %v564 = vld [vmem:[%s274 + $0x548] sm:$0xff]
        %v565 = vld [vmem:[%s274 + $0x550] sm:$0xff]
        %v566 = vld [vmem:[%s274 + $0x558] sm:$0xf]
        %v567 = vld [vmem:[%s274 + $0x55c] sm:$0xff]
        %v568 = vld [vmem:[%s274 + $0x564] sm:$0xff]
        %v569 = vld [vmem:[%s274 + $0x56c] sm:$0xff]
        %v570 = vld [vmem:[%s274 + $0x574] sm:$0xf]
        %v571 = vld [vmem:[%s274 + $0x578] sm:$0xff]
        %v572 = vld [vmem:[%s274 + $0x580] sm:$0xff]
        %v573 = vld [vmem:[%s274 + $0x588] sm:$0xff]
        %v574 = vld [vmem:[%s274 + $0x590] sm:$0xf]
        %v575 = vld [vmem:[%s274 + $0x594] sm:$0xff]
        %v576 = vld [vmem:[%s274 + $0x59c] sm:$0xff]
        %v577 = vld [vmem:[%s274 + $0x5a4] sm:$0xff]
        %v578 = vld [vmem:[%s274 + $0x5ac] sm:$0xf]
        %v579 = vld [vmem:[%s274 + $0x5b0] sm:$0xff]
        %v580 = vld [vmem:[%s274 + $0x5b8] sm:$0xff]
        %v581 = vld [vmem:[%s274 + $0x5c0] sm:$0xff]
        %v582 = vld [vmem:[%s274 + $0x5c8] sm:$0xf]
        %v583 = vld [vmem:[%s274 + $0x5cc] sm:$0xff]
        %v584 = vld [vmem:[%s274 + $0x5d4] sm:$0xff]
        %v585 = vld [vmem:[%s274 + $0x5dc] sm:$0xff]
        %v586 = vld [vmem:[%s274 + $0x5e4] sm:$0xf]
        %v587 = vld [vmem:[%s274 + $0x5e8] sm:$0xff]
        %v588 = vld [vmem:[%s274 + $0x5f0] sm:$0xff]
        %v589 = vld [vmem:[%s274 + $0x5f8] sm:$0xff]
        %v590 = vld [vmem:[%s274 + $0x600] sm:$0xf]
        %v591 = vld [vmem:[%s274 + $0x604] sm:$0xff]
        %v592 = vld [vmem:[%s274 + $0x60c] sm:$0xff]
        %v593 = vld [vmem:[%s274 + $0x614] sm:$0xff]
        %v594 = vld [vmem:[%s274 + $0x61c] sm:$0xf]
        %v595 = vld [vmem:[%s274 + $0x620] sm:$0xff]
        %v596 = vld [vmem:[%s274 + $0x628] sm:$0xff]
        %v597 = vld [vmem:[%s274 + $0x630] sm:$0xff]
        %v598 = vld [vmem:[%s274 + $0x638] sm:$0xf]
        %v599 = vld [vmem:[%s274 + $0x63c] sm:$0xff]
        %v600 = vld [vmem:[%s274 + $0x644] sm:$0xff]
        %v601 = vld [vmem:[%s274 + $0x64c] sm:$0xff]
        %v602 = vld [vmem:[%s274 + $0x654] sm:$0xf]
        %v603 = vld [vmem:[%s274 + $0x658] sm:$0xff]
        %v604 = vld [vmem:[%s274 + $0x660] sm:$0xff]
        %v605 = vld [vmem:[%s274 + $0x668] sm:$0xff]
        %v606 = vld [vmem:[%s274 + $0x670] sm:$0xf]
        %v607 = vld [vmem:[%s274 + $0x674] sm:$0xff]
        %v608 = vld [vmem:[%s274 + $0x67c] sm:$0xff]
        %v609 = vld [vmem:[%s274 + $0x684] sm:$0xff]
        %v610 = vld [vmem:[%s274 + $0x68c] sm:$0xf]
        %v611 = vld [vmem:[%s274 + $0x690] sm:$0xff]
        %v612 = vld [vmem:[%s274 + $0x698] sm:$0xff]
        %v613 = vld [vmem:[%s274 + $0x6a0] sm:$0xff]
        %v614 = vld [vmem:[%s274 + $0x6a8] sm:$0xf]
        %v615 = vld [vmem:[%s274 + $0x6ac] sm:$0xff]
        %v616 = vld [vmem:[%s274 + $0x6b4] sm:$0xff]
        %v617 = vld [vmem:[%s274 + $0x6bc] sm:$0xff]
        %v618 = vld [vmem:[%s274 + $0x6c4] sm:$0xf]
        %v619 = vld [vmem:[%s274 + $0x6c8] sm:$0xff]
        %v620 = vld [vmem:[%s274 + $0x6d0] sm:$0xff]
        %v621 = vld [vmem:[%s274 + $0x6d8] sm:$0xff]
        %v622 = vld [vmem:[%s274 + $0x6e0] sm:$0xf]
        %v623 = vld [vmem:[%s274 + $0x6e4] sm:$0xff]
        %v624 = vld [vmem:[%s274 + $0x6ec] sm:$0xff]
        %v625 = vld [vmem:[%s274 + $0x6f4] sm:$0xff]
        %v626 = vld [vmem:[%s274 + $0x6fc] sm:$0xf]
        %v627 = vld [vmem:[%s274 + $0x700] sm:$0xff]
        %v628 = vld [vmem:[%s274 + $0x708] sm:$0xff]
        %v629 = vld [vmem:[%s274 + $0x710] sm:$0xff]
        %v630 = vld [vmem:[%s274 + $0x718] sm:$0xf]
        %v631 = vld [vmem:[%s274 + $0x71c] sm:$0xff]
        %v632 = vld [vmem:[%s274 + $0x724] sm:$0xff]
        %v633 = vld [vmem:[%s274 + $0x72c] sm:$0xff]
        %v634 = vld [vmem:[%s274 + $0x734] sm:$0xf]
        %v635 = vld [vmem:[%s274 + $0x738] sm:$0xff]
        %v636 = vld [vmem:[%s274 + $0x740] sm:$0xff]
        %v637 = vld [vmem:[%s274 + $0x748] sm:$0xff]
        %v638 = vld [vmem:[%s274 + $0x750] sm:$0xf]
        %v639 = vld [vmem:[%s274 + $0x754] sm:$0xff]
        %v640 = vld [vmem:[%s274 + $0x75c] sm:$0xff]
        %v641 = vld [vmem:[%s274 + $0x764] sm:$0xff]
        %v642 = vld [vmem:[%s274 + $0x76c] sm:$0xf]
        %v643 = vld [vmem:[%s274 + $0x770] sm:$0xff]
        %v644 = vld [vmem:[%s274 + $0x778] sm:$0xff]
        %v645 = vld [vmem:[%s274 + $0x780] sm:$0xff]
        %v646 = vld [vmem:[%s274 + $0x788] sm:$0xf]
        %v647 = vld [vmem:[%s274 + $0x78c] sm:$0xff]
        %v648 = vld [vmem:[%s274 + $0x794] sm:$0xff]
        %v649 = vld [vmem:[%s274 + $0x79c] sm:$0xff]
        %v650 = vld [vmem:[%s274 + $0x7a4] sm:$0xf]
        %v651 = vld [vmem:[%s274 + $0x7a8] sm:$0xff]
        %v652 = vld [vmem:[%s274 + $0x7b0] sm:$0xff]
        %v653 = vld [vmem:[%s274 + $0x7b8] sm:$0xff]
        %v654 = vld [vmem:[%s274 + $0x7c0] sm:$0xf]
        %v655 = vld [vmem:[%s274 + $0x7c4] sm:$0xff]
        %v656 = vld [vmem:[%s274 + $0x7cc] sm:$0xff]
        %v657 = vld [vmem:[%s274 + $0x7d4] sm:$0xff]
        %v658 = vld [vmem:[%s274 + $0x7dc] sm:$0xf]
        %v659 = vld [vmem:[%s274 + $0x7e0] sm:$0xff]
        %v660 = vld [vmem:[%s274 + $0x7e8] sm:$0xff]
        %v661 = vld [vmem:[%s274 + $0x7f0] sm:$0xff]
        %v662 = vld [vmem:[%s274 + $0x7f8] sm:$0xf]
        %v663 = vld [vmem:[%s274 + $0x7fc] sm:$0xff]
        %v664 = vld [vmem:[%s274 + $0x804] sm:$0xff]
        %v665 = vld [vmem:[%s274 + $0x80c] sm:$0xff]
        %v666 = vld [vmem:[%s274 + $0x814] sm:$0xf]
        %v667 = vld [vmem:[%s274 + $0x818] sm:$0xff]
        %v668 = vld [vmem:[%s274 + $0x820] sm:$0xff]
        %v669 = vld [vmem:[%s274 + $0x828] sm:$0xff]
        %v670 = vld [vmem:[%s274 + $0x830] sm:$0xf]
        %v671 = vld [vmem:[%s274 + $0x834] sm:$0xff]
        %v672 = vld [vmem:[%s274 + $0x83c] sm:$0xff]
        %v673 = vld [vmem:[%s274 + $0x844] sm:$0xff]
        %v674 = vld [vmem:[%s274 + $0x84c] sm:$0xf]
        %v675 = vld [vmem:[%s274 + $0x850] sm:$0xff]
        %v676 = vld [vmem:[%s274 + $0x858] sm:$0xff]
        %v677 = vld [vmem:[%s274 + $0x860] sm:$0xff]
        %v678 = vld [vmem:[%s274 + $0x868] sm:$0xf]
        %v679 = vld [vmem:[%s274 + $0x86c] sm:$0xff]
        %v680 = vld [vmem:[%s274 + $0x874] sm:$0xff]
        %v681 = vld [vmem:[%s274 + $0x87c] sm:$0xff]
        %v682 = vld [vmem:[%s274 + $0x884] sm:$0xf]
        %v683 = vld [vmem:[%s274 + $0x888] sm:$0xff]
        %v684 = vld [vmem:[%s274 + $0x890] sm:$0xff]
        %v685 = vld [vmem:[%s274 + $0x898] sm:$0xff]
        %v686 = vld [vmem:[%s274 + $0x8a0] sm:$0xf]
        %v687 = vld [vmem:[%s274 + $0x8a4] sm:$0xff]
        %v688 = vld [vmem:[%s274 + $0x8ac] sm:$0xff]
        %v689 = vld [vmem:[%s274 + $0x8b4] sm:$0xff]
        %v690 = vld [vmem:[%s274 + $0x8bc] sm:$0xf]
        %v691 = vld [vmem:[%s274 + $0x8c0] sm:$0xff]
        %v692 = vld [vmem:[%s274 + $0x8c8] sm:$0xff]
        %v693 = vld [vmem:[%s274 + $0x8d0] sm:$0xff]
        %v694 = vld [vmem:[%s274 + $0x8d8] sm:$0xf]
        %v695 = vld [vmem:[%s274 + $0x8dc] sm:$0xff]
        %v696 = vld [vmem:[%s274 + $0x8e4] sm:$0xff]
        %v697 = vld [vmem:[%s274 + $0x8ec] sm:$0xff]
        %v698 = vld [vmem:[%s274 + $0x8f4] sm:$0xf]
        %v699 = vld [vmem:[%s274 + $0x8f8] sm:$0xff]
        %v700 = vld [vmem:[%s274 + $0x900] sm:$0xff]
        %v701 = vld [vmem:[%s274 + $0x908] sm:$0xff]
        %v702 = vld [vmem:[%s274 + $0x910] sm:$0xf]
        %v703 = vld [vmem:[%s274 + $0x914] sm:$0xff]
        %v704 = vld [vmem:[%s274 + $0x91c] sm:$0xff]
        %v705 = vld [vmem:[%s274 + $0x924] sm:$0xff]
        %v706 = vld [vmem:[%s274 + $0x92c] sm:$0xf]
        %v707 = vld [vmem:[%s274 + $0x930] sm:$0xff]
        %v708 = vld [vmem:[%s274 + $0x938] sm:$0xff]
        %v709 = vld [vmem:[%s274 + $0x940] sm:$0xff]
        %v710 = vld [vmem:[%s274 + $0x948] sm:$0xf]
        %v711 = vld [vmem:[%s274 + $0x94c] sm:$0xff]
        %v712 = vld [vmem:[%s274 + $0x954] sm:$0xff]
        %v713 = vld [vmem:[%s274 + $0x95c] sm:$0xff]
        %v714 = vld [vmem:[%s274 + $0x964] sm:$0xf]
        %v715 = vld [vmem:[%s274 + $0x968] sm:$0xff]
        %v716 = vld [vmem:[%s274 + $0x970] sm:$0xff]
        %v717 = vld [vmem:[%s274 + $0x978] sm:$0xff]
        %v718 = vld [vmem:[%s274 + $0x980] sm:$0xf]
        %v719 = vld [vmem:[%s274 + $0x984] sm:$0xff]
        %v720 = vld [vmem:[%s274 + $0x98c] sm:$0xff]
        %v721 = vld [vmem:[%s274 + $0x994] sm:$0xff]
        %v722 = vld [vmem:[%s274 + $0x99c] sm:$0xf]
        %v723 = vld [vmem:[%s274 + $0x9a0] sm:$0xff]
        %v724 = vld [vmem:[%s274 + $0x9a8] sm:$0xff]
        %v725 = vld [vmem:[%s274 + $0x9b0] sm:$0xff]
        %v726 = vld [vmem:[%s274 + $0x9b8] sm:$0xf]
        %v727 = vld [vmem:[%s274 + $0x9bc] sm:$0xff]
        %v728 = vld [vmem:[%s274 + $0x9c4] sm:$0xff]
        %v729 = vld [vmem:[%s274 + $0x9cc] sm:$0xff]
        %v730 = vld [vmem:[%s274 + $0x9d4] sm:$0xf]
        %v731 = vld [vmem:[%s274 + $0x9d8] sm:$0xff]
        %v732 = vld [vmem:[%s274 + $0x9e0] sm:$0xff]
        %v733 = vld [vmem:[%s274 + $0x9e8] sm:$0xff]
        %v734 = vld [vmem:[%s274 + $0x9f0] sm:$0xf]
        %v735 = vld [vmem:[%s274 + $0x9f4] sm:$0xff]
        %v736 = vld [vmem:[%s274 + $0x9fc] sm:$0xff]
        %v737 = vld [vmem:[%s274 + $0xa04] sm:$0xff]
        %v738 = vld [vmem:[%s274 + $0xa0c] sm:$0xf]
        %v739 = vld [vmem:[%s274 + $0xa10] sm:$0xff]
        %v740 = vld [vmem:[%s274 + $0xa18] sm:$0xff]
        %v741 = vld [vmem:[%s274 + $0xa20] sm:$0xff]
        %v742 = vld [vmem:[%s274 + $0xa28] sm:$0xf]
        %v743 = vld [vmem:[%s274 + $0xa2c] sm:$0xff]
        %v744 = vld [vmem:[%s274 + $0xa34] sm:$0xff]
        %v745 = vld [vmem:[%s274 + $0xa3c] sm:$0xff]
        %v746 = vld [vmem:[%s274 + $0xa44] sm:$0xf]
        %v747 = vld [vmem:[%s274 + $0xa48] sm:$0xff]
        %v748 = vld [vmem:[%s274 + $0xa50] sm:$0xff]
        %v749 = vld [vmem:[%s274 + $0xa58] sm:$0xff]
        %v750 = vld [vmem:[%s274 + $0xa60] sm:$0xf]
        %v751 = vld [vmem:[%s274 + $0xa64] sm:$0xff]
        %v752 = vld [vmem:[%s274 + $0xa6c] sm:$0xff]
        %v753 = vld [vmem:[%s274 + $0xa74] sm:$0xff]
        %v754 = vld [vmem:[%s274 + $0xa7c] sm:$0xf]
        %v755 = vld [vmem:[%s274 + $0xa80] sm:$0xff]
        %v756 = vld [vmem:[%s274 + $0xa88] sm:$0xff]
        %v757 = vld [vmem:[%s274 + $0xa90] sm:$0xff]
        %v758 = vld [vmem:[%s274 + $0xa98] sm:$0xf]
        %v759 = vld [vmem:[%s274 + $0xa9c] sm:$0xff]
        %v760 = vld [vmem:[%s274 + $0xaa4] sm:$0xff]
        %v761 = vld [vmem:[%s274 + $0xaac] sm:$0xff]
        %v762 = vld [vmem:[%s274 + $0xab4] sm:$0xf]
        %v763 = vld [vmem:[%s274 + $0xab8] sm:$0xff]
        %v764 = vld [vmem:[%s274 + $0xac0] sm:$0xff]
        %v765 = vld [vmem:[%s274 + $0xac8] sm:$0xff]
        %v766 = vld [vmem:[%s274 + $0xad0] sm:$0xf]
        %v767 = vld [vmem:[%s274 + $0xad4] sm:$0xff]
        %v768 = vld [vmem:[%s274 + $0xadc] sm:$0xff]
        %v769 = vld [vmem:[%s274 + $0xae4] sm:$0xff]
        %v770 = vld [vmem:[%s274 + $0xaec] sm:$0xf]
        %v771 = vld [vmem:[%s274 + $0xaf0] sm:$0xff]
        %v772 = vld [vmem:[%s274 + $0xaf8] sm:$0xff]
        %v773 = vld [vmem:[%s274 + $0xb00] sm:$0xff]
        %v774 = vld [vmem:[%s274 + $0xb08] sm:$0xf]
        %v775 = vld [vmem:[%s274 + $0xb0c] sm:$0xff]
        %v776 = vld [vmem:[%s274 + $0xb14] sm:$0xff]
        %v777 = vld [vmem:[%s274 + $0xb1c] sm:$0xff]
        %v778 = vld [vmem:[%s274 + $0xb24] sm:$0xf]
        %v779 = vld [vmem:[%s274 + $0xb28] sm:$0xff]
        %v780 = vld [vmem:[%s274 + $0xb30] sm:$0xff]
        %v781 = vld [vmem:[%s274 + $0xb38] sm:$0xff]
        %v782 = vld [vmem:[%s274 + $0xb40] sm:$0xf]
        %v783 = vld [vmem:[%s274 + $0xb44] sm:$0xff]
        %v784 = vld [vmem:[%s274 + $0xb4c] sm:$0xff]
        %v785 = vld [vmem:[%s274 + $0xb54] sm:$0xff]
        %v786 = vld [vmem:[%s274 + $0xb5c] sm:$0xf]
        %v787 = vld [vmem:[%s274 + $0xb60] sm:$0xff]
        %v788 = vld [vmem:[%s274 + $0xb68] sm:$0xff]
        %v789 = vld [vmem:[%s274 + $0xb70] sm:$0xff]
        %v790 = vld [vmem:[%s274 + $0xb78] sm:$0xf]
        %v791 = vld [vmem:[%s274 + $0xb7c] sm:$0xff]
        %v792 = vld [vmem:[%s274 + $0xb84] sm:$0xff]
        %v793 = vld [vmem:[%s274 + $0xb8c] sm:$0xff]
        %v794 = vld [vmem:[%s274 + $0xb94] sm:$0xf]
        %v795 = vld [vmem:[%s274 + $0xb98] sm:$0xff]
        %v796 = vld [vmem:[%s274 + $0xba0] sm:$0xff]
        %v797 = vld [vmem:[%s274 + $0xba8] sm:$0xff]
        %v798 = vld [vmem:[%s274 + $0xbb0] sm:$0xf]
        %v799 = vld [vmem:[%s274 + $0xbb4] sm:$0xff]
        %v800 = vld [vmem:[%s274 + $0xbbc] sm:$0xff]
        %v801 = vld [vmem:[%s274 + $0xbc4] sm:$0xff]
        %v802 = vld [vmem:[%s274 + $0xbcc] sm:$0xf]
        %v803 = vld [vmem:[%s274 + $0xbd0] sm:$0xff]
        %v804 = vld [vmem:[%s274 + $0xbd8] sm:$0xff]
        %v805 = vld [vmem:[%s274 + $0xbe0] sm:$0xff]
        %v806 = vld [vmem:[%s274 + $0xbe8] sm:$0xf]
        %v807 = vld [vmem:[%s274 + $0xbec] sm:$0xff]
        %v808 = vld [vmem:[%s274 + $0xbf4] sm:$0xff]
        %v809 = vld [vmem:[%s274 + $0xbfc] sm:$0xff]
        %v810 = vld [vmem:[%s274 + $0xc04] sm:$0xf]
        %v811 = vld [vmem:[%s274 + $0xc08] sm:$0xff]
        %v812 = vld [vmem:[%s274 + $0xc10] sm:$0xff]
        %v813 = vld [vmem:[%s274 + $0xc18] sm:$0xff]
        %v814 = vld [vmem:[%s274 + $0xc20] sm:$0xf]
        %v815 = vld [vmem:[%s274 + $0xc24] sm:$0xff]
        %v816 = vld [vmem:[%s274 + $0xc2c] sm:$0xff]
        %v817 = vld [vmem:[%s274 + $0xc34] sm:$0xff]
        %v818 = vld [vmem:[%s274 + $0xc3c] sm:$0xf]
        %v819 = vld [vmem:[%s274 + $0xc40] sm:$0xff]
        %v820 = vld [vmem:[%s274 + $0xc48] sm:$0xff]
        %v821 = vld [vmem:[%s274 + $0xc50] sm:$0xff]
        %v822 = vld [vmem:[%s274 + $0xc58] sm:$0xf]
        %v823 = vld [vmem:[%s274 + $0xc5c] sm:$0xff]
        %v824 = vld [vmem:[%s274 + $0xc64] sm:$0xff]
        %v825 = vld [vmem:[%s274 + $0xc6c] sm:$0xff]
        %v826 = vld [vmem:[%s274 + $0xc74] sm:$0xf]
        %v827 = vld [vmem:[%s274 + $0xc78] sm:$0xff]
        %v828 = vld [vmem:[%s274 + $0xc80] sm:$0xff]
        %v829 = vld [vmem:[%s274 + $0xc88] sm:$0xff]
        %v830 = vld [vmem:[%s274 + $0xc90] sm:$0xf]
        %v831 = vld [vmem:[%s274 + $0xc94] sm:$0xff]
        %v832 = vld [vmem:[%s274 + $0xc9c] sm:$0xff]
        %v833 = vld [vmem:[%s274 + $0xca4] sm:$0xff]
        %v834 = vld [vmem:[%s274 + $0xcac] sm:$0xf]
        %v835 = vld [vmem:[%s274 + $0xcb0] sm:$0xff]
        %v836 = vld [vmem:[%s274 + $0xcb8] sm:$0xff]
        %v837 = vld [vmem:[%s274 + $0xcc0] sm:$0xff]
        %v838 = vld [vmem:[%s274 + $0xcc8] sm:$0xf]
        %v839 = vld [vmem:[%s274 + $0xccc] sm:$0xff]
        %v840 = vld [vmem:[%s274 + $0xcd4] sm:$0xff]
        %v841 = vld [vmem:[%s274 + $0xcdc] sm:$0xff]
        %v842 = vld [vmem:[%s274 + $0xce4] sm:$0xf]
        %v843 = vld [vmem:[%s274 + $0xce8] sm:$0xff]
        %v844 = vld [vmem:[%s274 + $0xcf0] sm:$0xff]
        %v845 = vld [vmem:[%s274 + $0xcf8] sm:$0xff]
        %v846 = vld [vmem:[%s274 + $0xd00] sm:$0xf]
        %v847 = vld [vmem:[%s274 + $0xd04] sm:$0xff]
        %v848 = vld [vmem:[%s274 + $0xd0c] sm:$0xff]
        %v849 = vld [vmem:[%s274 + $0xd14] sm:$0xff]
        %v850 = vld [vmem:[%s274 + $0xd1c] sm:$0xf]
        %v851 = vld [vmem:[%s274 + $0xd20] sm:$0xff]
        %v852 = vld [vmem:[%s274 + $0xd28] sm:$0xff]
        %v853 = vld [vmem:[%s274 + $0xd30] sm:$0xff]
        %v854 = vld [vmem:[%s274 + $0xd38] sm:$0xf]
        %v855 = vld [vmem:[%s274 + $0xd3c] sm:$0xff]
        %v856 = vld [vmem:[%s274 + $0xd44] sm:$0xff]
        %v857 = vld [vmem:[%s274 + $0xd4c] sm:$0xff]
        %v858 = vld [vmem:[%s274 + $0xd54] sm:$0xf]
        %v859 = vld [vmem:[%s274 + $0xd58] sm:$0xff]
        %v860 = vld [vmem:[%s274 + $0xd60] sm:$0xff]
        %v861 = vld [vmem:[%s274 + $0xd68] sm:$0xff]
        %v862 = vld [vmem:[%s274 + $0xd70] sm:$0xf]
        %v863 = vld [vmem:[%s274 + $0xd74] sm:$0xff]
        %v864 = vld [vmem:[%s274 + $0xd7c] sm:$0xff]
        %v865 = vld [vmem:[%s274 + $0xd84] sm:$0xff]
        %v866 = vld [vmem:[%s274 + $0xd8c] sm:$0xf]
        %v867 = vld [vmem:[%s274 + $0xd90] sm:$0xff]
        %v868 = vld [vmem:[%s274 + $0xd98] sm:$0xff]
        %v869 = vld [vmem:[%s274 + $0xda0] sm:$0xff]
        %v870 = vld [vmem:[%s274 + $0xda8] sm:$0xf]
        %v871 = vld [vmem:[%s274 + $0xdac] sm:$0xff]
        %v872 = vld [vmem:[%s274 + $0xdb4] sm:$0xff]
        %v873 = vld [vmem:[%s274 + $0xdbc] sm:$0xff]
        %v874 = vld [vmem:[%s274 + $0xdc4] sm:$0xf]
        %v875 = vld [vmem:[%s274 + $0xdc8] sm:$0xff]
        %v876 = vld [vmem:[%s274 + $0xdd0] sm:$0xff]
        %v877 = vld [vmem:[%s274 + $0xdd8] sm:$0xff]
        %v878 = vld [vmem:[%s274 + $0xde0] sm:$0xf]
        %v879 = vld [vmem:[%s274 + $0xde4] sm:$0xff]
        %v880 = vld [vmem:[%s274 + $0xdec] sm:$0xff]
        %v881 = vld [vmem:[%s274 + $0xdf4] sm:$0xff]
        %v882 = vld [vmem:[%s274 + $0xdfc] sm:$0xf]
        %v883 = vld [vmem:[%s274 + $0xe00] sm:$0xff]
        %v884 = vld [vmem:[%s274 + $0xe08] sm:$0xff]
        %v885 = vld [vmem:[%s274 + $0xe10] sm:$0xff]
        %v886 = vld [vmem:[%s274 + $0xe18] sm:$0xf]
        %v887 = vld [vmem:[%s274 + $0xe1c] sm:$0xff]
        %v888 = vld [vmem:[%s274 + $0xe24] sm:$0xff]
        %v889 = vld [vmem:[%s274 + $0xe2c] sm:$0xff]
        %v890 = vld [vmem:[%s274 + $0xe34] sm:$0xf]
        %v891 = vld [vmem:[%s274 + $0xe38] sm:$0xff]
        %v892 = vld [vmem:[%s274 + $0xe40] sm:$0xff]
        %v893 = vld [vmem:[%s274 + $0xe48] sm:$0xff]
        %v894 = vld [vmem:[%s274 + $0xe50] sm:$0xf]
        %v895 = vld [vmem:[%s274 + $0xe54] sm:$0xff]
        %v896 = vld [vmem:[%s274 + $0xe5c] sm:$0xff]
        %v897 = vld [vmem:[%s274 + $0xe64] sm:$0xff]
        %v898 = vld [vmem:[%s274 + $0xe6c] sm:$0xf]
        %v899 = vld [vmem:[%s274 + $0xe70] sm:$0xff]
        %v900 = vld [vmem:[%s274 + $0xe78] sm:$0xff]
        %v901 = vld [vmem:[%s274 + $0xe80] sm:$0xff]
        %v902 = vld [vmem:[%s274 + $0xe88] sm:$0xf]
        %v903 = vld [vmem:[%s274 + $0xe8c] sm:$0xff]
        %v904 = vld [vmem:[%s274 + $0xe94] sm:$0xff]
        %v905 = vld [vmem:[%s274 + $0xe9c] sm:$0xff]
        %v906 = vld [vmem:[%s274 + $0xea4] sm:$0xf]
        %v907 = vld [vmem:[%s274 + $0xea8] sm:$0xff]
        %v908 = vld [vmem:[%s274 + $0xeb0] sm:$0xff]
        %v909 = vld [vmem:[%s274 + $0xeb8] sm:$0xff]
        %v910 = vld [vmem:[%s274 + $0xec0] sm:$0xf]
        %v911 = vld [vmem:[%s274 + $0xec4] sm:$0xff]
        %v912 = vld [vmem:[%s274 + $0xecc] sm:$0xff]
        %v913 = vld [vmem:[%s274 + $0xed4] sm:$0xff]
        %v914 = vld [vmem:[%s274 + $0xedc] sm:$0xf]
        %v915 = vld [vmem:[%s274 + $0xee0] sm:$0xff]
        %v916 = vld [vmem:[%s274 + $0xee8] sm:$0xff]
        %v917 = vld [vmem:[%s274 + $0xef0] sm:$0xff]
        %v918 = vld [vmem:[%s274 + $0xef8] sm:$0xf]
        %v919 = vld [vmem:[%s274 + $0xefc] sm:$0xff]
        %v920 = vld [vmem:[%s274 + $0xf04] sm:$0xff]
        %v921 = vld [vmem:[%s274 + $0xf0c] sm:$0xff]
        %v922 = vld [vmem:[%s274 + $0xf14] sm:$0xf]
        %v923 = vld [vmem:[%s274 + $0xf18] sm:$0xff]
        %v924 = vld [vmem:[%s274 + $0xf20] sm:$0xff]
        %v925 = vld [vmem:[%s274 + $0xf28] sm:$0xff]
        %v926 = vld [vmem:[%s274 + $0xf30] sm:$0xf]
        %v927 = vld [vmem:[%s274 + $0xf34] sm:$0xff]
        %v928 = vld [vmem:[%s274 + $0xf3c] sm:$0xff]
        %v929 = vld [vmem:[%s274 + $0xf44] sm:$0xff]
        %v930 = vld [vmem:[%s274 + $0xf4c] sm:$0xf]
        %v931 = vld [vmem:[%s274 + $0xf50] sm:$0xff]
        %v932 = vld [vmem:[%s274 + $0xf58] sm:$0xff]
        %v933 = vld [vmem:[%s274 + $0xf60] sm:$0xff]
        %v934 = vld [vmem:[%s274 + $0xf68] sm:$0xf]
        %v935 = vld [vmem:[%s274 + $0xf6c] sm:$0xff]
        %v936 = vld [vmem:[%s274 + $0xf74] sm:$0xff]
        %v937 = vld [vmem:[%s274 + $0xf7c] sm:$0xff]
        %v938 = vld [vmem:[%s274 + $0xf84] sm:$0xf]
        %v939 = vld [vmem:[%s274 + $0xf88] sm:$0xff]
        %v940 = vld [vmem:[%s274 + $0xf90] sm:$0xff]
        %v941 = vld [vmem:[%s274 + $0xf98] sm:$0xff]
        %v942 = vld [vmem:[%s274 + $0xfa0] sm:$0xf]
        %v943 = vld [vmem:[%s274 + $0xfa4] sm:$0xff]
        %v944 = vld [vmem:[%s274 + $0xfac] sm:$0xff]
        %v945 = vld [vmem:[%s274 + $0xfb4] sm:$0xff]
        %v946 = vld [vmem:[%s274 + $0xfbc] sm:$0xf]
        %v947 = vld [vmem:[%s274 + $0xfc0] sm:$0xff]
        %v948 = vld [vmem:[%s274 + $0xfc8] sm:$0xff]
        %v949 = vld [vmem:[%s274 + $0xfd0] sm:$0xff]
        %v950 = vld [vmem:[%s274 + $0xfd8] sm:$0xf]
        %v951 = vld [vmem:[%s274 + $0xfdc] sm:$0xff]
        %v952 = vld [vmem:[%s274 + $0xfe4] sm:$0xff]
        %v953 = vld [vmem:[%s274 + $0xfec] sm:$0xff]
        %v954 = vld [vmem:[%s274 + $0xff4] sm:$0xf]
        %v955 = vld [vmem:[%s274 + $0xff8] sm:$0xff]
        %v956 = vld [vmem:[%s274 + $0x1000] sm:$0xff]
        %v957 = vld [vmem:[%s274 + $0x1008] sm:$0xff]
        %v958 = vld [vmem:[%s274 + $0x1010] sm:$0xf]
        %v959 = vld [vmem:[%s274 + $0x1014] sm:$0xff]
        %v960 = vld [vmem:[%s274 + $0x101c] sm:$0xff]
        %v961 = vld [vmem:[%s274 + $0x1024] sm:$0xff]
        %v962 = vld [vmem:[%s274 + $0x102c] sm:$0xf]
        %v963 = vld [vmem:[%s274 + $0x1030] sm:$0xff]
        %v964 = vld [vmem:[%s274 + $0x1038] sm:$0xff]
        %v965 = vld [vmem:[%s274 + $0x1040] sm:$0xff]
        %v966 = vld [vmem:[%s274 + $0x1048] sm:$0xf]
        %v967 = vld [vmem:[%s274 + $0x104c] sm:$0xff]
        %v968 = vld [vmem:[%s274 + $0x1054] sm:$0xff]
        %v969 = vld [vmem:[%s274 + $0x105c] sm:$0xff]
        %v970 = vld [vmem:[%s274 + $0x1064] sm:$0xf]
        %v971 = vld [vmem:[%s274 + $0x1068] sm:$0xff]
        %v972 = vld [vmem:[%s274 + $0x1070] sm:$0xff]
        %v973 = vld [vmem:[%s274 + $0x1078] sm:$0xff]
        %v974 = vld [vmem:[%s274 + $0x1080] sm:$0xf]
        %v975 = vld [vmem:[%s274 + $0x1084] sm:$0xff]
        %v976 = vld [vmem:[%s274 + $0x108c] sm:$0xff]
        %v977 = vld [vmem:[%s274 + $0x1094] sm:$0xff]
        %v978 = vld [vmem:[%s274 + $0x109c] sm:$0xf]
        %v979 = vld [vmem:[%s274 + $0x10a0] sm:$0xff]
        %v980 = vld [vmem:[%s274 + $0x10a8] sm:$0xff]
        %v981 = vld [vmem:[%s274 + $0x10b0] sm:$0xff]
        %v982 = vld [vmem:[%s274 + $0x10b8] sm:$0xf]
        %v983 = vld [vmem:[%s274 + $0x10bc] sm:$0xff]
        %v984 = vld [vmem:[%s274 + $0x10c4] sm:$0xff]
        %v985 = vld [vmem:[%s274 + $0x10cc] sm:$0xff]
        %v986 = vld [vmem:[%s274 + $0x10d4] sm:$0xf]
        %v987 = vld [vmem:[%s274 + $0x10d8] sm:$0xff]
        %v988 = vld [vmem:[%s274 + $0x10e0] sm:$0xff]
        %v989 = vld [vmem:[%s274 + $0x10e8] sm:$0xff]
        %v990 = vld [vmem:[%s274 + $0x10f0] sm:$0xf]
        %v991 = vld [vmem:[%s274 + $0x10f4] sm:$0xff]
        %v992 = vld [vmem:[%s274 + $0x10fc] sm:$0xff]
        %v993 = vld [vmem:[%s274 + $0x1104] sm:$0xff]
        %v994 = vld [vmem:[%s274 + $0x110c] sm:$0xf]
        %v995 = vld [vmem:[%s274 + $0x1110] sm:$0xff]
        %v996 = vld [vmem:[%s274 + $0x1118] sm:$0xff]
        %v997 = vld [vmem:[%s274 + $0x1120] sm:$0xff]
        %v998 = vld [vmem:[%s274 + $0x1128] sm:$0xf]
        %v999 = vld [vmem:[%s274 + $0x112c] sm:$0xff]
        %v1000 = vld [vmem:[%s274 + $0x1134] sm:$0xff]
        %v1001 = vld [vmem:[%s274 + $0x113c] sm:$0xff]
        %v1002 = vld [vmem:[%s274 + $0x1144] sm:$0xf]
        %v1003 = vld [vmem:[%s274 + $0x1148] sm:$0xff]
        %v1004 = vld [vmem:[%s274 + $0x1150] sm:$0xff]
        %v1005 = vld [vmem:[%s274 + $0x1158] sm:$0xff]
        %v1006 = vld [vmem:[%s274 + $0x1160] sm:$0xf]
        %v1007 = vld [vmem:[%s274 + $0x1164] sm:$0xff]
        %v1008 = vld [vmem:[%s274 + $0x116c] sm:$0xff]
        %v1009 = vld [vmem:[%s274 + $0x1174] sm:$0xff]
        %v1010 = vld [vmem:[%s274 + $0x117c] sm:$0xf]
        %v1011 = vld [vmem:[%s274 + $0x1180] sm:$0xff]
        %v1012 = vld [vmem:[%s274 + $0x1188] sm:$0xff]
        %v1013 = vld [vmem:[%s274 + $0x1190] sm:$0xff]
        %v1014 = vld [vmem:[%s274 + $0x1198] sm:$0xf]
        %v1015 = vld [vmem:[%s274 + $0x119c] sm:$0xff]
        %v1016 = vld [vmem:[%s274 + $0x11a4] sm:$0xff]
        %v1017 = vld [vmem:[%s274 + $0x11ac] sm:$0xff]
        %v1018 = vld [vmem:[%s274 + $0x11b4] sm:$0xf]
        %v1019 = vld [vmem:[%s274 + $0x11b8] sm:$0xff]
        %v1020 = vld [vmem:[%s274 + $0x11c0] sm:$0xff]
        %v1021 = vld [vmem:[%s274 + $0x11c8] sm:$0xff]
        %v1022 = vld [vmem:[%s274 + $0x11d0] sm:$0xf]
        %v1023 = vld [vmem:[%s274 + $0x11d4] sm:$0xff]
        %v1024 = vld [vmem:[%s274 + $0x11dc] sm:$0xff]
        %v1025 = vld [vmem:[%s274 + $0x11e4] sm:$0xff]
        %v1026 = vld [vmem:[%s274 + $0x11ec] sm:$0xf]
        %v1027 = vld [vmem:[%s274 + $0x11f0] sm:$0xff]
        %v1028 = vld [vmem:[%s274 + $0x11f8] sm:$0xff]
        %v1029 = vld [vmem:[%s274 + $0x1200] sm:$0xff]
        %v1030 = vld [vmem:[%s274 + $0x1208] sm:$0xf]
        %v1031 = vld [vmem:[%s274 + $0x120c] sm:$0xff]
        %v1032 = vld [vmem:[%s274 + $0x1214] sm:$0xff]
        %v1033 = vld [vmem:[%s274 + $0x121c] sm:$0xff]
        %v1034 = vld [vmem:[%s274 + $0x1224] sm:$0xf]
        %v1035 = vld [vmem:[%s274 + $0x1228] sm:$0xff]
        %v1036 = vld [vmem:[%s274 + $0x1230] sm:$0xff]
        %v1037 = vld [vmem:[%s274 + $0x1238] sm:$0xff]
        %v1038 = vld [vmem:[%s274 + $0x1240] sm:$0xf]
        %v1039 = vld [vmem:[%s274 + $0x1244] sm:$0xff]
        %v1040 = vld [vmem:[%s274 + $0x124c] sm:$0xff]
        %v1041 = vld [vmem:[%s274 + $0x1254] sm:$0xff]
        %v1042 = vld [vmem:[%s274 + $0x125c] sm:$0xf]
        %v1043 = vld [vmem:[%s274 + $0x1260] sm:$0xff]
        %v1044 = vld [vmem:[%s274 + $0x1268] sm:$0xff]
        %v1045 = vld [vmem:[%s274 + $0x1270] sm:$0xff]
        %v1046 = vld [vmem:[%s274 + $0x1278] sm:$0xf]
        %v1047 = vld [vmem:[%s274 + $0x127c] sm:$0xff]
        %v1048 = vld [vmem:[%s274 + $0x1284] sm:$0xff]
        %v1049 = vld [vmem:[%s274 + $0x128c] sm:$0xff]
        %v1050 = vld [vmem:[%s274 + $0x1294] sm:$0xf]
        %v1051 = vld [vmem:[%s274 + $0x1298] sm:$0xff]
        %v1052 = vld [vmem:[%s274 + $0x12a0] sm:$0xff]
        %v1053 = vld [vmem:[%s274 + $0x12a8] sm:$0xff]
        %v1054 = vld [vmem:[%s274 + $0x12b0] sm:$0xf]
        %v1055 = vld [vmem:[%s274 + $0x12b4] sm:$0xff]
        %v1056 = vld [vmem:[%s274 + $0x12bc] sm:$0xff]
        %v1057 = vld [vmem:[%s274 + $0x12c4] sm:$0xff]
        %v1058 = vld [vmem:[%s274 + $0x12cc] sm:$0xf]
        %v1059 = vld [vmem:[%s274 + $0x12d0] sm:$0xff]
        %v1060 = vld [vmem:[%s274 + $0x12d8] sm:$0xff]
        %v1061 = vld [vmem:[%s274 + $0x12e0] sm:$0xff]
        %v1062 = vld [vmem:[%s274 + $0x12e8] sm:$0xf]
        %v1063 = vld [vmem:[%s274 + $0x12ec] sm:$0xff]
        %v1064 = vld [vmem:[%s274 + $0x12f4] sm:$0xff]
        %v1065 = vld [vmem:[%s274 + $0x12fc] sm:$0xff]
        %v1066 = vld [vmem:[%s274 + $0x1304] sm:$0xf]
        %v1067 = vld [vmem:[%s274 + $0x1308] sm:$0xff]
        %v1068 = vld [vmem:[%s274 + $0x1310] sm:$0xff]
        %v1069 = vld [vmem:[%s274 + $0x1318] sm:$0xff]
        %v1070 = vld [vmem:[%s274 + $0x1320] sm:$0xf]
        %v1071 = vld [vmem:[%s274 + $0x1324] sm:$0xff]
        %v1072 = vld [vmem:[%s274 + $0x132c] sm:$0xff]
        %v1073 = vld [vmem:[%s274 + $0x1334] sm:$0xff]
        %v1074 = vld [vmem:[%s274 + $0x133c] sm:$0xf]
        %v1075 = vld [vmem:[%s274 + $0x1340] sm:$0xff]
        %v1076 = vld [vmem:[%s274 + $0x1348] sm:$0xff]
        %v1077 = vld [vmem:[%s274 + $0x1350] sm:$0xff]
        %v1078 = vld [vmem:[%s274 + $0x1358] sm:$0xf]
        %v1079 = vld [vmem:[%s274 + $0x135c] sm:$0xff]
        %v1080 = vld [vmem:[%s274 + $0x1364] sm:$0xff]
        %v1081 = vld [vmem:[%s274 + $0x136c] sm:$0xff]
        %v1082 = vld [vmem:[%s274 + $0x1374] sm:$0xf]
        %v1083 = vld [vmem:[%s274 + $0x1378] sm:$0xff]
        %v1084 = vld [vmem:[%s274 + $0x1380] sm:$0xff]
        %v1085 = vld [vmem:[%s274 + $0x1388] sm:$0xff]
        %v1086 = vld [vmem:[%s274 + $0x1390] sm:$0xf]
        %v1087 = vld [vmem:[%s274 + $0x1394] sm:$0xff]
        %v1088 = vld [vmem:[%s274 + $0x139c] sm:$0xff]
        %v1089 = vld [vmem:[%s274 + $0x13a4] sm:$0xff]
        %v1090 = vld [vmem:[%s274 + $0x13ac] sm:$0xf]
        %v1091 = vld [vmem:[%s274 + $0x13b0] sm:$0xff]
        %v1092 = vld [vmem:[%s274 + $0x13b8] sm:$0xff]
        %v1093 = vld [vmem:[%s274 + $0x13c0] sm:$0xff]
        %v1094 = vld [vmem:[%s274 + $0x13c8] sm:$0xf]
        %v1095 = vld [vmem:[%s274 + $0x13cc] sm:$0xff]
        %v1096 = vld [vmem:[%s274 + $0x13d4] sm:$0xff]
        %v1097 = vld [vmem:[%s274 + $0x13dc] sm:$0xff]
        %v1098 = vld [vmem:[%s274 + $0x13e4] sm:$0xf]
        %v1099 = vld [vmem:[%s274 + $0x13e8] sm:$0xff]
        %v1100 = vld [vmem:[%s274 + $0x13f0] sm:$0xff]
        %v1101 = vld [vmem:[%s274 + $0x13f8] sm:$0xff]
        %v1102 = vld [vmem:[%s274 + $0x1400] sm:$0xf]
        %v1103 = vld [vmem:[%s274 + $0x1404] sm:$0xff]
        %v1104 = vld [vmem:[%s274 + $0x140c] sm:$0xff]
        %v1105 = vld [vmem:[%s274 + $0x1414] sm:$0xff]
        %v1106 = vld [vmem:[%s274 + $0x141c] sm:$0xf]
        %v1107 = vld [vmem:[%s274 + $0x1420] sm:$0xff]
        %v1108 = vld [vmem:[%s274 + $0x1428] sm:$0xff]
        %v1109 = vld [vmem:[%s274 + $0x1430] sm:$0xff]
        %v1110 = vld [vmem:[%s274 + $0x1438] sm:$0xf]
        %v1111 = vld [vmem:[%s274 + $0x143c] sm:$0xff]
        %v1112 = vld [vmem:[%s274 + $0x1444] sm:$0xff]
        %v1113 = vld [vmem:[%s274 + $0x144c] sm:$0xff]
        %v1114 = vld [vmem:[%s274 + $0x1454] sm:$0xf]
        %v1115 = vld [vmem:[%s274 + $0x1458] sm:$0xff]
        %v1116 = vld [vmem:[%s274 + $0x1460] sm:$0xff]
        %v1117 = vld [vmem:[%s274 + $0x1468] sm:$0xff]
        %v1118 = vld [vmem:[%s274 + $0x1470] sm:$0xf]
        %v1119 = vld [vmem:[%s274 + $0x1474] sm:$0xff]
        %v1120 = vld [vmem:[%s274 + $0x147c] sm:$0xff]
        %v1121 = vld [vmem:[%s274 + $0x1484] sm:$0xff]
        %v1122 = vld [vmem:[%s274 + $0x148c] sm:$0xf]
        %v1123 = vld [vmem:[%s274 + $0x1490] sm:$0xff]
        %v1124 = vld [vmem:[%s274 + $0x1498] sm:$0xff]
        %v1125 = vld [vmem:[%s274 + $0x14a0] sm:$0xff]
        %v1126 = vld [vmem:[%s274 + $0x14a8] sm:$0xf]
        %v1127 = vld [vmem:[%s274 + $0x14ac] sm:$0xff]
        %v1128 = vld [vmem:[%s274 + $0x14b4] sm:$0xff]
        %v1129 = vld [vmem:[%s274 + $0x14bc] sm:$0xff]
        %v1130 = vld [vmem:[%s274 + $0x14c4] sm:$0xf]
        %v1131 = vld [vmem:[%s274 + $0x14c8] sm:$0xff]
        %v1132 = vld [vmem:[%s274 + $0x14d0] sm:$0xff]
        %v1133 = vld [vmem:[%s274 + $0x14d8] sm:$0xff]
        %v1134 = vld [vmem:[%s274 + $0x14e0] sm:$0xf]
        %v1135 = vld [vmem:[%s274 + $0x14e4] sm:$0xff]
        %v1136 = vld [vmem:[%s274 + $0x14ec] sm:$0xff]
        %v1137 = vld [vmem:[%s274 + $0x14f4] sm:$0xff]
        %v1138 = vld [vmem:[%s274 + $0x14fc] sm:$0xf]
        %v1139 = vld [vmem:[%s274 + $0x1500] sm:$0xff]
        %v1140 = vld [vmem:[%s274 + $0x1508] sm:$0xff]
        %v1141 = vld [vmem:[%s274 + $0x1510] sm:$0xff]
        %v1142 = vld [vmem:[%s274 + $0x1518] sm:$0xf]
        %v1143 = vld [vmem:[%s274 + $0x151c] sm:$0xff]
        %v1144 = vld [vmem:[%s274 + $0x1524] sm:$0xff]
        %v1145 = vld [vmem:[%s274 + $0x152c] sm:$0xff]
        %v1146 = vld [vmem:[%s274 + $0x1534] sm:$0xf]
        %v1147 = vld [vmem:[%s274 + $0x1538] sm:$0xff]
        %v1148 = vld [vmem:[%s274 + $0x1540] sm:$0xff]
        %v1149 = vld [vmem:[%s274 + $0x1548] sm:$0xff]
        %v1150 = vld [vmem:[%s274 + $0x1550] sm:$0xf]
        %v1151 = vld [vmem:[%s274 + $0x1554] sm:$0xff]
        %v1152 = vld [vmem:[%s274 + $0x155c] sm:$0xff]
        %v1153 = vld [vmem:[%s274 + $0x1564] sm:$0xff]
        %v1154 = vld [vmem:[%s274 + $0x156c] sm:$0xf]
        %v1155 = vld [vmem:[%s274 + $0x1570] sm:$0xff]
        %v1156 = vld [vmem:[%s274 + $0x1578] sm:$0xff]
        %v1157 = vld [vmem:[%s274 + $0x1580] sm:$0xff]
        %v1158 = vld [vmem:[%s274 + $0x1588] sm:$0xf]
        %v1159 = vld [vmem:[%s274 + $0x158c] sm:$0xff]
        %v1160 = vld [vmem:[%s274 + $0x1594] sm:$0xff]
        %v1161 = vld [vmem:[%s274 + $0x159c] sm:$0xff]
        %v1162 = vld [vmem:[%s274 + $0x15a4] sm:$0xf]
        %v1163 = vld [vmem:[%s274 + $0x15a8] sm:$0xff]
        %v1164 = vld [vmem:[%s274 + $0x15b0] sm:$0xff]
        %v1165 = vld [vmem:[%s274 + $0x15b8] sm:$0xff]
        %v1166 = vld [vmem:[%s274 + $0x15c0] sm:$0xf]
        %v1167 = vld [vmem:[%s274 + $0x15c4] sm:$0xff]
        %v1168 = vld [vmem:[%s274 + $0x15cc] sm:$0xff]
        %v1169 = vld [vmem:[%s274 + $0x15d4] sm:$0xff]
        %v1170 = vld [vmem:[%s274 + $0x15dc] sm:$0xf]
        %v1171 = vld [vmem:[%s274 + $0x15e0] sm:$0xff]
        %v1172 = vld [vmem:[%s274 + $0x15e8] sm:$0xff]
        %v1173 = vld [vmem:[%s274 + $0x15f0] sm:$0xff]
        %v1174 = vld [vmem:[%s274 + $0x15f8] sm:$0xf]
        %v1175 = vld [vmem:[%s274 + $0x15fc] sm:$0xff]
        %v1176 = vld [vmem:[%s274 + $0x1604] sm:$0xff]
        %v1177 = vld [vmem:[%s274 + $0x160c] sm:$0xff]
        %v1178 = vld [vmem:[%s274 + $0x1614] sm:$0xf]
        %v1179 = vld [vmem:[%s274 + $0x1618] sm:$0xff]
        %v1180 = vld [vmem:[%s274 + $0x1620] sm:$0xff]
        %v1181 = vld [vmem:[%s274 + $0x1628] sm:$0xff]
        %v1182 = vld [vmem:[%s274 + $0x1630] sm:$0xf]
        %v1183 = vld [vmem:[%s274 + $0x1634] sm:$0xff]
        %v1184 = vld [vmem:[%s274 + $0x163c] sm:$0xff]
        %v1185 = vld [vmem:[%s274 + $0x1644] sm:$0xff]
        %v1186 = vld [vmem:[%s274 + $0x164c] sm:$0xf]
        %v1187 = vld [vmem:[%s274 + $0x1650] sm:$0xff]
        %v1188 = vld [vmem:[%s274 + $0x1658] sm:$0xff]
        %v1189 = vld [vmem:[%s274 + $0x1660] sm:$0xff]
        %v1190 = vld [vmem:[%s274 + $0x1668] sm:$0xf]
        %v1191 = vld [vmem:[%s274 + $0x166c] sm:$0xff]
        %v1192 = vld [vmem:[%s274 + $0x1674] sm:$0xff]
        %v1193 = vld [vmem:[%s274 + $0x167c] sm:$0xff]
        %v1194 = vld [vmem:[%s274 + $0x1684] sm:$0xf]
        %v1195 = vld [vmem:[%s274 + $0x1688] sm:$0xff]
        %v1196 = vld [vmem:[%s274 + $0x1690] sm:$0xff]
        %v1197 = vld [vmem:[%s274 + $0x1698] sm:$0xff]
        %v1198 = vld [vmem:[%s274 + $0x16a0] sm:$0xf]
        %v1199 = vld [vmem:[%s274 + $0x16a4] sm:$0xff]
        %v1200 = vld [vmem:[%s274 + $0x16ac] sm:$0xff]
        %v1201 = vld [vmem:[%s274 + $0x16b4] sm:$0xff]
        %v1202 = vld [vmem:[%s274 + $0x16bc] sm:$0xf]
        %v1203 = vld [vmem:[%s274 + $0x16c0] sm:$0xff]
        %v1204 = vld [vmem:[%s274 + $0x16c8] sm:$0xff]
        %v1205 = vld [vmem:[%s274 + $0x16d0] sm:$0xff]
        %v1206 = vld [vmem:[%s274 + $0x16d8] sm:$0xf]
        %v1207 = vld [vmem:[%s274 + $0x16dc] sm:$0xff]
        %v1208 = vld [vmem:[%s274 + $0x16e4] sm:$0xff]
        %v1209 = vld [vmem:[%s274 + $0x16ec] sm:$0xff]
        %v1210 = vld [vmem:[%s274 + $0x16f4] sm:$0xf]
        %v1211 = vld [vmem:[%s274 + $0x16f8] sm:$0xff]
        %v1212 = vld [vmem:[%s274 + $0x1700] sm:$0xff]
        %v1213 = vld [vmem:[%s274 + $0x1708] sm:$0xff]
        %v1214 = vld [vmem:[%s274 + $0x1710] sm:$0xf]
        %v1215 = vld [vmem:[%s274 + $0x1714] sm:$0xff]
        %v1216 = vld [vmem:[%s274 + $0x171c] sm:$0xff]
        %v1217 = vld [vmem:[%s274 + $0x1724] sm:$0xff]
        %v1218 = vld [vmem:[%s274 + $0x172c] sm:$0xf]
        %v1219 = vld [vmem:[%s274 + $0x1730] sm:$0xff]
        %v1220 = vld [vmem:[%s274 + $0x1738] sm:$0xff]
        %v1221 = vld [vmem:[%s274 + $0x1740] sm:$0xff]
        %v1222 = vld [vmem:[%s274 + $0x1748] sm:$0xf]
        %v1223 = vld [vmem:[%s274 + $0x174c] sm:$0xff]
        %v1224 = vld [vmem:[%s274 + $0x1754] sm:$0xff]
        %v1225 = vld [vmem:[%s274 + $0x175c] sm:$0xff]
        %v1226 = vld [vmem:[%s274 + $0x1764] sm:$0xf]
        %v1227 = vld [vmem:[%s274 + $0x1768] sm:$0xff]
        %v1228 = vld [vmem:[%s274 + $0x1770] sm:$0xff]
        %v1229 = vld [vmem:[%s274 + $0x1778] sm:$0xff]
        %v1230 = vld [vmem:[%s274 + $0x1780] sm:$0xf]
        %v1231 = vld [vmem:[%s274 + $0x1784] sm:$0xff]
        %v1232 = vld [vmem:[%s274 + $0x178c] sm:$0xff]
        %v1233 = vld [vmem:[%s274 + $0x1794] sm:$0xff]
        %v1234 = vld [vmem:[%s274 + $0x179c] sm:$0xf]
        %v1235 = vld [vmem:[%s274 + $0x17a0] sm:$0xff]
        %v1236 = vld [vmem:[%s274 + $0x17a8] sm:$0xff]
        %v1237 = vld [vmem:[%s274 + $0x17b0] sm:$0xff]
        %v1238 = vld [vmem:[%s274 + $0x17b8] sm:$0xf]
        %v1239 = vld [vmem:[%s274 + $0x17bc] sm:$0xff]
        %v1240 = vld [vmem:[%s274 + $0x17c4] sm:$0xff]
        %v1241 = vld [vmem:[%s274 + $0x17cc] sm:$0xff]
        %v1242 = vld [vmem:[%s274 + $0x17d4] sm:$0xf]
        %v1243 = vld [vmem:[%s274 + $0x17d8] sm:$0xff]
        %v1244 = vld [vmem:[%s274 + $0x17e0] sm:$0xff]
        %v1245 = vld [vmem:[%s274 + $0x17e8] sm:$0xff]
        %v1246 = vld [vmem:[%s274 + $0x17f0] sm:$0xf]
        %v1247 = vld [vmem:[%s274 + $0x17f4] sm:$0xff]
        %v1248 = vld [vmem:[%s274 + $0x17fc] sm:$0xff]
        %v1249 = vld [vmem:[%s274 + $0x1804] sm:$0xff]
        %v1250 = vld [vmem:[%s274 + $0x180c] sm:$0xf]
        %v1251 = vld [vmem:[%s274 + $0x1810] sm:$0xff]
        %v1252 = vld [vmem:[%s274 + $0x1818] sm:$0xff]
        %v1253 = vld [vmem:[%s274 + $0x1820] sm:$0xff]
        %v1254 = vld [vmem:[%s274 + $0x1828] sm:$0xf]
        %v1255 = vld [vmem:[%s274 + $0x182c] sm:$0xff]
        %v1256 = vld [vmem:[%s274 + $0x1834] sm:$0xff]
        %v1257 = vld [vmem:[%s274 + $0x183c] sm:$0xff]
        %v1258 = vld [vmem:[%s274 + $0x1844] sm:$0xf]
        %v1259 = vld [vmem:[%s274 + $0x1848] sm:$0xff]
        %v1260 = vld [vmem:[%s274 + $0x1850] sm:$0xff]
        %v1261 = vld [vmem:[%s274 + $0x1858] sm:$0xff]
        %v1262 = vld [vmem:[%s274 + $0x1860] sm:$0xf]
        %v1263 = vld [vmem:[%s274 + $0x1864] sm:$0xff]
        %v1264 = vld [vmem:[%s274 + $0x186c] sm:$0xff]
        %v1265 = vld [vmem:[%s274 + $0x1874] sm:$0xff]
        %v1266 = vld [vmem:[%s274 + $0x187c] sm:$0xf]
        %v1267 = vld [vmem:[%s274 + $0x1880] sm:$0xff]
        %v1268 = vld [vmem:[%s274 + $0x1888] sm:$0xff]
        %v1269 = vld [vmem:[%s274 + $0x1890] sm:$0xff]
        %v1270 = vld [vmem:[%s274 + $0x1898] sm:$0xf]
        %v1271 = vld [vmem:[%s274 + $0x189c] sm:$0xff]
        %v1272 = vld [vmem:[%s274 + $0x18a4] sm:$0xff]
        %v1273 = vld [vmem:[%s274 + $0x18ac] sm:$0xff]
        %v1274 = vld [vmem:[%s274 + $0x18b4] sm:$0xf]
        %v1275 = vld [vmem:[%s274 + $0x18b8] sm:$0xff]
        %v1276 = vld [vmem:[%s274 + $0x18c0] sm:$0xff]
        %v1277 = vld [vmem:[%s274 + $0x18c8] sm:$0xff]
        %v1278 = vld [vmem:[%s274 + $0x18d0] sm:$0xf]
        %v1279 = vld [vmem:[%s274 + $0x18d4] sm:$0xff]
        %v1280 = vld [vmem:[%s274 + $0x18dc] sm:$0xff]
        %v1281 = vld [vmem:[%s274 + $0x18e4] sm:$0xff]
        %v1282 = vld [vmem:[%s274 + $0x18ec] sm:$0xf]
        %v1283 = vld [vmem:[%s274 + $0x18f0] sm:$0xff]
        %v1284 = vld [vmem:[%s274 + $0x18f8] sm:$0xff]
        %v1285 = vld [vmem:[%s274 + $0x1900] sm:$0xff]
        %v1286 = vld [vmem:[%s274 + $0x1908] sm:$0xf]
        %v1287 = vld [vmem:[%s274 + $0x190c] sm:$0xff]
        %v1288 = vld [vmem:[%s274 + $0x1914] sm:$0xff]
        %v1289 = vld [vmem:[%s274 + $0x191c] sm:$0xff]
        %v1290 = vld [vmem:[%s274 + $0x1924] sm:$0xf]
        %v1291 = vld [vmem:[%s274 + $0x1928] sm:$0xff]
        %v1292 = vld [vmem:[%s274 + $0x1930] sm:$0xff]
        %v1293 = vld [vmem:[%s274 + $0x1938] sm:$0xff]
        %v1294 = vld [vmem:[%s274 + $0x1940] sm:$0xf]
        %v1295 = vld [vmem:[%s274 + $0x1944] sm:$0xff]
        %v1296 = vld [vmem:[%s274 + $0x194c] sm:$0xff]
        %v1297 = vld [vmem:[%s274 + $0x1954] sm:$0xff]
        %v1298 = vld [vmem:[%s274 + $0x195c] sm:$0xf]
        %v1299 = vld [vmem:[%s274 + $0x1960] sm:$0xff]
        %v1300 = vld [vmem:[%s274 + $0x1968] sm:$0xff]
        %v1301 = vld [vmem:[%s274 + $0x1970] sm:$0xff]
        %v1302 = vld [vmem:[%s274 + $0x1978] sm:$0xf]
        %v1303 = vld [vmem:[%s274 + $0x197c] sm:$0xff]
        %v1304 = vld [vmem:[%s274 + $0x1984] sm:$0xff]
        %v1305 = vld [vmem:[%s274 + $0x198c] sm:$0xff]
        %v1306 = vld [vmem:[%s274 + $0x1994] sm:$0xf]
        %v1307 = vld [vmem:[%s274 + $0x1998] sm:$0xff]
        %v1308 = vld [vmem:[%s274 + $0x19a0] sm:$0xff]
        %v1309 = vld [vmem:[%s274 + $0x19a8] sm:$0xff]
        %v1310 = vld [vmem:[%s274 + $0x19b0] sm:$0xf]
        %v1311 = vld [vmem:[%s274 + $0x19b4] sm:$0xff]
        %v1312 = vld [vmem:[%s274 + $0x19bc] sm:$0xff]
        %v1313 = vld [vmem:[%s274 + $0x19c4] sm:$0xff]
        %v1314 = vld [vmem:[%s274 + $0x19cc] sm:$0xf]
        %v1315 = vld [vmem:[%s274 + $0x19d0] sm:$0xff]
        %v1316 = vld [vmem:[%s274 + $0x19d8] sm:$0xff]
        %v1317 = vld [vmem:[%s274 + $0x19e0] sm:$0xff]
        %v1318 = vld [vmem:[%s274 + $0x19e8] sm:$0xf]
        %v1319 = vld [vmem:[%s274 + $0x19ec] sm:$0xff]
        %v1320 = vld [vmem:[%s274 + $0x19f4] sm:$0xff]
        %v1321 = vld [vmem:[%s274 + $0x19fc] sm:$0xff]
        %v1322 = vld [vmem:[%s274 + $0x1a04] sm:$0xf]
        %v1323 = vld [vmem:[%s274 + $0x1a08] sm:$0xff]
        %v1324 = vld [vmem:[%s274 + $0x1a10] sm:$0xff]
        %v1325 = vld [vmem:[%s274 + $0x1a18] sm:$0xff]
        %v1326 = vld [vmem:[%s274 + $0x1a20] sm:$0xf]
        %v1327 = vld [vmem:[%s274 + $0x1a24] sm:$0xff]
        %v1328 = vld [vmem:[%s274 + $0x1a2c] sm:$0xff]
        %v1329 = vld [vmem:[%s274 + $0x1a34] sm:$0xff]
        %v1330 = vld [vmem:[%s274 + $0x1a3c] sm:$0xf]
        %v1331 = vld [vmem:[%s274 + $0x1a40] sm:$0xff]
        %v1332 = vld [vmem:[%s274 + $0x1a48] sm:$0xff]
        %v1333 = vld [vmem:[%s274 + $0x1a50] sm:$0xff]
        %v1334 = vld [vmem:[%s274 + $0x1a58] sm:$0xf]
        %v1335 = vld [vmem:[%s274 + $0x1a5c] sm:$0xff]
        %v1336 = vld [vmem:[%s274 + $0x1a64] sm:$0xff]
        %v1337 = vld [vmem:[%s274 + $0x1a6c] sm:$0xff]
        %v1338 = vld [vmem:[%s274 + $0x1a74] sm:$0xf]
        %v1339 = vld [vmem:[%s274 + $0x1a78] sm:$0xff]
        %v1340 = vld [vmem:[%s274 + $0x1a80] sm:$0xff]
        %v1341 = vld [vmem:[%s274 + $0x1a88] sm:$0xff]
        %v1342 = vld [vmem:[%s274 + $0x1a90] sm:$0xf]
        %v1343 = vld [vmem:[%s274 + $0x1a94] sm:$0xff]
        %v1344 = vld [vmem:[%s274 + $0x1a9c] sm:$0xff]
        %v1345 = vld [vmem:[%s274 + $0x1aa4] sm:$0xff]
        %v1346 = vld [vmem:[%s274 + $0x1aac] sm:$0xf]
        %v1347 = vld [vmem:[%s274 + $0x1ab0] sm:$0xff]
        %v1348 = vld [vmem:[%s274 + $0x1ab8] sm:$0xff]
        %v1349 = vld [vmem:[%s274 + $0x1ac0] sm:$0xff]
        %v1350 = vld [vmem:[%s274 + $0x1ac8] sm:$0xf]
        %v1351 = vld [vmem:[%s274 + $0x1acc] sm:$0xff]
        %v1352 = vld [vmem:[%s274 + $0x1ad4] sm:$0xff]
        %v1353 = vld [vmem:[%s274 + $0x1adc] sm:$0xff]
        %v1354 = vld [vmem:[%s274 + $0x1ae4] sm:$0xf]
        %v1355 = vld [vmem:[%s274 + $0x1ae8] sm:$0xff]
        %v1356 = vld [vmem:[%s274 + $0x1af0] sm:$0xff]
        %v1357 = vld [vmem:[%s274 + $0x1af8] sm:$0xff]
        %v1358 = vld [vmem:[%s274 + $0x1b00] sm:$0xf]
        %v1359 = vld [vmem:[%s274 + $0x1b04] sm:$0xff]
        %v1360 = vld [vmem:[%s274 + $0x1b0c] sm:$0xff]
        %v1361 = vld [vmem:[%s274 + $0x1b14] sm:$0xff]
        %v1362 = vld [vmem:[%s274 + $0x1b1c] sm:$0xf]
        %v1363 = vld [vmem:[%s274 + $0x1b20] sm:$0xff]
        %v1364 = vld [vmem:[%s274 + $0x1b28] sm:$0xff]
        %v1365 = vld [vmem:[%s274 + $0x1b30] sm:$0xff]
        %v1366 = vld [vmem:[%s274 + $0x1b38] sm:$0xf]
        %v1367 = vld [vmem:[%s274 + $0x1b3c] sm:$0xff]
        %v1368 = vld [vmem:[%s274 + $0x1b44] sm:$0xff]
        %v1369 = vld [vmem:[%s274 + $0x1b4c] sm:$0xff]
        %v1370 = vld [vmem:[%s274 + $0x1b54] sm:$0xf]
        %v1371 = vld [vmem:[%s274 + $0x1b58] sm:$0xff]
        %v1372 = vld [vmem:[%s274 + $0x1b60] sm:$0xff]
        %v1373 = vld [vmem:[%s274 + $0x1b68] sm:$0xff]
        %v1374 = vld [vmem:[%s274 + $0x1b70] sm:$0xf]
        %v1375 = vld [vmem:[%s274 + $0x1b74] sm:$0xff]
        %v1376 = vld [vmem:[%s274 + $0x1b7c] sm:$0xff]
        %v1377 = vld [vmem:[%s274 + $0x1b84] sm:$0xff]
        %v1378 = vld [vmem:[%s274 + $0x1b8c] sm:$0xf]
        %v1379 = vld [vmem:[%s274 + $0x1b90] sm:$0xff]
        %v1380 = vld [vmem:[%s274 + $0x1b98] sm:$0xff]
        %v1381 = vld [vmem:[%s274 + $0x1ba0] sm:$0xff]
        %v1382 = vld [vmem:[%s274 + $0x1ba8] sm:$0xf]
        %v1383 = vld [vmem:[%s274 + $0x1bac] sm:$0xff]
        %v1384 = vld [vmem:[%s274 + $0x1bb4] sm:$0xff]
        %v1385 = vld [vmem:[%s274 + $0x1bbc] sm:$0xff]
        %v1386 = vld [vmem:[%s274 + $0x1bc4] sm:$0xf]
        %v1387 = vld [vmem:[%s274 + $0x1bc8] sm:$0xff]
        %v1388 = vld [vmem:[%s274 + $0x1bd0] sm:$0xff]
        %v1389 = vld [vmem:[%s274 + $0x1bd8] sm:$0xff]
        %v1390 = vld [vmem:[%s274 + $0x1be0] sm:$0xf]
        %v1391 = vld [vmem:[%s274 + $0x1be4] sm:$0xff]
        %v1392 = vld [vmem:[%s274 + $0x1bec] sm:$0xff]
        %v1393 = vld [vmem:[%s274 + $0x1bf4] sm:$0xff]
        %v1394 = vld [vmem:[%s274 + $0x1bfc] sm:$0xf]
        %v1411 = vunpack.c.l.b16 %v355
        %v1412 = vunpack.c.h.b16 %v355
        %v1413 = vunpack.c.l.b16 %v356
        %v1414 = vunpack.c.h.b16 %v356
        %v1415 = vunpack.c.l.b16 %v357
        %v1416 = vunpack.c.h.b16 %v357
        %v1417 = vunpack.c.l.b16 %v358
        %v1418 = vunpack.c.h.b16 %v358
        %v1419 = vunpack.c.l.b16 %v359
        %v1420 = vunpack.c.h.b16 %v359
        %v1421 = vunpack.c.l.b16 %v360
        %v1422 = vunpack.c.h.b16 %v360
        %v1423 = vunpack.c.l.b16 %v361
        %v1424 = vunpack.c.h.b16 %v361
        %v1425 = vunpack.c.l.b16 %v362
        %v1426 = vunpack.c.h.b16 %v362
        %v1427 = vunpack.c.l.b16 %v363
        %v1428 = vunpack.c.h.b16 %v363
        %v1429 = vunpack.c.l.b16 %v364
        %v1430 = vunpack.c.h.b16 %v364
        %v1431 = vunpack.c.l.b16 %v365
        %v1432 = vunpack.c.h.b16 %v365
        %v1433 = vunpack.c.l.b16 %v366
        %v1434 = vunpack.c.h.b16 %v366
        %v1435 = vunpack.c.l.b16 %v367
        %v1436 = vunpack.c.h.b16 %v367
        %v1437 = vunpack.c.l.b16 %v368
        %v1438 = vunpack.c.h.b16 %v368
        %v1439 = vunpack.c.l.b16 %v369
        %v1440 = vunpack.c.h.b16 %v369
        %v1441 = vunpack.c.l.b16 %v370
        %v1442 = vunpack.c.h.b16 %v370
        %v1443 = vpack.c.b16 %v1427, %v1411
        %v1444 = vpack.c.b16 %v1428, %v1412
        %v1445 = vpack.c.b16 %v1429, %v1413
        %v1446 = vpack.c.b16 %v1430, %v1414
        %v1447 = vpack.c.b16 %v1431, %v1415
        %v1448 = vpack.c.b16 %v1432, %v1416
        %v1449 = vpack.c.b16 %v1433, %v1417
        %v1450 = vpack.c.b16 %v1434, %v1418
        %v1451 = vpack.c.b16 %v1435, %v1419
        %v1452 = vpack.c.b16 %v1436, %v1420
        %v1453 = vpack.c.b16 %v1437, %v1421
        %v1454 = vpack.c.b16 %v1438, %v1422
        %v1455 = vpack.c.b16 %v1439, %v1423
        %v1456 = vpack.c.b16 %v1440, %v1424
        %v1457 = vpack.c.b16 %v1441, %v1425
        %v1458 = vpack.c.b16 %v1442, %v1426
        %v2499 = vunpack.c.l.b16 %v371
        %v2500 = vunpack.c.h.b16 %v371
        %v2501 = vunpack.c.l.b16 %v372
        %v2502 = vunpack.c.h.b16 %v372
        %v2503 = vunpack.c.l.b16 %v373
        %v2504 = vunpack.c.h.b16 %v373
        %v2505 = vunpack.c.l.b16 %v374
        %v2506 = vunpack.c.l.b16 %v375
        %v2507 = vunpack.c.h.b16 %v375
        %v2508 = vunpack.c.l.b16 %v376
        %v2509 = vunpack.c.h.b16 %v376
        %v2510 = vunpack.c.l.b16 %v377
        %v2511 = vunpack.c.h.b16 %v377
        %v2512 = vunpack.c.l.b16 %v378
        %v2513 = vunpack.c.l.b16 %v379
        %v2514 = vunpack.c.h.b16 %v379
        %v2515 = vunpack.c.l.b16 %v380
        %v2516 = vunpack.c.h.b16 %v380
        %v2517 = vunpack.c.l.b16 %v381
        %v2518 = vunpack.c.h.b16 %v381
        %v2519 = vunpack.c.l.b16 %v382
        %v2520 = vunpack.c.l.b16 %v383
        %v2521 = vunpack.c.h.b16 %v383
        %v2522 = vunpack.c.l.b16 %v384
        %v2523 = vunpack.c.h.b16 %v384
        %v2524 = vunpack.c.l.b16 %v385
        %v2525 = vunpack.c.h.b16 %v385
        %v2526 = vunpack.c.l.b16 %v386
        %v2527 = vunpack.c.l.b16 %v387
        %v2528 = vunpack.c.h.b16 %v387
        %v2529 = vunpack.c.l.b16 %v388
        %v2530 = vunpack.c.h.b16 %v388
        %v2531 = vunpack.c.l.b16 %v389
        %v2532 = vunpack.c.h.b16 %v389
        %v2533 = vunpack.c.l.b16 %v390
        %v2534 = vunpack.c.l.b16 %v391
        %v2535 = vunpack.c.h.b16 %v391
        %v2536 = vunpack.c.l.b16 %v392
        %v2537 = vunpack.c.h.b16 %v392
        %v2538 = vunpack.c.l.b16 %v393
        %v2539 = vunpack.c.h.b16 %v393
        %v2540 = vunpack.c.l.b16 %v394
        %v2541 = vunpack.c.l.b16 %v395
        %v2542 = vunpack.c.h.b16 %v395
        %v2543 = vunpack.c.l.b16 %v396
        %v2544 = vunpack.c.h.b16 %v396
        %v2545 = vunpack.c.l.b16 %v397
        %v2546 = vunpack.c.h.b16 %v397
        %v2547 = vunpack.c.l.b16 %v398
        %v2548 = vunpack.c.l.b16 %v399
        %v2549 = vunpack.c.h.b16 %v399
        %v2550 = vunpack.c.l.b16 %v400
        %v2551 = vunpack.c.h.b16 %v400
        %v2552 = vunpack.c.l.b16 %v401
        %v2553 = vunpack.c.h.b16 %v401
        %v2554 = vunpack.c.l.b16 %v402
        %v2555 = vunpack.c.l.b16 %v403
        %v2556 = vunpack.c.h.b16 %v403
        %v2557 = vunpack.c.l.b16 %v404
        %v2558 = vunpack.c.h.b16 %v404
        %v2559 = vunpack.c.l.b16 %v405
        %v2560 = vunpack.c.h.b16 %v405
        %v2561 = vunpack.c.l.b16 %v406
        %v2562 = vunpack.c.l.b16 %v407
        %v2563 = vunpack.c.h.b16 %v407
        %v2564 = vunpack.c.l.b16 %v408
        %v2565 = vunpack.c.h.b16 %v408
        %v2566 = vunpack.c.l.b16 %v409
        %v2567 = vunpack.c.h.b16 %v409
        %v2568 = vunpack.c.l.b16 %v410
        %v2569 = vunpack.c.l.b16 %v411
        %v2570 = vunpack.c.h.b16 %v411
        %v2571 = vunpack.c.l.b16 %v412
        %v2572 = vunpack.c.h.b16 %v412
        %v2573 = vunpack.c.l.b16 %v413
        %v2574 = vunpack.c.h.b16 %v413
        %v2575 = vunpack.c.l.b16 %v414
        %v2576 = vunpack.c.l.b16 %v415
        %v2577 = vunpack.c.h.b16 %v415
        %v2578 = vunpack.c.l.b16 %v416
        %v2579 = vunpack.c.h.b16 %v416
        %v2580 = vunpack.c.l.b16 %v417
        %v2581 = vunpack.c.h.b16 %v417
        %v2582 = vunpack.c.l.b16 %v418
        %v2583 = vunpack.c.l.b16 %v419
        %v2584 = vunpack.c.h.b16 %v419
        %v2585 = vunpack.c.l.b16 %v420
        %v2586 = vunpack.c.h.b16 %v420
        %v2587 = vunpack.c.l.b16 %v421
        %v2588 = vunpack.c.h.b16 %v421
        %v2589 = vunpack.c.l.b16 %v422
        %v2590 = vunpack.c.l.b16 %v423
        %v2591 = vunpack.c.h.b16 %v423
        %v2592 = vunpack.c.l.b16 %v424
        %v2593 = vunpack.c.h.b16 %v424
        %v2594 = vunpack.c.l.b16 %v425
        %v2595 = vunpack.c.h.b16 %v425
        %v2596 = vunpack.c.l.b16 %v426
        %v2597 = vunpack.c.l.b16 %v427
        %v2598 = vunpack.c.h.b16 %v427
        %v2599 = vunpack.c.l.b16 %v428
        %v2600 = vunpack.c.h.b16 %v428
        %v2601 = vunpack.c.l.b16 %v429
        %v2602 = vunpack.c.h.b16 %v429
        %v2603 = vunpack.c.l.b16 %v430
        %v2604 = vunpack.c.l.b16 %v431
        %v2605 = vunpack.c.h.b16 %v431
        %v2606 = vunpack.c.l.b16 %v432
        %v2607 = vunpack.c.h.b16 %v432
        %v2608 = vunpack.c.l.b16 %v433
        %v2609 = vunpack.c.h.b16 %v433
        %v2610 = vunpack.c.l.b16 %v434
        %v2611 = vunpack.c.l.b16 %v435
        %v2612 = vunpack.c.h.b16 %v435
        %v2613 = vunpack.c.l.b16 %v436
        %v2614 = vunpack.c.h.b16 %v436
        %v2615 = vunpack.c.l.b16 %v437
        %v2616 = vunpack.c.h.b16 %v437
        %v2617 = vunpack.c.l.b16 %v438
        %v2618 = vunpack.c.l.b16 %v439
        %v2619 = vunpack.c.h.b16 %v439
        %v2620 = vunpack.c.l.b16 %v440
        %v2621 = vunpack.c.h.b16 %v440
        %v2622 = vunpack.c.l.b16 %v441
        %v2623 = vunpack.c.h.b16 %v441
        %v2624 = vunpack.c.l.b16 %v442
        %v2625 = vunpack.c.l.b16 %v443
        %v2626 = vunpack.c.h.b16 %v443
        %v2627 = vunpack.c.l.b16 %v444
        %v2628 = vunpack.c.h.b16 %v444
        %v2629 = vunpack.c.l.b16 %v445
        %v2630 = vunpack.c.h.b16 %v445
        %v2631 = vunpack.c.l.b16 %v446
        %v2632 = vunpack.c.l.b16 %v447
        %v2633 = vunpack.c.h.b16 %v447
        %v2634 = vunpack.c.l.b16 %v448
        %v2635 = vunpack.c.h.b16 %v448
        %v2636 = vunpack.c.l.b16 %v449
        %v2637 = vunpack.c.h.b16 %v449
        %v2638 = vunpack.c.l.b16 %v450
        %v2639 = vunpack.c.l.b16 %v451
        %v2640 = vunpack.c.h.b16 %v451
        %v2641 = vunpack.c.l.b16 %v452
        %v2642 = vunpack.c.h.b16 %v452
        %v2643 = vunpack.c.l.b16 %v453
        %v2644 = vunpack.c.h.b16 %v453
        %v2645 = vunpack.c.l.b16 %v454
        %v2646 = vunpack.c.l.b16 %v455
        %v2647 = vunpack.c.h.b16 %v455
        %v2648 = vunpack.c.l.b16 %v456
        %v2649 = vunpack.c.h.b16 %v456
        %v2650 = vunpack.c.l.b16 %v457
        %v2651 = vunpack.c.h.b16 %v457
        %v2652 = vunpack.c.l.b16 %v458
        %v2653 = vunpack.c.l.b16 %v459
        %v2654 = vunpack.c.h.b16 %v459
        %v2655 = vunpack.c.l.b16 %v460
        %v2656 = vunpack.c.h.b16 %v460
        %v2657 = vunpack.c.l.b16 %v461
        %v2658 = vunpack.c.h.b16 %v461
        %v2659 = vunpack.c.l.b16 %v462
        %v2660 = vunpack.c.l.b16 %v463
        %v2661 = vunpack.c.h.b16 %v463
        %v2662 = vunpack.c.l.b16 %v464
        %v2663 = vunpack.c.h.b16 %v464
        %v2664 = vunpack.c.l.b16 %v465
        %v2665 = vunpack.c.h.b16 %v465
        %v2666 = vunpack.c.l.b16 %v466
        %v2667 = vunpack.c.l.b16 %v467
        %v2668 = vunpack.c.h.b16 %v467
        %v2669 = vunpack.c.l.b16 %v468
        %v2670 = vunpack.c.h.b16 %v468
        %v2671 = vunpack.c.l.b16 %v469
        %v2672 = vunpack.c.h.b16 %v469
        %v2673 = vunpack.c.l.b16 %v470
        %v2674 = vunpack.c.l.b16 %v471
        %v2675 = vunpack.c.h.b16 %v471
        %v2676 = vunpack.c.l.b16 %v472
        %v2677 = vunpack.c.h.b16 %v472
        %v2678 = vunpack.c.l.b16 %v473
        %v2679 = vunpack.c.h.b16 %v473
        %v2680 = vunpack.c.l.b16 %v474
        %v2681 = vunpack.c.l.b16 %v475
        %v2682 = vunpack.c.h.b16 %v475
        %v2683 = vunpack.c.l.b16 %v476
        %v2684 = vunpack.c.h.b16 %v476
        %v2685 = vunpack.c.l.b16 %v477
        %v2686 = vunpack.c.h.b16 %v477
        %v2687 = vunpack.c.l.b16 %v478
        %v2688 = vunpack.c.l.b16 %v479
        %v2689 = vunpack.c.h.b16 %v479
        %v2690 = vunpack.c.l.b16 %v480
        %v2691 = vunpack.c.h.b16 %v480
        %v2692 = vunpack.c.l.b16 %v481
        %v2693 = vunpack.c.h.b16 %v481
        %v2694 = vunpack.c.l.b16 %v482
        %v2695 = vunpack.c.l.b16 %v483
        %v2696 = vunpack.c.h.b16 %v483
        %v2697 = vunpack.c.l.b16 %v484
        %v2698 = vunpack.c.h.b16 %v484
        %v2699 = vunpack.c.l.b16 %v485
        %v2700 = vunpack.c.h.b16 %v485
        %v2701 = vunpack.c.l.b16 %v486
        %v2702 = vunpack.c.l.b16 %v487
        %v2703 = vunpack.c.h.b16 %v487
        %v2704 = vunpack.c.l.b16 %v488
        %v2705 = vunpack.c.h.b16 %v488
        %v2706 = vunpack.c.l.b16 %v489
        %v2707 = vunpack.c.h.b16 %v489
        %v2708 = vunpack.c.l.b16 %v490
        %v2709 = vunpack.c.l.b16 %v491
        %v2710 = vunpack.c.h.b16 %v491
        %v2711 = vunpack.c.l.b16 %v492
        %v2712 = vunpack.c.h.b16 %v492
        %v2713 = vunpack.c.l.b16 %v493
        %v2714 = vunpack.c.h.b16 %v493
        %v2715 = vunpack.c.l.b16 %v494
        %v2716 = vunpack.c.l.b16 %v495
        %v2717 = vunpack.c.h.b16 %v495
        %v2718 = vunpack.c.l.b16 %v496
        %v2719 = vunpack.c.h.b16 %v496
        %v2720 = vunpack.c.l.b16 %v497
        %v2721 = vunpack.c.h.b16 %v497
        %v2722 = vunpack.c.l.b16 %v498
        %v2723 = vunpack.c.l.b16 %v499
        %v2724 = vunpack.c.h.b16 %v499
        %v2725 = vunpack.c.l.b16 %v500
        %v2726 = vunpack.c.h.b16 %v500
        %v2727 = vunpack.c.l.b16 %v501
        %v2728 = vunpack.c.h.b16 %v501
        %v2729 = vunpack.c.l.b16 %v502
        %v2730 = vunpack.c.l.b16 %v503
        %v2731 = vunpack.c.h.b16 %v503
        %v2732 = vunpack.c.l.b16 %v504
        %v2733 = vunpack.c.h.b16 %v504
        %v2734 = vunpack.c.l.b16 %v505
        %v2735 = vunpack.c.h.b16 %v505
        %v2736 = vunpack.c.l.b16 %v506
        %v2737 = vunpack.c.l.b16 %v507
        %v2738 = vunpack.c.h.b16 %v507
        %v2739 = vunpack.c.l.b16 %v508
        %v2740 = vunpack.c.h.b16 %v508
        %v2741 = vunpack.c.l.b16 %v509
        %v2742 = vunpack.c.h.b16 %v509
        %v2743 = vunpack.c.l.b16 %v510
        %v2744 = vunpack.c.l.b16 %v511
        %v2745 = vunpack.c.h.b16 %v511
        %v2746 = vunpack.c.l.b16 %v512
        %v2747 = vunpack.c.h.b16 %v512
        %v2748 = vunpack.c.l.b16 %v513
        %v2749 = vunpack.c.h.b16 %v513
        %v2750 = vunpack.c.l.b16 %v514
        %v2751 = vunpack.c.l.b16 %v515
        %v2752 = vunpack.c.h.b16 %v515
        %v2753 = vunpack.c.l.b16 %v516
        %v2754 = vunpack.c.h.b16 %v516
        %v2755 = vunpack.c.l.b16 %v517
        %v2756 = vunpack.c.h.b16 %v517
        %v2757 = vunpack.c.l.b16 %v518
        %v2758 = vunpack.c.l.b16 %v519
        %v2759 = vunpack.c.h.b16 %v519
        %v2760 = vunpack.c.l.b16 %v520
        %v2761 = vunpack.c.h.b16 %v520
        %v2762 = vunpack.c.l.b16 %v521
        %v2763 = vunpack.c.h.b16 %v521
        %v2764 = vunpack.c.l.b16 %v522
        %v2765 = vunpack.c.l.b16 %v523
        %v2766 = vunpack.c.h.b16 %v523
        %v2767 = vunpack.c.l.b16 %v524
        %v2768 = vunpack.c.h.b16 %v524
        %v2769 = vunpack.c.l.b16 %v525
        %v2770 = vunpack.c.h.b16 %v525
        %v2771 = vunpack.c.l.b16 %v526
        %v2772 = vunpack.c.l.b16 %v527
        %v2773 = vunpack.c.h.b16 %v527
        %v2774 = vunpack.c.l.b16 %v528
        %v2775 = vunpack.c.h.b16 %v528
        %v2776 = vunpack.c.l.b16 %v529
        %v2777 = vunpack.c.h.b16 %v529
        %v2778 = vunpack.c.l.b16 %v530
        %v2779 = vunpack.c.l.b16 %v531
        %v2780 = vunpack.c.h.b16 %v531
        %v2781 = vunpack.c.l.b16 %v532
        %v2782 = vunpack.c.h.b16 %v532
        %v2783 = vunpack.c.l.b16 %v533
        %v2784 = vunpack.c.h.b16 %v533
        %v2785 = vunpack.c.l.b16 %v534
        %v2786 = vunpack.c.l.b16 %v535
        %v2787 = vunpack.c.h.b16 %v535
        %v2788 = vunpack.c.l.b16 %v536
        %v2789 = vunpack.c.h.b16 %v536
        %v2790 = vunpack.c.l.b16 %v537
        %v2791 = vunpack.c.h.b16 %v537
        %v2792 = vunpack.c.l.b16 %v538
        %v2793 = vunpack.c.l.b16 %v539
        %v2794 = vunpack.c.h.b16 %v539
        %v2795 = vunpack.c.l.b16 %v540
        %v2796 = vunpack.c.h.b16 %v540
        %v2797 = vunpack.c.l.b16 %v541
        %v2798 = vunpack.c.h.b16 %v541
        %v2799 = vunpack.c.l.b16 %v542
        %v2800 = vunpack.c.l.b16 %v543
        %v2801 = vunpack.c.h.b16 %v543
        %v2802 = vunpack.c.l.b16 %v544
        %v2803 = vunpack.c.h.b16 %v544
        %v2804 = vunpack.c.l.b16 %v545
        %v2805 = vunpack.c.h.b16 %v545
        %v2806 = vunpack.c.l.b16 %v546
        %v2807 = vunpack.c.l.b16 %v547
        %v2808 = vunpack.c.h.b16 %v547
        %v2809 = vunpack.c.l.b16 %v548
        %v2810 = vunpack.c.h.b16 %v548
        %v2811 = vunpack.c.l.b16 %v549
        %v2812 = vunpack.c.h.b16 %v549
        %v2813 = vunpack.c.l.b16 %v550
        %v2814 = vunpack.c.l.b16 %v551
        %v2815 = vunpack.c.h.b16 %v551
        %v2816 = vunpack.c.l.b16 %v552
        %v2817 = vunpack.c.h.b16 %v552
        %v2818 = vunpack.c.l.b16 %v553
        %v2819 = vunpack.c.h.b16 %v553
        %v2820 = vunpack.c.l.b16 %v554
        %v2821 = vunpack.c.l.b16 %v555
        %v2822 = vunpack.c.h.b16 %v555
        %v2823 = vunpack.c.l.b16 %v556
        %v2824 = vunpack.c.h.b16 %v556
        %v2825 = vunpack.c.l.b16 %v557
        %v2826 = vunpack.c.h.b16 %v557
        %v2827 = vunpack.c.l.b16 %v558
        %v2828 = vunpack.c.l.b16 %v559
        %v2829 = vunpack.c.h.b16 %v559
        %v2830 = vunpack.c.l.b16 %v560
        %v2831 = vunpack.c.h.b16 %v560
        %v2832 = vunpack.c.l.b16 %v561
        %v2833 = vunpack.c.h.b16 %v561
        %v2834 = vunpack.c.l.b16 %v562
        %v2835 = vunpack.c.l.b16 %v563
        %v2836 = vunpack.c.h.b16 %v563
        %v2837 = vunpack.c.l.b16 %v564
        %v2838 = vunpack.c.h.b16 %v564
        %v2839 = vunpack.c.l.b16 %v565
        %v2840 = vunpack.c.h.b16 %v565
        %v2841 = vunpack.c.l.b16 %v566
        %v2842 = vunpack.c.l.b16 %v567
        %v2843 = vunpack.c.h.b16 %v567
        %v2844 = vunpack.c.l.b16 %v568
        %v2845 = vunpack.c.h.b16 %v568
        %v2846 = vunpack.c.l.b16 %v569
        %v2847 = vunpack.c.h.b16 %v569
        %v2848 = vunpack.c.l.b16 %v570
        %v2849 = vunpack.c.l.b16 %v571
        %v2850 = vunpack.c.h.b16 %v571
        %v2851 = vunpack.c.l.b16 %v572
        %v2852 = vunpack.c.h.b16 %v572
        %v2853 = vunpack.c.l.b16 %v573
        %v2854 = vunpack.c.h.b16 %v573
        %v2855 = vunpack.c.l.b16 %v574
        %v2856 = vunpack.c.l.b16 %v575
        %v2857 = vunpack.c.h.b16 %v575
        %v2858 = vunpack.c.l.b16 %v576
        %v2859 = vunpack.c.h.b16 %v576
        %v2860 = vunpack.c.l.b16 %v577
        %v2861 = vunpack.c.h.b16 %v577
        %v2862 = vunpack.c.l.b16 %v578
        %v2863 = vunpack.c.l.b16 %v579
        %v2864 = vunpack.c.h.b16 %v579
        %v2865 = vunpack.c.l.b16 %v580
        %v2866 = vunpack.c.h.b16 %v580
        %v2867 = vunpack.c.l.b16 %v581
        %v2868 = vunpack.c.h.b16 %v581
        %v2869 = vunpack.c.l.b16 %v582
        %v2870 = vunpack.c.l.b16 %v583
        %v2871 = vunpack.c.h.b16 %v583
        %v2872 = vunpack.c.l.b16 %v584
        %v2873 = vunpack.c.h.b16 %v584
        %v2874 = vunpack.c.l.b16 %v585
        %v2875 = vunpack.c.h.b16 %v585
        %v2876 = vunpack.c.l.b16 %v586
        %v2877 = vunpack.c.l.b16 %v587
        %v2878 = vunpack.c.h.b16 %v587
        %v2879 = vunpack.c.l.b16 %v588
        %v2880 = vunpack.c.h.b16 %v588
        %v2881 = vunpack.c.l.b16 %v589
        %v2882 = vunpack.c.h.b16 %v589
        %v2883 = vunpack.c.l.b16 %v590
        %v2884 = vunpack.c.l.b16 %v591
        %v2885 = vunpack.c.h.b16 %v591
        %v2886 = vunpack.c.l.b16 %v592
        %v2887 = vunpack.c.h.b16 %v592
        %v2888 = vunpack.c.l.b16 %v593
        %v2889 = vunpack.c.h.b16 %v593
        %v2890 = vunpack.c.l.b16 %v594
        %v2891 = vunpack.c.l.b16 %v595
        %v2892 = vunpack.c.h.b16 %v595
        %v2893 = vunpack.c.l.b16 %v596
        %v2894 = vunpack.c.h.b16 %v596
        %v2895 = vunpack.c.l.b16 %v597
        %v2896 = vunpack.c.h.b16 %v597
        %v2897 = vunpack.c.l.b16 %v598
        %v2898 = vunpack.c.l.b16 %v599
        %v2899 = vunpack.c.h.b16 %v599
        %v2900 = vunpack.c.l.b16 %v600
        %v2901 = vunpack.c.h.b16 %v600
        %v2902 = vunpack.c.l.b16 %v601
        %v2903 = vunpack.c.h.b16 %v601
        %v2904 = vunpack.c.l.b16 %v602
        %v2905 = vunpack.c.l.b16 %v603
        %v2906 = vunpack.c.h.b16 %v603
        %v2907 = vunpack.c.l.b16 %v604
        %v2908 = vunpack.c.h.b16 %v604
        %v2909 = vunpack.c.l.b16 %v605
        %v2910 = vunpack.c.h.b16 %v605
        %v2911 = vunpack.c.l.b16 %v606
        %v2912 = vunpack.c.l.b16 %v607
        %v2913 = vunpack.c.h.b16 %v607
        %v2914 = vunpack.c.l.b16 %v608
        %v2915 = vunpack.c.h.b16 %v608
        %v2916 = vunpack.c.l.b16 %v609
        %v2917 = vunpack.c.h.b16 %v609
        %v2918 = vunpack.c.l.b16 %v610
        %v2919 = vunpack.c.l.b16 %v611
        %v2920 = vunpack.c.h.b16 %v611
        %v2921 = vunpack.c.l.b16 %v612
        %v2922 = vunpack.c.h.b16 %v612
        %v2923 = vunpack.c.l.b16 %v613
        %v2924 = vunpack.c.h.b16 %v613
        %v2925 = vunpack.c.l.b16 %v614
        %v2926 = vunpack.c.l.b16 %v615
        %v2927 = vunpack.c.h.b16 %v615
        %v2928 = vunpack.c.l.b16 %v616
        %v2929 = vunpack.c.h.b16 %v616
        %v2930 = vunpack.c.l.b16 %v617
        %v2931 = vunpack.c.h.b16 %v617
        %v2932 = vunpack.c.l.b16 %v618
        %v2933 = vunpack.c.l.b16 %v619
        %v2934 = vunpack.c.h.b16 %v619
        %v2935 = vunpack.c.l.b16 %v620
        %v2936 = vunpack.c.h.b16 %v620
        %v2937 = vunpack.c.l.b16 %v621
        %v2938 = vunpack.c.h.b16 %v621
        %v2939 = vunpack.c.l.b16 %v622
        %v2940 = vunpack.c.l.b16 %v623
        %v2941 = vunpack.c.h.b16 %v623
        %v2942 = vunpack.c.l.b16 %v624
        %v2943 = vunpack.c.h.b16 %v624
        %v2944 = vunpack.c.l.b16 %v625
        %v2945 = vunpack.c.h.b16 %v625
        %v2946 = vunpack.c.l.b16 %v626
        %v2947 = vunpack.c.l.b16 %v627
        %v2948 = vunpack.c.h.b16 %v627
        %v2949 = vunpack.c.l.b16 %v628
        %v2950 = vunpack.c.h.b16 %v628
        %v2951 = vunpack.c.l.b16 %v629
        %v2952 = vunpack.c.h.b16 %v629
        %v2953 = vunpack.c.l.b16 %v630
        %v2954 = vunpack.c.l.b16 %v631
        %v2955 = vunpack.c.h.b16 %v631
        %v2956 = vunpack.c.l.b16 %v632
        %v2957 = vunpack.c.h.b16 %v632
        %v2958 = vunpack.c.l.b16 %v633
        %v2959 = vunpack.c.h.b16 %v633
        %v2960 = vunpack.c.l.b16 %v634
        %v2961 = vunpack.c.l.b16 %v635
        %v2962 = vunpack.c.h.b16 %v635
        %v2963 = vunpack.c.l.b16 %v636
        %v2964 = vunpack.c.h.b16 %v636
        %v2965 = vunpack.c.l.b16 %v637
        %v2966 = vunpack.c.h.b16 %v637
        %v2967 = vunpack.c.l.b16 %v638
        %v2968 = vunpack.c.l.b16 %v639
        %v2969 = vunpack.c.h.b16 %v639
        %v2970 = vunpack.c.l.b16 %v640
        %v2971 = vunpack.c.h.b16 %v640
        %v2972 = vunpack.c.l.b16 %v641
        %v2973 = vunpack.c.h.b16 %v641
        %v2974 = vunpack.c.l.b16 %v642
        %v2975 = vunpack.c.l.b16 %v643
        %v2976 = vunpack.c.h.b16 %v643
        %v2977 = vunpack.c.l.b16 %v644
        %v2978 = vunpack.c.h.b16 %v644
        %v2979 = vunpack.c.l.b16 %v645
        %v2980 = vunpack.c.h.b16 %v645
        %v2981 = vunpack.c.l.b16 %v646
        %v2982 = vunpack.c.l.b16 %v647
        %v2983 = vunpack.c.h.b16 %v647
        %v2984 = vunpack.c.l.b16 %v648
        %v2985 = vunpack.c.h.b16 %v648
        %v2986 = vunpack.c.l.b16 %v649
        %v2987 = vunpack.c.h.b16 %v649
        %v2988 = vunpack.c.l.b16 %v650
        %v2989 = vunpack.c.l.b16 %v651
        %v2990 = vunpack.c.h.b16 %v651
        %v2991 = vunpack.c.l.b16 %v652
        %v2992 = vunpack.c.h.b16 %v652
        %v2993 = vunpack.c.l.b16 %v653
        %v2994 = vunpack.c.h.b16 %v653
        %v2995 = vunpack.c.l.b16 %v654
        %v2996 = vunpack.c.l.b16 %v655
        %v2997 = vunpack.c.h.b16 %v655
        %v2998 = vunpack.c.l.b16 %v656
        %v2999 = vunpack.c.h.b16 %v656
        %v3000 = vunpack.c.l.b16 %v657
        %v3001 = vunpack.c.h.b16 %v657
        %v3002 = vunpack.c.l.b16 %v658
        %v3003 = vunpack.c.l.b16 %v659
        %v3004 = vunpack.c.h.b16 %v659
        %v3005 = vunpack.c.l.b16 %v660
        %v3006 = vunpack.c.h.b16 %v660
        %v3007 = vunpack.c.l.b16 %v661
        %v3008 = vunpack.c.h.b16 %v661
        %v3009 = vunpack.c.l.b16 %v662
        %v3010 = vunpack.c.l.b16 %v663
        %v3011 = vunpack.c.h.b16 %v663
        %v3012 = vunpack.c.l.b16 %v664
        %v3013 = vunpack.c.h.b16 %v664
        %v3014 = vunpack.c.l.b16 %v665
        %v3015 = vunpack.c.h.b16 %v665
        %v3016 = vunpack.c.l.b16 %v666
        %v3017 = vunpack.c.l.b16 %v667
        %v3018 = vunpack.c.h.b16 %v667
        %v3019 = vunpack.c.l.b16 %v668
        %v3020 = vunpack.c.h.b16 %v668
        %v3021 = vunpack.c.l.b16 %v669
        %v3022 = vunpack.c.h.b16 %v669
        %v3023 = vunpack.c.l.b16 %v670
        %v3024 = vunpack.c.l.b16 %v671
        %v3025 = vunpack.c.h.b16 %v671
        %v3026 = vunpack.c.l.b16 %v672
        %v3027 = vunpack.c.h.b16 %v672
        %v3028 = vunpack.c.l.b16 %v673
        %v3029 = vunpack.c.h.b16 %v673
        %v3030 = vunpack.c.l.b16 %v674
        %v3031 = vunpack.c.l.b16 %v675
        %v3032 = vunpack.c.h.b16 %v675
        %v3033 = vunpack.c.l.b16 %v676
        %v3034 = vunpack.c.h.b16 %v676
        %v3035 = vunpack.c.l.b16 %v677
        %v3036 = vunpack.c.h.b16 %v677
        %v3037 = vunpack.c.l.b16 %v678
        %v3038 = vunpack.c.l.b16 %v679
        %v3039 = vunpack.c.h.b16 %v679
        %v3040 = vunpack.c.l.b16 %v680
        %v3041 = vunpack.c.h.b16 %v680
        %v3042 = vunpack.c.l.b16 %v681
        %v3043 = vunpack.c.h.b16 %v681
        %v3044 = vunpack.c.l.b16 %v682
        %v3045 = vunpack.c.l.b16 %v683
        %v3046 = vunpack.c.h.b16 %v683
        %v3047 = vunpack.c.l.b16 %v684
        %v3048 = vunpack.c.h.b16 %v684
        %v3049 = vunpack.c.l.b16 %v685
        %v3050 = vunpack.c.h.b16 %v685
        %v3051 = vunpack.c.l.b16 %v686
        %v3052 = vunpack.c.l.b16 %v687
        %v3053 = vunpack.c.h.b16 %v687
        %v3054 = vunpack.c.l.b16 %v688
        %v3055 = vunpack.c.h.b16 %v688
        %v3056 = vunpack.c.l.b16 %v689
        %v3057 = vunpack.c.h.b16 %v689
        %v3058 = vunpack.c.l.b16 %v690
        %v3059 = vunpack.c.l.b16 %v691
        %v3060 = vunpack.c.h.b16 %v691
        %v3061 = vunpack.c.l.b16 %v692
        %v3062 = vunpack.c.h.b16 %v692
        %v3063 = vunpack.c.l.b16 %v693
        %v3064 = vunpack.c.h.b16 %v693
        %v3065 = vunpack.c.l.b16 %v694
        %v3066 = vunpack.c.l.b16 %v695
        %v3067 = vunpack.c.h.b16 %v695
        %v3068 = vunpack.c.l.b16 %v696
        %v3069 = vunpack.c.h.b16 %v696
        %v3070 = vunpack.c.l.b16 %v697
        %v3071 = vunpack.c.h.b16 %v697
        %v3072 = vunpack.c.l.b16 %v698
        %v3073 = vunpack.c.l.b16 %v699
        %v3074 = vunpack.c.h.b16 %v699
        %v3075 = vunpack.c.l.b16 %v700
        %v3076 = vunpack.c.h.b16 %v700
        %v3077 = vunpack.c.l.b16 %v701
        %v3078 = vunpack.c.h.b16 %v701
        %v3079 = vunpack.c.l.b16 %v702
        %v3080 = vunpack.c.l.b16 %v703
        %v3081 = vunpack.c.h.b16 %v703
        %v3082 = vunpack.c.l.b16 %v704
        %v3083 = vunpack.c.h.b16 %v704
        %v3084 = vunpack.c.l.b16 %v705
        %v3085 = vunpack.c.h.b16 %v705
        %v3086 = vunpack.c.l.b16 %v706
        %v3087 = vunpack.c.l.b16 %v707
        %v3088 = vunpack.c.h.b16 %v707
        %v3089 = vunpack.c.l.b16 %v708
        %v3090 = vunpack.c.h.b16 %v708
        %v3091 = vunpack.c.l.b16 %v709
        %v3092 = vunpack.c.h.b16 %v709
        %v3093 = vunpack.c.l.b16 %v710
        %v3094 = vunpack.c.l.b16 %v711
        %v3095 = vunpack.c.h.b16 %v711
        %v3096 = vunpack.c.l.b16 %v712
        %v3097 = vunpack.c.h.b16 %v712
        %v3098 = vunpack.c.l.b16 %v713
        %v3099 = vunpack.c.h.b16 %v713
        %v3100 = vunpack.c.l.b16 %v714
        %v3101 = vunpack.c.l.b16 %v715
        %v3102 = vunpack.c.h.b16 %v715
        %v3103 = vunpack.c.l.b16 %v716
        %v3104 = vunpack.c.h.b16 %v716
        %v3105 = vunpack.c.l.b16 %v717
        %v3106 = vunpack.c.h.b16 %v717
        %v3107 = vunpack.c.l.b16 %v718
        %v3108 = vunpack.c.l.b16 %v719
        %v3109 = vunpack.c.h.b16 %v719
        %v3110 = vunpack.c.l.b16 %v720
        %v3111 = vunpack.c.h.b16 %v720
        %v3112 = vunpack.c.l.b16 %v721
        %v3113 = vunpack.c.h.b16 %v721
        %v3114 = vunpack.c.l.b16 %v722
        %v3115 = vunpack.c.l.b16 %v723
        %v3116 = vunpack.c.h.b16 %v723
        %v3117 = vunpack.c.l.b16 %v724
        %v3118 = vunpack.c.h.b16 %v724
        %v3119 = vunpack.c.l.b16 %v725
        %v3120 = vunpack.c.h.b16 %v725
        %v3121 = vunpack.c.l.b16 %v726
        %v3122 = vunpack.c.l.b16 %v727
        %v3123 = vunpack.c.h.b16 %v727
        %v3124 = vunpack.c.l.b16 %v728
        %v3125 = vunpack.c.h.b16 %v728
        %v3126 = vunpack.c.l.b16 %v729
        %v3127 = vunpack.c.h.b16 %v729
        %v3128 = vunpack.c.l.b16 %v730
        %v3129 = vunpack.c.l.b16 %v731
        %v3130 = vunpack.c.h.b16 %v731
        %v3131 = vunpack.c.l.b16 %v732
        %v3132 = vunpack.c.h.b16 %v732
        %v3133 = vunpack.c.l.b16 %v733
        %v3134 = vunpack.c.h.b16 %v733
        %v3135 = vunpack.c.l.b16 %v734
        %v3136 = vunpack.c.l.b16 %v735
        %v3137 = vunpack.c.h.b16 %v735
        %v3138 = vunpack.c.l.b16 %v736
        %v3139 = vunpack.c.h.b16 %v736
        %v3140 = vunpack.c.l.b16 %v737
        %v3141 = vunpack.c.h.b16 %v737
        %v3142 = vunpack.c.l.b16 %v738
        %v3143 = vunpack.c.l.b16 %v739
        %v3144 = vunpack.c.h.b16 %v739
        %v3145 = vunpack.c.l.b16 %v740
        %v3146 = vunpack.c.h.b16 %v740
        %v3147 = vunpack.c.l.b16 %v741
        %v3148 = vunpack.c.h.b16 %v741
        %v3149 = vunpack.c.l.b16 %v742
        %v3150 = vunpack.c.l.b16 %v743
        %v3151 = vunpack.c.h.b16 %v743
        %v3152 = vunpack.c.l.b16 %v744
        %v3153 = vunpack.c.h.b16 %v744
        %v3154 = vunpack.c.l.b16 %v745
        %v3155 = vunpack.c.h.b16 %v745
        %v3156 = vunpack.c.l.b16 %v746
        %v3157 = vunpack.c.l.b16 %v747
        %v3158 = vunpack.c.h.b16 %v747
        %v3159 = vunpack.c.l.b16 %v748
        %v3160 = vunpack.c.h.b16 %v748
        %v3161 = vunpack.c.l.b16 %v749
        %v3162 = vunpack.c.h.b16 %v749
        %v3163 = vunpack.c.l.b16 %v750
        %v3164 = vunpack.c.l.b16 %v751
        %v3165 = vunpack.c.h.b16 %v751
        %v3166 = vunpack.c.l.b16 %v752
        %v3167 = vunpack.c.h.b16 %v752
        %v3168 = vunpack.c.l.b16 %v753
        %v3169 = vunpack.c.h.b16 %v753
        %v3170 = vunpack.c.l.b16 %v754
        %v3171 = vunpack.c.l.b16 %v755
        %v3172 = vunpack.c.h.b16 %v755
        %v3173 = vunpack.c.l.b16 %v756
        %v3174 = vunpack.c.h.b16 %v756
        %v3175 = vunpack.c.l.b16 %v757
        %v3176 = vunpack.c.h.b16 %v757
        %v3177 = vunpack.c.l.b16 %v758
        %v3178 = vunpack.c.l.b16 %v759
        %v3179 = vunpack.c.h.b16 %v759
        %v3180 = vunpack.c.l.b16 %v760
        %v3181 = vunpack.c.h.b16 %v760
        %v3182 = vunpack.c.l.b16 %v761
        %v3183 = vunpack.c.h.b16 %v761
        %v3184 = vunpack.c.l.b16 %v762
        %v3185 = vunpack.c.l.b16 %v763
        %v3186 = vunpack.c.h.b16 %v763
        %v3187 = vunpack.c.l.b16 %v764
        %v3188 = vunpack.c.h.b16 %v764
        %v3189 = vunpack.c.l.b16 %v765
        %v3190 = vunpack.c.h.b16 %v765
        %v3191 = vunpack.c.l.b16 %v766
        %v3192 = vunpack.c.l.b16 %v767
        %v3193 = vunpack.c.h.b16 %v767
        %v3194 = vunpack.c.l.b16 %v768
        %v3195 = vunpack.c.h.b16 %v768
        %v3196 = vunpack.c.l.b16 %v769
        %v3197 = vunpack.c.h.b16 %v769
        %v3198 = vunpack.c.l.b16 %v770
        %v3199 = vunpack.c.l.b16 %v771
        %v3200 = vunpack.c.h.b16 %v771
        %v3201 = vunpack.c.l.b16 %v772
        %v3202 = vunpack.c.h.b16 %v772
        %v3203 = vunpack.c.l.b16 %v773
        %v3204 = vunpack.c.h.b16 %v773
        %v3205 = vunpack.c.l.b16 %v774
        %v3206 = vunpack.c.l.b16 %v775
        %v3207 = vunpack.c.h.b16 %v775
        %v3208 = vunpack.c.l.b16 %v776
        %v3209 = vunpack.c.h.b16 %v776
        %v3210 = vunpack.c.l.b16 %v777
        %v3211 = vunpack.c.h.b16 %v777
        %v3212 = vunpack.c.l.b16 %v778
        %v3213 = vunpack.c.l.b16 %v779
        %v3214 = vunpack.c.h.b16 %v779
        %v3215 = vunpack.c.l.b16 %v780
        %v3216 = vunpack.c.h.b16 %v780
        %v3217 = vunpack.c.l.b16 %v781
        %v3218 = vunpack.c.h.b16 %v781
        %v3219 = vunpack.c.l.b16 %v782
        %v3220 = vunpack.c.l.b16 %v783
        %v3221 = vunpack.c.h.b16 %v783
        %v3222 = vunpack.c.l.b16 %v784
        %v3223 = vunpack.c.h.b16 %v784
        %v3224 = vunpack.c.l.b16 %v785
        %v3225 = vunpack.c.h.b16 %v785
        %v3226 = vunpack.c.l.b16 %v786
        %v3227 = vunpack.c.l.b16 %v787
        %v3228 = vunpack.c.h.b16 %v787
        %v3229 = vunpack.c.l.b16 %v788
        %v3230 = vunpack.c.h.b16 %v788
        %v3231 = vunpack.c.l.b16 %v789
        %v3232 = vunpack.c.h.b16 %v789
        %v3233 = vunpack.c.l.b16 %v790
        %v3234 = vunpack.c.l.b16 %v791
        %v3235 = vunpack.c.h.b16 %v791
        %v3236 = vunpack.c.l.b16 %v792
        %v3237 = vunpack.c.h.b16 %v792
        %v3238 = vunpack.c.l.b16 %v793
        %v3239 = vunpack.c.h.b16 %v793
        %v3240 = vunpack.c.l.b16 %v794
        %v3241 = vunpack.c.l.b16 %v795
        %v3242 = vunpack.c.h.b16 %v795
        %v3243 = vunpack.c.l.b16 %v796
        %v3244 = vunpack.c.h.b16 %v796
        %v3245 = vunpack.c.l.b16 %v797
        %v3246 = vunpack.c.h.b16 %v797
        %v3247 = vunpack.c.l.b16 %v798
        %v3248 = vunpack.c.l.b16 %v799
        %v3249 = vunpack.c.h.b16 %v799
        %v3250 = vunpack.c.l.b16 %v800
        %v3251 = vunpack.c.h.b16 %v800
        %v3252 = vunpack.c.l.b16 %v801
        %v3253 = vunpack.c.h.b16 %v801
        %v3254 = vunpack.c.l.b16 %v802
        %v3255 = vunpack.c.l.b16 %v803
        %v3256 = vunpack.c.h.b16 %v803
        %v3257 = vunpack.c.l.b16 %v804
        %v3258 = vunpack.c.h.b16 %v804
        %v3259 = vunpack.c.l.b16 %v805
        %v3260 = vunpack.c.h.b16 %v805
        %v3261 = vunpack.c.l.b16 %v806
        %v3262 = vunpack.c.l.b16 %v807
        %v3263 = vunpack.c.h.b16 %v807
        %v3264 = vunpack.c.l.b16 %v808
        %v3265 = vunpack.c.h.b16 %v808
        %v3266 = vunpack.c.l.b16 %v809
        %v3267 = vunpack.c.h.b16 %v809
        %v3268 = vunpack.c.l.b16 %v810
        %v3269 = vunpack.c.l.b16 %v811
        %v3270 = vunpack.c.h.b16 %v811
        %v3271 = vunpack.c.l.b16 %v812
        %v3272 = vunpack.c.h.b16 %v812
        %v3273 = vunpack.c.l.b16 %v813
        %v3274 = vunpack.c.h.b16 %v813
        %v3275 = vunpack.c.l.b16 %v814
        %v3276 = vunpack.c.l.b16 %v815
        %v3277 = vunpack.c.h.b16 %v815
        %v3278 = vunpack.c.l.b16 %v816
        %v3279 = vunpack.c.h.b16 %v816
        %v3280 = vunpack.c.l.b16 %v817
        %v3281 = vunpack.c.h.b16 %v817
        %v3282 = vunpack.c.l.b16 %v818
        %v3283 = vunpack.c.l.b16 %v819
        %v3284 = vunpack.c.h.b16 %v819
        %v3285 = vunpack.c.l.b16 %v820
        %v3286 = vunpack.c.h.b16 %v820
        %v3287 = vunpack.c.l.b16 %v821
        %v3288 = vunpack.c.h.b16 %v821
        %v3289 = vunpack.c.l.b16 %v822
        %v3290 = vunpack.c.l.b16 %v823
        %v3291 = vunpack.c.h.b16 %v823
        %v3292 = vunpack.c.l.b16 %v824
        %v3293 = vunpack.c.h.b16 %v824
        %v3294 = vunpack.c.l.b16 %v825
        %v3295 = vunpack.c.h.b16 %v825
        %v3296 = vunpack.c.l.b16 %v826
        %v3297 = vunpack.c.l.b16 %v827
        %v3298 = vunpack.c.h.b16 %v827
        %v3299 = vunpack.c.l.b16 %v828
        %v3300 = vunpack.c.h.b16 %v828
        %v3301 = vunpack.c.l.b16 %v829
        %v3302 = vunpack.c.h.b16 %v829
        %v3303 = vunpack.c.l.b16 %v830
        %v3304 = vunpack.c.l.b16 %v831
        %v3305 = vunpack.c.h.b16 %v831
        %v3306 = vunpack.c.l.b16 %v832
        %v3307 = vunpack.c.h.b16 %v832
        %v3308 = vunpack.c.l.b16 %v833
        %v3309 = vunpack.c.h.b16 %v833
        %v3310 = vunpack.c.l.b16 %v834
        %v3311 = vunpack.c.l.b16 %v835
        %v3312 = vunpack.c.h.b16 %v835
        %v3313 = vunpack.c.l.b16 %v836
        %v3314 = vunpack.c.h.b16 %v836
        %v3315 = vunpack.c.l.b16 %v837
        %v3316 = vunpack.c.h.b16 %v837
        %v3317 = vunpack.c.l.b16 %v838
        %v3318 = vunpack.c.l.b16 %v839
        %v3319 = vunpack.c.h.b16 %v839
        %v3320 = vunpack.c.l.b16 %v840
        %v3321 = vunpack.c.h.b16 %v840
        %v3322 = vunpack.c.l.b16 %v841
        %v3323 = vunpack.c.h.b16 %v841
        %v3324 = vunpack.c.l.b16 %v842
        %v3325 = vunpack.c.l.b16 %v843
        %v3326 = vunpack.c.h.b16 %v843
        %v3327 = vunpack.c.l.b16 %v844
        %v3328 = vunpack.c.h.b16 %v844
        %v3329 = vunpack.c.l.b16 %v845
        %v3330 = vunpack.c.h.b16 %v845
        %v3331 = vunpack.c.l.b16 %v846
        %v3332 = vunpack.c.l.b16 %v847
        %v3333 = vunpack.c.h.b16 %v847
        %v3334 = vunpack.c.l.b16 %v848
        %v3335 = vunpack.c.h.b16 %v848
        %v3336 = vunpack.c.l.b16 %v849
        %v3337 = vunpack.c.h.b16 %v849
        %v3338 = vunpack.c.l.b16 %v850
        %v3339 = vunpack.c.l.b16 %v851
        %v3340 = vunpack.c.h.b16 %v851
        %v3341 = vunpack.c.l.b16 %v852
        %v3342 = vunpack.c.h.b16 %v852
        %v3343 = vunpack.c.l.b16 %v853
        %v3344 = vunpack.c.h.b16 %v853
        %v3345 = vunpack.c.l.b16 %v854
        %v3346 = vunpack.c.l.b16 %v855
        %v3347 = vunpack.c.h.b16 %v855
        %v3348 = vunpack.c.l.b16 %v856
        %v3349 = vunpack.c.h.b16 %v856
        %v3350 = vunpack.c.l.b16 %v857
        %v3351 = vunpack.c.h.b16 %v857
        %v3352 = vunpack.c.l.b16 %v858
        %v3353 = vunpack.c.l.b16 %v859
        %v3354 = vunpack.c.h.b16 %v859
        %v3355 = vunpack.c.l.b16 %v860
        %v3356 = vunpack.c.h.b16 %v860
        %v3357 = vunpack.c.l.b16 %v861
        %v3358 = vunpack.c.h.b16 %v861
        %v3359 = vunpack.c.l.b16 %v862
        %v3360 = vunpack.c.l.b16 %v863
        %v3361 = vunpack.c.h.b16 %v863
        %v3362 = vunpack.c.l.b16 %v864
        %v3363 = vunpack.c.h.b16 %v864
        %v3364 = vunpack.c.l.b16 %v865
        %v3365 = vunpack.c.h.b16 %v865
        %v3366 = vunpack.c.l.b16 %v866
        %v3367 = vunpack.c.l.b16 %v867
        %v3368 = vunpack.c.h.b16 %v867
        %v3369 = vunpack.c.l.b16 %v868
        %v3370 = vunpack.c.h.b16 %v868
        %v3371 = vunpack.c.l.b16 %v869
        %v3372 = vunpack.c.h.b16 %v869
        %v3373 = vunpack.c.l.b16 %v870
        %v3374 = vunpack.c.l.b16 %v871
        %v3375 = vunpack.c.h.b16 %v871
        %v3376 = vunpack.c.l.b16 %v872
        %v3377 = vunpack.c.h.b16 %v872
        %v3378 = vunpack.c.l.b16 %v873
        %v3379 = vunpack.c.h.b16 %v873
        %v3380 = vunpack.c.l.b16 %v874
        %v3381 = vunpack.c.l.b16 %v875
        %v3382 = vunpack.c.h.b16 %v875
        %v3383 = vunpack.c.l.b16 %v876
        %v3384 = vunpack.c.h.b16 %v876
        %v3385 = vunpack.c.l.b16 %v877
        %v3386 = vunpack.c.h.b16 %v877
        %v3387 = vunpack.c.l.b16 %v878
        %v3388 = vunpack.c.l.b16 %v879
        %v3389 = vunpack.c.h.b16 %v879
        %v3390 = vunpack.c.l.b16 %v880
        %v3391 = vunpack.c.h.b16 %v880
        %v3392 = vunpack.c.l.b16 %v881
        %v3393 = vunpack.c.h.b16 %v881
        %v3394 = vunpack.c.l.b16 %v882
        %v3395 = vunpack.c.l.b16 %v883
        %v3396 = vunpack.c.h.b16 %v883
        %v3397 = vunpack.c.l.b16 %v884
        %v3398 = vunpack.c.h.b16 %v884
        %v3399 = vunpack.c.l.b16 %v885
        %v3400 = vunpack.c.h.b16 %v885
        %v3401 = vunpack.c.l.b16 %v886
        %v3402 = vunpack.c.l.b16 %v887
        %v3403 = vunpack.c.h.b16 %v887
        %v3404 = vunpack.c.l.b16 %v888
        %v3405 = vunpack.c.h.b16 %v888
        %v3406 = vunpack.c.l.b16 %v889
        %v3407 = vunpack.c.h.b16 %v889
        %v3408 = vunpack.c.l.b16 %v890
        %v3409 = vunpack.c.l.b16 %v891
        %v3410 = vunpack.c.h.b16 %v891
        %v3411 = vunpack.c.l.b16 %v892
        %v3412 = vunpack.c.h.b16 %v892
        %v3413 = vunpack.c.l.b16 %v893
        %v3414 = vunpack.c.h.b16 %v893
        %v3415 = vunpack.c.l.b16 %v894
        %v3416 = vunpack.c.l.b16 %v895
        %v3417 = vunpack.c.h.b16 %v895
        %v3418 = vunpack.c.l.b16 %v896
        %v3419 = vunpack.c.h.b16 %v896
        %v3420 = vunpack.c.l.b16 %v897
        %v3421 = vunpack.c.h.b16 %v897
        %v3422 = vunpack.c.l.b16 %v898
        %v3423 = vunpack.c.l.b16 %v899
        %v3424 = vunpack.c.h.b16 %v899
        %v3425 = vunpack.c.l.b16 %v900
        %v3426 = vunpack.c.h.b16 %v900
        %v3427 = vunpack.c.l.b16 %v901
        %v3428 = vunpack.c.h.b16 %v901
        %v3429 = vunpack.c.l.b16 %v902
        %v3430 = vunpack.c.l.b16 %v903
        %v3431 = vunpack.c.h.b16 %v903
        %v3432 = vunpack.c.l.b16 %v904
        %v3433 = vunpack.c.h.b16 %v904
        %v3434 = vunpack.c.l.b16 %v905
        %v3435 = vunpack.c.h.b16 %v905
        %v3436 = vunpack.c.l.b16 %v906
        %v3437 = vunpack.c.l.b16 %v907
        %v3438 = vunpack.c.h.b16 %v907
        %v3439 = vunpack.c.l.b16 %v908
        %v3440 = vunpack.c.h.b16 %v908
        %v3441 = vunpack.c.l.b16 %v909
        %v3442 = vunpack.c.h.b16 %v909
        %v3443 = vunpack.c.l.b16 %v910
        %v3444 = vunpack.c.l.b16 %v911
        %v3445 = vunpack.c.h.b16 %v911
        %v3446 = vunpack.c.l.b16 %v912
        %v3447 = vunpack.c.h.b16 %v912
        %v3448 = vunpack.c.l.b16 %v913
        %v3449 = vunpack.c.h.b16 %v913
        %v3450 = vunpack.c.l.b16 %v914
        %v3451 = vunpack.c.l.b16 %v915
        %v3452 = vunpack.c.h.b16 %v915
        %v3453 = vunpack.c.l.b16 %v916
        %v3454 = vunpack.c.h.b16 %v916
        %v3455 = vunpack.c.l.b16 %v917
        %v3456 = vunpack.c.h.b16 %v917
        %v3457 = vunpack.c.l.b16 %v918
        %v3458 = vunpack.c.l.b16 %v919
        %v3459 = vunpack.c.h.b16 %v919
        %v3460 = vunpack.c.l.b16 %v920
        %v3461 = vunpack.c.h.b16 %v920
        %v3462 = vunpack.c.l.b16 %v921
        %v3463 = vunpack.c.h.b16 %v921
        %v3464 = vunpack.c.l.b16 %v922
        %v3465 = vunpack.c.l.b16 %v923
        %v3466 = vunpack.c.h.b16 %v923
        %v3467 = vunpack.c.l.b16 %v924
        %v3468 = vunpack.c.h.b16 %v924
        %v3469 = vunpack.c.l.b16 %v925
        %v3470 = vunpack.c.h.b16 %v925
        %v3471 = vunpack.c.l.b16 %v926
        %v3472 = vunpack.c.l.b16 %v927
        %v3473 = vunpack.c.h.b16 %v927
        %v3474 = vunpack.c.l.b16 %v928
        %v3475 = vunpack.c.h.b16 %v928
        %v3476 = vunpack.c.l.b16 %v929
        %v3477 = vunpack.c.h.b16 %v929
        %v3478 = vunpack.c.l.b16 %v930
        %v3479 = vunpack.c.l.b16 %v931
        %v3480 = vunpack.c.h.b16 %v931
        %v3481 = vunpack.c.l.b16 %v932
        %v3482 = vunpack.c.h.b16 %v932
        %v3483 = vunpack.c.l.b16 %v933
        %v3484 = vunpack.c.h.b16 %v933
        %v3485 = vunpack.c.l.b16 %v934
        %v3486 = vunpack.c.l.b16 %v935
        %v3487 = vunpack.c.h.b16 %v935
        %v3488 = vunpack.c.l.b16 %v936
        %v3489 = vunpack.c.h.b16 %v936
        %v3490 = vunpack.c.l.b16 %v937
        %v3491 = vunpack.c.h.b16 %v937
        %v3492 = vunpack.c.l.b16 %v938
        %v3493 = vunpack.c.l.b16 %v939
        %v3494 = vunpack.c.h.b16 %v939
        %v3495 = vunpack.c.l.b16 %v940
        %v3496 = vunpack.c.h.b16 %v940
        %v3497 = vunpack.c.l.b16 %v941
        %v3498 = vunpack.c.h.b16 %v941
        %v3499 = vunpack.c.l.b16 %v942
        %v3500 = vunpack.c.l.b16 %v943
        %v3501 = vunpack.c.h.b16 %v943
        %v3502 = vunpack.c.l.b16 %v944
        %v3503 = vunpack.c.h.b16 %v944
        %v3504 = vunpack.c.l.b16 %v945
        %v3505 = vunpack.c.h.b16 %v945
        %v3506 = vunpack.c.l.b16 %v946
        %v3507 = vunpack.c.l.b16 %v947
        %v3508 = vunpack.c.h.b16 %v947
        %v3509 = vunpack.c.l.b16 %v948
        %v3510 = vunpack.c.h.b16 %v948
        %v3511 = vunpack.c.l.b16 %v949
        %v3512 = vunpack.c.h.b16 %v949
        %v3513 = vunpack.c.l.b16 %v950
        %v3514 = vunpack.c.l.b16 %v951
        %v3515 = vunpack.c.h.b16 %v951
        %v3516 = vunpack.c.l.b16 %v952
        %v3517 = vunpack.c.h.b16 %v952
        %v3518 = vunpack.c.l.b16 %v953
        %v3519 = vunpack.c.h.b16 %v953
        %v3520 = vunpack.c.l.b16 %v954
        %v3521 = vunpack.c.l.b16 %v955
        %v3522 = vunpack.c.h.b16 %v955
        %v3523 = vunpack.c.l.b16 %v956
        %v3524 = vunpack.c.h.b16 %v956
        %v3525 = vunpack.c.l.b16 %v957
        %v3526 = vunpack.c.h.b16 %v957
        %v3527 = vunpack.c.l.b16 %v958
        %v3528 = vunpack.c.l.b16 %v959
        %v3529 = vunpack.c.h.b16 %v959
        %v3530 = vunpack.c.l.b16 %v960
        %v3531 = vunpack.c.h.b16 %v960
        %v3532 = vunpack.c.l.b16 %v961
        %v3533 = vunpack.c.h.b16 %v961
        %v3534 = vunpack.c.l.b16 %v962
        %v3535 = vunpack.c.l.b16 %v963
        %v3536 = vunpack.c.h.b16 %v963
        %v3537 = vunpack.c.l.b16 %v964
        %v3538 = vunpack.c.h.b16 %v964
        %v3539 = vunpack.c.l.b16 %v965
        %v3540 = vunpack.c.h.b16 %v965
        %v3541 = vunpack.c.l.b16 %v966
        %v3542 = vunpack.c.l.b16 %v967
        %v3543 = vunpack.c.h.b16 %v967
        %v3544 = vunpack.c.l.b16 %v968
        %v3545 = vunpack.c.h.b16 %v968
        %v3546 = vunpack.c.l.b16 %v969
        %v3547 = vunpack.c.h.b16 %v969
        %v3548 = vunpack.c.l.b16 %v970
        %v3549 = vunpack.c.l.b16 %v971
        %v3550 = vunpack.c.h.b16 %v971
        %v3551 = vunpack.c.l.b16 %v972
        %v3552 = vunpack.c.h.b16 %v972
        %v3553 = vunpack.c.l.b16 %v973
        %v3554 = vunpack.c.h.b16 %v973
        %v3555 = vunpack.c.l.b16 %v974
        %v3556 = vunpack.c.l.b16 %v975
        %v3557 = vunpack.c.h.b16 %v975
        %v3558 = vunpack.c.l.b16 %v976
        %v3559 = vunpack.c.h.b16 %v976
        %v3560 = vunpack.c.l.b16 %v977
        %v3561 = vunpack.c.h.b16 %v977
        %v3562 = vunpack.c.l.b16 %v978
        %v3563 = vunpack.c.l.b16 %v979
        %v3564 = vunpack.c.h.b16 %v979
        %v3565 = vunpack.c.l.b16 %v980
        %v3566 = vunpack.c.h.b16 %v980
        %v3567 = vunpack.c.l.b16 %v981
        %v3568 = vunpack.c.h.b16 %v981
        %v3569 = vunpack.c.l.b16 %v982
        %v3570 = vunpack.c.l.b16 %v983
        %v3571 = vunpack.c.h.b16 %v983
        %v3572 = vunpack.c.l.b16 %v984
        %v3573 = vunpack.c.h.b16 %v984
        %v3574 = vunpack.c.l.b16 %v985
        %v3575 = vunpack.c.h.b16 %v985
        %v3576 = vunpack.c.l.b16 %v986
        %v3577 = vunpack.c.l.b16 %v987
        %v3578 = vunpack.c.h.b16 %v987
        %v3579 = vunpack.c.l.b16 %v988
        %v3580 = vunpack.c.h.b16 %v988
        %v3581 = vunpack.c.l.b16 %v989
        %v3582 = vunpack.c.h.b16 %v989
        %v3583 = vunpack.c.l.b16 %v990
        %v3584 = vunpack.c.l.b16 %v991
        %v3585 = vunpack.c.h.b16 %v991
        %v3586 = vunpack.c.l.b16 %v992
        %v3587 = vunpack.c.h.b16 %v992
        %v3588 = vunpack.c.l.b16 %v993
        %v3589 = vunpack.c.h.b16 %v993
        %v3590 = vunpack.c.l.b16 %v994
        %v3591 = vunpack.c.l.b16 %v995
        %v3592 = vunpack.c.h.b16 %v995
        %v3593 = vunpack.c.l.b16 %v996
        %v3594 = vunpack.c.h.b16 %v996
        %v3595 = vunpack.c.l.b16 %v997
        %v3596 = vunpack.c.h.b16 %v997
        %v3597 = vunpack.c.l.b16 %v998
        %v3598 = vunpack.c.l.b16 %v999
        %v3599 = vunpack.c.h.b16 %v999
        %v3600 = vunpack.c.l.b16 %v1000
        %v3601 = vunpack.c.h.b16 %v1000
        %v3602 = vunpack.c.l.b16 %v1001
        %v3603 = vunpack.c.h.b16 %v1001
        %v3604 = vunpack.c.l.b16 %v1002
        %v3605 = vunpack.c.l.b16 %v1003
        %v3606 = vunpack.c.h.b16 %v1003
        %v3607 = vunpack.c.l.b16 %v1004
        %v3608 = vunpack.c.h.b16 %v1004
        %v3609 = vunpack.c.l.b16 %v1005
        %v3610 = vunpack.c.h.b16 %v1005
        %v3611 = vunpack.c.l.b16 %v1006
        %v3612 = vunpack.c.l.b16 %v1007
        %v3613 = vunpack.c.h.b16 %v1007
        %v3614 = vunpack.c.l.b16 %v1008
        %v3615 = vunpack.c.h.b16 %v1008
        %v3616 = vunpack.c.l.b16 %v1009
        %v3617 = vunpack.c.h.b16 %v1009
        %v3618 = vunpack.c.l.b16 %v1010
        %v3619 = vunpack.c.l.b16 %v1011
        %v3620 = vunpack.c.h.b16 %v1011
        %v3621 = vunpack.c.l.b16 %v1012
        %v3622 = vunpack.c.h.b16 %v1012
        %v3623 = vunpack.c.l.b16 %v1013
        %v3624 = vunpack.c.h.b16 %v1013
        %v3625 = vunpack.c.l.b16 %v1014
        %v3626 = vunpack.c.l.b16 %v1015
        %v3627 = vunpack.c.h.b16 %v1015
        %v3628 = vunpack.c.l.b16 %v1016
        %v3629 = vunpack.c.h.b16 %v1016
        %v3630 = vunpack.c.l.b16 %v1017
        %v3631 = vunpack.c.h.b16 %v1017
        %v3632 = vunpack.c.l.b16 %v1018
        %v3633 = vunpack.c.l.b16 %v1019
        %v3634 = vunpack.c.h.b16 %v1019
        %v3635 = vunpack.c.l.b16 %v1020
        %v3636 = vunpack.c.h.b16 %v1020
        %v3637 = vunpack.c.l.b16 %v1021
        %v3638 = vunpack.c.h.b16 %v1021
        %v3639 = vunpack.c.l.b16 %v1022
        %v3640 = vunpack.c.l.b16 %v1023
        %v3641 = vunpack.c.h.b16 %v1023
        %v3642 = vunpack.c.l.b16 %v1024
        %v3643 = vunpack.c.h.b16 %v1024
        %v3644 = vunpack.c.l.b16 %v1025
        %v3645 = vunpack.c.h.b16 %v1025
        %v3646 = vunpack.c.l.b16 %v1026
        %v3647 = vunpack.c.l.b16 %v1027
        %v3648 = vunpack.c.h.b16 %v1027
        %v3649 = vunpack.c.l.b16 %v1028
        %v3650 = vunpack.c.h.b16 %v1028
        %v3651 = vunpack.c.l.b16 %v1029
        %v3652 = vunpack.c.h.b16 %v1029
        %v3653 = vunpack.c.l.b16 %v1030
        %v3654 = vunpack.c.l.b16 %v1031
        %v3655 = vunpack.c.h.b16 %v1031
        %v3656 = vunpack.c.l.b16 %v1032
        %v3657 = vunpack.c.h.b16 %v1032
        %v3658 = vunpack.c.l.b16 %v1033
        %v3659 = vunpack.c.h.b16 %v1033
        %v3660 = vunpack.c.l.b16 %v1034
        %v3661 = vunpack.c.l.b16 %v1035
        %v3662 = vunpack.c.h.b16 %v1035
        %v3663 = vunpack.c.l.b16 %v1036
        %v3664 = vunpack.c.h.b16 %v1036
        %v3665 = vunpack.c.l.b16 %v1037
        %v3666 = vunpack.c.h.b16 %v1037
        %v3667 = vunpack.c.l.b16 %v1038
        %v3668 = vunpack.c.l.b16 %v1039
        %v3669 = vunpack.c.h.b16 %v1039
        %v3670 = vunpack.c.l.b16 %v1040
        %v3671 = vunpack.c.h.b16 %v1040
        %v3672 = vunpack.c.l.b16 %v1041
        %v3673 = vunpack.c.h.b16 %v1041
        %v3674 = vunpack.c.l.b16 %v1042
        %v3675 = vunpack.c.l.b16 %v1043
        %v3676 = vunpack.c.h.b16 %v1043
        %v3677 = vunpack.c.l.b16 %v1044
        %v3678 = vunpack.c.h.b16 %v1044
        %v3679 = vunpack.c.l.b16 %v1045
        %v3680 = vunpack.c.h.b16 %v1045
        %v3681 = vunpack.c.l.b16 %v1046
        %v3682 = vunpack.c.l.b16 %v1047
        %v3683 = vunpack.c.h.b16 %v1047
        %v3684 = vunpack.c.l.b16 %v1048
        %v3685 = vunpack.c.h.b16 %v1048
        %v3686 = vunpack.c.l.b16 %v1049
        %v3687 = vunpack.c.h.b16 %v1049
        %v3688 = vunpack.c.l.b16 %v1050
        %v3689 = vunpack.c.l.b16 %v1051
        %v3690 = vunpack.c.h.b16 %v1051
        %v3691 = vunpack.c.l.b16 %v1052
        %v3692 = vunpack.c.h.b16 %v1052
        %v3693 = vunpack.c.l.b16 %v1053
        %v3694 = vunpack.c.h.b16 %v1053
        %v3695 = vunpack.c.l.b16 %v1054
        %v3696 = vunpack.c.l.b16 %v1055
        %v3697 = vunpack.c.h.b16 %v1055
        %v3698 = vunpack.c.l.b16 %v1056
        %v3699 = vunpack.c.h.b16 %v1056
        %v3700 = vunpack.c.l.b16 %v1057
        %v3701 = vunpack.c.h.b16 %v1057
        %v3702 = vunpack.c.l.b16 %v1058
        %v3703 = vunpack.c.l.b16 %v1059
        %v3704 = vunpack.c.h.b16 %v1059
        %v3705 = vunpack.c.l.b16 %v1060
        %v3706 = vunpack.c.h.b16 %v1060
        %v3707 = vunpack.c.l.b16 %v1061
        %v3708 = vunpack.c.h.b16 %v1061
        %v3709 = vunpack.c.l.b16 %v1062
        %v3710 = vunpack.c.l.b16 %v1063
        %v3711 = vunpack.c.h.b16 %v1063
        %v3712 = vunpack.c.l.b16 %v1064
        %v3713 = vunpack.c.h.b16 %v1064
        %v3714 = vunpack.c.l.b16 %v1065
        %v3715 = vunpack.c.h.b16 %v1065
        %v3716 = vunpack.c.l.b16 %v1066
        %v3717 = vunpack.c.l.b16 %v1067
        %v3718 = vunpack.c.h.b16 %v1067
        %v3719 = vunpack.c.l.b16 %v1068
        %v3720 = vunpack.c.h.b16 %v1068
        %v3721 = vunpack.c.l.b16 %v1069
        %v3722 = vunpack.c.h.b16 %v1069
        %v3723 = vunpack.c.l.b16 %v1070
        %v3724 = vunpack.c.l.b16 %v1071
        %v3725 = vunpack.c.h.b16 %v1071
        %v3726 = vunpack.c.l.b16 %v1072
        %v3727 = vunpack.c.h.b16 %v1072
        %v3728 = vunpack.c.l.b16 %v1073
        %v3729 = vunpack.c.h.b16 %v1073
        %v3730 = vunpack.c.l.b16 %v1074
        %v3731 = vunpack.c.l.b16 %v1075
        %v3732 = vunpack.c.h.b16 %v1075
        %v3733 = vunpack.c.l.b16 %v1076
        %v3734 = vunpack.c.h.b16 %v1076
        %v3735 = vunpack.c.l.b16 %v1077
        %v3736 = vunpack.c.h.b16 %v1077
        %v3737 = vunpack.c.l.b16 %v1078
        %v3738 = vunpack.c.l.b16 %v1079
        %v3739 = vunpack.c.h.b16 %v1079
        %v3740 = vunpack.c.l.b16 %v1080
        %v3741 = vunpack.c.h.b16 %v1080
        %v3742 = vunpack.c.l.b16 %v1081
        %v3743 = vunpack.c.h.b16 %v1081
        %v3744 = vunpack.c.l.b16 %v1082
        %v3745 = vunpack.c.l.b16 %v1083
        %v3746 = vunpack.c.h.b16 %v1083
        %v3747 = vunpack.c.l.b16 %v1084
        %v3748 = vunpack.c.h.b16 %v1084
        %v3749 = vunpack.c.l.b16 %v1085
        %v3750 = vunpack.c.h.b16 %v1085
        %v3751 = vunpack.c.l.b16 %v1086
        %v3752 = vunpack.c.l.b16 %v1087
        %v3753 = vunpack.c.h.b16 %v1087
        %v3754 = vunpack.c.l.b16 %v1088
        %v3755 = vunpack.c.h.b16 %v1088
        %v3756 = vunpack.c.l.b16 %v1089
        %v3757 = vunpack.c.h.b16 %v1089
        %v3758 = vunpack.c.l.b16 %v1090
        %v3759 = vunpack.c.l.b16 %v1091
        %v3760 = vunpack.c.h.b16 %v1091
        %v3761 = vunpack.c.l.b16 %v1092
        %v3762 = vunpack.c.h.b16 %v1092
        %v3763 = vunpack.c.l.b16 %v1093
        %v3764 = vunpack.c.h.b16 %v1093
        %v3765 = vunpack.c.l.b16 %v1094
        %v3766 = vunpack.c.l.b16 %v1095
        %v3767 = vunpack.c.h.b16 %v1095
        %v3768 = vunpack.c.l.b16 %v1096
        %v3769 = vunpack.c.h.b16 %v1096
        %v3770 = vunpack.c.l.b16 %v1097
        %v3771 = vunpack.c.h.b16 %v1097
        %v3772 = vunpack.c.l.b16 %v1098
        %v3773 = vunpack.c.l.b16 %v1099
        %v3774 = vunpack.c.h.b16 %v1099
        %v3775 = vunpack.c.l.b16 %v1100
        %v3776 = vunpack.c.h.b16 %v1100
        %v3777 = vunpack.c.l.b16 %v1101
        %v3778 = vunpack.c.h.b16 %v1101
        %v3779 = vunpack.c.l.b16 %v1102
        %v3780 = vunpack.c.l.b16 %v1103
        %v3781 = vunpack.c.h.b16 %v1103
        %v3782 = vunpack.c.l.b16 %v1104
        %v3783 = vunpack.c.h.b16 %v1104
        %v3784 = vunpack.c.l.b16 %v1105
        %v3785 = vunpack.c.h.b16 %v1105
        %v3786 = vunpack.c.l.b16 %v1106
        %v3787 = vunpack.c.l.b16 %v1107
        %v3788 = vunpack.c.h.b16 %v1107
        %v3789 = vunpack.c.l.b16 %v1108
        %v3790 = vunpack.c.h.b16 %v1108
        %v3791 = vunpack.c.l.b16 %v1109
        %v3792 = vunpack.c.h.b16 %v1109
        %v3793 = vunpack.c.l.b16 %v1110
        %v3794 = vunpack.c.l.b16 %v1111
        %v3795 = vunpack.c.h.b16 %v1111
        %v3796 = vunpack.c.l.b16 %v1112
        %v3797 = vunpack.c.h.b16 %v1112
        %v3798 = vunpack.c.l.b16 %v1113
        %v3799 = vunpack.c.h.b16 %v1113
        %v3800 = vunpack.c.l.b16 %v1114
        %v3801 = vunpack.c.l.b16 %v1115
        %v3802 = vunpack.c.h.b16 %v1115
        %v3803 = vunpack.c.l.b16 %v1116
        %v3804 = vunpack.c.h.b16 %v1116
        %v3805 = vunpack.c.l.b16 %v1117
        %v3806 = vunpack.c.h.b16 %v1117
        %v3807 = vunpack.c.l.b16 %v1118
        %v3808 = vunpack.c.l.b16 %v1119
        %v3809 = vunpack.c.h.b16 %v1119
        %v3810 = vunpack.c.l.b16 %v1120
        %v3811 = vunpack.c.h.b16 %v1120
        %v3812 = vunpack.c.l.b16 %v1121
        %v3813 = vunpack.c.h.b16 %v1121
        %v3814 = vunpack.c.l.b16 %v1122
        %v3815 = vunpack.c.l.b16 %v1123
        %v3816 = vunpack.c.h.b16 %v1123
        %v3817 = vunpack.c.l.b16 %v1124
        %v3818 = vunpack.c.h.b16 %v1124
        %v3819 = vunpack.c.l.b16 %v1125
        %v3820 = vunpack.c.h.b16 %v1125
        %v3821 = vunpack.c.l.b16 %v1126
        %v3822 = vunpack.c.l.b16 %v1127
        %v3823 = vunpack.c.h.b16 %v1127
        %v3824 = vunpack.c.l.b16 %v1128
        %v3825 = vunpack.c.h.b16 %v1128
        %v3826 = vunpack.c.l.b16 %v1129
        %v3827 = vunpack.c.h.b16 %v1129
        %v3828 = vunpack.c.l.b16 %v1130
        %v3829 = vunpack.c.l.b16 %v1131
        %v3830 = vunpack.c.h.b16 %v1131
        %v3831 = vunpack.c.l.b16 %v1132
        %v3832 = vunpack.c.h.b16 %v1132
        %v3833 = vunpack.c.l.b16 %v1133
        %v3834 = vunpack.c.h.b16 %v1133
        %v3835 = vunpack.c.l.b16 %v1134
        %v3836 = vunpack.c.l.b16 %v1135
        %v3837 = vunpack.c.h.b16 %v1135
        %v3838 = vunpack.c.l.b16 %v1136
        %v3839 = vunpack.c.h.b16 %v1136
        %v3840 = vunpack.c.l.b16 %v1137
        %v3841 = vunpack.c.h.b16 %v1137
        %v3842 = vunpack.c.l.b16 %v1138
        %v3843 = vunpack.c.l.b16 %v1139
        %v3844 = vunpack.c.h.b16 %v1139
        %v3845 = vunpack.c.l.b16 %v1140
        %v3846 = vunpack.c.h.b16 %v1140
        %v3847 = vunpack.c.l.b16 %v1141
        %v3848 = vunpack.c.h.b16 %v1141
        %v3849 = vunpack.c.l.b16 %v1142
        %v3850 = vunpack.c.l.b16 %v1143
        %v3851 = vunpack.c.h.b16 %v1143
        %v3852 = vunpack.c.l.b16 %v1144
        %v3853 = vunpack.c.h.b16 %v1144
        %v3854 = vunpack.c.l.b16 %v1145
        %v3855 = vunpack.c.h.b16 %v1145
        %v3856 = vunpack.c.l.b16 %v1146
        %v3857 = vunpack.c.l.b16 %v1147
        %v3858 = vunpack.c.h.b16 %v1147
        %v3859 = vunpack.c.l.b16 %v1148
        %v3860 = vunpack.c.h.b16 %v1148
        %v3861 = vunpack.c.l.b16 %v1149
        %v3862 = vunpack.c.h.b16 %v1149
        %v3863 = vunpack.c.l.b16 %v1150
        %v3864 = vunpack.c.l.b16 %v1151
        %v3865 = vunpack.c.h.b16 %v1151
        %v3866 = vunpack.c.l.b16 %v1152
        %v3867 = vunpack.c.h.b16 %v1152
        %v3868 = vunpack.c.l.b16 %v1153
        %v3869 = vunpack.c.h.b16 %v1153
        %v3870 = vunpack.c.l.b16 %v1154
        %v3871 = vunpack.c.l.b16 %v1155
        %v3872 = vunpack.c.h.b16 %v1155
        %v3873 = vunpack.c.l.b16 %v1156
        %v3874 = vunpack.c.h.b16 %v1156
        %v3875 = vunpack.c.l.b16 %v1157
        %v3876 = vunpack.c.h.b16 %v1157
        %v3877 = vunpack.c.l.b16 %v1158
        %v3878 = vunpack.c.l.b16 %v1159
        %v3879 = vunpack.c.h.b16 %v1159
        %v3880 = vunpack.c.l.b16 %v1160
        %v3881 = vunpack.c.h.b16 %v1160
        %v3882 = vunpack.c.l.b16 %v1161
        %v3883 = vunpack.c.h.b16 %v1161
        %v3884 = vunpack.c.l.b16 %v1162
        %v3885 = vunpack.c.l.b16 %v1163
        %v3886 = vunpack.c.h.b16 %v1163
        %v3887 = vunpack.c.l.b16 %v1164
        %v3888 = vunpack.c.h.b16 %v1164
        %v3889 = vunpack.c.l.b16 %v1165
        %v3890 = vunpack.c.h.b16 %v1165
        %v3891 = vunpack.c.l.b16 %v1166
        %v3892 = vunpack.c.l.b16 %v1167
        %v3893 = vunpack.c.h.b16 %v1167
        %v3894 = vunpack.c.l.b16 %v1168
        %v3895 = vunpack.c.h.b16 %v1168
        %v3896 = vunpack.c.l.b16 %v1169
        %v3897 = vunpack.c.h.b16 %v1169
        %v3898 = vunpack.c.l.b16 %v1170
        %v3899 = vunpack.c.l.b16 %v1171
        %v3900 = vunpack.c.h.b16 %v1171
        %v3901 = vunpack.c.l.b16 %v1172
        %v3902 = vunpack.c.h.b16 %v1172
        %v3903 = vunpack.c.l.b16 %v1173
        %v3904 = vunpack.c.h.b16 %v1173
        %v3905 = vunpack.c.l.b16 %v1174
        %v3906 = vunpack.c.l.b16 %v1175
        %v3907 = vunpack.c.h.b16 %v1175
        %v3908 = vunpack.c.l.b16 %v1176
        %v3909 = vunpack.c.h.b16 %v1176
        %v3910 = vunpack.c.l.b16 %v1177
        %v3911 = vunpack.c.h.b16 %v1177
        %v3912 = vunpack.c.l.b16 %v1178
        %v3913 = vunpack.c.l.b16 %v1179
        %v3914 = vunpack.c.h.b16 %v1179
        %v3915 = vunpack.c.l.b16 %v1180
        %v3916 = vunpack.c.h.b16 %v1180
        %v3917 = vunpack.c.l.b16 %v1181
        %v3918 = vunpack.c.h.b16 %v1181
        %v3919 = vunpack.c.l.b16 %v1182
        %v3920 = vunpack.c.l.b16 %v1183
        %v3921 = vunpack.c.h.b16 %v1183
        %v3922 = vunpack.c.l.b16 %v1184
        %v3923 = vunpack.c.h.b16 %v1184
        %v3924 = vunpack.c.l.b16 %v1185
        %v3925 = vunpack.c.h.b16 %v1185
        %v3926 = vunpack.c.l.b16 %v1186
        %v3927 = vunpack.c.l.b16 %v1187
        %v3928 = vunpack.c.h.b16 %v1187
        %v3929 = vunpack.c.l.b16 %v1188
        %v3930 = vunpack.c.h.b16 %v1188
        %v3931 = vunpack.c.l.b16 %v1189
        %v3932 = vunpack.c.h.b16 %v1189
        %v3933 = vunpack.c.l.b16 %v1190
        %v3934 = vunpack.c.l.b16 %v1191
        %v3935 = vunpack.c.h.b16 %v1191
        %v3936 = vunpack.c.l.b16 %v1192
        %v3937 = vunpack.c.h.b16 %v1192
        %v3938 = vunpack.c.l.b16 %v1193
        %v3939 = vunpack.c.h.b16 %v1193
        %v3940 = vunpack.c.l.b16 %v1194
        %v3941 = vunpack.c.l.b16 %v1195
        %v3942 = vunpack.c.h.b16 %v1195
        %v3943 = vunpack.c.l.b16 %v1196
        %v3944 = vunpack.c.h.b16 %v1196
        %v3945 = vunpack.c.l.b16 %v1197
        %v3946 = vunpack.c.h.b16 %v1197
        %v3947 = vunpack.c.l.b16 %v1198
        %v3948 = vunpack.c.l.b16 %v1199
        %v3949 = vunpack.c.h.b16 %v1199
        %v3950 = vunpack.c.l.b16 %v1200
        %v3951 = vunpack.c.h.b16 %v1200
        %v3952 = vunpack.c.l.b16 %v1201
        %v3953 = vunpack.c.h.b16 %v1201
        %v3954 = vunpack.c.l.b16 %v1202
        %v3955 = vunpack.c.l.b16 %v1203
        %v3956 = vunpack.c.h.b16 %v1203
        %v3957 = vunpack.c.l.b16 %v1204
        %v3958 = vunpack.c.h.b16 %v1204
        %v3959 = vunpack.c.l.b16 %v1205
        %v3960 = vunpack.c.h.b16 %v1205
        %v3961 = vunpack.c.l.b16 %v1206
        %v3962 = vunpack.c.l.b16 %v1207
        %v3963 = vunpack.c.h.b16 %v1207
        %v3964 = vunpack.c.l.b16 %v1208
        %v3965 = vunpack.c.h.b16 %v1208
        %v3966 = vunpack.c.l.b16 %v1209
        %v3967 = vunpack.c.h.b16 %v1209
        %v3968 = vunpack.c.l.b16 %v1210
        %v3969 = vunpack.c.l.b16 %v1211
        %v3970 = vunpack.c.h.b16 %v1211
        %v3971 = vunpack.c.l.b16 %v1212
        %v3972 = vunpack.c.h.b16 %v1212
        %v3973 = vunpack.c.l.b16 %v1213
        %v3974 = vunpack.c.h.b16 %v1213
        %v3975 = vunpack.c.l.b16 %v1214
        %v3976 = vunpack.c.l.b16 %v1215
        %v3977 = vunpack.c.h.b16 %v1215
        %v3978 = vunpack.c.l.b16 %v1216
        %v3979 = vunpack.c.h.b16 %v1216
        %v3980 = vunpack.c.l.b16 %v1217
        %v3981 = vunpack.c.h.b16 %v1217
        %v3982 = vunpack.c.l.b16 %v1218
        %v3983 = vunpack.c.l.b16 %v1219
        %v3984 = vunpack.c.h.b16 %v1219
        %v3985 = vunpack.c.l.b16 %v1220
        %v3986 = vunpack.c.h.b16 %v1220
        %v3987 = vunpack.c.l.b16 %v1221
        %v3988 = vunpack.c.h.b16 %v1221
        %v3989 = vunpack.c.l.b16 %v1222
        %v3990 = vunpack.c.l.b16 %v1223
        %v3991 = vunpack.c.h.b16 %v1223
        %v3992 = vunpack.c.l.b16 %v1224
        %v3993 = vunpack.c.h.b16 %v1224
        %v3994 = vunpack.c.l.b16 %v1225
        %v3995 = vunpack.c.h.b16 %v1225
        %v3996 = vunpack.c.l.b16 %v1226
        %v3997 = vunpack.c.l.b16 %v1227
        %v3998 = vunpack.c.h.b16 %v1227
        %v3999 = vunpack.c.l.b16 %v1228
        %v4000 = vunpack.c.h.b16 %v1228
        %v4001 = vunpack.c.l.b16 %v1229
        %v4002 = vunpack.c.h.b16 %v1229
        %v4003 = vunpack.c.l.b16 %v1230
        %v4004 = vunpack.c.l.b16 %v1231
        %v4005 = vunpack.c.h.b16 %v1231
        %v4006 = vunpack.c.l.b16 %v1232
        %v4007 = vunpack.c.h.b16 %v1232
        %v4008 = vunpack.c.l.b16 %v1233
        %v4009 = vunpack.c.h.b16 %v1233
        %v4010 = vunpack.c.l.b16 %v1234
        %v4011 = vunpack.c.l.b16 %v1235
        %v4012 = vunpack.c.h.b16 %v1235
        %v4013 = vunpack.c.l.b16 %v1236
        %v4014 = vunpack.c.h.b16 %v1236
        %v4015 = vunpack.c.l.b16 %v1237
        %v4016 = vunpack.c.h.b16 %v1237
        %v4017 = vunpack.c.l.b16 %v1238
        %v4018 = vunpack.c.l.b16 %v1239
        %v4019 = vunpack.c.h.b16 %v1239
        %v4020 = vunpack.c.l.b16 %v1240
        %v4021 = vunpack.c.h.b16 %v1240
        %v4022 = vunpack.c.l.b16 %v1241
        %v4023 = vunpack.c.h.b16 %v1241
        %v4024 = vunpack.c.l.b16 %v1242
        %v4025 = vunpack.c.l.b16 %v1243
        %v4026 = vunpack.c.h.b16 %v1243
        %v4027 = vunpack.c.l.b16 %v1244
        %v4028 = vunpack.c.h.b16 %v1244
        %v4029 = vunpack.c.l.b16 %v1245
        %v4030 = vunpack.c.h.b16 %v1245
        %v4031 = vunpack.c.l.b16 %v1246
        %v4032 = vunpack.c.l.b16 %v1247
        %v4033 = vunpack.c.h.b16 %v1247
        %v4034 = vunpack.c.l.b16 %v1248
        %v4035 = vunpack.c.h.b16 %v1248
        %v4036 = vunpack.c.l.b16 %v1249
        %v4037 = vunpack.c.h.b16 %v1249
        %v4038 = vunpack.c.l.b16 %v1250
        %v4039 = vunpack.c.l.b16 %v1251
        %v4040 = vunpack.c.h.b16 %v1251
        %v4041 = vunpack.c.l.b16 %v1252
        %v4042 = vunpack.c.h.b16 %v1252
        %v4043 = vunpack.c.l.b16 %v1253
        %v4044 = vunpack.c.h.b16 %v1253
        %v4045 = vunpack.c.l.b16 %v1254
        %v4046 = vunpack.c.l.b16 %v1255
        %v4047 = vunpack.c.h.b16 %v1255
        %v4048 = vunpack.c.l.b16 %v1256
        %v4049 = vunpack.c.h.b16 %v1256
        %v4050 = vunpack.c.l.b16 %v1257
        %v4051 = vunpack.c.h.b16 %v1257
        %v4052 = vunpack.c.l.b16 %v1258
        %v4053 = vunpack.c.l.b16 %v1259
        %v4054 = vunpack.c.h.b16 %v1259
        %v4055 = vunpack.c.l.b16 %v1260
        %v4056 = vunpack.c.h.b16 %v1260
        %v4057 = vunpack.c.l.b16 %v1261
        %v4058 = vunpack.c.h.b16 %v1261
        %v4059 = vunpack.c.l.b16 %v1262
        %v4060 = vunpack.c.l.b16 %v1263
        %v4061 = vunpack.c.h.b16 %v1263
        %v4062 = vunpack.c.l.b16 %v1264
        %v4063 = vunpack.c.h.b16 %v1264
        %v4064 = vunpack.c.l.b16 %v1265
        %v4065 = vunpack.c.h.b16 %v1265
        %v4066 = vunpack.c.l.b16 %v1266
        %v4067 = vunpack.c.l.b16 %v1267
        %v4068 = vunpack.c.h.b16 %v1267
        %v4069 = vunpack.c.l.b16 %v1268
        %v4070 = vunpack.c.h.b16 %v1268
        %v4071 = vunpack.c.l.b16 %v1269
        %v4072 = vunpack.c.h.b16 %v1269
        %v4073 = vunpack.c.l.b16 %v1270
        %v4074 = vunpack.c.l.b16 %v1271
        %v4075 = vunpack.c.h.b16 %v1271
        %v4076 = vunpack.c.l.b16 %v1272
        %v4077 = vunpack.c.h.b16 %v1272
        %v4078 = vunpack.c.l.b16 %v1273
        %v4079 = vunpack.c.h.b16 %v1273
        %v4080 = vunpack.c.l.b16 %v1274
        %v4081 = vunpack.c.l.b16 %v1275
        %v4082 = vunpack.c.h.b16 %v1275
        %v4083 = vunpack.c.l.b16 %v1276
        %v4084 = vunpack.c.h.b16 %v1276
        %v4085 = vunpack.c.l.b16 %v1277
        %v4086 = vunpack.c.h.b16 %v1277
        %v4087 = vunpack.c.l.b16 %v1278
        %v4088 = vunpack.c.l.b16 %v1279
        %v4089 = vunpack.c.h.b16 %v1279
        %v4090 = vunpack.c.l.b16 %v1280
        %v4091 = vunpack.c.h.b16 %v1280
        %v4092 = vunpack.c.l.b16 %v1281
        %v4093 = vunpack.c.h.b16 %v1281
        %v4094 = vunpack.c.l.b16 %v1282
        %v4095 = vunpack.c.l.b16 %v1283
        %v4096 = vunpack.c.h.b16 %v1283
        %v4097 = vunpack.c.l.b16 %v1284
        %v4098 = vunpack.c.h.b16 %v1284
        %v4099 = vunpack.c.l.b16 %v1285
        %v4100 = vunpack.c.h.b16 %v1285
        %v4101 = vunpack.c.l.b16 %v1286
        %v4102 = vunpack.c.l.b16 %v1287
        %v4103 = vunpack.c.h.b16 %v1287
        %v4104 = vunpack.c.l.b16 %v1288
        %v4105 = vunpack.c.h.b16 %v1288
        %v4106 = vunpack.c.l.b16 %v1289
        %v4107 = vunpack.c.h.b16 %v1289
        %v4108 = vunpack.c.l.b16 %v1290
        %v4109 = vunpack.c.l.b16 %v1291
        %v4110 = vunpack.c.h.b16 %v1291
        %v4111 = vunpack.c.l.b16 %v1292
        %v4112 = vunpack.c.h.b16 %v1292
        %v4113 = vunpack.c.l.b16 %v1293
        %v4114 = vunpack.c.h.b16 %v1293
        %v4115 = vunpack.c.l.b16 %v1294
        %v4116 = vunpack.c.l.b16 %v1295
        %v4117 = vunpack.c.h.b16 %v1295
        %v4118 = vunpack.c.l.b16 %v1296
        %v4119 = vunpack.c.h.b16 %v1296
        %v4120 = vunpack.c.l.b16 %v1297
        %v4121 = vunpack.c.h.b16 %v1297
        %v4122 = vunpack.c.l.b16 %v1298
        %v4123 = vunpack.c.l.b16 %v1299
        %v4124 = vunpack.c.h.b16 %v1299
        %v4125 = vunpack.c.l.b16 %v1300
        %v4126 = vunpack.c.h.b16 %v1300
        %v4127 = vunpack.c.l.b16 %v1301
        %v4128 = vunpack.c.h.b16 %v1301
        %v4129 = vunpack.c.l.b16 %v1302
        %v4130 = vunpack.c.l.b16 %v1303
        %v4131 = vunpack.c.h.b16 %v1303
        %v4132 = vunpack.c.l.b16 %v1304
        %v4133 = vunpack.c.h.b16 %v1304
        %v4134 = vunpack.c.l.b16 %v1305
        %v4135 = vunpack.c.h.b16 %v1305
        %v4136 = vunpack.c.l.b16 %v1306
        %v4137 = vunpack.c.l.b16 %v1307
        %v4138 = vunpack.c.h.b16 %v1307
        %v4139 = vunpack.c.l.b16 %v1308
        %v4140 = vunpack.c.h.b16 %v1308
        %v4141 = vunpack.c.l.b16 %v1309
        %v4142 = vunpack.c.h.b16 %v1309
        %v4143 = vunpack.c.l.b16 %v1310
        %v4144 = vunpack.c.l.b16 %v1311
        %v4145 = vunpack.c.h.b16 %v1311
        %v4146 = vunpack.c.l.b16 %v1312
        %v4147 = vunpack.c.h.b16 %v1312
        %v4148 = vunpack.c.l.b16 %v1313
        %v4149 = vunpack.c.h.b16 %v1313
        %v4150 = vunpack.c.l.b16 %v1314
        %v4151 = vunpack.c.l.b16 %v1315
        %v4152 = vunpack.c.h.b16 %v1315
        %v4153 = vunpack.c.l.b16 %v1316
        %v4154 = vunpack.c.h.b16 %v1316
        %v4155 = vunpack.c.l.b16 %v1317
        %v4156 = vunpack.c.h.b16 %v1317
        %v4157 = vunpack.c.l.b16 %v1318
        %v4158 = vunpack.c.l.b16 %v1319
        %v4159 = vunpack.c.h.b16 %v1319
        %v4160 = vunpack.c.l.b16 %v1320
        %v4161 = vunpack.c.h.b16 %v1320
        %v4162 = vunpack.c.l.b16 %v1321
        %v4163 = vunpack.c.h.b16 %v1321
        %v4164 = vunpack.c.l.b16 %v1322
        %v4165 = vunpack.c.l.b16 %v1323
        %v4166 = vunpack.c.h.b16 %v1323
        %v4167 = vunpack.c.l.b16 %v1324
        %v4168 = vunpack.c.h.b16 %v1324
        %v4169 = vunpack.c.l.b16 %v1325
        %v4170 = vunpack.c.h.b16 %v1325
        %v4171 = vunpack.c.l.b16 %v1326
        %v4172 = vunpack.c.l.b16 %v1327
        %v4173 = vunpack.c.h.b16 %v1327
        %v4174 = vunpack.c.l.b16 %v1328
        %v4175 = vunpack.c.h.b16 %v1328
        %v4176 = vunpack.c.l.b16 %v1329
        %v4177 = vunpack.c.h.b16 %v1329
        %v4178 = vunpack.c.l.b16 %v1330
        %v4179 = vunpack.c.l.b16 %v1331
        %v4180 = vunpack.c.h.b16 %v1331
        %v4181 = vunpack.c.l.b16 %v1332
        %v4182 = vunpack.c.h.b16 %v1332
        %v4183 = vunpack.c.l.b16 %v1333
        %v4184 = vunpack.c.h.b16 %v1333
        %v4185 = vunpack.c.l.b16 %v1334
        %v4186 = vunpack.c.l.b16 %v1335
        %v4187 = vunpack.c.h.b16 %v1335
        %v4188 = vunpack.c.l.b16 %v1336
        %v4189 = vunpack.c.h.b16 %v1336
        %v4190 = vunpack.c.l.b16 %v1337
        %v4191 = vunpack.c.h.b16 %v1337
        %v4192 = vunpack.c.l.b16 %v1338
        %v4193 = vunpack.c.l.b16 %v1339
        %v4194 = vunpack.c.h.b16 %v1339
        %v4195 = vunpack.c.l.b16 %v1340
        %v4196 = vunpack.c.h.b16 %v1340
        %v4197 = vunpack.c.l.b16 %v1341
        %v4198 = vunpack.c.h.b16 %v1341
        %v4199 = vunpack.c.l.b16 %v1342
        %v4200 = vunpack.c.l.b16 %v1343
        %v4201 = vunpack.c.h.b16 %v1343
        %v4202 = vunpack.c.l.b16 %v1344
        %v4203 = vunpack.c.h.b16 %v1344
        %v4204 = vunpack.c.l.b16 %v1345
        %v4205 = vunpack.c.h.b16 %v1345
        %v4206 = vunpack.c.l.b16 %v1346
        %v4207 = vunpack.c.l.b16 %v1347
        %v4208 = vunpack.c.h.b16 %v1347
        %v4209 = vunpack.c.l.b16 %v1348
        %v4210 = vunpack.c.h.b16 %v1348
        %v4211 = vunpack.c.l.b16 %v1349
        %v4212 = vunpack.c.h.b16 %v1349
        %v4213 = vunpack.c.l.b16 %v1350
        %v4214 = vunpack.c.l.b16 %v1351
        %v4215 = vunpack.c.h.b16 %v1351
        %v4216 = vunpack.c.l.b16 %v1352
        %v4217 = vunpack.c.h.b16 %v1352
        %v4218 = vunpack.c.l.b16 %v1353
        %v4219 = vunpack.c.h.b16 %v1353
        %v4220 = vunpack.c.l.b16 %v1354
        %v4221 = vunpack.c.l.b16 %v1355
        %v4222 = vunpack.c.h.b16 %v1355
        %v4223 = vunpack.c.l.b16 %v1356
        %v4224 = vunpack.c.h.b16 %v1356
        %v4225 = vunpack.c.l.b16 %v1357
        %v4226 = vunpack.c.h.b16 %v1357
        %v4227 = vunpack.c.l.b16 %v1358
        %v4228 = vunpack.c.l.b16 %v1359
        %v4229 = vunpack.c.h.b16 %v1359
        %v4230 = vunpack.c.l.b16 %v1360
        %v4231 = vunpack.c.h.b16 %v1360
        %v4232 = vunpack.c.l.b16 %v1361
        %v4233 = vunpack.c.h.b16 %v1361
        %v4234 = vunpack.c.l.b16 %v1362
        %v4235 = vunpack.c.l.b16 %v1363
        %v4236 = vunpack.c.h.b16 %v1363
        %v4237 = vunpack.c.l.b16 %v1364
        %v4238 = vunpack.c.h.b16 %v1364
        %v4239 = vunpack.c.l.b16 %v1365
        %v4240 = vunpack.c.h.b16 %v1365
        %v4241 = vunpack.c.l.b16 %v1366
        %v4242 = vunpack.c.l.b16 %v1367
        %v4243 = vunpack.c.h.b16 %v1367
        %v4244 = vunpack.c.l.b16 %v1368
        %v4245 = vunpack.c.h.b16 %v1368
        %v4246 = vunpack.c.l.b16 %v1369
        %v4247 = vunpack.c.h.b16 %v1369
        %v4248 = vunpack.c.l.b16 %v1370
        %v4249 = vunpack.c.l.b16 %v1371
        %v4250 = vunpack.c.h.b16 %v1371
        %v4251 = vunpack.c.l.b16 %v1372
        %v4252 = vunpack.c.h.b16 %v1372
        %v4253 = vunpack.c.l.b16 %v1373
        %v4254 = vunpack.c.h.b16 %v1373
        %v4255 = vunpack.c.l.b16 %v1374
        %v4256 = vunpack.c.l.b16 %v1375
        %v4257 = vunpack.c.h.b16 %v1375
        %v4258 = vunpack.c.l.b16 %v1376
        %v4259 = vunpack.c.h.b16 %v1376
        %v4260 = vunpack.c.l.b16 %v1377
        %v4261 = vunpack.c.h.b16 %v1377
        %v4262 = vunpack.c.l.b16 %v1378
        %v4263 = vunpack.c.l.b16 %v1379
        %v4264 = vunpack.c.h.b16 %v1379
        %v4265 = vunpack.c.l.b16 %v1380
        %v4266 = vunpack.c.h.b16 %v1380
        %v4267 = vunpack.c.l.b16 %v1381
        %v4268 = vunpack.c.h.b16 %v1381
        %v4269 = vunpack.c.l.b16 %v1382
        %v4270 = vunpack.c.l.b16 %v1383
        %v4271 = vunpack.c.h.b16 %v1383
        %v4272 = vunpack.c.l.b16 %v1384
        %v4273 = vunpack.c.h.b16 %v1384
        %v4274 = vunpack.c.l.b16 %v1385
        %v4275 = vunpack.c.h.b16 %v1385
        %v4276 = vunpack.c.l.b16 %v1386
        %v4277 = vunpack.c.l.b16 %v1387
        %v4278 = vunpack.c.h.b16 %v1387
        %v4279 = vunpack.c.l.b16 %v1388
        %v4280 = vunpack.c.h.b16 %v1388
        %v4281 = vunpack.c.l.b16 %v1389
        %v4282 = vunpack.c.h.b16 %v1389
        %v4283 = vunpack.c.l.b16 %v1390
        %v4284 = vunpack.c.l.b16 %v1391
        %v4285 = vunpack.c.h.b16 %v1391
        %v4286 = vunpack.c.l.b16 %v1392
        %v4287 = vunpack.c.h.b16 %v1392
        %v4288 = vunpack.c.l.b16 %v1393
        %v4289 = vunpack.c.h.b16 %v1393
        %v4290 = vunpack.c.l.b16 %v1394
        %v4291 = vpack.c.b16 %v2506, %v2499
        %v4292 = vpack.c.b16 %v2507, %v2500
        %v4293 = vpack.c.b16 %v2508, %v2501
        %v4294 = vpack.c.b16 %v2509, %v2502
        %v4295 = vpack.c.b16 %v2510, %v2503
        %v4296 = vpack.c.b16 %v2511, %v2504
        %v4297 = vpack.c.b16 %v2512, %v2505
        %v4298 = vpack.c.b16 %v2520, %v2513
        %v4299 = vpack.c.b16 %v2521, %v2514
        %v4300 = vpack.c.b16 %v2522, %v2515
        %v4301 = vpack.c.b16 %v2523, %v2516
        %v4302 = vpack.c.b16 %v2524, %v2517
        %v4303 = vpack.c.b16 %v2525, %v2518
        %v4304 = vpack.c.b16 %v2526, %v2519
        %v4305 = vpack.c.b16 %v2534, %v2527
        %v4306 = vpack.c.b16 %v2535, %v2528
        %v4307 = vpack.c.b16 %v2536, %v2529
        %v4308 = vpack.c.b16 %v2537, %v2530
        %v4309 = vpack.c.b16 %v2538, %v2531
        %v4310 = vpack.c.b16 %v2539, %v2532
        %v4311 = vpack.c.b16 %v2540, %v2533
        %v4312 = vpack.c.b16 %v2548, %v2541
        %v4313 = vpack.c.b16 %v2549, %v2542
        %v4314 = vpack.c.b16 %v2550, %v2543
        %v4315 = vpack.c.b16 %v2551, %v2544
        %v4316 = vpack.c.b16 %v2552, %v2545
        %v4317 = vpack.c.b16 %v2553, %v2546
        %v4318 = vpack.c.b16 %v2554, %v2547
        %v4319 = vpack.c.b16 %v2562, %v2555
        %v4320 = vpack.c.b16 %v2563, %v2556
        %v4321 = vpack.c.b16 %v2564, %v2557
        %v4322 = vpack.c.b16 %v2565, %v2558
        %v4323 = vpack.c.b16 %v2566, %v2559
        %v4324 = vpack.c.b16 %v2567, %v2560
        %v4325 = vpack.c.b16 %v2568, %v2561
        %v4326 = vpack.c.b16 %v2576, %v2569
        %v4327 = vpack.c.b16 %v2577, %v2570
        %v4328 = vpack.c.b16 %v2578, %v2571
        %v4329 = vpack.c.b16 %v2579, %v2572
        %v4330 = vpack.c.b16 %v2580, %v2573
        %v4331 = vpack.c.b16 %v2581, %v2574
        %v4332 = vpack.c.b16 %v2582, %v2575
        %v4333 = vpack.c.b16 %v2590, %v2583
        %v4334 = vpack.c.b16 %v2591, %v2584
        %v4335 = vpack.c.b16 %v2592, %v2585
        %v4336 = vpack.c.b16 %v2593, %v2586
        %v4337 = vpack.c.b16 %v2594, %v2587
        %v4338 = vpack.c.b16 %v2595, %v2588
        %v4339 = vpack.c.b16 %v2596, %v2589
        %v4340 = vpack.c.b16 %v2604, %v2597
        %v4341 = vpack.c.b16 %v2605, %v2598
        %v4342 = vpack.c.b16 %v2606, %v2599
        %v4343 = vpack.c.b16 %v2607, %v2600
        %v4344 = vpack.c.b16 %v2608, %v2601
        %v4345 = vpack.c.b16 %v2609, %v2602
        %v4346 = vpack.c.b16 %v2610, %v2603
        %v4347 = vpack.c.b16 %v2618, %v2611
        %v4348 = vpack.c.b16 %v2619, %v2612
        %v4349 = vpack.c.b16 %v2620, %v2613
        %v4350 = vpack.c.b16 %v2621, %v2614
        %v4351 = vpack.c.b16 %v2622, %v2615
        %v4352 = vpack.c.b16 %v2623, %v2616
        %v4353 = vpack.c.b16 %v2624, %v2617
        %v4354 = vpack.c.b16 %v2632, %v2625
        %v4355 = vpack.c.b16 %v2633, %v2626
        %v4356 = vpack.c.b16 %v2634, %v2627
        %v4357 = vpack.c.b16 %v2635, %v2628
        %v4358 = vpack.c.b16 %v2636, %v2629
        %v4359 = vpack.c.b16 %v2637, %v2630
        %v4360 = vpack.c.b16 %v2638, %v2631
        %v4361 = vpack.c.b16 %v2646, %v2639
        %v4362 = vpack.c.b16 %v2647, %v2640
        %v4363 = vpack.c.b16 %v2648, %v2641
        %v4364 = vpack.c.b16 %v2649, %v2642
        %v4365 = vpack.c.b16 %v2650, %v2643
        %v4366 = vpack.c.b16 %v2651, %v2644
        %v4367 = vpack.c.b16 %v2652, %v2645
        %v4368 = vpack.c.b16 %v2660, %v2653
        %v4369 = vpack.c.b16 %v2661, %v2654
        %v4370 = vpack.c.b16 %v2662, %v2655
        %v4371 = vpack.c.b16 %v2663, %v2656
        %v4372 = vpack.c.b16 %v2664, %v2657
        %v4373 = vpack.c.b16 %v2665, %v2658
        %v4374 = vpack.c.b16 %v2666, %v2659
        %v4375 = vpack.c.b16 %v2674, %v2667
        %v4376 = vpack.c.b16 %v2675, %v2668
        %v4377 = vpack.c.b16 %v2676, %v2669
        %v4378 = vpack.c.b16 %v2677, %v2670
        %v4379 = vpack.c.b16 %v2678, %v2671
        %v4380 = vpack.c.b16 %v2679, %v2672
        %v4381 = vpack.c.b16 %v2680, %v2673
        %v4382 = vpack.c.b16 %v2688, %v2681
        %v4383 = vpack.c.b16 %v2689, %v2682
        %v4384 = vpack.c.b16 %v2690, %v2683
        %v4385 = vpack.c.b16 %v2691, %v2684
        %v4386 = vpack.c.b16 %v2692, %v2685
        %v4387 = vpack.c.b16 %v2693, %v2686
        %v4388 = vpack.c.b16 %v2694, %v2687
        %v4389 = vpack.c.b16 %v2702, %v2695
        %v4390 = vpack.c.b16 %v2703, %v2696
        %v4391 = vpack.c.b16 %v2704, %v2697
        %v4392 = vpack.c.b16 %v2705, %v2698
        %v4393 = vpack.c.b16 %v2706, %v2699
        %v4394 = vpack.c.b16 %v2707, %v2700
        %v4395 = vpack.c.b16 %v2708, %v2701
        %v4396 = vpack.c.b16 %v2716, %v2709
        %v4397 = vpack.c.b16 %v2717, %v2710
        %v4398 = vpack.c.b16 %v2718, %v2711
        %v4399 = vpack.c.b16 %v2719, %v2712
        %v4400 = vpack.c.b16 %v2720, %v2713
        %v4401 = vpack.c.b16 %v2721, %v2714
        %v4402 = vpack.c.b16 %v2722, %v2715
        %v4403 = vpack.c.b16 %v2730, %v2723
        %v4404 = vpack.c.b16 %v2731, %v2724
        %v4405 = vpack.c.b16 %v2732, %v2725
        %v4406 = vpack.c.b16 %v2733, %v2726
        %v4407 = vpack.c.b16 %v2734, %v2727
        %v4408 = vpack.c.b16 %v2735, %v2728
        %v4409 = vpack.c.b16 %v2736, %v2729
        %v4410 = vpack.c.b16 %v2744, %v2737
        %v4411 = vpack.c.b16 %v2745, %v2738
        %v4412 = vpack.c.b16 %v2746, %v2739
        %v4413 = vpack.c.b16 %v2747, %v2740
        %v4414 = vpack.c.b16 %v2748, %v2741
        %v4415 = vpack.c.b16 %v2749, %v2742
        %v4416 = vpack.c.b16 %v2750, %v2743
        %v4417 = vpack.c.b16 %v2758, %v2751
        %v4418 = vpack.c.b16 %v2759, %v2752
        %v4419 = vpack.c.b16 %v2760, %v2753
        %v4420 = vpack.c.b16 %v2761, %v2754
        %v4421 = vpack.c.b16 %v2762, %v2755
        %v4422 = vpack.c.b16 %v2763, %v2756
        %v4423 = vpack.c.b16 %v2764, %v2757
        %v4424 = vpack.c.b16 %v2772, %v2765
        %v4425 = vpack.c.b16 %v2773, %v2766
        %v4426 = vpack.c.b16 %v2774, %v2767
        %v4427 = vpack.c.b16 %v2775, %v2768
        %v4428 = vpack.c.b16 %v2776, %v2769
        %v4429 = vpack.c.b16 %v2777, %v2770
        %v4430 = vpack.c.b16 %v2778, %v2771
        %v4431 = vpack.c.b16 %v2786, %v2779
        %v4432 = vpack.c.b16 %v2787, %v2780
        %v4433 = vpack.c.b16 %v2788, %v2781
        %v4434 = vpack.c.b16 %v2789, %v2782
        %v4435 = vpack.c.b16 %v2790, %v2783
        %v4436 = vpack.c.b16 %v2791, %v2784
        %v4437 = vpack.c.b16 %v2792, %v2785
        %v4438 = vpack.c.b16 %v2800, %v2793
        %v4439 = vpack.c.b16 %v2801, %v2794
        %v4440 = vpack.c.b16 %v2802, %v2795
        %v4441 = vpack.c.b16 %v2803, %v2796
        %v4442 = vpack.c.b16 %v2804, %v2797
        %v4443 = vpack.c.b16 %v2805, %v2798
        %v4444 = vpack.c.b16 %v2806, %v2799
        %v4445 = vpack.c.b16 %v2814, %v2807
        %v4446 = vpack.c.b16 %v2815, %v2808
        %v4447 = vpack.c.b16 %v2816, %v2809
        %v4448 = vpack.c.b16 %v2817, %v2810
        %v4449 = vpack.c.b16 %v2818, %v2811
        %v4450 = vpack.c.b16 %v2819, %v2812
        %v4451 = vpack.c.b16 %v2820, %v2813
        %v4452 = vpack.c.b16 %v2828, %v2821
        %v4453 = vpack.c.b16 %v2829, %v2822
        %v4454 = vpack.c.b16 %v2830, %v2823
        %v4455 = vpack.c.b16 %v2831, %v2824
        %v4456 = vpack.c.b16 %v2832, %v2825
        %v4457 = vpack.c.b16 %v2833, %v2826
        %v4458 = vpack.c.b16 %v2834, %v2827
        %v4459 = vpack.c.b16 %v2842, %v2835
        %v4460 = vpack.c.b16 %v2843, %v2836
        %v4461 = vpack.c.b16 %v2844, %v2837
        %v4462 = vpack.c.b16 %v2845, %v2838
        %v4463 = vpack.c.b16 %v2846, %v2839
        %v4464 = vpack.c.b16 %v2847, %v2840
        %v4465 = vpack.c.b16 %v2848, %v2841
        %v4466 = vpack.c.b16 %v2856, %v2849
        %v4467 = vpack.c.b16 %v2857, %v2850
        %v4468 = vpack.c.b16 %v2858, %v2851
        %v4469 = vpack.c.b16 %v2859, %v2852
        %v4470 = vpack.c.b16 %v2860, %v2853
        %v4471 = vpack.c.b16 %v2861, %v2854
        %v4472 = vpack.c.b16 %v2862, %v2855
        %v4473 = vpack.c.b16 %v2870, %v2863
        %v4474 = vpack.c.b16 %v2871, %v2864
        %v4475 = vpack.c.b16 %v2872, %v2865
        %v4476 = vpack.c.b16 %v2873, %v2866
        %v4477 = vpack.c.b16 %v2874, %v2867
        %v4478 = vpack.c.b16 %v2875, %v2868
        %v4479 = vpack.c.b16 %v2876, %v2869
        %v4480 = vpack.c.b16 %v2884, %v2877
        %v4481 = vpack.c.b16 %v2885, %v2878
        %v4482 = vpack.c.b16 %v2886, %v2879
        %v4483 = vpack.c.b16 %v2887, %v2880
        %v4484 = vpack.c.b16 %v2888, %v2881
        %v4485 = vpack.c.b16 %v2889, %v2882
        %v4486 = vpack.c.b16 %v2890, %v2883
        %v4487 = vpack.c.b16 %v2898, %v2891
        %v4488 = vpack.c.b16 %v2899, %v2892
        %v4489 = vpack.c.b16 %v2900, %v2893
        %v4490 = vpack.c.b16 %v2901, %v2894
        %v4491 = vpack.c.b16 %v2902, %v2895
        %v4492 = vpack.c.b16 %v2903, %v2896
        %v4493 = vpack.c.b16 %v2904, %v2897
        %v4494 = vpack.c.b16 %v2912, %v2905
        %v4495 = vpack.c.b16 %v2913, %v2906
        %v4496 = vpack.c.b16 %v2914, %v2907
        %v4497 = vpack.c.b16 %v2915, %v2908
        %v4498 = vpack.c.b16 %v2916, %v2909
        %v4499 = vpack.c.b16 %v2917, %v2910
        %v4500 = vpack.c.b16 %v2918, %v2911
        %v4501 = vpack.c.b16 %v2926, %v2919
        %v4502 = vpack.c.b16 %v2927, %v2920
        %v4503 = vpack.c.b16 %v2928, %v2921
        %v4504 = vpack.c.b16 %v2929, %v2922
        %v4505 = vpack.c.b16 %v2930, %v2923
        %v4506 = vpack.c.b16 %v2931, %v2924
        %v4507 = vpack.c.b16 %v2932, %v2925
        %v4508 = vpack.c.b16 %v2940, %v2933
        %v4509 = vpack.c.b16 %v2941, %v2934
        %v4510 = vpack.c.b16 %v2942, %v2935
        %v4511 = vpack.c.b16 %v2943, %v2936
        %v4512 = vpack.c.b16 %v2944, %v2937
        %v4513 = vpack.c.b16 %v2945, %v2938
        %v4514 = vpack.c.b16 %v2946, %v2939
        %v4515 = vpack.c.b16 %v2954, %v2947
        %v4516 = vpack.c.b16 %v2955, %v2948
        %v4517 = vpack.c.b16 %v2956, %v2949
        %v4518 = vpack.c.b16 %v2957, %v2950
        %v4519 = vpack.c.b16 %v2958, %v2951
        %v4520 = vpack.c.b16 %v2959, %v2952
        %v4521 = vpack.c.b16 %v2960, %v2953
        %v4522 = vpack.c.b16 %v2968, %v2961
        %v4523 = vpack.c.b16 %v2969, %v2962
        %v4524 = vpack.c.b16 %v2970, %v2963
        %v4525 = vpack.c.b16 %v2971, %v2964
        %v4526 = vpack.c.b16 %v2972, %v2965
        %v4527 = vpack.c.b16 %v2973, %v2966
        %v4528 = vpack.c.b16 %v2974, %v2967
        %v4529 = vpack.c.b16 %v2982, %v2975
        %v4530 = vpack.c.b16 %v2983, %v2976
        %v4531 = vpack.c.b16 %v2984, %v2977
        %v4532 = vpack.c.b16 %v2985, %v2978
        %v4533 = vpack.c.b16 %v2986, %v2979
        %v4534 = vpack.c.b16 %v2987, %v2980
        %v4535 = vpack.c.b16 %v2988, %v2981
        %v4536 = vpack.c.b16 %v2996, %v2989
        %v4537 = vpack.c.b16 %v2997, %v2990
        %v4538 = vpack.c.b16 %v2998, %v2991
        %v4539 = vpack.c.b16 %v2999, %v2992
        %v4540 = vpack.c.b16 %v3000, %v2993
        %v4541 = vpack.c.b16 %v3001, %v2994
        %v4542 = vpack.c.b16 %v3002, %v2995
        %v4543 = vpack.c.b16 %v3010, %v3003
        %v4544 = vpack.c.b16 %v3011, %v3004
        %v4545 = vpack.c.b16 %v3012, %v3005
        %v4546 = vpack.c.b16 %v3013, %v3006
        %v4547 = vpack.c.b16 %v3014, %v3007
        %v4548 = vpack.c.b16 %v3015, %v3008
        %v4549 = vpack.c.b16 %v3016, %v3009
        %v4550 = vpack.c.b16 %v3024, %v3017
        %v4551 = vpack.c.b16 %v3025, %v3018
        %v4552 = vpack.c.b16 %v3026, %v3019
        %v4553 = vpack.c.b16 %v3027, %v3020
        %v4554 = vpack.c.b16 %v3028, %v3021
        %v4555 = vpack.c.b16 %v3029, %v3022
        %v4556 = vpack.c.b16 %v3030, %v3023
        %v4557 = vpack.c.b16 %v3038, %v3031
        %v4558 = vpack.c.b16 %v3039, %v3032
        %v4559 = vpack.c.b16 %v3040, %v3033
        %v4560 = vpack.c.b16 %v3041, %v3034
        %v4561 = vpack.c.b16 %v3042, %v3035
        %v4562 = vpack.c.b16 %v3043, %v3036
        %v4563 = vpack.c.b16 %v3044, %v3037
        %v4564 = vpack.c.b16 %v3052, %v3045
        %v4565 = vpack.c.b16 %v3053, %v3046
        %v4566 = vpack.c.b16 %v3054, %v3047
        %v4567 = vpack.c.b16 %v3055, %v3048
        %v4568 = vpack.c.b16 %v3056, %v3049
        %v4569 = vpack.c.b16 %v3057, %v3050
        %v4570 = vpack.c.b16 %v3058, %v3051
        %v4571 = vpack.c.b16 %v3066, %v3059
        %v4572 = vpack.c.b16 %v3067, %v3060
        %v4573 = vpack.c.b16 %v3068, %v3061
        %v4574 = vpack.c.b16 %v3069, %v3062
        %v4575 = vpack.c.b16 %v3070, %v3063
        %v4576 = vpack.c.b16 %v3071, %v3064
        %v4577 = vpack.c.b16 %v3072, %v3065
        %v4578 = vpack.c.b16 %v3080, %v3073
        %v4579 = vpack.c.b16 %v3081, %v3074
        %v4580 = vpack.c.b16 %v3082, %v3075
        %v4581 = vpack.c.b16 %v3083, %v3076
        %v4582 = vpack.c.b16 %v3084, %v3077
        %v4583 = vpack.c.b16 %v3085, %v3078
        %v4584 = vpack.c.b16 %v3086, %v3079
        %v4585 = vpack.c.b16 %v3094, %v3087
        %v4586 = vpack.c.b16 %v3095, %v3088
        %v4587 = vpack.c.b16 %v3096, %v3089
        %v4588 = vpack.c.b16 %v3097, %v3090
        %v4589 = vpack.c.b16 %v3098, %v3091
        %v4590 = vpack.c.b16 %v3099, %v3092
        %v4591 = vpack.c.b16 %v3100, %v3093
        %v4592 = vpack.c.b16 %v3108, %v3101
        %v4593 = vpack.c.b16 %v3109, %v3102
        %v4594 = vpack.c.b16 %v3110, %v3103
        %v4595 = vpack.c.b16 %v3111, %v3104
        %v4596 = vpack.c.b16 %v3112, %v3105
        %v4597 = vpack.c.b16 %v3113, %v3106
        %v4598 = vpack.c.b16 %v3114, %v3107
        %v4599 = vpack.c.b16 %v3122, %v3115
        %v4600 = vpack.c.b16 %v3123, %v3116
        %v4601 = vpack.c.b16 %v3124, %v3117
        %v4602 = vpack.c.b16 %v3125, %v3118
        %v4603 = vpack.c.b16 %v3126, %v3119
        %v4604 = vpack.c.b16 %v3127, %v3120
        %v4605 = vpack.c.b16 %v3128, %v3121
        %v4606 = vpack.c.b16 %v3136, %v3129
        %v4607 = vpack.c.b16 %v3137, %v3130
        %v4608 = vpack.c.b16 %v3138, %v3131
        %v4609 = vpack.c.b16 %v3139, %v3132
        %v4610 = vpack.c.b16 %v3140, %v3133
        %v4611 = vpack.c.b16 %v3141, %v3134
        %v4612 = vpack.c.b16 %v3142, %v3135
        %v4613 = vpack.c.b16 %v3150, %v3143
        %v4614 = vpack.c.b16 %v3151, %v3144
        %v4615 = vpack.c.b16 %v3152, %v3145
        %v4616 = vpack.c.b16 %v3153, %v3146
        %v4617 = vpack.c.b16 %v3154, %v3147
        %v4618 = vpack.c.b16 %v3155, %v3148
        %v4619 = vpack.c.b16 %v3156, %v3149
        %v4620 = vpack.c.b16 %v3164, %v3157
        %v4621 = vpack.c.b16 %v3165, %v3158
        %v4622 = vpack.c.b16 %v3166, %v3159
        %v4623 = vpack.c.b16 %v3167, %v3160
        %v4624 = vpack.c.b16 %v3168, %v3161
        %v4625 = vpack.c.b16 %v3169, %v3162
        %v4626 = vpack.c.b16 %v3170, %v3163
        %v4627 = vpack.c.b16 %v3178, %v3171
        %v4628 = vpack.c.b16 %v3179, %v3172
        %v4629 = vpack.c.b16 %v3180, %v3173
        %v4630 = vpack.c.b16 %v3181, %v3174
        %v4631 = vpack.c.b16 %v3182, %v3175
        %v4632 = vpack.c.b16 %v3183, %v3176
        %v4633 = vpack.c.b16 %v3184, %v3177
        %v4634 = vpack.c.b16 %v3192, %v3185
        %v4635 = vpack.c.b16 %v3193, %v3186
        %v4636 = vpack.c.b16 %v3194, %v3187
        %v4637 = vpack.c.b16 %v3195, %v3188
        %v4638 = vpack.c.b16 %v3196, %v3189
        %v4639 = vpack.c.b16 %v3197, %v3190
        %v4640 = vpack.c.b16 %v3198, %v3191
        %v4641 = vpack.c.b16 %v3206, %v3199
        %v4642 = vpack.c.b16 %v3207, %v3200
        %v4643 = vpack.c.b16 %v3208, %v3201
        %v4644 = vpack.c.b16 %v3209, %v3202
        %v4645 = vpack.c.b16 %v3210, %v3203
        %v4646 = vpack.c.b16 %v3211, %v3204
        %v4647 = vpack.c.b16 %v3212, %v3205
        %v4648 = vpack.c.b16 %v3220, %v3213
        %v4649 = vpack.c.b16 %v3221, %v3214
        %v4650 = vpack.c.b16 %v3222, %v3215
        %v4651 = vpack.c.b16 %v3223, %v3216
        %v4652 = vpack.c.b16 %v3224, %v3217
        %v4653 = vpack.c.b16 %v3225, %v3218
        %v4654 = vpack.c.b16 %v3226, %v3219
        %v4655 = vpack.c.b16 %v3234, %v3227
        %v4656 = vpack.c.b16 %v3235, %v3228
        %v4657 = vpack.c.b16 %v3236, %v3229
        %v4658 = vpack.c.b16 %v3237, %v3230
        %v4659 = vpack.c.b16 %v3238, %v3231
        %v4660 = vpack.c.b16 %v3239, %v3232
        %v4661 = vpack.c.b16 %v3240, %v3233
        %v4662 = vpack.c.b16 %v3248, %v3241
        %v4663 = vpack.c.b16 %v3249, %v3242
        %v4664 = vpack.c.b16 %v3250, %v3243
        %v4665 = vpack.c.b16 %v3251, %v3244
        %v4666 = vpack.c.b16 %v3252, %v3245
        %v4667 = vpack.c.b16 %v3253, %v3246
        %v4668 = vpack.c.b16 %v3254, %v3247
        %v4669 = vpack.c.b16 %v3262, %v3255
        %v4670 = vpack.c.b16 %v3263, %v3256
        %v4671 = vpack.c.b16 %v3264, %v3257
        %v4672 = vpack.c.b16 %v3265, %v3258
        %v4673 = vpack.c.b16 %v3266, %v3259
        %v4674 = vpack.c.b16 %v3267, %v3260
        %v4675 = vpack.c.b16 %v3268, %v3261
        %v4676 = vpack.c.b16 %v3276, %v3269
        %v4677 = vpack.c.b16 %v3277, %v3270
        %v4678 = vpack.c.b16 %v3278, %v3271
        %v4679 = vpack.c.b16 %v3279, %v3272
        %v4680 = vpack.c.b16 %v3280, %v3273
        %v4681 = vpack.c.b16 %v3281, %v3274
        %v4682 = vpack.c.b16 %v3282, %v3275
        %v4683 = vpack.c.b16 %v3290, %v3283
        %v4684 = vpack.c.b16 %v3291, %v3284
        %v4685 = vpack.c.b16 %v3292, %v3285
        %v4686 = vpack.c.b16 %v3293, %v3286
        %v4687 = vpack.c.b16 %v3294, %v3287
        %v4688 = vpack.c.b16 %v3295, %v3288
        %v4689 = vpack.c.b16 %v3296, %v3289
        %v4690 = vpack.c.b16 %v3304, %v3297
        %v4691 = vpack.c.b16 %v3305, %v3298
        %v4692 = vpack.c.b16 %v3306, %v3299
        %v4693 = vpack.c.b16 %v3307, %v3300
        %v4694 = vpack.c.b16 %v3308, %v3301
        %v4695 = vpack.c.b16 %v3309, %v3302
        %v4696 = vpack.c.b16 %v3310, %v3303
        %v4697 = vpack.c.b16 %v3318, %v3311
        %v4698 = vpack.c.b16 %v3319, %v3312
        %v4699 = vpack.c.b16 %v3320, %v3313
        %v4700 = vpack.c.b16 %v3321, %v3314
        %v4701 = vpack.c.b16 %v3322, %v3315
        %v4702 = vpack.c.b16 %v3323, %v3316
        %v4703 = vpack.c.b16 %v3324, %v3317
        %v4704 = vpack.c.b16 %v3332, %v3325
        %v4705 = vpack.c.b16 %v3333, %v3326
        %v4706 = vpack.c.b16 %v3334, %v3327
        %v4707 = vpack.c.b16 %v3335, %v3328
        %v4708 = vpack.c.b16 %v3336, %v3329
        %v4709 = vpack.c.b16 %v3337, %v3330
        %v4710 = vpack.c.b16 %v3338, %v3331
        %v4711 = vpack.c.b16 %v3346, %v3339
        %v4712 = vpack.c.b16 %v3347, %v3340
        %v4713 = vpack.c.b16 %v3348, %v3341
        %v4714 = vpack.c.b16 %v3349, %v3342
        %v4715 = vpack.c.b16 %v3350, %v3343
        %v4716 = vpack.c.b16 %v3351, %v3344
        %v4717 = vpack.c.b16 %v3352, %v3345
        %v4718 = vpack.c.b16 %v3360, %v3353
        %v4719 = vpack.c.b16 %v3361, %v3354
        %v4720 = vpack.c.b16 %v3362, %v3355
        %v4721 = vpack.c.b16 %v3363, %v3356
        %v4722 = vpack.c.b16 %v3364, %v3357
        %v4723 = vpack.c.b16 %v3365, %v3358
        %v4724 = vpack.c.b16 %v3366, %v3359
        %v4725 = vpack.c.b16 %v3374, %v3367
        %v4726 = vpack.c.b16 %v3375, %v3368
        %v4727 = vpack.c.b16 %v3376, %v3369
        %v4728 = vpack.c.b16 %v3377, %v3370
        %v4729 = vpack.c.b16 %v3378, %v3371
        %v4730 = vpack.c.b16 %v3379, %v3372
        %v4731 = vpack.c.b16 %v3380, %v3373
        %v4732 = vpack.c.b16 %v3388, %v3381
        %v4733 = vpack.c.b16 %v3389, %v3382
        %v4734 = vpack.c.b16 %v3390, %v3383
        %v4735 = vpack.c.b16 %v3391, %v3384
        %v4736 = vpack.c.b16 %v3392, %v3385
        %v4737 = vpack.c.b16 %v3393, %v3386
        %v4738 = vpack.c.b16 %v3394, %v3387
        %v4739 = vpack.c.b16 %v3402, %v3395
        %v4740 = vpack.c.b16 %v3403, %v3396
        %v4741 = vpack.c.b16 %v3404, %v3397
        %v4742 = vpack.c.b16 %v3405, %v3398
        %v4743 = vpack.c.b16 %v3406, %v3399
        %v4744 = vpack.c.b16 %v3407, %v3400
        %v4745 = vpack.c.b16 %v3408, %v3401
        %v4746 = vpack.c.b16 %v3416, %v3409
        %v4747 = vpack.c.b16 %v3417, %v3410
        %v4748 = vpack.c.b16 %v3418, %v3411
        %v4749 = vpack.c.b16 %v3419, %v3412
        %v4750 = vpack.c.b16 %v3420, %v3413
        %v4751 = vpack.c.b16 %v3421, %v3414
        %v4752 = vpack.c.b16 %v3422, %v3415
        %v4753 = vpack.c.b16 %v3430, %v3423
        %v4754 = vpack.c.b16 %v3431, %v3424
        %v4755 = vpack.c.b16 %v3432, %v3425
        %v4756 = vpack.c.b16 %v3433, %v3426
        %v4757 = vpack.c.b16 %v3434, %v3427
        %v4758 = vpack.c.b16 %v3435, %v3428
        %v4759 = vpack.c.b16 %v3436, %v3429
        %v4760 = vpack.c.b16 %v3444, %v3437
        %v4761 = vpack.c.b16 %v3445, %v3438
        %v4762 = vpack.c.b16 %v3446, %v3439
        %v4763 = vpack.c.b16 %v3447, %v3440
        %v4764 = vpack.c.b16 %v3448, %v3441
        %v4765 = vpack.c.b16 %v3449, %v3442
        %v4766 = vpack.c.b16 %v3450, %v3443
        %v4767 = vpack.c.b16 %v3458, %v3451
        %v4768 = vpack.c.b16 %v3459, %v3452
        %v4769 = vpack.c.b16 %v3460, %v3453
        %v4770 = vpack.c.b16 %v3461, %v3454
        %v4771 = vpack.c.b16 %v3462, %v3455
        %v4772 = vpack.c.b16 %v3463, %v3456
        %v4773 = vpack.c.b16 %v3464, %v3457
        %v4774 = vpack.c.b16 %v3472, %v3465
        %v4775 = vpack.c.b16 %v3473, %v3466
        %v4776 = vpack.c.b16 %v3474, %v3467
        %v4777 = vpack.c.b16 %v3475, %v3468
        %v4778 = vpack.c.b16 %v3476, %v3469
        %v4779 = vpack.c.b16 %v3477, %v3470
        %v4780 = vpack.c.b16 %v3478, %v3471
        %v4781 = vpack.c.b16 %v3486, %v3479
        %v4782 = vpack.c.b16 %v3487, %v3480
        %v4783 = vpack.c.b16 %v3488, %v3481
        %v4784 = vpack.c.b16 %v3489, %v3482
        %v4785 = vpack.c.b16 %v3490, %v3483
        %v4786 = vpack.c.b16 %v3491, %v3484
        %v4787 = vpack.c.b16 %v3492, %v3485
        %v4788 = vpack.c.b16 %v3500, %v3493
        %v4789 = vpack.c.b16 %v3501, %v3494
        %v4790 = vpack.c.b16 %v3502, %v3495
        %v4791 = vpack.c.b16 %v3503, %v3496
        %v4792 = vpack.c.b16 %v3504, %v3497
        %v4793 = vpack.c.b16 %v3505, %v3498
        %v4794 = vpack.c.b16 %v3506, %v3499
        %v4795 = vpack.c.b16 %v3514, %v3507
        %v4796 = vpack.c.b16 %v3515, %v3508
        %v4797 = vpack.c.b16 %v3516, %v3509
        %v4798 = vpack.c.b16 %v3517, %v3510
        %v4799 = vpack.c.b16 %v3518, %v3511
        %v4800 = vpack.c.b16 %v3519, %v3512
        %v4801 = vpack.c.b16 %v3520, %v3513
        %v4802 = vpack.c.b16 %v3528, %v3521
        %v4803 = vpack.c.b16 %v3529, %v3522
        %v4804 = vpack.c.b16 %v3530, %v3523
        %v4805 = vpack.c.b16 %v3531, %v3524
        %v4806 = vpack.c.b16 %v3532, %v3525
        %v4807 = vpack.c.b16 %v3533, %v3526
        %v4808 = vpack.c.b16 %v3534, %v3527
        %v4809 = vpack.c.b16 %v3542, %v3535
        %v4810 = vpack.c.b16 %v3543, %v3536
        %v4811 = vpack.c.b16 %v3544, %v3537
        %v4812 = vpack.c.b16 %v3545, %v3538
        %v4813 = vpack.c.b16 %v3546, %v3539
        %v4814 = vpack.c.b16 %v3547, %v3540
        %v4815 = vpack.c.b16 %v3548, %v3541
        %v4816 = vpack.c.b16 %v3556, %v3549
        %v4817 = vpack.c.b16 %v3557, %v3550
        %v4818 = vpack.c.b16 %v3558, %v3551
        %v4819 = vpack.c.b16 %v3559, %v3552
        %v4820 = vpack.c.b16 %v3560, %v3553
        %v4821 = vpack.c.b16 %v3561, %v3554
        %v4822 = vpack.c.b16 %v3562, %v3555
        %v4823 = vpack.c.b16 %v3570, %v3563
        %v4824 = vpack.c.b16 %v3571, %v3564
        %v4825 = vpack.c.b16 %v3572, %v3565
        %v4826 = vpack.c.b16 %v3573, %v3566
        %v4827 = vpack.c.b16 %v3574, %v3567
        %v4828 = vpack.c.b16 %v3575, %v3568
        %v4829 = vpack.c.b16 %v3576, %v3569
        %v4830 = vpack.c.b16 %v3584, %v3577
        %v4831 = vpack.c.b16 %v3585, %v3578
        %v4832 = vpack.c.b16 %v3586, %v3579
        %v4833 = vpack.c.b16 %v3587, %v3580
        %v4834 = vpack.c.b16 %v3588, %v3581
        %v4835 = vpack.c.b16 %v3589, %v3582
        %v4836 = vpack.c.b16 %v3590, %v3583
        %v4837 = vpack.c.b16 %v3598, %v3591
        %v4838 = vpack.c.b16 %v3599, %v3592
        %v4839 = vpack.c.b16 %v3600, %v3593
        %v4840 = vpack.c.b16 %v3601, %v3594
        %v4841 = vpack.c.b16 %v3602, %v3595
        %v4842 = vpack.c.b16 %v3603, %v3596
        %v4843 = vpack.c.b16 %v3604, %v3597
        %v4844 = vpack.c.b16 %v3612, %v3605
        %v4845 = vpack.c.b16 %v3613, %v3606
        %v4846 = vpack.c.b16 %v3614, %v3607
        %v4847 = vpack.c.b16 %v3615, %v3608
        %v4848 = vpack.c.b16 %v3616, %v3609
        %v4849 = vpack.c.b16 %v3617, %v3610
        %v4850 = vpack.c.b16 %v3618, %v3611
        %v4851 = vpack.c.b16 %v3626, %v3619
        %v4852 = vpack.c.b16 %v3627, %v3620
        %v4853 = vpack.c.b16 %v3628, %v3621
        %v4854 = vpack.c.b16 %v3629, %v3622
        %v4855 = vpack.c.b16 %v3630, %v3623
        %v4856 = vpack.c.b16 %v3631, %v3624
        %v4857 = vpack.c.b16 %v3632, %v3625
        %v4858 = vpack.c.b16 %v3640, %v3633
        %v4859 = vpack.c.b16 %v3641, %v3634
        %v4860 = vpack.c.b16 %v3642, %v3635
        %v4861 = vpack.c.b16 %v3643, %v3636
        %v4862 = vpack.c.b16 %v3644, %v3637
        %v4863 = vpack.c.b16 %v3645, %v3638
        %v4864 = vpack.c.b16 %v3646, %v3639
        %v4865 = vpack.c.b16 %v3654, %v3647
        %v4866 = vpack.c.b16 %v3655, %v3648
        %v4867 = vpack.c.b16 %v3656, %v3649
        %v4868 = vpack.c.b16 %v3657, %v3650
        %v4869 = vpack.c.b16 %v3658, %v3651
        %v4870 = vpack.c.b16 %v3659, %v3652
        %v4871 = vpack.c.b16 %v3660, %v3653
        %v4872 = vpack.c.b16 %v3668, %v3661
        %v4873 = vpack.c.b16 %v3669, %v3662
        %v4874 = vpack.c.b16 %v3670, %v3663
        %v4875 = vpack.c.b16 %v3671, %v3664
        %v4876 = vpack.c.b16 %v3672, %v3665
        %v4877 = vpack.c.b16 %v3673, %v3666
        %v4878 = vpack.c.b16 %v3674, %v3667
        %v4879 = vpack.c.b16 %v3682, %v3675
        %v4880 = vpack.c.b16 %v3683, %v3676
        %v4881 = vpack.c.b16 %v3684, %v3677
        %v4882 = vpack.c.b16 %v3685, %v3678
        %v4883 = vpack.c.b16 %v3686, %v3679
        %v4884 = vpack.c.b16 %v3687, %v3680
        %v4885 = vpack.c.b16 %v3688, %v3681
        %v4886 = vpack.c.b16 %v3696, %v3689
        %v4887 = vpack.c.b16 %v3697, %v3690
        %v4888 = vpack.c.b16 %v3698, %v3691
        %v4889 = vpack.c.b16 %v3699, %v3692
        %v4890 = vpack.c.b16 %v3700, %v3693
        %v4891 = vpack.c.b16 %v3701, %v3694
        %v4892 = vpack.c.b16 %v3702, %v3695
        %v4893 = vpack.c.b16 %v3710, %v3703
        %v4894 = vpack.c.b16 %v3711, %v3704
        %v4895 = vpack.c.b16 %v3712, %v3705
        %v4896 = vpack.c.b16 %v3713, %v3706
        %v4897 = vpack.c.b16 %v3714, %v3707
        %v4898 = vpack.c.b16 %v3715, %v3708
        %v4899 = vpack.c.b16 %v3716, %v3709
        %v4900 = vpack.c.b16 %v3724, %v3717
        %v4901 = vpack.c.b16 %v3725, %v3718
        %v4902 = vpack.c.b16 %v3726, %v3719
        %v4903 = vpack.c.b16 %v3727, %v3720
        %v4904 = vpack.c.b16 %v3728, %v3721
        %v4905 = vpack.c.b16 %v3729, %v3722
        %v4906 = vpack.c.b16 %v3730, %v3723
        %v4907 = vpack.c.b16 %v3738, %v3731
        %v4908 = vpack.c.b16 %v3739, %v3732
        %v4909 = vpack.c.b16 %v3740, %v3733
        %v4910 = vpack.c.b16 %v3741, %v3734
        %v4911 = vpack.c.b16 %v3742, %v3735
        %v4912 = vpack.c.b16 %v3743, %v3736
        %v4913 = vpack.c.b16 %v3744, %v3737
        %v4914 = vpack.c.b16 %v3752, %v3745
        %v4915 = vpack.c.b16 %v3753, %v3746
        %v4916 = vpack.c.b16 %v3754, %v3747
        %v4917 = vpack.c.b16 %v3755, %v3748
        %v4918 = vpack.c.b16 %v3756, %v3749
        %v4919 = vpack.c.b16 %v3757, %v3750
        %v4920 = vpack.c.b16 %v3758, %v3751
        %v4921 = vpack.c.b16 %v3766, %v3759
        %v4922 = vpack.c.b16 %v3767, %v3760
        %v4923 = vpack.c.b16 %v3768, %v3761
        %v4924 = vpack.c.b16 %v3769, %v3762
        %v4925 = vpack.c.b16 %v3770, %v3763
        %v4926 = vpack.c.b16 %v3771, %v3764
        %v4927 = vpack.c.b16 %v3772, %v3765
        %v4928 = vpack.c.b16 %v3780, %v3773
        %v4929 = vpack.c.b16 %v3781, %v3774
        %v4930 = vpack.c.b16 %v3782, %v3775
        %v4931 = vpack.c.b16 %v3783, %v3776
        %v4932 = vpack.c.b16 %v3784, %v3777
        %v4933 = vpack.c.b16 %v3785, %v3778
        %v4934 = vpack.c.b16 %v3786, %v3779
        %v4935 = vpack.c.b16 %v3794, %v3787
        %v4936 = vpack.c.b16 %v3795, %v3788
        %v4937 = vpack.c.b16 %v3796, %v3789
        %v4938 = vpack.c.b16 %v3797, %v3790
        %v4939 = vpack.c.b16 %v3798, %v3791
        %v4940 = vpack.c.b16 %v3799, %v3792
        %v4941 = vpack.c.b16 %v3800, %v3793
        %v4942 = vpack.c.b16 %v3808, %v3801
        %v4943 = vpack.c.b16 %v3809, %v3802
        %v4944 = vpack.c.b16 %v3810, %v3803
        %v4945 = vpack.c.b16 %v3811, %v3804
        %v4946 = vpack.c.b16 %v3812, %v3805
        %v4947 = vpack.c.b16 %v3813, %v3806
        %v4948 = vpack.c.b16 %v3814, %v3807
        %v4949 = vpack.c.b16 %v3822, %v3815
        %v4950 = vpack.c.b16 %v3823, %v3816
        %v4951 = vpack.c.b16 %v3824, %v3817
        %v4952 = vpack.c.b16 %v3825, %v3818
        %v4953 = vpack.c.b16 %v3826, %v3819
        %v4954 = vpack.c.b16 %v3827, %v3820
        %v4955 = vpack.c.b16 %v3828, %v3821
        %v4956 = vpack.c.b16 %v3836, %v3829
        %v4957 = vpack.c.b16 %v3837, %v3830
        %v4958 = vpack.c.b16 %v3838, %v3831
        %v4959 = vpack.c.b16 %v3839, %v3832
        %v4960 = vpack.c.b16 %v3840, %v3833
        %v4961 = vpack.c.b16 %v3841, %v3834
        %v4962 = vpack.c.b16 %v3842, %v3835
        %v4963 = vpack.c.b16 %v3850, %v3843
        %v4964 = vpack.c.b16 %v3851, %v3844
        %v4965 = vpack.c.b16 %v3852, %v3845
        %v4966 = vpack.c.b16 %v3853, %v3846
        %v4967 = vpack.c.b16 %v3854, %v3847
        %v4968 = vpack.c.b16 %v3855, %v3848
        %v4969 = vpack.c.b16 %v3856, %v3849
        %v4970 = vpack.c.b16 %v3864, %v3857
        %v4971 = vpack.c.b16 %v3865, %v3858
        %v4972 = vpack.c.b16 %v3866, %v3859
        %v4973 = vpack.c.b16 %v3867, %v3860
        %v4974 = vpack.c.b16 %v3868, %v3861
        %v4975 = vpack.c.b16 %v3869, %v3862
        %v4976 = vpack.c.b16 %v3870, %v3863
        %v4977 = vpack.c.b16 %v3878, %v3871
        %v4978 = vpack.c.b16 %v3879, %v3872
        %v4979 = vpack.c.b16 %v3880, %v3873
        %v4980 = vpack.c.b16 %v3881, %v3874
        %v4981 = vpack.c.b16 %v3882, %v3875
        %v4982 = vpack.c.b16 %v3883, %v3876
        %v4983 = vpack.c.b16 %v3884, %v3877
        %v4984 = vpack.c.b16 %v3892, %v3885
        %v4985 = vpack.c.b16 %v3893, %v3886
        %v4986 = vpack.c.b16 %v3894, %v3887
        %v4987 = vpack.c.b16 %v3895, %v3888
        %v4988 = vpack.c.b16 %v3896, %v3889
        %v4989 = vpack.c.b16 %v3897, %v3890
        %v4990 = vpack.c.b16 %v3898, %v3891
        %v4991 = vpack.c.b16 %v3906, %v3899
        %v4992 = vpack.c.b16 %v3907, %v3900
        %v4993 = vpack.c.b16 %v3908, %v3901
        %v4994 = vpack.c.b16 %v3909, %v3902
        %v4995 = vpack.c.b16 %v3910, %v3903
        %v4996 = vpack.c.b16 %v3911, %v3904
        %v4997 = vpack.c.b16 %v3912, %v3905
        %v4998 = vpack.c.b16 %v3920, %v3913
        %v4999 = vpack.c.b16 %v3921, %v3914
        %v5000 = vpack.c.b16 %v3922, %v3915
        %v5001 = vpack.c.b16 %v3923, %v3916
        %v5002 = vpack.c.b16 %v3924, %v3917
        %v5003 = vpack.c.b16 %v3925, %v3918
        %v5004 = vpack.c.b16 %v3926, %v3919
        %v5005 = vpack.c.b16 %v3934, %v3927
        %v5006 = vpack.c.b16 %v3935, %v3928
        %v5007 = vpack.c.b16 %v3936, %v3929
        %v5008 = vpack.c.b16 %v3937, %v3930
        %v5009 = vpack.c.b16 %v3938, %v3931
        %v5010 = vpack.c.b16 %v3939, %v3932
        %v5011 = vpack.c.b16 %v3940, %v3933
        %v5012 = vpack.c.b16 %v3948, %v3941
        %v5013 = vpack.c.b16 %v3949, %v3942
        %v5014 = vpack.c.b16 %v3950, %v3943
        %v5015 = vpack.c.b16 %v3951, %v3944
        %v5016 = vpack.c.b16 %v3952, %v3945
        %v5017 = vpack.c.b16 %v3953, %v3946
        %v5018 = vpack.c.b16 %v3954, %v3947
        %v5019 = vpack.c.b16 %v3962, %v3955
        %v5020 = vpack.c.b16 %v3963, %v3956
        %v5021 = vpack.c.b16 %v3964, %v3957
        %v5022 = vpack.c.b16 %v3965, %v3958
        %v5023 = vpack.c.b16 %v3966, %v3959
        %v5024 = vpack.c.b16 %v3967, %v3960
        %v5025 = vpack.c.b16 %v3968, %v3961
        %v5026 = vpack.c.b16 %v3976, %v3969
        %v5027 = vpack.c.b16 %v3977, %v3970
        %v5028 = vpack.c.b16 %v3978, %v3971
        %v5029 = vpack.c.b16 %v3979, %v3972
        %v5030 = vpack.c.b16 %v3980, %v3973
        %v5031 = vpack.c.b16 %v3981, %v3974
        %v5032 = vpack.c.b16 %v3982, %v3975
        %v5033 = vpack.c.b16 %v3990, %v3983
        %v5034 = vpack.c.b16 %v3991, %v3984
        %v5035 = vpack.c.b16 %v3992, %v3985
        %v5036 = vpack.c.b16 %v3993, %v3986
        %v5037 = vpack.c.b16 %v3994, %v3987
        %v5038 = vpack.c.b16 %v3995, %v3988
        %v5039 = vpack.c.b16 %v3996, %v3989
        %v5040 = vpack.c.b16 %v4004, %v3997
        %v5041 = vpack.c.b16 %v4005, %v3998
        %v5042 = vpack.c.b16 %v4006, %v3999
        %v5043 = vpack.c.b16 %v4007, %v4000
        %v5044 = vpack.c.b16 %v4008, %v4001
        %v5045 = vpack.c.b16 %v4009, %v4002
        %v5046 = vpack.c.b16 %v4010, %v4003
        %v5047 = vpack.c.b16 %v4018, %v4011
        %v5048 = vpack.c.b16 %v4019, %v4012
        %v5049 = vpack.c.b16 %v4020, %v4013
        %v5050 = vpack.c.b16 %v4021, %v4014
        %v5051 = vpack.c.b16 %v4022, %v4015
        %v5052 = vpack.c.b16 %v4023, %v4016
        %v5053 = vpack.c.b16 %v4024, %v4017
        %v5054 = vpack.c.b16 %v4032, %v4025
        %v5055 = vpack.c.b16 %v4033, %v4026
        %v5056 = vpack.c.b16 %v4034, %v4027
        %v5057 = vpack.c.b16 %v4035, %v4028
        %v5058 = vpack.c.b16 %v4036, %v4029
        %v5059 = vpack.c.b16 %v4037, %v4030
        %v5060 = vpack.c.b16 %v4038, %v4031
        %v5061 = vpack.c.b16 %v4046, %v4039
        %v5062 = vpack.c.b16 %v4047, %v4040
        %v5063 = vpack.c.b16 %v4048, %v4041
        %v5064 = vpack.c.b16 %v4049, %v4042
        %v5065 = vpack.c.b16 %v4050, %v4043
        %v5066 = vpack.c.b16 %v4051, %v4044
        %v5067 = vpack.c.b16 %v4052, %v4045
        %v5068 = vpack.c.b16 %v4060, %v4053
        %v5069 = vpack.c.b16 %v4061, %v4054
        %v5070 = vpack.c.b16 %v4062, %v4055
        %v5071 = vpack.c.b16 %v4063, %v4056
        %v5072 = vpack.c.b16 %v4064, %v4057
        %v5073 = vpack.c.b16 %v4065, %v4058
        %v5074 = vpack.c.b16 %v4066, %v4059
        %v5075 = vpack.c.b16 %v4074, %v4067
        %v5076 = vpack.c.b16 %v4075, %v4068
        %v5077 = vpack.c.b16 %v4076, %v4069
        %v5078 = vpack.c.b16 %v4077, %v4070
        %v5079 = vpack.c.b16 %v4078, %v4071
        %v5080 = vpack.c.b16 %v4079, %v4072
        %v5081 = vpack.c.b16 %v4080, %v4073
        %v5082 = vpack.c.b16 %v4088, %v4081
        %v5083 = vpack.c.b16 %v4089, %v4082
        %v5084 = vpack.c.b16 %v4090, %v4083
        %v5085 = vpack.c.b16 %v4091, %v4084
        %v5086 = vpack.c.b16 %v4092, %v4085
        %v5087 = vpack.c.b16 %v4093, %v4086
        %v5088 = vpack.c.b16 %v4094, %v4087
        %v5089 = vpack.c.b16 %v4102, %v4095
        %v5090 = vpack.c.b16 %v4103, %v4096
        %v5091 = vpack.c.b16 %v4104, %v4097
        %v5092 = vpack.c.b16 %v4105, %v4098
        %v5093 = vpack.c.b16 %v4106, %v4099
        %v5094 = vpack.c.b16 %v4107, %v4100
        %v5095 = vpack.c.b16 %v4108, %v4101
        %v5096 = vpack.c.b16 %v4116, %v4109
        %v5097 = vpack.c.b16 %v4117, %v4110
        %v5098 = vpack.c.b16 %v4118, %v4111
        %v5099 = vpack.c.b16 %v4119, %v4112
        %v5100 = vpack.c.b16 %v4120, %v4113
        %v5101 = vpack.c.b16 %v4121, %v4114
        %v5102 = vpack.c.b16 %v4122, %v4115
        %v5103 = vpack.c.b16 %v4130, %v4123
        %v5104 = vpack.c.b16 %v4131, %v4124
        %v5105 = vpack.c.b16 %v4132, %v4125
        %v5106 = vpack.c.b16 %v4133, %v4126
        %v5107 = vpack.c.b16 %v4134, %v4127
        %v5108 = vpack.c.b16 %v4135, %v4128
        %v5109 = vpack.c.b16 %v4136, %v4129
        %v5110 = vpack.c.b16 %v4144, %v4137
        %v5111 = vpack.c.b16 %v4145, %v4138
        %v5112 = vpack.c.b16 %v4146, %v4139
        %v5113 = vpack.c.b16 %v4147, %v4140
        %v5114 = vpack.c.b16 %v4148, %v4141
        %v5115 = vpack.c.b16 %v4149, %v4142
        %v5116 = vpack.c.b16 %v4150, %v4143
        %v5117 = vpack.c.b16 %v4158, %v4151
        %v5118 = vpack.c.b16 %v4159, %v4152
        %v5119 = vpack.c.b16 %v4160, %v4153
        %v5120 = vpack.c.b16 %v4161, %v4154
        %v5121 = vpack.c.b16 %v4162, %v4155
        %v5122 = vpack.c.b16 %v4163, %v4156
        %v5123 = vpack.c.b16 %v4164, %v4157
        %v5124 = vpack.c.b16 %v4172, %v4165
        %v5125 = vpack.c.b16 %v4173, %v4166
        %v5126 = vpack.c.b16 %v4174, %v4167
        %v5127 = vpack.c.b16 %v4175, %v4168
        %v5128 = vpack.c.b16 %v4176, %v4169
        %v5129 = vpack.c.b16 %v4177, %v4170
        %v5130 = vpack.c.b16 %v4178, %v4171
        %v5131 = vpack.c.b16 %v4186, %v4179
        %v5132 = vpack.c.b16 %v4187, %v4180
        %v5133 = vpack.c.b16 %v4188, %v4181
        %v5134 = vpack.c.b16 %v4189, %v4182
        %v5135 = vpack.c.b16 %v4190, %v4183
        %v5136 = vpack.c.b16 %v4191, %v4184
        %v5137 = vpack.c.b16 %v4192, %v4185
        %v5138 = vpack.c.b16 %v4200, %v4193
        %v5139 = vpack.c.b16 %v4201, %v4194
        %v5140 = vpack.c.b16 %v4202, %v4195
        %v5141 = vpack.c.b16 %v4203, %v4196
        %v5142 = vpack.c.b16 %v4204, %v4197
        %v5143 = vpack.c.b16 %v4205, %v4198
        %v5144 = vpack.c.b16 %v4206, %v4199
        %v5145 = vpack.c.b16 %v4214, %v4207
        %v5146 = vpack.c.b16 %v4215, %v4208
        %v5147 = vpack.c.b16 %v4216, %v4209
        %v5148 = vpack.c.b16 %v4217, %v4210
        %v5149 = vpack.c.b16 %v4218, %v4211
        %v5150 = vpack.c.b16 %v4219, %v4212
        %v5151 = vpack.c.b16 %v4220, %v4213
        %v5152 = vpack.c.b16 %v4228, %v4221
        %v5153 = vpack.c.b16 %v4229, %v4222
        %v5154 = vpack.c.b16 %v4230, %v4223
        %v5155 = vpack.c.b16 %v4231, %v4224
        %v5156 = vpack.c.b16 %v4232, %v4225
        %v5157 = vpack.c.b16 %v4233, %v4226
        %v5158 = vpack.c.b16 %v4234, %v4227
        %v5159 = vpack.c.b16 %v4242, %v4235
        %v5160 = vpack.c.b16 %v4243, %v4236
        %v5161 = vpack.c.b16 %v4244, %v4237
        %v5162 = vpack.c.b16 %v4245, %v4238
        %v5163 = vpack.c.b16 %v4246, %v4239
        %v5164 = vpack.c.b16 %v4247, %v4240
        %v5165 = vpack.c.b16 %v4248, %v4241
        %v5166 = vpack.c.b16 %v4256, %v4249
        %v5167 = vpack.c.b16 %v4257, %v4250
        %v5168 = vpack.c.b16 %v4258, %v4251
        %v5169 = vpack.c.b16 %v4259, %v4252
        %v5170 = vpack.c.b16 %v4260, %v4253
        %v5171 = vpack.c.b16 %v4261, %v4254
        %v5172 = vpack.c.b16 %v4262, %v4255
        %v5173 = vpack.c.b16 %v4270, %v4263
        %v5174 = vpack.c.b16 %v4271, %v4264
        %v5175 = vpack.c.b16 %v4272, %v4265
        %v5176 = vpack.c.b16 %v4273, %v4266
        %v5177 = vpack.c.b16 %v4274, %v4267
        %v5178 = vpack.c.b16 %v4275, %v4268
        %v5179 = vpack.c.b16 %v4276, %v4269
        %v5180 = vpack.c.b16 %v4284, %v4277
        %v5181 = vpack.c.b16 %v4285, %v4278
        %v5182 = vpack.c.b16 %v4286, %v4279
        %v5183 = vpack.c.b16 %v4287, %v4280
        %v5184 = vpack.c.b16 %v4288, %v4281
        %v5185 = vpack.c.b16 %v4289, %v4282
        %v5186 = vpack.c.b16 %v4290, %v4283
        %6083 = vmatprep.subr.bf16.mxu0 %v4341
        %6084 = vmatpush1.bf16.msra.mxu0 %v4340
        %6085 = vmatprep.subr.bf16.mxu0 %v4334
        %6086 = vmatpush1.bf16.msra.mxu0 %v4333
        %6087 = vmatprep.subr.bf16.mxu0 %v4327
        %6088 = vmatpush1.bf16.msra.mxu0 %v4326
        %6089 = vmatprep.subr.bf16.mxu0 %v4320
        %6090 = vmatpush1.bf16.msra.mxu0 %v4319
        %6091 = vmatprep.subr.bf16.mxu0 %v4313
        %6092 = vmatpush1.bf16.msra.mxu0 %v4312
        %6093 = vmatprep.subr.bf16.mxu0 %v4306
        %6094 = vmatpush1.bf16.msra.mxu0 %v4305
        %6095 = vmatprep.subr.bf16.mxu0 %v4299
        %6096 = vmatpush1.bf16.msra.mxu0 %v4298
        %6097 = vmatprep.subr.bf16.mxu0 %v4292
        %6098 = vmatpush1.bf16.msra.mxu0 %v4291
        %6099 = vmatprep.subr.bf16.mxu0 %v4397
        %6100 = vmatpush2.bf16.msra.mxu0 %v4396
        %6101 = vmatprep.subr.bf16.mxu0 %v4390
        %6102 = vmatpush2.bf16.msra.mxu0 %v4389
        %6103 = vmatprep.subr.bf16.mxu0 %v4383
        %6104 = vmatpush2.bf16.msra.mxu0 %v4382
        %6105 = vmatprep.subr.bf16.mxu0 %v4376
        %6106 = vmatpush2.bf16.msra.mxu0 %v4375
        %6107 = vmatprep.subr.bf16.mxu0 %v4369
        %6108 = vmatpush2.bf16.msra.mxu0 %v4368
        %6109 = vmatprep.subr.bf16.mxu0 %v4362
        %6110 = vmatpush2.bf16.msra.mxu0 %v4361
        %6111 = vmatprep.subr.bf16.mxu0 %v4355
        %6112 = vmatpush2.bf16.msra.mxu0 %v4354
        %6113 = vmatprep.subr.bf16.mxu0 %v4348
        %6114 = vmatpush2.bf16.msra.mxu0 %v4347
        %6115 = vmatprep.mubr.bf16.mxu0 %v1444
        %6116 = vmatmul.mubr.bf16.gmra.mxu0 %v1443
        %v6117 = vpop.f32.mrf.mxu0
        %v6118 = vadd.f32 0.0, %v6117
        %v6119 = vpop.f32.mrf.mxu0
        %v6120 = vadd.f32 0.0, %v6119
        %v6121 = vpop.f32.mrf.mxu0
        %v6122 = vadd.f32 0.0, %v6121
        %v6123 = vpop.f32.mrf.mxu0
        %v6124 = vadd.f32 0.0, %v6123
        %6125 = vdwg.mxu0
        %6126 = vmatprep.subr.bf16.mxu0 %v4453
        %6127 = vmatpush1.bf16.msra.mxu0 %v4452
        %6128 = vmatprep.subr.bf16.mxu0 %v4446
        %6129 = vmatpush1.bf16.msra.mxu0 %v4445
        %6130 = vmatprep.subr.bf16.mxu0 %v4439
        %6131 = vmatpush1.bf16.msra.mxu0 %v4438
        %6132 = vmatprep.subr.bf16.mxu0 %v4432
        %6133 = vmatpush1.bf16.msra.mxu0 %v4431
        %6134 = vmatprep.subr.bf16.mxu0 %v4425
        %6135 = vmatpush1.bf16.msra.mxu0 %v4424
        %6136 = vmatprep.subr.bf16.mxu0 %v4418
        %6137 = vmatpush1.bf16.msra.mxu0 %v4417
        %6138 = vmatprep.subr.bf16.mxu0 %v4411
        %6139 = vmatpush1.bf16.msra.mxu0 %v4410
        %6140 = vmatprep.subr.bf16.mxu0 %v4404
        %6141 = vmatpush1.bf16.msra.mxu0 %v4403
        %6142 = vmatprep.subr.bf16.mxu0 %v4509
        %6143 = vmatpush2.bf16.msra.mxu0 %v4508
        %6144 = vmatprep.subr.bf16.mxu0 %v4502
        %6145 = vmatpush2.bf16.msra.mxu0 %v4501
        %6146 = vmatprep.subr.bf16.mxu0 %v4495
        %6147 = vmatpush2.bf16.msra.mxu0 %v4494
        %6148 = vmatprep.subr.bf16.mxu0 %v4488
        %6149 = vmatpush2.bf16.msra.mxu0 %v4487
        %6150 = vmatprep.subr.bf16.mxu0 %v4481
        %6151 = vmatpush2.bf16.msra.mxu0 %v4480
        %6152 = vmatprep.subr.bf16.mxu0 %v4474
        %6153 = vmatpush2.bf16.msra.mxu0 %v4473
        %6154 = vmatprep.subr.bf16.mxu0 %v4467
        %6155 = vmatpush2.bf16.msra.mxu0 %v4466
        %6156 = vmatprep.subr.bf16.mxu0 %v4460
        %6157 = vmatpush2.bf16.msra.mxu0 %v4459
        %6158 = vmatprep.mubr.bf16.mxu0 %v1446
        %6159 = vmatmul.mubr.bf16.gmra.mxu0 %v1445
        %v6160 = vpop.f32.mrf.mxu0
        %v6161 = vadd.f32 %v6118, %v6160
        %v6162 = vpop.f32.mrf.mxu0
        %v6163 = vadd.f32 %v6120, %v6162
        %v6164 = vpop.f32.mrf.mxu0
        %v6165 = vadd.f32 %v6122, %v6164
        %v6166 = vpop.f32.mrf.mxu0
        %v6167 = vadd.f32 %v6124, %v6166
        %6168 = vdwg.mxu0
        %6169 = vmatprep.subr.bf16.mxu0 %v4565
        %6170 = vmatpush1.bf16.msra.mxu0 %v4564
        %6171 = vmatprep.subr.bf16.mxu0 %v4558
        %6172 = vmatpush1.bf16.msra.mxu0 %v4557
        %6173 = vmatprep.subr.bf16.mxu0 %v4551
        %6174 = vmatpush1.bf16.msra.mxu0 %v4550
        %6175 = vmatprep.subr.bf16.mxu0 %v4544
        %6176 = vmatpush1.bf16.msra.mxu0 %v4543
        %6177 = vmatprep.subr.bf16.mxu0 %v4537
        %6178 = vmatpush1.bf16.msra.mxu0 %v4536
        %6179 = vmatprep.subr.bf16.mxu0 %v4530
        %6180 = vmatpush1.bf16.msra.mxu0 %v4529
        %6181 = vmatprep.subr.bf16.mxu0 %v4523
        %6182 = vmatpush1.bf16.msra.mxu0 %v4522
        %6183 = vmatprep.subr.bf16.mxu0 %v4516
        %6184 = vmatpush1.bf16.msra.mxu0 %v4515
        %6185 = vmatprep.subr.bf16.mxu0 %v4621
        %6186 = vmatpush2.bf16.msra.mxu0 %v4620
        %6187 = vmatprep.subr.bf16.mxu0 %v4614
        %6188 = vmatpush2.bf16.msra.mxu0 %v4613
        %6189 = vmatprep.subr.bf16.mxu0 %v4607
        %6190 = vmatpush2.bf16.msra.mxu0 %v4606
        %6191 = vmatprep.subr.bf16.mxu0 %v4600
        %6192 = vmatpush2.bf16.msra.mxu0 %v4599
        %6193 = vmatprep.subr.bf16.mxu0 %v4593
        %6194 = vmatpush2.bf16.msra.mxu0 %v4592
        %6195 = vmatprep.subr.bf16.mxu0 %v4586
        %6196 = vmatpush2.bf16.msra.mxu0 %v4585
        %6197 = vmatprep.subr.bf16.mxu0 %v4579
        %6198 = vmatpush2.bf16.msra.mxu0 %v4578
        %6199 = vmatprep.subr.bf16.mxu0 %v4572
        %6200 = vmatpush2.bf16.msra.mxu0 %v4571
        %6201 = vmatprep.mubr.bf16.mxu0 %v1448
        %6202 = vmatmul.mubr.bf16.gmra.mxu0 %v1447
        %v6203 = vpop.f32.mrf.mxu0
        %v6204 = vadd.f32 %v6161, %v6203
        %v6205 = vpop.f32.mrf.mxu0
        %v6206 = vadd.f32 %v6163, %v6205
        %v6207 = vpop.f32.mrf.mxu0
        %v6208 = vadd.f32 %v6165, %v6207
        %v6209 = vpop.f32.mrf.mxu0
        %v6210 = vadd.f32 %v6167, %v6209
        %6211 = vdwg.mxu0
        %6212 = vmatprep.subr.bf16.mxu0 %v4677
        %6213 = vmatpush1.bf16.msra.mxu0 %v4676
        %6214 = vmatprep.subr.bf16.mxu0 %v4670
        %6215 = vmatpush1.bf16.msra.mxu0 %v4669
        %6216 = vmatprep.subr.bf16.mxu0 %v4663
        %6217 = vmatpush1.bf16.msra.mxu0 %v4662
        %6218 = vmatprep.subr.bf16.mxu0 %v4656
        %6219 = vmatpush1.bf16.msra.mxu0 %v4655
        %6220 = vmatprep.subr.bf16.mxu0 %v4649
        %6221 = vmatpush1.bf16.msra.mxu0 %v4648
        %6222 = vmatprep.subr.bf16.mxu0 %v4642
        %6223 = vmatpush1.bf16.msra.mxu0 %v4641
        %6224 = vmatprep.subr.bf16.mxu0 %v4635
        %6225 = vmatpush1.bf16.msra.mxu0 %v4634
        %6226 = vmatprep.subr.bf16.mxu0 %v4628
        %6227 = vmatpush1.bf16.msra.mxu0 %v4627
        %6228 = vmatprep.subr.bf16.mxu0 %v4733
        %6229 = vmatpush2.bf16.msra.mxu0 %v4732
        %6230 = vmatprep.subr.bf16.mxu0 %v4726
        %6231 = vmatpush2.bf16.msra.mxu0 %v4725
        %6232 = vmatprep.subr.bf16.mxu0 %v4719
        %6233 = vmatpush2.bf16.msra.mxu0 %v4718
        %6234 = vmatprep.subr.bf16.mxu0 %v4712
        %6235 = vmatpush2.bf16.msra.mxu0 %v4711
        %6236 = vmatprep.subr.bf16.mxu0 %v4705
        %6237 = vmatpush2.bf16.msra.mxu0 %v4704
        %6238 = vmatprep.subr.bf16.mxu0 %v4698
        %6239 = vmatpush2.bf16.msra.mxu0 %v4697
        %6240 = vmatprep.subr.bf16.mxu0 %v4691
        %6241 = vmatpush2.bf16.msra.mxu0 %v4690
        %6242 = vmatprep.subr.bf16.mxu0 %v4684
        %6243 = vmatpush2.bf16.msra.mxu0 %v4683
        %6244 = vmatprep.mubr.bf16.mxu0 %v1450
        %6245 = vmatmul.mubr.bf16.gmra.mxu0 %v1449
        %v6246 = vpop.f32.mrf.mxu0
        %v6247 = vadd.f32 %v6204, %v6246
        %v6248 = vpop.f32.mrf.mxu0
        %v6249 = vadd.f32 %v6206, %v6248
        %v6250 = vpop.f32.mrf.mxu0
        %v6251 = vadd.f32 %v6208, %v6250
        %v6252 = vpop.f32.mrf.mxu0
        %v6253 = vadd.f32 %v6210, %v6252
        %6254 = vdwg.mxu0
        %6255 = vmatprep.subr.bf16.mxu0 %v4789
        %6256 = vmatpush1.bf16.msra.mxu0 %v4788
        %6257 = vmatprep.subr.bf16.mxu0 %v4782
        %6258 = vmatpush1.bf16.msra.mxu0 %v4781
        %6259 = vmatprep.subr.bf16.mxu0 %v4775
        %6260 = vmatpush1.bf16.msra.mxu0 %v4774
        %6261 = vmatprep.subr.bf16.mxu0 %v4768
        %6262 = vmatpush1.bf16.msra.mxu0 %v4767
        %6263 = vmatprep.subr.bf16.mxu0 %v4761
        %6264 = vmatpush1.bf16.msra.mxu0 %v4760
        %6265 = vmatprep.subr.bf16.mxu0 %v4754
        %6266 = vmatpush1.bf16.msra.mxu0 %v4753
        %6267 = vmatprep.subr.bf16.mxu0 %v4747
        %6268 = vmatpush1.bf16.msra.mxu0 %v4746
        %6269 = vmatprep.subr.bf16.mxu0 %v4740
        %6270 = vmatpush1.bf16.msra.mxu0 %v4739
        %6271 = vmatprep.subr.bf16.mxu0 %v4845
        %6272 = vmatpush2.bf16.msra.mxu0 %v4844
        %6273 = vmatprep.subr.bf16.mxu0 %v4838
        %6274 = vmatpush2.bf16.msra.mxu0 %v4837
        %6275 = vmatprep.subr.bf16.mxu0 %v4831
        %6276 = vmatpush2.bf16.msra.mxu0 %v4830
        %6277 = vmatprep.subr.bf16.mxu0 %v4824
        %6278 = vmatpush2.bf16.msra.mxu0 %v4823
        %6279 = vmatprep.subr.bf16.mxu0 %v4817
        %6280 = vmatpush2.bf16.msra.mxu0 %v4816
        %6281 = vmatprep.subr.bf16.mxu0 %v4810
        %6282 = vmatpush2.bf16.msra.mxu0 %v4809
        %6283 = vmatprep.subr.bf16.mxu0 %v4803
        %6284 = vmatpush2.bf16.msra.mxu0 %v4802
        %6285 = vmatprep.subr.bf16.mxu0 %v4796
        %6286 = vmatpush2.bf16.msra.mxu0 %v4795
        %6287 = vmatprep.mubr.bf16.mxu0 %v1452
        %6288 = vmatmul.mubr.bf16.gmra.mxu0 %v1451
        %v6289 = vpop.f32.mrf.mxu0
        %v6290 = vadd.f32 %v6247, %v6289
        %v6291 = vpop.f32.mrf.mxu0
        %v6292 = vadd.f32 %v6249, %v6291
        %v6293 = vpop.f32.mrf.mxu0
        %v6294 = vadd.f32 %v6251, %v6293
        %v6295 = vpop.f32.mrf.mxu0
        %v6296 = vadd.f32 %v6253, %v6295
        %6297 = vdwg.mxu0
        %6298 = vmatprep.subr.bf16.mxu0 %v4901
        %6299 = vmatpush1.bf16.msra.mxu0 %v4900
        %6300 = vmatprep.subr.bf16.mxu0 %v4894
        %6301 = vmatpush1.bf16.msra.mxu0 %v4893
        %6302 = vmatprep.subr.bf16.mxu0 %v4887
        %6303 = vmatpush1.bf16.msra.mxu0 %v4886
        %6304 = vmatprep.subr.bf16.mxu0 %v4880
        %6305 = vmatpush1.bf16.msra.mxu0 %v4879
        %6306 = vmatprep.subr.bf16.mxu0 %v4873
        %6307 = vmatpush1.bf16.msra.mxu0 %v4872
        %6308 = vmatprep.subr.bf16.mxu0 %v4866
        %6309 = vmatpush1.bf16.msra.mxu0 %v4865
        %6310 = vmatprep.subr.bf16.mxu0 %v4859
        %6311 = vmatpush1.bf16.msra.mxu0 %v4858
        %6312 = vmatprep.subr.bf16.mxu0 %v4852
        %6313 = vmatpush1.bf16.msra.mxu0 %v4851
        %6314 = vmatprep.subr.bf16.mxu0 %v4957
        %6315 = vmatpush2.bf16.msra.mxu0 %v4956
        %6316 = vmatprep.subr.bf16.mxu0 %v4950
        %6317 = vmatpush2.bf16.msra.mxu0 %v4949
        %6318 = vmatprep.subr.bf16.mxu0 %v4943
        %6319 = vmatpush2.bf16.msra.mxu0 %v4942
        %6320 = vmatprep.subr.bf16.mxu0 %v4936
        %6321 = vmatpush2.bf16.msra.mxu0 %v4935
        %6322 = vmatprep.subr.bf16.mxu0 %v4929
        %6323 = vmatpush2.bf16.msra.mxu0 %v4928
        %6324 = vmatprep.subr.bf16.mxu0 %v4922
        %6325 = vmatpush2.bf16.msra.mxu0 %v4921
        %6326 = vmatprep.subr.bf16.mxu0 %v4915
        %6327 = vmatpush2.bf16.msra.mxu0 %v4914
        %6328 = vmatprep.subr.bf16.mxu0 %v4908
        %6329 = vmatpush2.bf16.msra.mxu0 %v4907
        %6330 = vmatprep.mubr.bf16.mxu0 %v1454
        %6331 = vmatmul.mubr.bf16.gmra.mxu0 %v1453
        %v6332 = vpop.f32.mrf.mxu0
        %v6333 = vadd.f32 %v6290, %v6332
        %v6334 = vpop.f32.mrf.mxu0
        %v6335 = vadd.f32 %v6292, %v6334
        %v6336 = vpop.f32.mrf.mxu0
        %v6337 = vadd.f32 %v6294, %v6336
        %v6338 = vpop.f32.mrf.mxu0
        %v6339 = vadd.f32 %v6296, %v6338
        %6340 = vdwg.mxu0
        %6341 = vmatprep.subr.bf16.mxu0 %v5013
        %6342 = vmatpush1.bf16.msra.mxu0 %v5012
        %6343 = vmatprep.subr.bf16.mxu0 %v5006
        %6344 = vmatpush1.bf16.msra.mxu0 %v5005
        %6345 = vmatprep.subr.bf16.mxu0 %v4999
        %6346 = vmatpush1.bf16.msra.mxu0 %v4998
        %6347 = vmatprep.subr.bf16.mxu0 %v4992
        %6348 = vmatpush1.bf16.msra.mxu0 %v4991
        %6349 = vmatprep.subr.bf16.mxu0 %v4985
        %6350 = vmatpush1.bf16.msra.mxu0 %v4984
        %6351 = vmatprep.subr.bf16.mxu0 %v4978
        %6352 = vmatpush1.bf16.msra.mxu0 %v4977
        %6353 = vmatprep.subr.bf16.mxu0 %v4971
        %6354 = vmatpush1.bf16.msra.mxu0 %v4970
        %6355 = vmatprep.subr.bf16.mxu0 %v4964
        %6356 = vmatpush1.bf16.msra.mxu0 %v4963
        %6357 = vmatprep.subr.bf16.mxu0 %v5069
        %6358 = vmatpush2.bf16.msra.mxu0 %v5068
        %6359 = vmatprep.subr.bf16.mxu0 %v5062
        %6360 = vmatpush2.bf16.msra.mxu0 %v5061
        %6361 = vmatprep.subr.bf16.mxu0 %v5055
        %6362 = vmatpush2.bf16.msra.mxu0 %v5054
        %6363 = vmatprep.subr.bf16.mxu0 %v5048
        %6364 = vmatpush2.bf16.msra.mxu0 %v5047
        %6365 = vmatprep.subr.bf16.mxu0 %v5041
        %6366 = vmatpush2.bf16.msra.mxu0 %v5040
        %6367 = vmatprep.subr.bf16.mxu0 %v5034
        %6368 = vmatpush2.bf16.msra.mxu0 %v5033
        %6369 = vmatprep.subr.bf16.mxu0 %v5027
        %6370 = vmatpush2.bf16.msra.mxu0 %v5026
        %6371 = vmatprep.subr.bf16.mxu0 %v5020
        %6372 = vmatpush2.bf16.msra.mxu0 %v5019
        %6373 = vmatprep.mubr.bf16.mxu0 %v1456
        %6374 = vmatmul.mubr.bf16.gmra.mxu0 %v1455
        %v6375 = vpop.f32.mrf.mxu0
        %v6376 = vadd.f32 %v6333, %v6375
        %v6377 = vpop.f32.mrf.mxu0
        %v6378 = vadd.f32 %v6335, %v6377
        %v6379 = vpop.f32.mrf.mxu0
        %v6380 = vadd.f32 %v6337, %v6379
        %v6381 = vpop.f32.mrf.mxu0
        %v6382 = vadd.f32 %v6339, %v6381
        %6383 = vdwg.mxu0
        %6384 = vmatprep.subr.bf16.mxu0 %v5125
        %6385 = vmatpush1.bf16.msra.mxu0 %v5124
        %6386 = vmatprep.subr.bf16.mxu0 %v5118
        %6387 = vmatpush1.bf16.msra.mxu0 %v5117
        %6388 = vmatprep.subr.bf16.mxu0 %v5111
        %6389 = vmatpush1.bf16.msra.mxu0 %v5110
        %6390 = vmatprep.subr.bf16.mxu0 %v5104
        %6391 = vmatpush1.bf16.msra.mxu0 %v5103
        %6392 = vmatprep.subr.bf16.mxu0 %v5097
        %6393 = vmatpush1.bf16.msra.mxu0 %v5096
        %6394 = vmatprep.subr.bf16.mxu0 %v5090
        %6395 = vmatpush1.bf16.msra.mxu0 %v5089
        %6396 = vmatprep.subr.bf16.mxu0 %v5083
        %6397 = vmatpush1.bf16.msra.mxu0 %v5082
        %6398 = vmatprep.subr.bf16.mxu0 %v5076
        %6399 = vmatpush1.bf16.msra.mxu0 %v5075
        %6400 = vmatprep.subr.bf16.mxu0 %v5181
        %6401 = vmatpush2.bf16.msra.mxu0 %v5180
        %6402 = vmatprep.subr.bf16.mxu0 %v5174
        %6403 = vmatpush2.bf16.msra.mxu0 %v5173
        %6404 = vmatprep.subr.bf16.mxu0 %v5167
        %6405 = vmatpush2.bf16.msra.mxu0 %v5166
        %6406 = vmatprep.subr.bf16.mxu0 %v5160
        %6407 = vmatpush2.bf16.msra.mxu0 %v5159
        %6408 = vmatprep.subr.bf16.mxu0 %v5153
        %6409 = vmatpush2.bf16.msra.mxu0 %v5152
        %6410 = vmatprep.subr.bf16.mxu0 %v5146
        %6411 = vmatpush2.bf16.msra.mxu0 %v5145
        %6412 = vmatprep.subr.bf16.mxu0 %v5139
        %6413 = vmatpush2.bf16.msra.mxu0 %v5138
        %6414 = vmatprep.subr.bf16.mxu0 %v5132
        %6415 = vmatpush2.bf16.msra.mxu0 %v5131
        %6416 = vmatprep.mubr.bf16.mxu0 %v1458
        %6417 = vmatmul.mubr.bf16.gmra.mxu0 %v1457
        %v6418 = vpop.f32.mrf.mxu0
        %v6419 = vadd.f32 %v6376, %v6418
        %v6420 = vpop.f32.mrf.mxu0
        %v6421 = vadd.f32 %v6378, %v6420
        %v6422 = vpop.f32.mrf.mxu0
        %v6423 = vadd.f32 %v6380, %v6422
        %v6424 = vpop.f32.mrf.mxu0
        %v6425 = vadd.f32 %v6382, %v6424
        %6426 = vdwg.mxu0
        %6427 = vmatprep.subr.bf16.mxu0 %v4343
        %6428 = vmatpush1.bf16.msra.mxu0 %v4342
        %6429 = vmatprep.subr.bf16.mxu0 %v4336
        %6430 = vmatpush1.bf16.msra.mxu0 %v4335
        %6431 = vmatprep.subr.bf16.mxu0 %v4329
        %6432 = vmatpush1.bf16.msra.mxu0 %v4328
        %6433 = vmatprep.subr.bf16.mxu0 %v4322
        %6434 = vmatpush1.bf16.msra.mxu0 %v4321
        %6435 = vmatprep.subr.bf16.mxu0 %v4315
        %6436 = vmatpush1.bf16.msra.mxu0 %v4314
        %6437 = vmatprep.subr.bf16.mxu0 %v4308
        %6438 = vmatpush1.bf16.msra.mxu0 %v4307
        %6439 = vmatprep.subr.bf16.mxu0 %v4301
        %6440 = vmatpush1.bf16.msra.mxu0 %v4300
        %6441 = vmatprep.subr.bf16.mxu0 %v4294
        %6442 = vmatpush1.bf16.msra.mxu0 %v4293
        %6443 = vmatprep.subr.bf16.mxu0 %v4399
        %6444 = vmatpush2.bf16.msra.mxu0 %v4398
        %6445 = vmatprep.subr.bf16.mxu0 %v4392
        %6446 = vmatpush2.bf16.msra.mxu0 %v4391
        %6447 = vmatprep.subr.bf16.mxu0 %v4385
        %6448 = vmatpush2.bf16.msra.mxu0 %v4384
        %6449 = vmatprep.subr.bf16.mxu0 %v4378
        %6450 = vmatpush2.bf16.msra.mxu0 %v4377
        %6451 = vmatprep.subr.bf16.mxu0 %v4371
        %6452 = vmatpush2.bf16.msra.mxu0 %v4370
        %6453 = vmatprep.subr.bf16.mxu0 %v4364
        %6454 = vmatpush2.bf16.msra.mxu0 %v4363
        %6455 = vmatprep.subr.bf16.mxu0 %v4357
        %6456 = vmatpush2.bf16.msra.mxu0 %v4356
        %6457 = vmatprep.subr.bf16.mxu0 %v4350
        %6458 = vmatpush2.bf16.msra.mxu0 %v4349
        %6459 = vmatprep.mubr.bf16.mxu0 %v1444
        %6460 = vmatmul.mubr.bf16.gmra.mxu0 %v1443
        %v6461 = vpop.f32.mrf.mxu0
        %v6462 = vadd.f32 0.0, %v6461
        %v6463 = vpop.f32.mrf.mxu0
        %v6464 = vadd.f32 0.0, %v6463
        %v6465 = vpop.f32.mrf.mxu0
        %v6466 = vadd.f32 0.0, %v6465
        %v6467 = vpop.f32.mrf.mxu0
        %v6468 = vadd.f32 0.0, %v6467
        %6469 = vdwg.mxu0
        %6470 = vmatprep.subr.bf16.mxu0 %v4455
        %6471 = vmatpush1.bf16.msra.mxu0 %v4454
        %6472 = vmatprep.subr.bf16.mxu0 %v4448
        %6473 = vmatpush1.bf16.msra.mxu0 %v4447
        %6474 = vmatprep.subr.bf16.mxu0 %v4441
        %6475 = vmatpush1.bf16.msra.mxu0 %v4440
        %6476 = vmatprep.subr.bf16.mxu0 %v4434
        %6477 = vmatpush1.bf16.msra.mxu0 %v4433
        %6478 = vmatprep.subr.bf16.mxu0 %v4427
        %6479 = vmatpush1.bf16.msra.mxu0 %v4426
        %6480 = vmatprep.subr.bf16.mxu0 %v4420
        %6481 = vmatpush1.bf16.msra.mxu0 %v4419
        %6482 = vmatprep.subr.bf16.mxu0 %v4413
        %6483 = vmatpush1.bf16.msra.mxu0 %v4412
        %6484 = vmatprep.subr.bf16.mxu0 %v4406
        %6485 = vmatpush1.bf16.msra.mxu0 %v4405
        %6486 = vmatprep.subr.bf16.mxu0 %v4511
        %6487 = vmatpush2.bf16.msra.mxu0 %v4510
        %6488 = vmatprep.subr.bf16.mxu0 %v4504
        %6489 = vmatpush2.bf16.msra.mxu0 %v4503
        %6490 = vmatprep.subr.bf16.mxu0 %v4497
        %6491 = vmatpush2.bf16.msra.mxu0 %v4496
        %6492 = vmatprep.subr.bf16.mxu0 %v4490
        %6493 = vmatpush2.bf16.msra.mxu0 %v4489
        %6494 = vmatprep.subr.bf16.mxu0 %v4483
        %6495 = vmatpush2.bf16.msra.mxu0 %v4482
        %6496 = vmatprep.subr.bf16.mxu0 %v4476
        %6497 = vmatpush2.bf16.msra.mxu0 %v4475
        %6498 = vmatprep.subr.bf16.mxu0 %v4469
        %6499 = vmatpush2.bf16.msra.mxu0 %v4468
        %6500 = vmatprep.subr.bf16.mxu0 %v4462
        %6501 = vmatpush2.bf16.msra.mxu0 %v4461
        %6502 = vmatprep.mubr.bf16.mxu0 %v1446
        %6503 = vmatmul.mubr.bf16.gmra.mxu0 %v1445
        %v6504 = vpop.f32.mrf.mxu0
        %v6505 = vadd.f32 %v6462, %v6504
        %v6506 = vpop.f32.mrf.mxu0
        %v6507 = vadd.f32 %v6464, %v6506
        %v6508 = vpop.f32.mrf.mxu0
        %v6509 = vadd.f32 %v6466, %v6508
        %v6510 = vpop.f32.mrf.mxu0
        %v6511 = vadd.f32 %v6468, %v6510
        %6512 = vdwg.mxu0
        %6513 = vmatprep.subr.bf16.mxu0 %v4567
        %6514 = vmatpush1.bf16.msra.mxu0 %v4566
        %6515 = vmatprep.subr.bf16.mxu0 %v4560
        %6516 = vmatpush1.bf16.msra.mxu0 %v4559
        %6517 = vmatprep.subr.bf16.mxu0 %v4553
        %6518 = vmatpush1.bf16.msra.mxu0 %v4552
        %6519 = vmatprep.subr.bf16.mxu0 %v4546
        %6520 = vmatpush1.bf16.msra.mxu0 %v4545
        %6521 = vmatprep.subr.bf16.mxu0 %v4539
        %6522 = vmatpush1.bf16.msra.mxu0 %v4538
        %6523 = vmatprep.subr.bf16.mxu0 %v4532
        %6524 = vmatpush1.bf16.msra.mxu0 %v4531
        %6525 = vmatprep.subr.bf16.mxu0 %v4525
        %6526 = vmatpush1.bf16.msra.mxu0 %v4524
        %6527 = vmatprep.subr.bf16.mxu0 %v4518
        %6528 = vmatpush1.bf16.msra.mxu0 %v4517
        %6529 = vmatprep.subr.bf16.mxu0 %v4623
        %6530 = vmatpush2.bf16.msra.mxu0 %v4622
        %6531 = vmatprep.subr.bf16.mxu0 %v4616
        %6532 = vmatpush2.bf16.msra.mxu0 %v4615
        %6533 = vmatprep.subr.bf16.mxu0 %v4609
        %6534 = vmatpush2.bf16.msra.mxu0 %v4608
        %6535 = vmatprep.subr.bf16.mxu0 %v4602
        %6536 = vmatpush2.bf16.msra.mxu0 %v4601
        %6537 = vmatprep.subr.bf16.mxu0 %v4595
        %6538 = vmatpush2.bf16.msra.mxu0 %v4594
        %6539 = vmatprep.subr.bf16.mxu0 %v4588
        %6540 = vmatpush2.bf16.msra.mxu0 %v4587
        %6541 = vmatprep.subr.bf16.mxu0 %v4581
        %6542 = vmatpush2.bf16.msra.mxu0 %v4580
        %6543 = vmatprep.subr.bf16.mxu0 %v4574
        %6544 = vmatpush2.bf16.msra.mxu0 %v4573
        %6545 = vmatprep.mubr.bf16.mxu0 %v1448
        %6546 = vmatmul.mubr.bf16.gmra.mxu0 %v1447
        %v6547 = vpop.f32.mrf.mxu0
        %v6548 = vadd.f32 %v6505, %v6547
        %v6549 = vpop.f32.mrf.mxu0
        %v6550 = vadd.f32 %v6507, %v6549
        %v6551 = vpop.f32.mrf.mxu0
        %v6552 = vadd.f32 %v6509, %v6551
        %v6553 = vpop.f32.mrf.mxu0
        %v6554 = vadd.f32 %v6511, %v6553
        %6555 = vdwg.mxu0
        %6556 = vmatprep.subr.bf16.mxu0 %v4679
        %6557 = vmatpush1.bf16.msra.mxu0 %v4678
        %6558 = vmatprep.subr.bf16.mxu0 %v4672
        %6559 = vmatpush1.bf16.msra.mxu0 %v4671
        %6560 = vmatprep.subr.bf16.mxu0 %v4665
        %6561 = vmatpush1.bf16.msra.mxu0 %v4664
        %6562 = vmatprep.subr.bf16.mxu0 %v4658
        %6563 = vmatpush1.bf16.msra.mxu0 %v4657
        %6564 = vmatprep.subr.bf16.mxu0 %v4651
        %6565 = vmatpush1.bf16.msra.mxu0 %v4650
        %6566 = vmatprep.subr.bf16.mxu0 %v4644
        %6567 = vmatpush1.bf16.msra.mxu0 %v4643
        %6568 = vmatprep.subr.bf16.mxu0 %v4637
        %6569 = vmatpush1.bf16.msra.mxu0 %v4636
        %6570 = vmatprep.subr.bf16.mxu0 %v4630
        %6571 = vmatpush1.bf16.msra.mxu0 %v4629
        %6572 = vmatprep.subr.bf16.mxu0 %v4735
        %6573 = vmatpush2.bf16.msra.mxu0 %v4734
        %6574 = vmatprep.subr.bf16.mxu0 %v4728
        %6575 = vmatpush2.bf16.msra.mxu0 %v4727
        %6576 = vmatprep.subr.bf16.mxu0 %v4721
        %6577 = vmatpush2.bf16.msra.mxu0 %v4720
        %6578 = vmatprep.subr.bf16.mxu0 %v4714
        %6579 = vmatpush2.bf16.msra.mxu0 %v4713
        %6580 = vmatprep.subr.bf16.mxu0 %v4707
        %6581 = vmatpush2.bf16.msra.mxu0 %v4706
        %6582 = vmatprep.subr.bf16.mxu0 %v4700
        %6583 = vmatpush2.bf16.msra.mxu0 %v4699
        %6584 = vmatprep.subr.bf16.mxu0 %v4693
        %6585 = vmatpush2.bf16.msra.mxu0 %v4692
        %6586 = vmatprep.subr.bf16.mxu0 %v4686
        %6587 = vmatpush2.bf16.msra.mxu0 %v4685
        %6588 = vmatprep.mubr.bf16.mxu0 %v1450
        %6589 = vmatmul.mubr.bf16.gmra.mxu0 %v1449
        %v6590 = vpop.f32.mrf.mxu0
        %v6591 = vadd.f32 %v6548, %v6590
        %v6592 = vpop.f32.mrf.mxu0
        %v6593 = vadd.f32 %v6550, %v6592
        %v6594 = vpop.f32.mrf.mxu0
        %v6595 = vadd.f32 %v6552, %v6594
        %v6596 = vpop.f32.mrf.mxu0
        %v6597 = vadd.f32 %v6554, %v6596
        %6598 = vdwg.mxu0
        %6599 = vmatprep.subr.bf16.mxu0 %v4791
        %6600 = vmatpush1.bf16.msra.mxu0 %v4790
        %6601 = vmatprep.subr.bf16.mxu0 %v4784
        %6602 = vmatpush1.bf16.msra.mxu0 %v4783
        %6603 = vmatprep.subr.bf16.mxu0 %v4777
        %6604 = vmatpush1.bf16.msra.mxu0 %v4776
        %6605 = vmatprep.subr.bf16.mxu0 %v4770
        %6606 = vmatpush1.bf16.msra.mxu0 %v4769
        %6607 = vmatprep.subr.bf16.mxu0 %v4763
        %6608 = vmatpush1.bf16.msra.mxu0 %v4762
        %6609 = vmatprep.subr.bf16.mxu0 %v4756
        %6610 = vmatpush1.bf16.msra.mxu0 %v4755
        %6611 = vmatprep.subr.bf16.mxu0 %v4749
        %6612 = vmatpush1.bf16.msra.mxu0 %v4748
        %6613 = vmatprep.subr.bf16.mxu0 %v4742
        %6614 = vmatpush1.bf16.msra.mxu0 %v4741
        %6615 = vmatprep.subr.bf16.mxu0 %v4847
        %6616 = vmatpush2.bf16.msra.mxu0 %v4846
        %6617 = vmatprep.subr.bf16.mxu0 %v4840
        %6618 = vmatpush2.bf16.msra.mxu0 %v4839
        %6619 = vmatprep.subr.bf16.mxu0 %v4833
        %6620 = vmatpush2.bf16.msra.mxu0 %v4832
        %6621 = vmatprep.subr.bf16.mxu0 %v4826
        %6622 = vmatpush2.bf16.msra.mxu0 %v4825
        %6623 = vmatprep.subr.bf16.mxu0 %v4819
        %6624 = vmatpush2.bf16.msra.mxu0 %v4818
        %6625 = vmatprep.subr.bf16.mxu0 %v4812
        %6626 = vmatpush2.bf16.msra.mxu0 %v4811
        %6627 = vmatprep.subr.bf16.mxu0 %v4805
        %6628 = vmatpush2.bf16.msra.mxu0 %v4804
        %6629 = vmatprep.subr.bf16.mxu0 %v4798
        %6630 = vmatpush2.bf16.msra.mxu0 %v4797
        %6631 = vmatprep.mubr.bf16.mxu0 %v1452
        %6632 = vmatmul.mubr.bf16.gmra.mxu0 %v1451
        %v6633 = vpop.f32.mrf.mxu0
        %v6634 = vadd.f32 %v6591, %v6633
        %v6635 = vpop.f32.mrf.mxu0
        %v6636 = vadd.f32 %v6593, %v6635
        %v6637 = vpop.f32.mrf.mxu0
        %v6638 = vadd.f32 %v6595, %v6637
        %v6639 = vpop.f32.mrf.mxu0
        %v6640 = vadd.f32 %v6597, %v6639
        %6641 = vdwg.mxu0
        %6642 = vmatprep.subr.bf16.mxu0 %v4903
        %6643 = vmatpush1.bf16.msra.mxu0 %v4902
        %6644 = vmatprep.subr.bf16.mxu0 %v4896
        %6645 = vmatpush1.bf16.msra.mxu0 %v4895
        %6646 = vmatprep.subr.bf16.mxu0 %v4889
        %6647 = vmatpush1.bf16.msra.mxu0 %v4888
        %6648 = vmatprep.subr.bf16.mxu0 %v4882
        %6649 = vmatpush1.bf16.msra.mxu0 %v4881
        %6650 = vmatprep.subr.bf16.mxu0 %v4875
        %6651 = vmatpush1.bf16.msra.mxu0 %v4874
        %6652 = vmatprep.subr.bf16.mxu0 %v4868
        %6653 = vmatpush1.bf16.msra.mxu0 %v4867
        %6654 = vmatprep.subr.bf16.mxu0 %v4861
        %6655 = vmatpush1.bf16.msra.mxu0 %v4860
        %6656 = vmatprep.subr.bf16.mxu0 %v4854
        %6657 = vmatpush1.bf16.msra.mxu0 %v4853
        %6658 = vmatprep.subr.bf16.mxu0 %v4959
        %6659 = vmatpush2.bf16.msra.mxu0 %v4958
        %6660 = vmatprep.subr.bf16.mxu0 %v4952
        %6661 = vmatpush2.bf16.msra.mxu0 %v4951
        %6662 = vmatprep.subr.bf16.mxu0 %v4945
        %6663 = vmatpush2.bf16.msra.mxu0 %v4944
        %6664 = vmatprep.subr.bf16.mxu0 %v4938
        %6665 = vmatpush2.bf16.msra.mxu0 %v4937
        %6666 = vmatprep.subr.bf16.mxu0 %v4931
        %6667 = vmatpush2.bf16.msra.mxu0 %v4930
        %6668 = vmatprep.subr.bf16.mxu0 %v4924
        %6669 = vmatpush2.bf16.msra.mxu0 %v4923
        %6670 = vmatprep.subr.bf16.mxu0 %v4917
        %6671 = vmatpush2.bf16.msra.mxu0 %v4916
        %6672 = vmatprep.subr.bf16.mxu0 %v4910
        %6673 = vmatpush2.bf16.msra.mxu0 %v4909
        %6674 = vmatprep.mubr.bf16.mxu0 %v1454
        %6675 = vmatmul.mubr.bf16.gmra.mxu0 %v1453
        %v6676 = vpop.f32.mrf.mxu0
        %v6677 = vadd.f32 %v6634, %v6676
        %v6678 = vpop.f32.mrf.mxu0
        %v6679 = vadd.f32 %v6636, %v6678
        %v6680 = vpop.f32.mrf.mxu0
        %v6681 = vadd.f32 %v6638, %v6680
        %v6682 = vpop.f32.mrf.mxu0
        %v6683 = vadd.f32 %v6640, %v6682
        %6684 = vdwg.mxu0
        %6685 = vmatprep.subr.bf16.mxu0 %v5015
        %6686 = vmatpush1.bf16.msra.mxu0 %v5014
        %6687 = vmatprep.subr.bf16.mxu0 %v5008
        %6688 = vmatpush1.bf16.msra.mxu0 %v5007
        %6689 = vmatprep.subr.bf16.mxu0 %v5001
        %6690 = vmatpush1.bf16.msra.mxu0 %v5000
        %6691 = vmatprep.subr.bf16.mxu0 %v4994
        %6692 = vmatpush1.bf16.msra.mxu0 %v4993
        %6693 = vmatprep.subr.bf16.mxu0 %v4987
        %6694 = vmatpush1.bf16.msra.mxu0 %v4986
        %6695 = vmatprep.subr.bf16.mxu0 %v4980
        %6696 = vmatpush1.bf16.msra.mxu0 %v4979
        %6697 = vmatprep.subr.bf16.mxu0 %v4973
        %6698 = vmatpush1.bf16.msra.mxu0 %v4972
        %6699 = vmatprep.subr.bf16.mxu0 %v4966
        %6700 = vmatpush1.bf16.msra.mxu0 %v4965
        %6701 = vmatprep.subr.bf16.mxu0 %v5071
        %6702 = vmatpush2.bf16.msra.mxu0 %v5070
        %6703 = vmatprep.subr.bf16.mxu0 %v5064
        %6704 = vmatpush2.bf16.msra.mxu0 %v5063
        %6705 = vmatprep.subr.bf16.mxu0 %v5057
        %6706 = vmatpush2.bf16.msra.mxu0 %v5056
        %6707 = vmatprep.subr.bf16.mxu0 %v5050
        %6708 = vmatpush2.bf16.msra.mxu0 %v5049
        %6709 = vmatprep.subr.bf16.mxu0 %v5043
        %6710 = vmatpush2.bf16.msra.mxu0 %v5042
        %6711 = vmatprep.subr.bf16.mxu0 %v5036
        %6712 = vmatpush2.bf16.msra.mxu0 %v5035
        %6713 = vmatprep.subr.bf16.mxu0 %v5029
        %6714 = vmatpush2.bf16.msra.mxu0 %v5028
        %6715 = vmatprep.subr.bf16.mxu0 %v5022
        %6716 = vmatpush2.bf16.msra.mxu0 %v5021
        %6717 = vmatprep.mubr.bf16.mxu0 %v1456
        %6718 = vmatmul.mubr.bf16.gmra.mxu0 %v1455
        %v6719 = vpop.f32.mrf.mxu0
        %v6720 = vadd.f32 %v6677, %v6719
        %v6721 = vpop.f32.mrf.mxu0
        %v6722 = vadd.f32 %v6679, %v6721
        %v6723 = vpop.f32.mrf.mxu0
        %v6724 = vadd.f32 %v6681, %v6723
        %v6725 = vpop.f32.mrf.mxu0
        %v6726 = vadd.f32 %v6683, %v6725
        %6727 = vdwg.mxu0
        %6728 = vmatprep.subr.bf16.mxu0 %v5127
        %6729 = vmatpush1.bf16.msra.mxu0 %v5126
        %6730 = vmatprep.subr.bf16.mxu0 %v5120
        %6731 = vmatpush1.bf16.msra.mxu0 %v5119
        %6732 = vmatprep.subr.bf16.mxu0 %v5113
        %6733 = vmatpush1.bf16.msra.mxu0 %v5112
        %6734 = vmatprep.subr.bf16.mxu0 %v5106
        %6735 = vmatpush1.bf16.msra.mxu0 %v5105
        %6736 = vmatprep.subr.bf16.mxu0 %v5099
        %6737 = vmatpush1.bf16.msra.mxu0 %v5098
        %6738 = vmatprep.subr.bf16.mxu0 %v5092
        %6739 = vmatpush1.bf16.msra.mxu0 %v5091
        %6740 = vmatprep.subr.bf16.mxu0 %v5085
        %6741 = vmatpush1.bf16.msra.mxu0 %v5084
        %6742 = vmatprep.subr.bf16.mxu0 %v5078
        %6743 = vmatpush1.bf16.msra.mxu0 %v5077
        %6744 = vmatprep.subr.bf16.mxu0 %v5183
        %6745 = vmatpush2.bf16.msra.mxu0 %v5182
        %6746 = vmatprep.subr.bf16.mxu0 %v5176
        %6747 = vmatpush2.bf16.msra.mxu0 %v5175
        %6748 = vmatprep.subr.bf16.mxu0 %v5169
        %6749 = vmatpush2.bf16.msra.mxu0 %v5168
        %6750 = vmatprep.subr.bf16.mxu0 %v5162
        %6751 = vmatpush2.bf16.msra.mxu0 %v5161
        %6752 = vmatprep.subr.bf16.mxu0 %v5155
        %6753 = vmatpush2.bf16.msra.mxu0 %v5154
        %6754 = vmatprep.subr.bf16.mxu0 %v5148
        %6755 = vmatpush2.bf16.msra.mxu0 %v5147
        %6756 = vmatprep.subr.bf16.mxu0 %v5141
        %6757 = vmatpush2.bf16.msra.mxu0 %v5140
        %6758 = vmatprep.subr.bf16.mxu0 %v5134
        %6759 = vmatpush2.bf16.msra.mxu0 %v5133
        %6760 = vmatprep.mubr.bf16.mxu0 %v1458
        %6761 = vmatmul.mubr.bf16.gmra.mxu0 %v1457
        %v6762 = vpop.f32.mrf.mxu0
        %v6763 = vadd.f32 %v6720, %v6762
        %v6764 = vpop.f32.mrf.mxu0
        %v6765 = vadd.f32 %v6722, %v6764
        %v6766 = vpop.f32.mrf.mxu0
        %v6767 = vadd.f32 %v6724, %v6766
        %v6768 = vpop.f32.mrf.mxu0
        %v6769 = vadd.f32 %v6726, %v6768
        %6770 = vdwg.mxu0
        %6771 = vmatprep.subr.bf16.mxu0 %v4345
        %6772 = vmatpush1.bf16.msra.mxu0 %v4344
        %6773 = vmatprep.subr.bf16.mxu0 %v4338
        %6774 = vmatpush1.bf16.msra.mxu0 %v4337
        %6775 = vmatprep.subr.bf16.mxu0 %v4331
        %6776 = vmatpush1.bf16.msra.mxu0 %v4330
        %6777 = vmatprep.subr.bf16.mxu0 %v4324
        %6778 = vmatpush1.bf16.msra.mxu0 %v4323
        %6779 = vmatprep.subr.bf16.mxu0 %v4317
        %6780 = vmatpush1.bf16.msra.mxu0 %v4316
        %6781 = vmatprep.subr.bf16.mxu0 %v4310
        %6782 = vmatpush1.bf16.msra.mxu0 %v4309
        %6783 = vmatprep.subr.bf16.mxu0 %v4303
        %6784 = vmatpush1.bf16.msra.mxu0 %v4302
        %6785 = vmatprep.subr.bf16.mxu0 %v4296
        %6786 = vmatpush1.bf16.msra.mxu0 %v4295
        %6787 = vmatprep.subr.bf16.mxu0 %v4401
        %6788 = vmatpush2.bf16.msra.mxu0 %v4400
        %6789 = vmatprep.subr.bf16.mxu0 %v4394
        %6790 = vmatpush2.bf16.msra.mxu0 %v4393
        %6791 = vmatprep.subr.bf16.mxu0 %v4387
        %6792 = vmatpush2.bf16.msra.mxu0 %v4386
        %6793 = vmatprep.subr.bf16.mxu0 %v4380
        %6794 = vmatpush2.bf16.msra.mxu0 %v4379
        %6795 = vmatprep.subr.bf16.mxu0 %v4373
        %6796 = vmatpush2.bf16.msra.mxu0 %v4372
        %6797 = vmatprep.subr.bf16.mxu0 %v4366
        %6798 = vmatpush2.bf16.msra.mxu0 %v4365
        %6799 = vmatprep.subr.bf16.mxu0 %v4359
        %6800 = vmatpush2.bf16.msra.mxu0 %v4358
        %6801 = vmatprep.subr.bf16.mxu0 %v4352
        %6802 = vmatpush2.bf16.msra.mxu0 %v4351
        %6803 = vmatprep.mubr.bf16.mxu0 %v1444
        %6804 = vmatmul.mubr.bf16.gmra.mxu0 %v1443
        %v6805 = vpop.f32.mrf.mxu0
        %v6806 = vadd.f32 0.0, %v6805
        %v6807 = vpop.f32.mrf.mxu0
        %v6808 = vadd.f32 0.0, %v6807
        %v6809 = vpop.f32.mrf.mxu0
        %v6810 = vadd.f32 0.0, %v6809
        %v6811 = vpop.f32.mrf.mxu0
        %v6812 = vadd.f32 0.0, %v6811
        %6813 = vdwg.mxu0
        %6814 = vmatprep.subr.bf16.mxu0 %v4457
        %6815 = vmatpush1.bf16.msra.mxu0 %v4456
        %6816 = vmatprep.subr.bf16.mxu0 %v4450
        %6817 = vmatpush1.bf16.msra.mxu0 %v4449
        %6818 = vmatprep.subr.bf16.mxu0 %v4443
        %6819 = vmatpush1.bf16.msra.mxu0 %v4442
        %6820 = vmatprep.subr.bf16.mxu0 %v4436
        %6821 = vmatpush1.bf16.msra.mxu0 %v4435
        %6822 = vmatprep.subr.bf16.mxu0 %v4429
        %6823 = vmatpush1.bf16.msra.mxu0 %v4428
        %6824 = vmatprep.subr.bf16.mxu0 %v4422
        %6825 = vmatpush1.bf16.msra.mxu0 %v4421
        %6826 = vmatprep.subr.bf16.mxu0 %v4415
        %6827 = vmatpush1.bf16.msra.mxu0 %v4414
        %6828 = vmatprep.subr.bf16.mxu0 %v4408
        %6829 = vmatpush1.bf16.msra.mxu0 %v4407
        %6830 = vmatprep.subr.bf16.mxu0 %v4513
        %6831 = vmatpush2.bf16.msra.mxu0 %v4512
        %6832 = vmatprep.subr.bf16.mxu0 %v4506
        %6833 = vmatpush2.bf16.msra.mxu0 %v4505
        %6834 = vmatprep.subr.bf16.mxu0 %v4499
        %6835 = vmatpush2.bf16.msra.mxu0 %v4498
        %6836 = vmatprep.subr.bf16.mxu0 %v4492
        %6837 = vmatpush2.bf16.msra.mxu0 %v4491
        %6838 = vmatprep.subr.bf16.mxu0 %v4485
        %6839 = vmatpush2.bf16.msra.mxu0 %v4484
        %6840 = vmatprep.subr.bf16.mxu0 %v4478
        %6841 = vmatpush2.bf16.msra.mxu0 %v4477
        %6842 = vmatprep.subr.bf16.mxu0 %v4471
        %6843 = vmatpush2.bf16.msra.mxu0 %v4470
        %6844 = vmatprep.subr.bf16.mxu0 %v4464
        %6845 = vmatpush2.bf16.msra.mxu0 %v4463
        %6846 = vmatprep.mubr.bf16.mxu0 %v1446
        %6847 = vmatmul.mubr.bf16.gmra.mxu0 %v1445
        %v6848 = vpop.f32.mrf.mxu0
        %v6849 = vadd.f32 %v6806, %v6848
        %v6850 = vpop.f32.mrf.mxu0
        %v6851 = vadd.f32 %v6808, %v6850
        %v6852 = vpop.f32.mrf.mxu0
        %v6853 = vadd.f32 %v6810, %v6852
        %v6854 = vpop.f32.mrf.mxu0
        %v6855 = vadd.f32 %v6812, %v6854
        %6856 = vdwg.mxu0
        %6857 = vmatprep.subr.bf16.mxu0 %v4569
        %6858 = vmatpush1.bf16.msra.mxu0 %v4568
        %6859 = vmatprep.subr.bf16.mxu0 %v4562
        %6860 = vmatpush1.bf16.msra.mxu0 %v4561
        %6861 = vmatprep.subr.bf16.mxu0 %v4555
        %6862 = vmatpush1.bf16.msra.mxu0 %v4554
        %6863 = vmatprep.subr.bf16.mxu0 %v4548
        %6864 = vmatpush1.bf16.msra.mxu0 %v4547
        %6865 = vmatprep.subr.bf16.mxu0 %v4541
        %6866 = vmatpush1.bf16.msra.mxu0 %v4540
        %6867 = vmatprep.subr.bf16.mxu0 %v4534
        %6868 = vmatpush1.bf16.msra.mxu0 %v4533
        %6869 = vmatprep.subr.bf16.mxu0 %v4527
        %6870 = vmatpush1.bf16.msra.mxu0 %v4526
        %6871 = vmatprep.subr.bf16.mxu0 %v4520
        %6872 = vmatpush1.bf16.msra.mxu0 %v4519
        %6873 = vmatprep.subr.bf16.mxu0 %v4625
        %6874 = vmatpush2.bf16.msra.mxu0 %v4624
        %6875 = vmatprep.subr.bf16.mxu0 %v4618
        %6876 = vmatpush2.bf16.msra.mxu0 %v4617
        %6877 = vmatprep.subr.bf16.mxu0 %v4611
        %6878 = vmatpush2.bf16.msra.mxu0 %v4610
        %6879 = vmatprep.subr.bf16.mxu0 %v4604
        %6880 = vmatpush2.bf16.msra.mxu0 %v4603
        %6881 = vmatprep.subr.bf16.mxu0 %v4597
        %6882 = vmatpush2.bf16.msra.mxu0 %v4596
        %6883 = vmatprep.subr.bf16.mxu0 %v4590
        %6884 = vmatpush2.bf16.msra.mxu0 %v4589
        %6885 = vmatprep.subr.bf16.mxu0 %v4583
        %6886 = vmatpush2.bf16.msra.mxu0 %v4582
        %6887 = vmatprep.subr.bf16.mxu0 %v4576
        %6888 = vmatpush2.bf16.msra.mxu0 %v4575
        %6889 = vmatprep.mubr.bf16.mxu0 %v1448
        %6890 = vmatmul.mubr.bf16.gmra.mxu0 %v1447
        %v6891 = vpop.f32.mrf.mxu0
        %v6892 = vadd.f32 %v6849, %v6891
        %v6893 = vpop.f32.mrf.mxu0
        %v6894 = vadd.f32 %v6851, %v6893
        %v6895 = vpop.f32.mrf.mxu0
        %v6896 = vadd.f32 %v6853, %v6895
        %v6897 = vpop.f32.mrf.mxu0
        %v6898 = vadd.f32 %v6855, %v6897
        %6899 = vdwg.mxu0
        %6900 = vmatprep.subr.bf16.mxu0 %v4681
        %6901 = vmatpush1.bf16.msra.mxu0 %v4680
        %6902 = vmatprep.subr.bf16.mxu0 %v4674
        %6903 = vmatpush1.bf16.msra.mxu0 %v4673
        %6904 = vmatprep.subr.bf16.mxu0 %v4667
        %6905 = vmatpush1.bf16.msra.mxu0 %v4666
        %6906 = vmatprep.subr.bf16.mxu0 %v4660
        %6907 = vmatpush1.bf16.msra.mxu0 %v4659
        %6908 = vmatprep.subr.bf16.mxu0 %v4653
        %6909 = vmatpush1.bf16.msra.mxu0 %v4652
        %6910 = vmatprep.subr.bf16.mxu0 %v4646
        %6911 = vmatpush1.bf16.msra.mxu0 %v4645
        %6912 = vmatprep.subr.bf16.mxu0 %v4639
        %6913 = vmatpush1.bf16.msra.mxu0 %v4638
        %6914 = vmatprep.subr.bf16.mxu0 %v4632
        %6915 = vmatpush1.bf16.msra.mxu0 %v4631
        %6916 = vmatprep.subr.bf16.mxu0 %v4737
        %6917 = vmatpush2.bf16.msra.mxu0 %v4736
        %6918 = vmatprep.subr.bf16.mxu0 %v4730
        %6919 = vmatpush2.bf16.msra.mxu0 %v4729
        %6920 = vmatprep.subr.bf16.mxu0 %v4723
        %6921 = vmatpush2.bf16.msra.mxu0 %v4722
        %6922 = vmatprep.subr.bf16.mxu0 %v4716
        %6923 = vmatpush2.bf16.msra.mxu0 %v4715
        %6924 = vmatprep.subr.bf16.mxu0 %v4709
        %6925 = vmatpush2.bf16.msra.mxu0 %v4708
        %6926 = vmatprep.subr.bf16.mxu0 %v4702
        %6927 = vmatpush2.bf16.msra.mxu0 %v4701
        %6928 = vmatprep.subr.bf16.mxu0 %v4695
        %6929 = vmatpush2.bf16.msra.mxu0 %v4694
        %6930 = vmatprep.subr.bf16.mxu0 %v4688
        %6931 = vmatpush2.bf16.msra.mxu0 %v4687
        %6932 = vmatprep.mubr.bf16.mxu0 %v1450
        %6933 = vmatmul.mubr.bf16.gmra.mxu0 %v1449
        %v6934 = vpop.f32.mrf.mxu0
        %v6935 = vadd.f32 %v6892, %v6934
        %v6936 = vpop.f32.mrf.mxu0
        %v6937 = vadd.f32 %v6894, %v6936
        %v6938 = vpop.f32.mrf.mxu0
        %v6939 = vadd.f32 %v6896, %v6938
        %v6940 = vpop.f32.mrf.mxu0
        %v6941 = vadd.f32 %v6898, %v6940
        %6942 = vdwg.mxu0
        %6943 = vmatprep.subr.bf16.mxu0 %v4793
        %6944 = vmatpush1.bf16.msra.mxu0 %v4792
        %6945 = vmatprep.subr.bf16.mxu0 %v4786
        %6946 = vmatpush1.bf16.msra.mxu0 %v4785
        %6947 = vmatprep.subr.bf16.mxu0 %v4779
        %6948 = vmatpush1.bf16.msra.mxu0 %v4778
        %6949 = vmatprep.subr.bf16.mxu0 %v4772
        %6950 = vmatpush1.bf16.msra.mxu0 %v4771
        %6951 = vmatprep.subr.bf16.mxu0 %v4765
        %6952 = vmatpush1.bf16.msra.mxu0 %v4764
        %6953 = vmatprep.subr.bf16.mxu0 %v4758
        %6954 = vmatpush1.bf16.msra.mxu0 %v4757
        %6955 = vmatprep.subr.bf16.mxu0 %v4751
        %6956 = vmatpush1.bf16.msra.mxu0 %v4750
        %6957 = vmatprep.subr.bf16.mxu0 %v4744
        %6958 = vmatpush1.bf16.msra.mxu0 %v4743
        %6959 = vmatprep.subr.bf16.mxu0 %v4849
        %6960 = vmatpush2.bf16.msra.mxu0 %v4848
        %6961 = vmatprep.subr.bf16.mxu0 %v4842
        %6962 = vmatpush2.bf16.msra.mxu0 %v4841
        %6963 = vmatprep.subr.bf16.mxu0 %v4835
        %6964 = vmatpush2.bf16.msra.mxu0 %v4834
        %6965 = vmatprep.subr.bf16.mxu0 %v4828
        %6966 = vmatpush2.bf16.msra.mxu0 %v4827
        %6967 = vmatprep.subr.bf16.mxu0 %v4821
        %6968 = vmatpush2.bf16.msra.mxu0 %v4820
        %6969 = vmatprep.subr.bf16.mxu0 %v4814
        %6970 = vmatpush2.bf16.msra.mxu0 %v4813
        %6971 = vmatprep.subr.bf16.mxu0 %v4807
        %6972 = vmatpush2.bf16.msra.mxu0 %v4806
        %6973 = vmatprep.subr.bf16.mxu0 %v4800
        %6974 = vmatpush2.bf16.msra.mxu0 %v4799
        %6975 = vmatprep.mubr.bf16.mxu0 %v1452
        %6976 = vmatmul.mubr.bf16.gmra.mxu0 %v1451
        %v6977 = vpop.f32.mrf.mxu0
        %v6978 = vadd.f32 %v6935, %v6977
        %v6979 = vpop.f32.mrf.mxu0
        %v6980 = vadd.f32 %v6937, %v6979
        %v6981 = vpop.f32.mrf.mxu0
        %v6982 = vadd.f32 %v6939, %v6981
        %v6983 = vpop.f32.mrf.mxu0
        %v6984 = vadd.f32 %v6941, %v6983
        %6985 = vdwg.mxu0
        %6986 = vmatprep.subr.bf16.mxu0 %v4905
        %6987 = vmatpush1.bf16.msra.mxu0 %v4904
        %6988 = vmatprep.subr.bf16.mxu0 %v4898
        %6989 = vmatpush1.bf16.msra.mxu0 %v4897
        %6990 = vmatprep.subr.bf16.mxu0 %v4891
        %6991 = vmatpush1.bf16.msra.mxu0 %v4890
        %6992 = vmatprep.subr.bf16.mxu0 %v4884
        %6993 = vmatpush1.bf16.msra.mxu0 %v4883
        %6994 = vmatprep.subr.bf16.mxu0 %v4877
        %6995 = vmatpush1.bf16.msra.mxu0 %v4876
        %6996 = vmatprep.subr.bf16.mxu0 %v4870
        %6997 = vmatpush1.bf16.msra.mxu0 %v4869
        %6998 = vmatprep.subr.bf16.mxu0 %v4863
        %6999 = vmatpush1.bf16.msra.mxu0 %v4862
        %7000 = vmatprep.subr.bf16.mxu0 %v4856
        %7001 = vmatpush1.bf16.msra.mxu0 %v4855
        %7002 = vmatprep.subr.bf16.mxu0 %v4961
        %7003 = vmatpush2.bf16.msra.mxu0 %v4960
        %7004 = vmatprep.subr.bf16.mxu0 %v4954
        %7005 = vmatpush2.bf16.msra.mxu0 %v4953
        %7006 = vmatprep.subr.bf16.mxu0 %v4947
        %7007 = vmatpush2.bf16.msra.mxu0 %v4946
        %7008 = vmatprep.subr.bf16.mxu0 %v4940
        %7009 = vmatpush2.bf16.msra.mxu0 %v4939
        %7010 = vmatprep.subr.bf16.mxu0 %v4933
        %7011 = vmatpush2.bf16.msra.mxu0 %v4932
        %7012 = vmatprep.subr.bf16.mxu0 %v4926
        %7013 = vmatpush2.bf16.msra.mxu0 %v4925
        %7014 = vmatprep.subr.bf16.mxu0 %v4919
        %7015 = vmatpush2.bf16.msra.mxu0 %v4918
        %7016 = vmatprep.subr.bf16.mxu0 %v4912
        %7017 = vmatpush2.bf16.msra.mxu0 %v4911
        %7018 = vmatprep.mubr.bf16.mxu0 %v1454
        %7019 = vmatmul.mubr.bf16.gmra.mxu0 %v1453
        %v7020 = vpop.f32.mrf.mxu0
        %v7021 = vadd.f32 %v6978, %v7020
        %v7022 = vpop.f32.mrf.mxu0
        %v7023 = vadd.f32 %v6980, %v7022
        %v7024 = vpop.f32.mrf.mxu0
        %v7025 = vadd.f32 %v6982, %v7024
        %v7026 = vpop.f32.mrf.mxu0
        %v7027 = vadd.f32 %v6984, %v7026
        %7028 = vdwg.mxu0
        %7029 = vmatprep.subr.bf16.mxu0 %v5017
        %7030 = vmatpush1.bf16.msra.mxu0 %v5016
        %7031 = vmatprep.subr.bf16.mxu0 %v5010
        %7032 = vmatpush1.bf16.msra.mxu0 %v5009
        %7033 = vmatprep.subr.bf16.mxu0 %v5003
        %7034 = vmatpush1.bf16.msra.mxu0 %v5002
        %7035 = vmatprep.subr.bf16.mxu0 %v4996
        %7036 = vmatpush1.bf16.msra.mxu0 %v4995
        %7037 = vmatprep.subr.bf16.mxu0 %v4989
        %7038 = vmatpush1.bf16.msra.mxu0 %v4988
        %7039 = vmatprep.subr.bf16.mxu0 %v4982
        %7040 = vmatpush1.bf16.msra.mxu0 %v4981
        %7041 = vmatprep.subr.bf16.mxu0 %v4975
        %7042 = vmatpush1.bf16.msra.mxu0 %v4974
        %7043 = vmatprep.subr.bf16.mxu0 %v4968
        %7044 = vmatpush1.bf16.msra.mxu0 %v4967
        %7045 = vmatprep.subr.bf16.mxu0 %v5073
        %7046 = vmatpush2.bf16.msra.mxu0 %v5072
        %7047 = vmatprep.subr.bf16.mxu0 %v5066
        %7048 = vmatpush2.bf16.msra.mxu0 %v5065
        %7049 = vmatprep.subr.bf16.mxu0 %v5059
        %7050 = vmatpush2.bf16.msra.mxu0 %v5058
        %7051 = vmatprep.subr.bf16.mxu0 %v5052
        %7052 = vmatpush2.bf16.msra.mxu0 %v5051
        %7053 = vmatprep.subr.bf16.mxu0 %v5045
        %7054 = vmatpush2.bf16.msra.mxu0 %v5044
        %7055 = vmatprep.subr.bf16.mxu0 %v5038
        %7056 = vmatpush2.bf16.msra.mxu0 %v5037
        %7057 = vmatprep.subr.bf16.mxu0 %v5031
        %7058 = vmatpush2.bf16.msra.mxu0 %v5030
        %7059 = vmatprep.subr.bf16.mxu0 %v5024
        %7060 = vmatpush2.bf16.msra.mxu0 %v5023
        %7061 = vmatprep.mubr.bf16.mxu0 %v1456
        %7062 = vmatmul.mubr.bf16.gmra.mxu0 %v1455
        %v7063 = vpop.f32.mrf.mxu0
        %v7064 = vadd.f32 %v7021, %v7063
        %v7065 = vpop.f32.mrf.mxu0
        %v7066 = vadd.f32 %v7023, %v7065
        %v7067 = vpop.f32.mrf.mxu0
        %v7068 = vadd.f32 %v7025, %v7067
        %v7069 = vpop.f32.mrf.mxu0
        %v7070 = vadd.f32 %v7027, %v7069
        %7071 = vdwg.mxu0
        %7072 = vmatprep.subr.bf16.mxu0 %v5129
        %7073 = vmatpush1.bf16.msra.mxu0 %v5128
        %7074 = vmatprep.subr.bf16.mxu0 %v5122
        %7075 = vmatpush1.bf16.msra.mxu0 %v5121
        %7076 = vmatprep.subr.bf16.mxu0 %v5115
        %7077 = vmatpush1.bf16.msra.mxu0 %v5114
        %7078 = vmatprep.subr.bf16.mxu0 %v5108
        %7079 = vmatpush1.bf16.msra.mxu0 %v5107
        %7080 = vmatprep.subr.bf16.mxu0 %v5101
        %7081 = vmatpush1.bf16.msra.mxu0 %v5100
        %7082 = vmatprep.subr.bf16.mxu0 %v5094
        %7083 = vmatpush1.bf16.msra.mxu0 %v5093
        %7084 = vmatprep.subr.bf16.mxu0 %v5087
        %7085 = vmatpush1.bf16.msra.mxu0 %v5086
        %7086 = vmatprep.subr.bf16.mxu0 %v5080
        %7087 = vmatpush1.bf16.msra.mxu0 %v5079
        %7088 = vmatprep.subr.bf16.mxu0 %v5185
        %7089 = vmatpush2.bf16.msra.mxu0 %v5184
        %7090 = vmatprep.subr.bf16.mxu0 %v5178
        %7091 = vmatpush2.bf16.msra.mxu0 %v5177
        %7092 = vmatprep.subr.bf16.mxu0 %v5171
        %7093 = vmatpush2.bf16.msra.mxu0 %v5170
        %7094 = vmatprep.subr.bf16.mxu0 %v5164
        %7095 = vmatpush2.bf16.msra.mxu0 %v5163
        %7096 = vmatprep.subr.bf16.mxu0 %v5157
        %7097 = vmatpush2.bf16.msra.mxu0 %v5156
        %7098 = vmatprep.subr.bf16.mxu0 %v5150
        %7099 = vmatpush2.bf16.msra.mxu0 %v5149
        %7100 = vmatprep.subr.bf16.mxu0 %v5143
        %7101 = vmatpush2.bf16.msra.mxu0 %v5142
        %7102 = vmatprep.subr.bf16.mxu0 %v5136
        %7103 = vmatpush2.bf16.msra.mxu0 %v5135
        %7104 = vmatprep.mubr.bf16.mxu0 %v1458
        %7105 = vmatmul.mubr.bf16.gmra.mxu0 %v1457
        %v7106 = vpop.f32.mrf.mxu0
        %v7107 = vadd.f32 %v7064, %v7106
        %v7108 = vpop.f32.mrf.mxu0
        %v7109 = vadd.f32 %v7066, %v7108
        %v7110 = vpop.f32.mrf.mxu0
        %v7111 = vadd.f32 %v7068, %v7110
        %v7112 = vpop.f32.mrf.mxu0
        %v7113 = vadd.f32 %v7070, %v7112
        %7114 = vdwg.mxu0
        %7115 = vmatprep.subr.bf16.mxu0 0
        %7116 = vmatpush1.bf16.msra.mxu0 %v4346
        %7117 = vmatprep.subr.bf16.mxu0 0
        %7118 = vmatpush1.bf16.msra.mxu0 %v4339
        %7119 = vmatprep.subr.bf16.mxu0 0
        %7120 = vmatpush1.bf16.msra.mxu0 %v4332
        %7121 = vmatprep.subr.bf16.mxu0 0
        %7122 = vmatpush1.bf16.msra.mxu0 %v4325
        %7123 = vmatprep.subr.bf16.mxu0 0
        %7124 = vmatpush1.bf16.msra.mxu0 %v4318
        %7125 = vmatprep.subr.bf16.mxu0 0
        %7126 = vmatpush1.bf16.msra.mxu0 %v4311
        %7127 = vmatprep.subr.bf16.mxu0 0
        %7128 = vmatpush1.bf16.msra.mxu0 %v4304
        %7129 = vmatprep.subr.bf16.mxu0 0
        %7130 = vmatpush1.bf16.msra.mxu0 %v4297
        %7131 = vmatprep.subr.bf16.mxu0 0
        %7132 = vmatpush2.bf16.msra.mxu0 %v4402
        %7133 = vmatprep.subr.bf16.mxu0 0
        %7134 = vmatpush2.bf16.msra.mxu0 %v4395
        %7135 = vmatprep.subr.bf16.mxu0 0
        %7136 = vmatpush2.bf16.msra.mxu0 %v4388
        %7137 = vmatprep.subr.bf16.mxu0 0
        %7138 = vmatpush2.bf16.msra.mxu0 %v4381
        %7139 = vmatprep.subr.bf16.mxu0 0
        %7140 = vmatpush2.bf16.msra.mxu0 %v4374
        %7141 = vmatprep.subr.bf16.mxu0 0
        %7142 = vmatpush2.bf16.msra.mxu0 %v4367
        %7143 = vmatprep.subr.bf16.mxu0 0
        %7144 = vmatpush2.bf16.msra.mxu0 %v4360
        %7145 = vmatprep.subr.bf16.mxu0 0
        %7146 = vmatpush2.bf16.msra.mxu0 %v4353
        %7147 = vmatprep.mubr.bf16.mxu0 %v1444
        %7148 = vmatmul.mubr.bf16.gmra.mxu0 %v1443
        %v7149 = vpop.f32.mrf.mxu0
        %v7150 = vadd.f32 0.0, %v7149
        %v7151 = vpop.f32.mrf.mxu0
        %v7152 = vpop.f32.mrf.mxu0
        %v7153 = vadd.f32 0.0, %v7152
        %v7154 = vpop.f32.mrf.mxu0
        %7155 = vdwg.mxu0
        %7156 = vmatprep.subr.bf16.mxu0 0
        %7157 = vmatpush1.bf16.msra.mxu0 %v4458
        %7158 = vmatprep.subr.bf16.mxu0 0
        %7159 = vmatpush1.bf16.msra.mxu0 %v4451
        %7160 = vmatprep.subr.bf16.mxu0 0
        %7161 = vmatpush1.bf16.msra.mxu0 %v4444
        %7162 = vmatprep.subr.bf16.mxu0 0
        %7163 = vmatpush1.bf16.msra.mxu0 %v4437
        %7164 = vmatprep.subr.bf16.mxu0 0
        %7165 = vmatpush1.bf16.msra.mxu0 %v4430
        %7166 = vmatprep.subr.bf16.mxu0 0
        %7167 = vmatpush1.bf16.msra.mxu0 %v4423
        %7168 = vmatprep.subr.bf16.mxu0 0
        %7169 = vmatpush1.bf16.msra.mxu0 %v4416
        %7170 = vmatprep.subr.bf16.mxu0 0
        %7171 = vmatpush1.bf16.msra.mxu0 %v4409
        %7172 = vmatprep.subr.bf16.mxu0 0
        %7173 = vmatpush2.bf16.msra.mxu0 %v4514
        %7174 = vmatprep.subr.bf16.mxu0 0
        %7175 = vmatpush2.bf16.msra.mxu0 %v4507
        %7176 = vmatprep.subr.bf16.mxu0 0
        %7177 = vmatpush2.bf16.msra.mxu0 %v4500
        %7178 = vmatprep.subr.bf16.mxu0 0
        %7179 = vmatpush2.bf16.msra.mxu0 %v4493
        %7180 = vmatprep.subr.bf16.mxu0 0
        %7181 = vmatpush2.bf16.msra.mxu0 %v4486
        %7182 = vmatprep.subr.bf16.mxu0 0
        %7183 = vmatpush2.bf16.msra.mxu0 %v4479
        %7184 = vmatprep.subr.bf16.mxu0 0
        %7185 = vmatpush2.bf16.msra.mxu0 %v4472
        %7186 = vmatprep.subr.bf16.mxu0 0
        %7187 = vmatpush2.bf16.msra.mxu0 %v4465
        %7188 = vmatprep.mubr.bf16.mxu0 %v1446
        %7189 = vmatmul.mubr.bf16.gmra.mxu0 %v1445
        %v7190 = vpop.f32.mrf.mxu0
        %v7191 = vadd.f32 %v7150, %v7190
        %v7192 = vpop.f32.mrf.mxu0
        %v7193 = vpop.f32.mrf.mxu0
        %v7194 = vadd.f32 %v7153, %v7193
        %v7195 = vpop.f32.mrf.mxu0
        %7196 = vdwg.mxu0
        %7197 = vmatprep.subr.bf16.mxu0 0
        %7198 = vmatpush1.bf16.msra.mxu0 %v4570
        %7199 = vmatprep.subr.bf16.mxu0 0
        %7200 = vmatpush1.bf16.msra.mxu0 %v4563
        %7201 = vmatprep.subr.bf16.mxu0 0
        %7202 = vmatpush1.bf16.msra.mxu0 %v4556
        %7203 = vmatprep.subr.bf16.mxu0 0
        %7204 = vmatpush1.bf16.msra.mxu0 %v4549
        %7205 = vmatprep.subr.bf16.mxu0 0
        %7206 = vmatpush1.bf16.msra.mxu0 %v4542
        %7207 = vmatprep.subr.bf16.mxu0 0
        %7208 = vmatpush1.bf16.msra.mxu0 %v4535
        %7209 = vmatprep.subr.bf16.mxu0 0
        %7210 = vmatpush1.bf16.msra.mxu0 %v4528
        %7211 = vmatprep.subr.bf16.mxu0 0
        %7212 = vmatpush1.bf16.msra.mxu0 %v4521
        %7213 = vmatprep.subr.bf16.mxu0 0
        %7214 = vmatpush2.bf16.msra.mxu0 %v4626
        %7215 = vmatprep.subr.bf16.mxu0 0
        %7216 = vmatpush2.bf16.msra.mxu0 %v4619
        %7217 = vmatprep.subr.bf16.mxu0 0
        %7218 = vmatpush2.bf16.msra.mxu0 %v4612
        %7219 = vmatprep.subr.bf16.mxu0 0
        %7220 = vmatpush2.bf16.msra.mxu0 %v4605
        %7221 = vmatprep.subr.bf16.mxu0 0
        %7222 = vmatpush2.bf16.msra.mxu0 %v4598
        %7223 = vmatprep.subr.bf16.mxu0 0
        %7224 = vmatpush2.bf16.msra.mxu0 %v4591
        %7225 = vmatprep.subr.bf16.mxu0 0
        %7226 = vmatpush2.bf16.msra.mxu0 %v4584
        %7227 = vmatprep.subr.bf16.mxu0 0
        %7228 = vmatpush2.bf16.msra.mxu0 %v4577
        %7229 = vmatprep.mubr.bf16.mxu0 %v1448
        %7230 = vmatmul.mubr.bf16.gmra.mxu0 %v1447
        %v7231 = vpop.f32.mrf.mxu0
        %v7232 = vadd.f32 %v7191, %v7231
        %v7233 = vpop.f32.mrf.mxu0
        %v7234 = vpop.f32.mrf.mxu0
        %v7235 = vadd.f32 %v7194, %v7234
        %v7236 = vpop.f32.mrf.mxu0
        %7237 = vdwg.mxu0
        %7238 = vmatprep.subr.bf16.mxu0 0
        %7239 = vmatpush1.bf16.msra.mxu0 %v4682
        %7240 = vmatprep.subr.bf16.mxu0 0
        %7241 = vmatpush1.bf16.msra.mxu0 %v4675
        %7242 = vmatprep.subr.bf16.mxu0 0
        %7243 = vmatpush1.bf16.msra.mxu0 %v4668
        %7244 = vmatprep.subr.bf16.mxu0 0
        %7245 = vmatpush1.bf16.msra.mxu0 %v4661
        %7246 = vmatprep.subr.bf16.mxu0 0
        %7247 = vmatpush1.bf16.msra.mxu0 %v4654
        %7248 = vmatprep.subr.bf16.mxu0 0
        %7249 = vmatpush1.bf16.msra.mxu0 %v4647
        %7250 = vmatprep.subr.bf16.mxu0 0
        %7251 = vmatpush1.bf16.msra.mxu0 %v4640
        %7252 = vmatprep.subr.bf16.mxu0 0
        %7253 = vmatpush1.bf16.msra.mxu0 %v4633
        %7254 = vmatprep.subr.bf16.mxu0 0
        %7255 = vmatpush2.bf16.msra.mxu0 %v4738
        %7256 = vmatprep.subr.bf16.mxu0 0
        %7257 = vmatpush2.bf16.msra.mxu0 %v4731
        %7258 = vmatprep.subr.bf16.mxu0 0
        %7259 = vmatpush2.bf16.msra.mxu0 %v4724
        %7260 = vmatprep.subr.bf16.mxu0 0
        %7261 = vmatpush2.bf16.msra.mxu0 %v4717
        %7262 = vmatprep.subr.bf16.mxu0 0
        %7263 = vmatpush2.bf16.msra.mxu0 %v4710
        %7264 = vmatprep.subr.bf16.mxu0 0
        %7265 = vmatpush2.bf16.msra.mxu0 %v4703
        %7266 = vmatprep.subr.bf16.mxu0 0
        %7267 = vmatpush2.bf16.msra.mxu0 %v4696
        %7268 = vmatprep.subr.bf16.mxu0 0
        %7269 = vmatpush2.bf16.msra.mxu0 %v4689
        %7270 = vmatprep.mubr.bf16.mxu0 %v1450
        %7271 = vmatmul.mubr.bf16.gmra.mxu0 %v1449
        %v7272 = vpop.f32.mrf.mxu0
        %v7273 = vadd.f32 %v7232, %v7272
        %v7274 = vpop.f32.mrf.mxu0
        %v7275 = vpop.f32.mrf.mxu0
        %v7276 = vadd.f32 %v7235, %v7275
        %v7277 = vpop.f32.mrf.mxu0
        %7278 = vdwg.mxu0
        %7279 = vmatprep.subr.bf16.mxu0 0
        %7280 = vmatpush1.bf16.msra.mxu0 %v4794
        %7281 = vmatprep.subr.bf16.mxu0 0
        %7282 = vmatpush1.bf16.msra.mxu0 %v4787
        %7283 = vmatprep.subr.bf16.mxu0 0
        %7284 = vmatpush1.bf16.msra.mxu0 %v4780
        %7285 = vmatprep.subr.bf16.mxu0 0
        %7286 = vmatpush1.bf16.msra.mxu0 %v4773
        %7287 = vmatprep.subr.bf16.mxu0 0
        %7288 = vmatpush1.bf16.msra.mxu0 %v4766
        %7289 = vmatprep.subr.bf16.mxu0 0
        %7290 = vmatpush1.bf16.msra.mxu0 %v4759
        %7291 = vmatprep.subr.bf16.mxu0 0
        %7292 = vmatpush1.bf16.msra.mxu0 %v4752
        %7293 = vmatprep.subr.bf16.mxu0 0
        %7294 = vmatpush1.bf16.msra.mxu0 %v4745
        %7295 = vmatprep.subr.bf16.mxu0 0
        %7296 = vmatpush2.bf16.msra.mxu0 %v4850
        %7297 = vmatprep.subr.bf16.mxu0 0
        %7298 = vmatpush2.bf16.msra.mxu0 %v4843
        %7299 = vmatprep.subr.bf16.mxu0 0
        %7300 = vmatpush2.bf16.msra.mxu0 %v4836
        %7301 = vmatprep.subr.bf16.mxu0 0
        %7302 = vmatpush2.bf16.msra.mxu0 %v4829
        %7303 = vmatprep.subr.bf16.mxu0 0
        %7304 = vmatpush2.bf16.msra.mxu0 %v4822
        %7305 = vmatprep.subr.bf16.mxu0 0
        %7306 = vmatpush2.bf16.msra.mxu0 %v4815
        %7307 = vmatprep.subr.bf16.mxu0 0
        %7308 = vmatpush2.bf16.msra.mxu0 %v4808
        %7309 = vmatprep.subr.bf16.mxu0 0
        %7310 = vmatpush2.bf16.msra.mxu0 %v4801
        %7311 = vmatprep.mubr.bf16.mxu0 %v1452
        %7312 = vmatmul.mubr.bf16.gmra.mxu0 %v1451
        %v7313 = vpop.f32.mrf.mxu0
        %v7314 = vadd.f32 %v7273, %v7313
        %v7315 = vpop.f32.mrf.mxu0
        %v7316 = vpop.f32.mrf.mxu0
        %v7317 = vadd.f32 %v7276, %v7316
        %v7318 = vpop.f32.mrf.mxu0
        %7319 = vdwg.mxu0
        %7320 = vmatprep.subr.bf16.mxu0 0
        %7321 = vmatpush1.bf16.msra.mxu0 %v4906
        %7322 = vmatprep.subr.bf16.mxu0 0
        %7323 = vmatpush1.bf16.msra.mxu0 %v4899
        %7324 = vmatprep.subr.bf16.mxu0 0
        %7325 = vmatpush1.bf16.msra.mxu0 %v4892
        %7326 = vmatprep.subr.bf16.mxu0 0
        %7327 = vmatpush1.bf16.msra.mxu0 %v4885
        %7328 = vmatprep.subr.bf16.mxu0 0
        %7329 = vmatpush1.bf16.msra.mxu0 %v4878
        %7330 = vmatprep.subr.bf16.mxu0 0
        %7331 = vmatpush1.bf16.msra.mxu0 %v4871
        %7332 = vmatprep.subr.bf16.mxu0 0
        %7333 = vmatpush1.bf16.msra.mxu0 %v4864
        %7334 = vmatprep.subr.bf16.mxu0 0
        %7335 = vmatpush1.bf16.msra.mxu0 %v4857
        %7336 = vmatprep.subr.bf16.mxu0 0
        %7337 = vmatpush2.bf16.msra.mxu0 %v4962
        %7338 = vmatprep.subr.bf16.mxu0 0
        %7339 = vmatpush2.bf16.msra.mxu0 %v4955
        %7340 = vmatprep.subr.bf16.mxu0 0
        %7341 = vmatpush2.bf16.msra.mxu0 %v4948
        %7342 = vmatprep.subr.bf16.mxu0 0
        %7343 = vmatpush2.bf16.msra.mxu0 %v4941
        %7344 = vmatprep.subr.bf16.mxu0 0
        %7345 = vmatpush2.bf16.msra.mxu0 %v4934
        %7346 = vmatprep.subr.bf16.mxu0 0
        %7347 = vmatpush2.bf16.msra.mxu0 %v4927
        %7348 = vmatprep.subr.bf16.mxu0 0
        %7349 = vmatpush2.bf16.msra.mxu0 %v4920
        %7350 = vmatprep.subr.bf16.mxu0 0
        %7351 = vmatpush2.bf16.msra.mxu0 %v4913
        %7352 = vmatprep.mubr.bf16.mxu0 %v1454
        %7353 = vmatmul.mubr.bf16.gmra.mxu0 %v1453
        %v7354 = vpop.f32.mrf.mxu0
        %v7355 = vadd.f32 %v7314, %v7354
        %v7356 = vpop.f32.mrf.mxu0
        %v7357 = vpop.f32.mrf.mxu0
        %v7358 = vadd.f32 %v7317, %v7357
        %v7359 = vpop.f32.mrf.mxu0
        %7360 = vdwg.mxu0
        %7361 = vmatprep.subr.bf16.mxu0 0
        %7362 = vmatpush1.bf16.msra.mxu0 %v5018
        %7363 = vmatprep.subr.bf16.mxu0 0
        %7364 = vmatpush1.bf16.msra.mxu0 %v5011
        %7365 = vmatprep.subr.bf16.mxu0 0
        %7366 = vmatpush1.bf16.msra.mxu0 %v5004
        %7367 = vmatprep.subr.bf16.mxu0 0
        %7368 = vmatpush1.bf16.msra.mxu0 %v4997
        %7369 = vmatprep.subr.bf16.mxu0 0
        %7370 = vmatpush1.bf16.msra.mxu0 %v4990
        %7371 = vmatprep.subr.bf16.mxu0 0
        %7372 = vmatpush1.bf16.msra.mxu0 %v4983
        %7373 = vmatprep.subr.bf16.mxu0 0
        %7374 = vmatpush1.bf16.msra.mxu0 %v4976
        %7375 = vmatprep.subr.bf16.mxu0 0
        %7376 = vmatpush1.bf16.msra.mxu0 %v4969
        %7377 = vmatprep.subr.bf16.mxu0 0
        %7378 = vmatpush2.bf16.msra.mxu0 %v5074
        %7379 = vmatprep.subr.bf16.mxu0 0
        %7380 = vmatpush2.bf16.msra.mxu0 %v5067
        %7381 = vmatprep.subr.bf16.mxu0 0
        %7382 = vmatpush2.bf16.msra.mxu0 %v5060
        %7383 = vmatprep.subr.bf16.mxu0 0
        %7384 = vmatpush2.bf16.msra.mxu0 %v5053
        %7385 = vmatprep.subr.bf16.mxu0 0
        %7386 = vmatpush2.bf16.msra.mxu0 %v5046
        %7387 = vmatprep.subr.bf16.mxu0 0
        %7388 = vmatpush2.bf16.msra.mxu0 %v5039
        %7389 = vmatprep.subr.bf16.mxu0 0
        %7390 = vmatpush2.bf16.msra.mxu0 %v5032
        %7391 = vmatprep.subr.bf16.mxu0 0
        %7392 = vmatpush2.bf16.msra.mxu0 %v5025
        %7393 = vmatprep.mubr.bf16.mxu0 %v1456
        %7394 = vmatmul.mubr.bf16.gmra.mxu0 %v1455
        %v7395 = vpop.f32.mrf.mxu0
        %v7396 = vadd.f32 %v7355, %v7395
        %v7397 = vpop.f32.mrf.mxu0
        %v7398 = vpop.f32.mrf.mxu0
        %v7399 = vadd.f32 %v7358, %v7398
        %v7400 = vpop.f32.mrf.mxu0
        %7401 = vdwg.mxu0
        %7402 = vmatprep.subr.bf16.mxu0 0
        %7403 = vmatpush1.bf16.msra.mxu0 %v5130
        %7404 = vmatprep.subr.bf16.mxu0 0
        %7405 = vmatpush1.bf16.msra.mxu0 %v5123
        %7406 = vmatprep.subr.bf16.mxu0 0
        %7407 = vmatpush1.bf16.msra.mxu0 %v5116
        %7408 = vmatprep.subr.bf16.mxu0 0
        %7409 = vmatpush1.bf16.msra.mxu0 %v5109
        %7410 = vmatprep.subr.bf16.mxu0 0
        %7411 = vmatpush1.bf16.msra.mxu0 %v5102
        %7412 = vmatprep.subr.bf16.mxu0 0
        %7413 = vmatpush1.bf16.msra.mxu0 %v5095
        %7414 = vmatprep.subr.bf16.mxu0 0
        %7415 = vmatpush1.bf16.msra.mxu0 %v5088
        %7416 = vmatprep.subr.bf16.mxu0 0
        %7417 = vmatpush1.bf16.msra.mxu0 %v5081
        %7418 = vmatprep.subr.bf16.mxu0 0
        %7419 = vmatpush2.bf16.msra.mxu0 %v5186
        %7420 = vmatprep.subr.bf16.mxu0 0
        %7421 = vmatpush2.bf16.msra.mxu0 %v5179
        %7422 = vmatprep.subr.bf16.mxu0 0
        %7423 = vmatpush2.bf16.msra.mxu0 %v5172
        %7424 = vmatprep.subr.bf16.mxu0 0
        %7425 = vmatpush2.bf16.msra.mxu0 %v5165
        %7426 = vmatprep.subr.bf16.mxu0 0
        %7427 = vmatpush2.bf16.msra.mxu0 %v5158
        %7428 = vmatprep.subr.bf16.mxu0 0
        %7429 = vmatpush2.bf16.msra.mxu0 %v5151
        %7430 = vmatprep.subr.bf16.mxu0 0
        %7431 = vmatpush2.bf16.msra.mxu0 %v5144
        %7432 = vmatprep.subr.bf16.mxu0 0
        %7433 = vmatpush2.bf16.msra.mxu0 %v5137
        %7434 = vmatprep.mubr.bf16.mxu0 %v1458
        %7435 = vmatmul.mubr.bf16.gmra.mxu0 %v1457
        %v7436 = vpop.f32.mrf.mxu0
        %v7437 = vadd.f32 %v7396, %v7436
        %v7438 = vpop.f32.mrf.mxu0
        %v7439 = vpop.f32.mrf.mxu0
        %v7440 = vadd.f32 %v7399, %v7439
        %v7441 = vpop.f32.mrf.mxu0
        %7442 = vdwg.mxu0
        %v7443 = vadd.f32 %v341, %v6419
        %v7444 = vadd.f32 %v342, %v6421
        %v7445 = vadd.f32 %v343, %v6763
        %v7446 = vadd.f32 %v344, %v6765
        %v7447 = vadd.f32 %v345, %v7107
        %v7448 = vadd.f32 %v346, %v7109
        %v7449 = vadd.f32 %v347, %v7437
        %v7450 = vadd.f32 %v348, %v6423
        %v7451 = vadd.f32 %v349, %v6425
        %v7452 = vadd.f32 %v350, %v6767
        %v7453 = vadd.f32 %v351, %v6769
        %v7454 = vadd.f32 %v352, %v7111
        %v7455 = vadd.f32 %v353, %v7113
        %v7456 = vadd.f32 %v354, %v7440
        %7457 = vst [vmem:[#allocation2] sm:$0xff] %v7443
        %7458 = vst [vmem:[#allocation2 + $0x8] sm:$0xff] %v7444
        %7459 = vst [vmem:[#allocation2 + $0x10] sm:$0xff] %v7445
        %7460 = vst [vmem:[#allocation2 + $0x18] sm:$0xff] %v7446
        %7461 = vst [vmem:[#allocation2 + $0x20] sm:$0xff] %v7447
        %7462 = vst [vmem:[#allocation2 + $0x28] sm:$0xff] %v7448
        %7463 = vst [vmem:[#allocation2 + $0x30] sm:$0xff] %v7449
        %7464 = vst [vmem:[#allocation2 + $0x38] sm:$0xff] %v7450
        %7465 = vst [vmem:[#allocation2 + $0x40] sm:$0xff] %v7451
        %7466 = vst [vmem:[#allocation2 + $0x48] sm:$0xff] %v7452
        %7467 = vst [vmem:[#allocation2 + $0x50] sm:$0xff] %v7453
        %7468 = vst [vmem:[#allocation2 + $0x58] sm:$0xff] %v7454
        %7469 = vst [vmem:[#allocation2 + $0x60] sm:$0xff] %v7455
        %7470 = vst [vmem:[#allocation2 + $0x68] sm:$0xff] %v7456
        %p7471 = scmp.eq.s32.totalorder %s25, 1
        // Predicated region
        $region68: #{cwyxx_forward.2} parent=50 // pred_check
          %p7472 = pneg %p7471
        $region69: #{cwyxx_forward.2} parent=50 // pred_check_branch
          %7474 = sbr.rel (%p7472) target = $region71
        $region70: #{cwyxx_forward.2} parent=50 // pred_region
          %v7475 = vld [vmem:[#allocation2] sm:$0xff]
          %v7476 = vld [vmem:[#allocation2 + $0x8] sm:$0xff]
          %v7477 = vld [vmem:[#allocation2 + $0x10] sm:$0xff]
          %v7478 = vld [vmem:[#allocation2 + $0x18] sm:$0xff]
          %v7479 = vld [vmem:[#allocation2 + $0x20] sm:$0xff]
          %v7480 = vld [vmem:[#allocation2 + $0x28] sm:$0xff]
          %v7481 = vld [vmem:[#allocation2 + $0x30] sm:$0xff]
          %v7482 = vld [vmem:[#allocation2 + $0x38] sm:$0xff]
          %v7483 = vld [vmem:[#allocation2 + $0x40] sm:$0xff]
          %v7484 = vld [vmem:[#allocation2 + $0x48] sm:$0xff]
          %v7485 = vld [vmem:[#allocation2 + $0x50] sm:$0xff]
          %v7486 = vld [vmem:[#allocation2 + $0x58] sm:$0xff]
          %v7487 = vld [vmem:[#allocation2 + $0x60] sm:$0xff]
          %v7488 = vld [vmem:[#allocation2 + $0x68] sm:$0xff]
          %v7489 = vld [vmem:[%s283] sm:$0xff]
          %v7491 = vlaneseq
          %v7492 = vshrl.u32 %v7491, 7
          %v7493 = vsub.s32 0, %v7492
          %v7494 = vrot.slane %v7489, %v7493
          %v7495 = vlaneseq
          %v7496 = vshrl.u32 %v7495, 7
          %v7497 = vsub.s32 1, %v7496
          %v7498 = vrot.slane %v7489, %v7497
          %v7499 = vlaneseq
          %v7500 = vshrl.u32 %v7499, 7
          %v7501 = vsub.s32 2, %v7500
          %v7502 = vrot.slane %v7489, %v7501
          %v7503 = vlaneseq
          %v7504 = vshrl.u32 %v7503, 7
          %v7505 = vsub.s32 3, %v7504
          %v7506 = vrot.slane %v7489, %v7505
          %v7507 = vlaneseq
          %v7508 = vshrl.u32 %v7507, 7
          %v7509 = vsub.s32 4, %v7508
          %v7510 = vrot.slane %v7489, %v7509
          %v7511 = vlaneseq
          %v7512 = vshrl.u32 %v7511, 7
          %v7513 = vsub.s32 5, %v7512
          %v7514 = vrot.slane %v7489, %v7513
          %v7515 = vlaneseq
          %v7516 = vshrl.u32 %v7515, 7
          %v7517 = vsub.s32 6, %v7516
          %v7518 = vrot.slane %v7489, %v7517
          %v7526 = vadd.f32 %v7475, %v7494
          %v7527 = vadd.f32 %v7476, %v7498
          %v7528 = vadd.f32 %v7477, %v7502
          %v7529 = vadd.f32 %v7478, %v7506
          %v7530 = vadd.f32 %v7479, %v7510
          %v7531 = vadd.f32 %v7480, %v7514
          %v7532 = vadd.f32 %v7481, %v7518
          %v7533 = vadd.f32 %v7482, %v7494
          %v7534 = vadd.f32 %v7483, %v7498
          %v7535 = vadd.f32 %v7484, %v7502
          %v7536 = vadd.f32 %v7485, %v7506
          %v7537 = vadd.f32 %v7486, %v7510
          %v7538 = vadd.f32 %v7487, %v7514
          %v7539 = vadd.f32 %v7488, %v7518
          %v7540 = vmax.f32 %v7526, 0.0
          %v7541 = vmax.f32 %v7527, 0.0
          %v7542 = vmax.f32 %v7528, 0.0
          %v7543 = vmax.f32 %v7529, 0.0
          %v7544 = vmax.f32 %v7530, 0.0
          %v7545 = vmax.f32 %v7531, 0.0
          %v7546 = vmax.f32 %v7532, 0.0
          %v7547 = vmax.f32 %v7533, 0.0
          %v7548 = vmax.f32 %v7534, 0.0
          %v7549 = vmax.f32 %v7535, 0.0
          %v7550 = vmax.f32 %v7536, 0.0
          %v7551 = vmax.f32 %v7537, 0.0
          %v7552 = vmax.f32 %v7538, 0.0
          %v7553 = vmax.f32 %v7539, 0.0
          %v7554 = vpack.c.bf16 %v7547, %v7540
          %v7555 = vpack.c.bf16 %v7548, %v7541
          %v7556 = vpack.c.bf16 %v7549, %v7542
          %v7557 = vpack.c.bf16 %v7550, %v7543
          %v7558 = vpack.c.bf16 %v7551, %v7544
          %v7559 = vpack.c.bf16 %v7552, %v7545
          %v7560 = vpack.c.bf16 %v7553, %v7546
          %v7568 = vunpack.c.l.b16 %v7554
          %v7569 = vunpack.c.l.b16 %v7555
          %v7570 = vunpack.c.l.b16 %v7556
          %v7571 = vunpack.c.l.b16 %v7557
          %v7572 = vunpack.c.l.b16 %v7558
          %v7573 = vunpack.c.l.b16 %v7559
          %v7574 = vunpack.c.l.b16 %v7560
          %v7575 = vunpack.c.h.b16 %v7554
          %v7576 = vunpack.c.h.b16 %v7555
          %v7577 = vunpack.c.h.b16 %v7556
          %v7578 = vunpack.c.h.b16 %v7557
          %v7579 = vunpack.c.h.b16 %v7558
          %v7580 = vunpack.c.h.b16 %v7559
          %v7581 = vunpack.c.h.b16 %v7560
          %v7582 = vpack.c.b16 %v7569, %v7568
          %v7583 = vpack.c.b16 %v7571, %v7570
          %v7584 = vpack.c.b16 %v7573, %v7572
          %v7585 = vpack.c.b16 %v7574, %v7574
          %v7586 = vpack.c.b16 %v7576, %v7575
          %v7587 = vpack.c.b16 %v7578, %v7577
          %v7588 = vpack.c.b16 %v7580, %v7579
          %v7589 = vpack.c.b16 %v7581, %v7581
          %7598 = vst [vmem:[%s321] sm:$0xff] %v7582
          %7599 = vst [vmem:[%s321 + $0x8] sm:$0xff] %v7583
          %7600 = vst [vmem:[%s321 + $0x10] sm:$0xff] %v7584
          %7601 = vst [vmem:[%s321 + $0x18] sm:$0xf] %v7585
          %7602 = vst [vmem:[%s321 + $0x1c] sm:$0xff] %v7586
          %7603 = vst [vmem:[%s321 + $0x24] sm:$0xff] %v7587
          %7604 = vst [vmem:[%s321 + $0x2c] sm:$0xff] %v7588
          %7605 = vst [vmem:[%s321 + $0x34] sm:$0xf] %v7589
        $region71: #{cwyxx_forward.2} parent=50 // pred_fallthru
          _
        %p7606 = scmp.lt.s32.totalorder %s24, 1
        %s7607 = scalar_select %p7606, %s24, 1
        %s7608 = smul.addr %s7607, 14
        %s7609 = smul.addr %s7608, 4
        %s7610 = scalar_lea.vmem %s3, %s7609
        // Predicated region
        $region72: #{cwyxx_forward.2} parent=50 // pred_check
          %p7611 = pneg %p132
        $region73: #{cwyxx_forward.2} parent=50 // pred_check_branch
          %7613 = sbr.rel (%p7611) target = $region75
        $region74: #{cwyxx_forward.2} parent=50 // pred_region
          _
        $region75: #{cwyxx_forward.2} parent=50 // pred_fallthru
          _
      $region51: #{cwyxx_forward.2} parent=5 // pred_fallthru
        _
      %p7614 = scmp.le.s32.totalorder 2, %s15
      // Predicated region
      $region76: #{cwyxx_forward.2} parent=5 // pred_check
        %p7615 = pneg %p7614
      $region77: #{cwyxx_forward.2} parent=5 // pred_check_branch
        %7617 = sbr.rel (%p7615) target = $region79
      $region78: #{cwyxx_forward.2} parent=5 // pred_region
        %s7618 = ssub.s32 %s15, 2
        // Predicated region
        $region80: #{cwyxx_forward.2} parent=78 // pred_check
          %p7619 = pneg %p138
        $region81: #{cwyxx_forward.2} parent=78 // pred_check_branch
          %7621 = sbr.rel (%p7619) target = $region83
        $region82: #{cwyxx_forward.2} parent=78 // pred_region
          %p7622 = scmp.lt.s32.totalorder %s26, 1
          %s7623 = scalar_select %p7622, %s26, 1
          %s7624 = smul.addr %s7623, 14
          %s7625 = smul.addr %s7624, 4
          %s7626 = scalar_lea.vmem %s3, %s7625
        $region83: #{cwyxx_forward.2} parent=78 // pred_fallthru
          _
      $region79: #{cwyxx_forward.2} parent=5 // pred_fallthru
        _
    $region6: #{cwyxx_forward.2} parent=1 // loop_footer
      %s19 = sadd.s32 1, %s15
    $region7: #{cwyxx_forward.2} parent=1 // loop_footer_branch
      %14 = sbr.rel target = $region3
    $region8: #{cwyxx_forward.2} parent=1 // loop_exit
      _
    %7627 = vsyncpa [#allocation5], 1
    %s7628 = scalar_lea.sflag [#allocation5], 1
    %7629 = vsyncpa %s7628, 1
    %7630 = vsyncpa [#allocation7], 1
    %s7631 = scalar_lea.sflag [#allocation7], 1
    %7632 = vsyncpa %s7631, 1

</llo_original>
